<compile_context>
chip_gen: v6e
topology: v6e:2x2x1
jax: 0.10.0
libtpu: 0.0.40
codegen_flags: <defaults>
</compile_context>

<pallas_src>
import jax
import jax.numpy as jnp
import numpy as np
from jax.experimental import pallas as pl
from jax.experimental.pallas import tpu as pltpu


def _sigmoid(x):
    # Exact f32 formula (matches torch.sigmoid); same formula is used in the
    # reference so only matmul rounding differentiates kernel vs. reference.
    return 1.0 / (1.0 + jnp.exp(-x))


def _split(x):
    """Split an f32 array into bf16 (hi, lo) for 3-pass (bf16_3x) matmuls."""
    if isinstance(x, tuple):
        return x
    hi = x.astype(jnp.bfloat16)
    lo = (x - hi.astype(jnp.float32)).astype(jnp.bfloat16)
    return hi, lo


def _mm(a, b):
    return jnp.dot(a, b, preferred_element_type=jnp.float32)


def _dot3(a, b):
    """f32-accurate matmul as 3 bf16 MXU passes (drops only lo*lo, ~2^-16 rel)."""
    ah, al = _split(a)
    bh, bl = _split(b)
    return _mm(ah, bh) + (_mm(ah, bl) + _mm(al, bh))


def _dot2_rhs_exact(a, b_bf16):
    """Like _dot3 but the rhs is exactly representable in bf16 (e.g. 0.25)."""
    ah, al = _split(a)
    return _mm(ah, b_bf16) + _mm(al, b_bf16)


def _make_lenet_kernel(fold_pool1):
    def kernel(xcol_ref, g1_ref, b1_ref, *rest):
        if fold_pool1:
            (g2_ref, b2_ref, f1_ref, f1b_ref,
             f2_ref, f2b_ref, f3_ref, f3b_ref, out_ref) = rest
            p1_ref = None
        else:
            (p1_ref, g2_ref, b2_ref, f1_ref, f1b_ref,
             f2_ref, f2b_ref, f3_ref, f3b_ref, out_ref) = rest

        Bt = out_ref.shape[0]

        # Weights split once per tile into bf16 (hi, lo) pairs (cheap VPU work).
        g1s = _split(g1_ref[...])
        g2s = tuple(_split(g2_ref[k]) for k in range(5))
        f1s = tuple(_split(f1_ref[q]) for q in range(5))
        f2s = _split(f2_ref[...])
        f3s = _split(f3_ref[...])
        b1v = b1_ref[...]
        b2v = b2_ref[...]

        # ---- conv1 (5x5, padding pre-applied) + sigmoid ------------------------
        # One matmul per output-row residue class c = h_out mod 4; the 5 kh taps
        # are folded into K (im2col done in the wrapper).  Rows = (j, b).
        def conv1_class(c):
            lhs = xcol_ref[c].reshape(7 * Bt, 160)
            return _sigmoid(_dot3(lhs, g1s) + b1v)           # (7*Bt, 168)

        # avg-pool #1, H direction: sum the two row classes feeding each pooled row
        s_e = conv1_class(0) + conv1_class(1)                # pooled rows 2j
        s_o = conv1_class(2) + conv1_class(3)                # pooled rows 2j+1
        if not fold_pool1:
            # v5e path: W-halving (+ the 0.25) as an explicit matmul (P1 is exact
            # in bf16, so a 2-pass dot suffices).
            p1b = p1_ref[...].astype(jnp.bfloat16)
            s_e = _dot2_rhs_exact(s_e, p1b)                  # (7*Bt, 84)
            s_o = _dot2_rhs_exact(s_o, p1b)
        # else: pool1's W-halving and the 0.25 are folded into g2.

        # ---- conv2 (5x5 valid) + sigmoid, accumulated over the 5 kh taps -------
        def conv2_rows(p):                                   # output rows 2i + p
            acc = None
            for kh in range(5):
                src = s_e if (kh + p) % 2 == 0 else s_o
                a = (kh + p) // 2
                d = _dot3(src[a * Bt:(a + 5) * Bt, :], g2s[kh])
                acc = d if acc is None else acc + d
            return _sigmoid(acc + b2v)                       # (5*Bt, 160)

        # avg-pool #2, H direction (W direction + 0.25 folded into fc1 weights)
        h2 = conv2_rows(0) + conv2_rows(1)                   # rows = (pool2 row q, b)

        # ---- fc1 (400 -> 120): 5 accumulated (Bt, 160) @ (160, 120) matmuls ----
        z = None
        for q in range(5):
            d = _dot3(h2[q * Bt:(q + 1) * Bt, :], f1s[q])
            z = d if z is None else z + d
        z = _sigmoid(z + f1b_ref[...])

        # ---- fc2 (120 -> 84) + sigmoid, fc3 (84 -> 10, lane-padded to 128) -----
        z = _sigmoid(_dot3(z, f2s) + f2b_ref[...])
        out_ref[...] = _dot3(z, f3s) + f3b_ref[...]          # dense 128-lane store
    return kernel


def _build_kernel_params(params, fold_pool1):
    """Re-layout PyTorch-shaped parameters for the kernel (pure glue, exact)."""
    w1, b1, w2, b2, f1w, f1b, f2w, f2b, f3w, f3b = params
    f32 = jnp.float32

    # conv1 -> single Toeplitz-over-W matmul weight with the 5 kh taps in K:
    #   G1[kh*32 + w_in, w_out*6 + co] = W1[co, 0, kh, w_in - w_out]
    S1 = np.zeros((5, 32, 28), np.float32)
    for kw in range(5):
        for wo in range(28):
            S1[kw, wo + kw, wo] = 1.0
    S1 = jnp.asarray(S1)
    w1t = jnp.transpose(w1[:, 0, :, :], (1, 2, 0)).astype(f32)            # (kh,kw,co)
    G1 = jnp.sum(S1[None, :, :, :, None] * w1t[:, :, None, None, :], axis=1)
    G1 = G1.reshape(5 * 32, 28 * 6)                                       # (160,168)

    # conv2 per-kh Toeplitz matrices: G2[kh][w_in*6+ci, w_out*16+co]
    S2 = np.zeros((5, 14, 10), np.float32)
    for kw in range(5):
        for wo in range(10):
            S2[kw, wo + kw, wo] = 1.0
    S2 = jnp.asarray(S2)
    w2t = jnp.transpose(w2, (2, 3, 1, 0)).astype(f32)                     # (kh,kw,ci,co)
    G2 = jnp.sum(S2[None, :, :, None, :, None] * w2t[:, :, None, :, None, :], axis=1)
    G2 = G2.reshape(5, 14 * 6, 10 * 16)                                   # (5,84,160)

    b1k = jnp.tile(b1.astype(f32), 28).reshape(1, 168)
    b2k = jnp.tile(b2.astype(f32), 10).reshape(1, 160)

    # fc1 grouped by pooled spatial row h; then fold avg-pool #2's W direction
    # (+0.25) in exactly: each pooled column feeds two conv2 columns with 0.25.
    F1 = jnp.transpose(f1w.reshape(120, 16, 5, 5), (2, 3, 1, 0)).reshape(5, 80, 120)
    F1 = F1.astype(f32)
    F1 = 0.25 * jnp.repeat(F1.reshape(5, 5, 16, 120), 2, axis=1).reshape(5, 160, 120)

    F2 = jnp.transpose(f2w, (1, 0)).astype(f32)                           # (120,84)
    F3 = jnp.zeros((84, 128), f32).at[:, :10].set(jnp.transpose(f3w, (1, 0)).astype(f32))
    f1bk = f1b.reshape(1, 120).astype(f32)
    f2bk = f2b.reshape(1, 84).astype(f32)
    f3bk = jnp.zeros((1, 128), f32).at[0, :10].set(f3b.astype(f32))

    if fold_pool1:
        # Fold avg-pool #1's W direction (+0.25) exactly into the conv2 weights.
        G2k = 0.25 * jnp.repeat(G2.reshape(5, 14, 6, 160), 2, axis=1).reshape(5, 168, 160)
        return (G1, b1k, G2k, b2k, F1, f1bk, F2, f2bk, F3, f3bk)

    # v5e path: explicit W-pooling matrix (includes the full 0.25 factor)
    P1 = np.zeros((28, 6, 14, 6), np.float32)
    for j in range(14):
        for c in range(6):
            P1[2 * j, c, j, c] = 0.25
            P1[2 * j + 1, c, j, c] = 0.25
    P1 = jnp.asarray(P1.reshape(168, 84))
    return (G1, b1k, P1, G2, b2k, F1, f1bk, F2, f2bk, F3, f3bk)


def lenet_pallas(x, params, block_b=256, fold_pool1=None, vmem_limit_bytes=48 * 2**20):
    """x: (B, 1, 28, 28) NCHW float32; params in PyTorch layouts.

    block_b: batch tile (multiple of 8).  256 is safe everywhere; on v5e/v6e
    (128 MiB VMEM) it can be raised to 512-1024 with a larger vmem_limit_bytes.
    """
    B = x.shape[0]
    assert x.shape[1:] == (1, 28, 28), "LeNet fc1 expects 16*5*5, i.e. 28x28 inputs"

    if fold_pool1 is None:
        # Folding pool1 into conv2 doubles conv2's K (84 -> 168): free on the
        # 256-deep v6e/v7x MXU, an extra K-chunk on the 128-deep v5e MXU.
        try:
            kind = jax.devices()[0].device_kind.lower()
        except Exception:
            kind = ""
        fold_pool1 = "v5" not in kind

    # Batch tile: multiple of 8, at most block_b, and >=2 grid tiles on big
    # batches so dimension_semantics=("parallel",) can use both v7x cores.
    block_b = max(8, (int(block_b) // 8) * 8)
    n_tiles = max(1, pl.cdiv(8 * pl.cdiv(B, 8), block_b))
    if n_tiles == 1 and B > 256:
        n_tiles = 2
    Bt = 8 * pl.cdiv(pl.cdiv(B, n_tiles), 8)
    Bpad = Bt * n_tiles

    # ---- input glue: conv1 "same" padding + batch padding, then im2col over H
    # so the 5 kh taps live in the matmul K dimension.
    #   xcol[c, j, b, kh*32 + w] = padded_image[b, 4*j + c + kh, w]
    x2 = x[:, 0, :, :].astype(jnp.float32)                               # (B,28,28)
    x2 = jnp.pad(x2, ((0, Bpad - B), (2, 2), (2, 2)))                    # (Bpad,32,32)
    xT = jnp.transpose(x2, (1, 0, 2))                                    # (32,Bpad,32)
    rows = (np.arange(4)[:, None, None] + 4 * np.arange(7)[None, :, None]
            + np.arange(5)[None, None, :])                               # (4,7,5)
    xcol = jnp.transpose(xT[rows], (0, 1, 3, 2, 4)).reshape(4, 7, Bpad, 160)

    consts = _build_kernel_params(params, fold_pool1)

    def _const_spec(a):
        n = a.ndim
        return pl.BlockSpec(a.shape, lambda i, n=n: (0,) * n)

    out = pl.pallas_call(
        _make_lenet_kernel(fold_pool1),
        out_shape=jax.ShapeDtypeStruct((Bpad, 128), jnp.float32),
        grid_spec=pltpu.PrefetchScalarGridSpec(
            num_scalar_prefetch=0,
            grid=(n_tiles,),
            in_specs=[pl.BlockSpec((4, 7, Bt, 160), lambda i: (0, 0, i, 0))]
                     + [_const_spec(a) for a in consts],
            out_specs=pl.BlockSpec((Bt, 128), lambda i: (i, 0)),
        ),
        compiler_params=pltpu.CompilerParams(
            dimension_semantics=("parallel",),       # batch tiles are independent
            vmem_limit_bytes=int(vmem_limit_bytes)),
    )(xcol, *consts)

    return out[:B, :10]


def lenet_reference(x, params):
    """Pure-JAX reference mirroring the PyTorch module exactly (NCHW, f32)."""
    w1, b1, w2, b2, f1w, f1b, f2w, f2b, f3w, f3b = params
    P = jax.lax.Precision.HIGHEST
    dn = ('NCHW', 'OIHW', 'NCHW')
    B = x.shape[0]
    y = jax.lax.conv_general_dilated(x, w1, (1, 1), ((2, 2), (2, 2)),
                                     dimension_numbers=dn, precision=P)
    y = _sigmoid(y + b1[None, :, None, None])
    y = y.reshape(B, 6, 14, 2, 14, 2).mean(axis=(3, 5))          # AvgPool2d(2,2)
    y = jax.lax.conv_general_dilated(y, w2, (1, 1), 'VALID',
                                     dimension_numbers=dn, precision=P)
    y = _sigmoid(y + b2[None, :, None, None])
    y = y.reshape(B, 16, 5, 2, 5, 2).mean(axis=(3, 5))           # AvgPool2d(2,2)
    y = y.reshape(B, 16 * 5 * 5)                                 # Flatten (c,h,w)
    y = _sigmoid(jnp.dot(y, f1w.T, precision=P) + f1b)
    y = _sigmoid(jnp.dot(y, f2w.T, precision=P) + f2b)
    y = jnp.dot(y, f3w.T, precision=P) + f3b
    return y


if __name__ == "__main__":
    key = jax.random.PRNGKey(0)
    ks = jax.random.split(key, 12)
    conv1_out, conv2_out = 6, 16

    def init(k, shape, scale):
        return (scale * jax.random.normal(k, shape)).astype(jnp.float32)

    # deterministic synthetic parameters (PyTorch shapes)
    w1 = init(ks[0], (conv1_out, 1, 5, 5), 0.30)
    b1 = init(ks[1], (conv1_out,), 0.10)
    w2 = init(ks[2], (conv2_out, conv1_out, 5, 5), 0.15)
    b2 = init(ks[3], (conv2_out,), 0.10)
    f1w = init(ks[4], (120, conv2_out * 5 * 5), 0.05)
    f1b = init(ks[5], (120,), 0.05)
    f2w = init(ks[6], (84, 120), 0.05)
    f2b = init(ks[7], (84,), 0.05)
    f3w = init(ks[8], (10, 84), 0.05)
    f3b = init(ks[9], (10,), 0.05)
    params = (w1, b1, w2, b2, f1w, f1b, f2w, f2b, f3w, f3b)

    # LeNet requires 28x28 input so that conv2's output is 5x5 (fc1 expects 16*5*5)
    x_small = jax.random.normal(ks[10], (2, 1, 28, 28), dtype=jnp.float32)
    x_multi = jax.random.normal(ks[11], (70, 1, 28, 28), dtype=jnp.float32)

    # Case 1: small batch, single grid tile, device-default pool1 fold.
    out1 = jax.block_until_ready(lenet_pallas(x_small, params))
    ref1 = lenet_reference(x_small, params)
    assert out1.shape == (2, 10)
    np.testing.assert_allclose(np.asarray(out1), np.asarray(ref1), atol=1e-3, rtol=1e-3)

    # Case 2: multi-tile grid + batch padding (70 -> 3 tiles of 24); exercise
    # both the folded and the explicit (v5e) pool1 variants.
    ref2 = lenet_reference(x_multi, params)
    for fold in (True, False):
        out2 = jax.block_until_ready(
            lenet_pallas(x_multi, params, block_b=32, fold_pool1=fold))
        assert out2.shape == (70, 10)
        np.testing.assert_allclose(np.asarray(out2), np.asarray(ref2),
                                   atol=1e-3, rtol=1e-3)

    print("KERNEL_OK")
</pallas_src>

<mosaic_0001>
module attributes {stable_mosaic.version = 11 : i64} {
  func.func @kernel(%arg0: i32, %arg1: memref<4x7x8x160xf32, #tpu.memory_space<vmem>>, %arg2: memref<160x168xf32, #tpu.memory_space<vmem>>, %arg3: memref<1x168xf32, #tpu.memory_space<vmem>>, %arg4: memref<5x168x160xf32, #tpu.memory_space<vmem>>, %arg5: memref<1x160xf32, #tpu.memory_space<vmem>>, %arg6: memref<5x160x120xf32, #tpu.memory_space<vmem>>, %arg7: memref<1x120xf32, #tpu.memory_space<vmem>>, %arg8: memref<120x84xf32, #tpu.memory_space<vmem>>, %arg9: memref<1x84xf32, #tpu.memory_space<vmem>>, %arg10: memref<84x128xf32, #tpu.memory_space<vmem>>, %arg11: memref<1x128xf32, #tpu.memory_space<vmem>>, %arg12: memref<8x128xf32, #tpu.memory_space<vmem>>) attributes {dimension_semantics = [#tpu.dimension_semantics<parallel>], iteration_bounds = array<i64: 1>, scalar_prefetch = 0 : i64, scratch_operands = 0 : i64, tpu.core_type = #tpu.core_type<tc>, window_params = [{transform_indices = @transform_0, window_bounds = array<i64: 4, 7, 8, 160>}, {pipeline_mode = #tpu.pipeline_mode<synchronous>, transform_indices = @transform_1, window_bounds = array<i64: 160, 168>}, {pipeline_mode = #tpu.pipeline_mode<synchronous>, transform_indices = @transform_2, window_bounds = array<i64: 1, 168>}, {pipeline_mode = #tpu.pipeline_mode<synchronous>, transform_indices = @transform_3, window_bounds = array<i64: 5, 168, 160>}, {pipeline_mode = #tpu.pipeline_mode<synchronous>, transform_indices = @transform_4, window_bounds = array<i64: 1, 160>}, {pipeline_mode = #tpu.pipeline_mode<synchronous>, transform_indices = @transform_5, window_bounds = array<i64: 5, 160, 120>}, {pipeline_mode = #tpu.pipeline_mode<synchronous>, transform_indices = @transform_6, window_bounds = array<i64: 1, 120>}, {pipeline_mode = #tpu.pipeline_mode<synchronous>, transform_indices = @transform_7, window_bounds = array<i64: 120, 84>}, {pipeline_mode = #tpu.pipeline_mode<synchronous>, transform_indices = @transform_8, window_bounds = array<i64: 1, 84>}, {pipeline_mode = #tpu.pipeline_mode<synchronous>, transform_indices = @transform_9, window_bounds = array<i64: 84, 128>}, {pipeline_mode = #tpu.pipeline_mode<synchronous>, transform_indices = @transform_10, window_bounds = array<i64: 1, 128>}, {transform_indices = @transform_11, window_bounds = array<i64: 8, 128>}]} {
    %c0 = arith.constant 0 : index
    %c0_0 = arith.constant 0 : index
    %0 = vector.load %arg2[%c0, %c0_0] : memref<160x168xf32, #tpu.memory_space<vmem>>, vector<160x168xf32>
    %1 = arith.truncf %0 : vector<160x168xf32> to vector<160x168xbf16>
    %2 = arith.extf %1 : vector<160x168xbf16> to vector<160x168xf32>
    %3 = arith.subf %0, %2 : vector<160x168xf32>
    %4 = arith.truncf %3 : vector<160x168xf32> to vector<160x168xbf16>
    %c0_1 = arith.constant 0 : index
    %c0_2 = arith.constant 0 : index
    %c0_3 = arith.constant 0 : index
    %5 = vector.load %arg4[%c0_1, %c0_2, %c0_3] : memref<5x168x160xf32, #tpu.memory_space<vmem>>, vector<1x168x160xf32>
    %6 = vector.shape_cast %5 : vector<1x168x160xf32> to vector<168x160xf32>
    %7 = arith.truncf %6 : vector<168x160xf32> to vector<168x160xbf16>
    %8 = arith.extf %7 : vector<168x160xbf16> to vector<168x160xf32>
    %9 = arith.subf %6, %8 : vector<168x160xf32>
    %10 = arith.truncf %9 : vector<168x160xf32> to vector<168x160xbf16>
    %c1 = arith.constant 1 : index
    %c0_4 = arith.constant 0 : index
    %c0_5 = arith.constant 0 : index
    %11 = vector.load %arg4[%c1, %c0_4, %c0_5] : memref<5x168x160xf32, #tpu.memory_space<vmem>>, vector<1x168x160xf32>
    %12 = vector.shape_cast %11 : vector<1x168x160xf32> to vector<168x160xf32>
    %13 = arith.truncf %12 : vector<168x160xf32> to vector<168x160xbf16>
    %14 = arith.extf %13 : vector<168x160xbf16> to vector<168x160xf32>
    %15 = arith.subf %12, %14 : vector<168x160xf32>
    %16 = arith.truncf %15 : vector<168x160xf32> to vector<168x160xbf16>
    %c2 = arith.constant 2 : index
    %c0_6 = arith.constant 0 : index
    %c0_7 = arith.constant 0 : index
    %17 = vector.load %arg4[%c2, %c0_6, %c0_7] : memref<5x168x160xf32, #tpu.memory_space<vmem>>, vector<1x168x160xf32>
    %18 = vector.shape_cast %17 : vector<1x168x160xf32> to vector<168x160xf32>
    %19 = arith.truncf %18 : vector<168x160xf32> to vector<168x160xbf16>
    %20 = arith.extf %19 : vector<168x160xbf16> to vector<168x160xf32>
    %21 = arith.subf %18, %20 : vector<168x160xf32>
    %22 = arith.truncf %21 : vector<168x160xf32> to vector<168x160xbf16>
    %c3 = arith.constant 3 : index
    %c0_8 = arith.constant 0 : index
    %c0_9 = arith.constant 0 : index
    %23 = vector.load %arg4[%c3, %c0_8, %c0_9] : memref<5x168x160xf32, #tpu.memory_space<vmem>>, vector<1x168x160xf32>
    %24 = vector.shape_cast %23 : vector<1x168x160xf32> to vector<168x160xf32>
    %25 = arith.truncf %24 : vector<168x160xf32> to vector<168x160xbf16>
    %26 = arith.extf %25 : vector<168x160xbf16> to vector<168x160xf32>
    %27 = arith.subf %24, %26 : vector<168x160xf32>
    %28 = arith.truncf %27 : vector<168x160xf32> to vector<168x160xbf16>
    %c4 = arith.constant 4 : index
    %c0_10 = arith.constant 0 : index
    %c0_11 = arith.constant 0 : index
    %29 = vector.load %arg4[%c4, %c0_10, %c0_11] : memref<5x168x160xf32, #tpu.memory_space<vmem>>, vector<1x168x160xf32>
    %30 = vector.shape_cast %29 : vector<1x168x160xf32> to vector<168x160xf32>
    %31 = arith.truncf %30 : vector<168x160xf32> to vector<168x160xbf16>
    %32 = arith.extf %31 : vector<168x160xbf16> to vector<168x160xf32>
    %33 = arith.subf %30, %32 : vector<168x160xf32>
    %34 = arith.truncf %33 : vector<168x160xf32> to vector<168x160xbf16>
    %c0_12 = arith.constant 0 : index
    %c0_13 = arith.constant 0 : index
    %c0_14 = arith.constant 0 : index
    %35 = vector.load %arg6[%c0_12, %c0_13, %c0_14] : memref<5x160x120xf32, #tpu.memory_space<vmem>>, vector<1x160x120xf32>
    %36 = vector.shape_cast %35 : vector<1x160x120xf32> to vector<160x120xf32>
    %37 = arith.truncf %36 : vector<160x120xf32> to vector<160x120xbf16>
    %38 = arith.extf %37 : vector<160x120xbf16> to vector<160x120xf32>
    %39 = arith.subf %36, %38 : vector<160x120xf32>
    %40 = arith.truncf %39 : vector<160x120xf32> to vector<160x120xbf16>
    %c1_15 = arith.constant 1 : index
    %c0_16 = arith.constant 0 : index
    %c0_17 = arith.constant 0 : index
    %41 = vector.load %arg6[%c1_15, %c0_16, %c0_17] : memref<5x160x120xf32, #tpu.memory_space<vmem>>, vector<1x160x120xf32>
    %42 = vector.shape_cast %41 : vector<1x160x120xf32> to vector<160x120xf32>
    %43 = arith.truncf %42 : vector<160x120xf32> to vector<160x120xbf16>
    %44 = arith.extf %43 : vector<160x120xbf16> to vector<160x120xf32>
    %45 = arith.subf %42, %44 : vector<160x120xf32>
    %46 = arith.truncf %45 : vector<160x120xf32> to vector<160x120xbf16>
    %c2_18 = arith.constant 2 : index
    %c0_19 = arith.constant 0 : index
    %c0_20 = arith.constant 0 : index
    %47 = vector.load %arg6[%c2_18, %c0_19, %c0_20] : memref<5x160x120xf32, #tpu.memory_space<vmem>>, vector<1x160x120xf32>
    %48 = vector.shape_cast %47 : vector<1x160x120xf32> to vector<160x120xf32>
    %49 = arith.truncf %48 : vector<160x120xf32> to vector<160x120xbf16>
    %50 = arith.extf %49 : vector<160x120xbf16> to vector<160x120xf32>
    %51 = arith.subf %48, %50 : vector<160x120xf32>
    %52 = arith.truncf %51 : vector<160x120xf32> to vector<160x120xbf16>
    %c3_21 = arith.constant 3 : index
    %c0_22 = arith.constant 0 : index
    %c0_23 = arith.constant 0 : index
    %53 = vector.load %arg6[%c3_21, %c0_22, %c0_23] : memref<5x160x120xf32, #tpu.memory_space<vmem>>, vector<1x160x120xf32>
    %54 = vector.shape_cast %53 : vector<1x160x120xf32> to vector<160x120xf32>
    %55 = arith.truncf %54 : vector<160x120xf32> to vector<160x120xbf16>
    %56 = arith.extf %55 : vector<160x120xbf16> to vector<160x120xf32>
    %57 = arith.subf %54, %56 : vector<160x120xf32>
    %58 = arith.truncf %57 : vector<160x120xf32> to vector<160x120xbf16>
    %c4_24 = arith.constant 4 : index
    %c0_25 = arith.constant 0 : index
    %c0_26 = arith.constant 0 : index
    %59 = vector.load %arg6[%c4_24, %c0_25, %c0_26] : memref<5x160x120xf32, #tpu.memory_space<vmem>>, vector<1x160x120xf32>
    %60 = vector.shape_cast %59 : vector<1x160x120xf32> to vector<160x120xf32>
    %61 = arith.truncf %60 : vector<160x120xf32> to vector<160x120xbf16>
    %62 = arith.extf %61 : vector<160x120xbf16> to vector<160x120xf32>
    %63 = arith.subf %60, %62 : vector<160x120xf32>
    %64 = arith.truncf %63 : vector<160x120xf32> to vector<160x120xbf16>
    %c0_27 = arith.constant 0 : index
    %c0_28 = arith.constant 0 : index
    %65 = vector.load %arg8[%c0_27, %c0_28] : memref<120x84xf32, #tpu.memory_space<vmem>>, vector<120x84xf32>
    %66 = arith.truncf %65 : vector<120x84xf32> to vector<120x84xbf16>
    %67 = arith.extf %66 : vector<120x84xbf16> to vector<120x84xf32>
    %68 = arith.subf %65, %67 : vector<120x84xf32>
    %69 = arith.truncf %68 : vector<120x84xf32> to vector<120x84xbf16>
    %c0_29 = arith.constant 0 : index
    %c0_30 = arith.constant 0 : index
    %70 = vector.load %arg10[%c0_29, %c0_30] : memref<84x128xf32, #tpu.memory_space<vmem>>, vector<84x128xf32>
    %71 = arith.truncf %70 : vector<84x128xf32> to vector<84x128xbf16>
    %72 = arith.extf %71 : vector<84x128xbf16> to vector<84x128xf32>
    %73 = arith.subf %70, %72 : vector<84x128xf32>
    %74 = arith.truncf %73 : vector<84x128xf32> to vector<84x128xbf16>
    %c0_31 = arith.constant 0 : index
    %c0_32 = arith.constant 0 : index
    %75 = vector.load %arg3[%c0_31, %c0_32] : memref<1x168xf32, #tpu.memory_space<vmem>>, vector<1x168xf32>
    %c0_33 = arith.constant 0 : index
    %c0_34 = arith.constant 0 : index
    %76 = vector.load %arg5[%c0_33, %c0_34] : memref<1x160xf32, #tpu.memory_space<vmem>>, vector<1x160xf32>
    %c0_35 = arith.constant 0 : index
    %c0_36 = arith.constant 0 : index
    %c0_37 = arith.constant 0 : index
    %c0_38 = arith.constant 0 : index
    %77 = vector.load %arg1[%c0_35, %c0_36, %c0_37, %c0_38] : memref<4x7x8x160xf32, #tpu.memory_space<vmem>>, vector<1x7x8x160xf32>
    %78 = vector.shape_cast %77 : vector<1x7x8x160xf32> to vector<7x8x160xf32>
    %79 = vector.shape_cast %78 : vector<7x8x160xf32> to vector<56x160xf32>
    %80 = arith.truncf %79 : vector<56x160xf32> to vector<56x160xbf16>
    %81 = arith.extf %80 : vector<56x160xbf16> to vector<56x160xf32>
    %82 = arith.subf %79, %81 : vector<56x160xf32>
    %83 = arith.truncf %82 : vector<56x160xf32> to vector<56x160xbf16>
    %cst = arith.constant dense<0.000000e+00> : vector<56x168xf32>
    %84 = tpu.matmul %80, %1, %cst {dimension_numbers = #tpu.dot_dimension_numbers<[1], [0], [0], [1], [0, 0, 1, 1], [], []>} : vector<56x160xbf16>, vector<160x168xbf16>, vector<56x168xf32> -> vector<56x168xf32>
    %cst_39 = arith.constant dense<0.000000e+00> : vector<56x168xf32>
    %85 = tpu.matmul %80, %4, %cst_39 {dimension_numbers = #tpu.dot_dimension_numbers<[1], [0], [0], [1], [0, 0, 1, 1], [], []>} : vector<56x160xbf16>, vector<160x168xbf16>, vector<56x168xf32> -> vector<56x168xf32>
    %cst_40 = arith.constant dense<0.000000e+00> : vector<56x168xf32>
    %86 = tpu.matmul %83, %1, %cst_40 {dimension_numbers = #tpu.dot_dimension_numbers<[1], [0], [0], [1], [0, 0, 1, 1], [], []>} : vector<56x160xbf16>, vector<160x168xbf16>, vector<56x168xf32> -> vector<56x168xf32>
    %87 = arith.addf %85, %86 : vector<56x168xf32>
    %88 = arith.addf %84, %87 : vector<56x168xf32>
    %89 = vector.broadcast %75 : vector<1x168xf32> to vector<56x168xf32>
    %90 = arith.addf %88, %89 : vector<56x168xf32>
    %cst_41 = arith.constant 0.000000e+00 : f32
    %91 = vector.broadcast %cst_41 : f32 to vector<56x168xf32>
    %92 = arith.subf %91, %90 : vector<56x168xf32>
    %93 = math.exp %92 : vector<56x168xf32>
    %cst_42 = arith.constant 1.000000e+00 : f32
    %94 = vector.broadcast %cst_42 : f32 to vector<56x168xf32>
    %95 = arith.addf %94, %93 : vector<56x168xf32>
    %cst_43 = arith.constant 1.000000e+00 : f32
    %96 = vector.broadcast %cst_43 : f32 to vector<56x168xf32>
    %97 = arith.divf %96, %95 : vector<56x168xf32>
    %c1_44 = arith.constant 1 : index
    %c0_45 = arith.constant 0 : index
    %c0_46 = arith.constant 0 : index
    %c0_47 = arith.constant 0 : index
    %98 = vector.load %arg1[%c1_44, %c0_45, %c0_46, %c0_47] : memref<4x7x8x160xf32, #tpu.memory_space<vmem>>, vector<1x7x8x160xf32>
    %99 = vector.shape_cast %98 : vector<1x7x8x160xf32> to vector<7x8x160xf32>
    %100 = vector.shape_cast %99 : vector<7x8x160xf32> to vector<56x160xf32>
    %101 = arith.truncf %100 : vector<56x160xf32> to vector<56x160xbf16>
    %102 = arith.extf %101 : vector<56x160xbf16> to vector<56x160xf32>
    %103 = arith.subf %100, %102 : vector<56x160xf32>
    %104 = arith.truncf %103 : vector<56x160xf32> to vector<56x160xbf16>
    %cst_48 = arith.constant dense<0.000000e+00> : vector<56x168xf32>
    %105 = tpu.matmul %101, %1, %cst_48 {dimension_numbers = #tpu.dot_dimension_numbers<[1], [0], [0], [1], [0, 0, 1, 1], [], []>} : vector<56x160xbf16>, vector<160x168xbf16>, vector<56x168xf32> -> vector<56x168xf32>
    %cst_49 = arith.constant dense<0.000000e+00> : vector<56x168xf32>
    %106 = tpu.matmul %101, %4, %cst_49 {dimension_numbers = #tpu.dot_dimension_numbers<[1], [0], [0], [1], [0, 0, 1, 1], [], []>} : vector<56x160xbf16>, vector<160x168xbf16>, vector<56x168xf32> -> vector<56x168xf32>
    %cst_50 = arith.constant dense<0.000000e+00> : vector<56x168xf32>
    %107 = tpu.matmul %104, %1, %cst_50 {dimension_numbers = #tpu.dot_dimension_numbers<[1], [0], [0], [1], [0, 0, 1, 1], [], []>} : vector<56x160xbf16>, vector<160x168xbf16>, vector<56x168xf32> -> vector<56x168xf32>
    %108 = arith.addf %106, %107 : vector<56x168xf32>
    %109 = arith.addf %105, %108 : vector<56x168xf32>
    %110 = vector.broadcast %75 : vector<1x168xf32> to vector<56x168xf32>
    %111 = arith.addf %109, %110 : vector<56x168xf32>
    %cst_51 = arith.constant 0.000000e+00 : f32
    %112 = vector.broadcast %cst_51 : f32 to vector<56x168xf32>
    %113 = arith.subf %112, %111 : vector<56x168xf32>
    %114 = math.exp %113 : vector<56x168xf32>
    %cst_52 = arith.constant 1.000000e+00 : f32
    %115 = vector.broadcast %cst_52 : f32 to vector<56x168xf32>
    %116 = arith.addf %115, %114 : vector<56x168xf32>
    %cst_53 = arith.constant 1.000000e+00 : f32
    %117 = vector.broadcast %cst_53 : f32 to vector<56x168xf32>
    %118 = arith.divf %117, %116 : vector<56x168xf32>
    %119 = arith.addf %97, %118 : vector<56x168xf32>
    %c2_54 = arith.constant 2 : index
    %c0_55 = arith.constant 0 : index
    %c0_56 = arith.constant 0 : index
    %c0_57 = arith.constant 0 : index
    %120 = vector.load %arg1[%c2_54, %c0_55, %c0_56, %c0_57] : memref<4x7x8x160xf32, #tpu.memory_space<vmem>>, vector<1x7x8x160xf32>
    %121 = vector.shape_cast %120 : vector<1x7x8x160xf32> to vector<7x8x160xf32>
    %122 = vector.shape_cast %121 : vector<7x8x160xf32> to vector<56x160xf32>
    %123 = arith.truncf %122 : vector<56x160xf32> to vector<56x160xbf16>
    %124 = arith.extf %123 : vector<56x160xbf16> to vector<56x160xf32>
    %125 = arith.subf %122, %124 : vector<56x160xf32>
    %126 = arith.truncf %125 : vector<56x160xf32> to vector<56x160xbf16>
    %cst_58 = arith.constant dense<0.000000e+00> : vector<56x168xf32>
    %127 = tpu.matmul %123, %1, %cst_58 {dimension_numbers = #tpu.dot_dimension_numbers<[1], [0], [0], [1], [0, 0, 1, 1], [], []>} : vector<56x160xbf16>, vector<160x168xbf16>, vector<56x168xf32> -> vector<56x168xf32>
    %cst_59 = arith.constant dense<0.000000e+00> : vector<56x168xf32>
    %128 = tpu.matmul %123, %4, %cst_59 {dimension_numbers = #tpu.dot_dimension_numbers<[1], [0], [0], [1], [0, 0, 1, 1], [], []>} : vector<56x160xbf16>, vector<160x168xbf16>, vector<56x168xf32> -> vector<56x168xf32>
    %cst_60 = arith.constant dense<0.000000e+00> : vector<56x168xf32>
    %129 = tpu.matmul %126, %1, %cst_60 {dimension_numbers = #tpu.dot_dimension_numbers<[1], [0], [0], [1], [0, 0, 1, 1], [], []>} : vector<56x160xbf16>, vector<160x168xbf16>, vector<56x168xf32> -> vector<56x168xf32>
    %130 = arith.addf %128, %129 : vector<56x168xf32>
    %131 = arith.addf %127, %130 : vector<56x168xf32>
    %132 = vector.broadcast %75 : vector<1x168xf32> to vector<56x168xf32>
    %133 = arith.addf %131, %132 : vector<56x168xf32>
    %cst_61 = arith.constant 0.000000e+00 : f32
    %134 = vector.broadcast %cst_61 : f32 to vector<56x168xf32>
    %135 = arith.subf %134, %133 : vector<56x168xf32>
    %136 = math.exp %135 : vector<56x168xf32>
    %cst_62 = arith.constant 1.000000e+00 : f32
    %137 = vector.broadcast %cst_62 : f32 to vector<56x168xf32>
    %138 = arith.addf %137, %136 : vector<56x168xf32>
    %cst_63 = arith.constant 1.000000e+00 : f32
    %139 = vector.broadcast %cst_63 : f32 to vector<56x168xf32>
    %140 = arith.divf %139, %138 : vector<56x168xf32>
    %c3_64 = arith.constant 3 : index
    %c0_65 = arith.constant 0 : index
    %c0_66 = arith.constant 0 : index
    %c0_67 = arith.constant 0 : index
    %141 = vector.load %arg1[%c3_64, %c0_65, %c0_66, %c0_67] : memref<4x7x8x160xf32, #tpu.memory_space<vmem>>, vector<1x7x8x160xf32>
    %142 = vector.shape_cast %141 : vector<1x7x8x160xf32> to vector<7x8x160xf32>
    %143 = vector.shape_cast %142 : vector<7x8x160xf32> to vector<56x160xf32>
    %144 = arith.truncf %143 : vector<56x160xf32> to vector<56x160xbf16>
    %145 = arith.extf %144 : vector<56x160xbf16> to vector<56x160xf32>
    %146 = arith.subf %143, %145 : vector<56x160xf32>
    %147 = arith.truncf %146 : vector<56x160xf32> to vector<56x160xbf16>
    %cst_68 = arith.constant dense<0.000000e+00> : vector<56x168xf32>
    %148 = tpu.matmul %144, %1, %cst_68 {dimension_numbers = #tpu.dot_dimension_numbers<[1], [0], [0], [1], [0, 0, 1, 1], [], []>} : vector<56x160xbf16>, vector<160x168xbf16>, vector<56x168xf32> -> vector<56x168xf32>
    %cst_69 = arith.constant dense<0.000000e+00> : vector<56x168xf32>
    %149 = tpu.matmul %144, %4, %cst_69 {dimension_numbers = #tpu.dot_dimension_numbers<[1], [0], [0], [1], [0, 0, 1, 1], [], []>} : vector<56x160xbf16>, vector<160x168xbf16>, vector<56x168xf32> -> vector<56x168xf32>
    %cst_70 = arith.constant dense<0.000000e+00> : vector<56x168xf32>
    %150 = tpu.matmul %147, %1, %cst_70 {dimension_numbers = #tpu.dot_dimension_numbers<[1], [0], [0], [1], [0, 0, 1, 1], [], []>} : vector<56x160xbf16>, vector<160x168xbf16>, vector<56x168xf32> -> vector<56x168xf32>
    %151 = arith.addf %149, %150 : vector<56x168xf32>
    %152 = arith.addf %148, %151 : vector<56x168xf32>
    %153 = vector.broadcast %75 : vector<1x168xf32> to vector<56x168xf32>
    %154 = arith.addf %152, %153 : vector<56x168xf32>
    %cst_71 = arith.constant 0.000000e+00 : f32
    %155 = vector.broadcast %cst_71 : f32 to vector<56x168xf32>
    %156 = arith.subf %155, %154 : vector<56x168xf32>
    %157 = math.exp %156 : vector<56x168xf32>
    %cst_72 = arith.constant 1.000000e+00 : f32
    %158 = vector.broadcast %cst_72 : f32 to vector<56x168xf32>
    %159 = arith.addf %158, %157 : vector<56x168xf32>
    %cst_73 = arith.constant 1.000000e+00 : f32
    %160 = vector.broadcast %cst_73 : f32 to vector<56x168xf32>
    %161 = arith.divf %160, %159 : vector<56x168xf32>
    %162 = arith.addf %140, %161 : vector<56x168xf32>
    %163 = vector.extract_strided_slice %119 {offsets = [0, 0], sizes = [40, 168], strides = [1, 1]} : vector<56x168xf32> to vector<40x168xf32>
    %164 = arith.truncf %163 : vector<40x168xf32> to vector<40x168xbf16>
    %165 = arith.extf %164 : vector<40x168xbf16> to vector<40x168xf32>
    %166 = arith.subf %163, %165 : vector<40x168xf32>
    %167 = arith.truncf %166 : vector<40x168xf32> to vector<40x168xbf16>
    %cst_74 = arith.constant dense<0.000000e+00> : vector<40x160xf32>
    %168 = tpu.matmul %164, %7, %cst_74 {dimension_numbers = #tpu.dot_dimension_numbers<[1], [0], [0], [1], [0, 0, 1, 1], [], []>} : vector<40x168xbf16>, vector<168x160xbf16>, vector<40x160xf32> -> vector<40x160xf32>
    %cst_75 = arith.constant dense<0.000000e+00> : vector<40x160xf32>
    %169 = tpu.matmul %164, %10, %cst_75 {dimension_numbers = #tpu.dot_dimension_numbers<[1], [0], [0], [1], [0, 0, 1, 1], [], []>} : vector<40x168xbf16>, vector<168x160xbf16>, vector<40x160xf32> -> vector<40x160xf32>
    %cst_76 = arith.constant dense<0.000000e+00> : vector<40x160xf32>
    %170 = tpu.matmul %167, %7, %cst_76 {dimension_numbers = #tpu.dot_dimension_numbers<[1], [0], [0], [1], [0, 0, 1, 1], [], []>} : vector<40x168xbf16>, vector<168x160xbf16>, vector<40x160xf32> -> vector<40x160xf32>
    %171 = arith.addf %169, %170 : vector<40x160xf32>
    %172 = arith.addf %168, %171 : vector<40x160xf32>
    %173 = vector.extract_strided_slice %162 {offsets = [0, 0], sizes = [40, 168], strides = [1, 1]} : vector<56x168xf32> to vector<40x168xf32>
    %174 = arith.truncf %173 : vector<40x168xf32> to vector<40x168xbf16>
    %175 = arith.extf %174 : vector<40x168xbf16> to vector<40x168xf32>
    %176 = arith.subf %173, %175 : vector<40x168xf32>
    %177 = arith.truncf %176 : vector<40x168xf32> to vector<40x168xbf16>
    %cst_77 = arith.constant dense<0.000000e+00> : vector<40x160xf32>
    %178 = tpu.matmul %174, %13, %cst_77 {dimension_numbers = #tpu.dot_dimension_numbers<[1], [0], [0], [1], [0, 0, 1, 1], [], []>} : vector<40x168xbf16>, vector<168x160xbf16>, vector<40x160xf32> -> vector<40x160xf32>
    %cst_78 = arith.constant dense<0.000000e+00> : vector<40x160xf32>
    %179 = tpu.matmul %174, %16, %cst_78 {dimension_numbers = #tpu.dot_dimension_numbers<[1], [0], [0], [1], [0, 0, 1, 1], [], []>} : vector<40x168xbf16>, vector<168x160xbf16>, vector<40x160xf32> -> vector<40x160xf32>
    %cst_79 = arith.constant dense<0.000000e+00> : vector<40x160xf32>
    %180 = tpu.matmul %177, %13, %cst_79 {dimension_numbers = #tpu.dot_dimension_numbers<[1], [0], [0], [1], [0, 0, 1, 1], [], []>} : vector<40x168xbf16>, vector<168x160xbf16>, vector<40x160xf32> -> vector<40x160xf32>
    %181 = arith.addf %179, %180 : vector<40x160xf32>
    %182 = arith.addf %178, %181 : vector<40x160xf32>
    %183 = arith.addf %172, %182 : vector<40x160xf32>
    %184 = vector.extract_strided_slice %119 {offsets = [8, 0], sizes = [40, 168], strides = [1, 1]} : vector<56x168xf32> to vector<40x168xf32>
    %185 = arith.truncf %184 : vector<40x168xf32> to vector<40x168xbf16>
    %186 = arith.extf %185 : vector<40x168xbf16> to vector<40x168xf32>
    %187 = arith.subf %184, %186 : vector<40x168xf32>
    %188 = arith.truncf %187 : vector<40x168xf32> to vector<40x168xbf16>
    %cst_80 = arith.constant dense<0.000000e+00> : vector<40x160xf32>
    %189 = tpu.matmul %185, %19, %cst_80 {dimension_numbers = #tpu.dot_dimension_numbers<[1], [0], [0], [1], [0, 0, 1, 1], [], []>} : vector<40x168xbf16>, vector<168x160xbf16>, vector<40x160xf32> -> vector<40x160xf32>
    %cst_81 = arith.constant dense<0.000000e+00> : vector<40x160xf32>
    %190 = tpu.matmul %185, %22, %cst_81 {dimension_numbers = #tpu.dot_dimension_numbers<[1], [0], [0], [1], [0, 0, 1, 1], [], []>} : vector<40x168xbf16>, vector<168x160xbf16>, vector<40x160xf32> -> vector<40x160xf32>
    %cst_82 = arith.constant dense<0.000000e+00> : vector<40x160xf32>
    %191 = tpu.matmul %188, %19, %cst_82 {dimension_numbers = #tpu.dot_dimension_numbers<[1], [0], [0], [1], [0, 0, 1, 1], [], []>} : vector<40x168xbf16>, vector<168x160xbf16>, vector<40x160xf32> -> vector<40x160xf32>
    %192 = arith.addf %190, %191 : vector<40x160xf32>
    %193 = arith.addf %189, %192 : vector<40x160xf32>
    %194 = arith.addf %183, %193 : vector<40x160xf32>
    %195 = vector.extract_strided_slice %162 {offsets = [8, 0], sizes = [40, 168], strides = [1, 1]} : vector<56x168xf32> to vector<40x168xf32>
    %196 = arith.truncf %195 : vector<40x168xf32> to vector<40x168xbf16>
    %197 = arith.extf %196 : vector<40x168xbf16> to vector<40x168xf32>
    %198 = arith.subf %195, %197 : vector<40x168xf32>
    %199 = arith.truncf %198 : vector<40x168xf32> to vector<40x168xbf16>
    %cst_83 = arith.constant dense<0.000000e+00> : vector<40x160xf32>
    %200 = tpu.matmul %196, %25, %cst_83 {dimension_numbers = #tpu.dot_dimension_numbers<[1], [0], [0], [1], [0, 0, 1, 1], [], []>} : vector<40x168xbf16>, vector<168x160xbf16>, vector<40x160xf32> -> vector<40x160xf32>
    %cst_84 = arith.constant dense<0.000000e+00> : vector<40x160xf32>
    %201 = tpu.matmul %196, %28, %cst_84 {dimension_numbers = #tpu.dot_dimension_numbers<[1], [0], [0], [1], [0, 0, 1, 1], [], []>} : vector<40x168xbf16>, vector<168x160xbf16>, vector<40x160xf32> -> vector<40x160xf32>
    %cst_85 = arith.constant dense<0.000000e+00> : vector<40x160xf32>
    %202 = tpu.matmul %199, %25, %cst_85 {dimension_numbers = #tpu.dot_dimension_numbers<[1], [0], [0], [1], [0, 0, 1, 1], [], []>} : vector<40x168xbf16>, vector<168x160xbf16>, vector<40x160xf32> -> vector<40x160xf32>
    %203 = arith.addf %201, %202 : vector<40x160xf32>
    %204 = arith.addf %200, %203 : vector<40x160xf32>
    %205 = arith.addf %194, %204 : vector<40x160xf32>
    %206 = vector.extract_strided_slice %119 {offsets = [16, 0], sizes = [40, 168], strides = [1, 1]} : vector<56x168xf32> to vector<40x168xf32>
    %207 = arith.truncf %206 : vector<40x168xf32> to vector<40x168xbf16>
    %208 = arith.extf %207 : vector<40x168xbf16> to vector<40x168xf32>
    %209 = arith.subf %206, %208 : vector<40x168xf32>
    %210 = arith.truncf %209 : vector<40x168xf32> to vector<40x168xbf16>
    %cst_86 = arith.constant dense<0.000000e+00> : vector<40x160xf32>
    %211 = tpu.matmul %207, %31, %cst_86 {dimension_numbers = #tpu.dot_dimension_numbers<[1], [0], [0], [1], [0, 0, 1, 1], [], []>} : vector<40x168xbf16>, vector<168x160xbf16>, vector<40x160xf32> -> vector<40x160xf32>
    %cst_87 = arith.constant dense<0.000000e+00> : vector<40x160xf32>
    %212 = tpu.matmul %207, %34, %cst_87 {dimension_numbers = #tpu.dot_dimension_numbers<[1], [0], [0], [1], [0, 0, 1, 1], [], []>} : vector<40x168xbf16>, vector<168x160xbf16>, vector<40x160xf32> -> vector<40x160xf32>
    %cst_88 = arith.constant dense<0.000000e+00> : vector<40x160xf32>
    %213 = tpu.matmul %210, %31, %cst_88 {dimension_numbers = #tpu.dot_dimension_numbers<[1], [0], [0], [1], [0, 0, 1, 1], [], []>} : vector<40x168xbf16>, vector<168x160xbf16>, vector<40x160xf32> -> vector<40x160xf32>
    %214 = arith.addf %212, %213 : vector<40x160xf32>
    %215 = arith.addf %211, %214 : vector<40x160xf32>
    %216 = arith.addf %205, %215 : vector<40x160xf32>
    %217 = vector.broadcast %76 : vector<1x160xf32> to vector<40x160xf32>
    %218 = arith.addf %216, %217 : vector<40x160xf32>
    %cst_89 = arith.constant 0.000000e+00 : f32
    %219 = vector.broadcast %cst_89 : f32 to vector<40x160xf32>
    %220 = arith.subf %219, %218 : vector<40x160xf32>
    %221 = math.exp %220 : vector<40x160xf32>
    %cst_90 = arith.constant 1.000000e+00 : f32
    %222 = vector.broadcast %cst_90 : f32 to vector<40x160xf32>
    %223 = arith.addf %222, %221 : vector<40x160xf32>
    %cst_91 = arith.constant 1.000000e+00 : f32
    %224 = vector.broadcast %cst_91 : f32 to vector<40x160xf32>
    %225 = arith.divf %224, %223 : vector<40x160xf32>
    %226 = vector.extract_strided_slice %162 {offsets = [0, 0], sizes = [40, 168], strides = [1, 1]} : vector<56x168xf32> to vector<40x168xf32>
    %227 = arith.truncf %226 : vector<40x168xf32> to vector<40x168xbf16>
    %228 = arith.extf %227 : vector<40x168xbf16> to vector<40x168xf32>
    %229 = arith.subf %226, %228 : vector<40x168xf32>
    %230 = arith.truncf %229 : vector<40x168xf32> to vector<40x168xbf16>
    %cst_92 = arith.constant dense<0.000000e+00> : vector<40x160xf32>
    %231 = tpu.matmul %227, %7, %cst_92 {dimension_numbers = #tpu.dot_dimension_numbers<[1], [0], [0], [1], [0, 0, 1, 1], [], []>} : vector<40x168xbf16>, vector<168x160xbf16>, vector<40x160xf32> -> vector<40x160xf32>
    %cst_93 = arith.constant dense<0.000000e+00> : vector<40x160xf32>
    %232 = tpu.matmul %227, %10, %cst_93 {dimension_numbers = #tpu.dot_dimension_numbers<[1], [0], [0], [1], [0, 0, 1, 1], [], []>} : vector<40x168xbf16>, vector<168x160xbf16>, vector<40x160xf32> -> vector<40x160xf32>
    %cst_94 = arith.constant dense<0.000000e+00> : vector<40x160xf32>
    %233 = tpu.matmul %230, %7, %cst_94 {dimension_numbers = #tpu.dot_dimension_numbers<[1], [0], [0], [1], [0, 0, 1, 1], [], []>} : vector<40x168xbf16>, vector<168x160xbf16>, vector<40x160xf32> -> vector<40x160xf32>
    %234 = arith.addf %232, %233 : vector<40x160xf32>
    %235 = arith.addf %231, %234 : vector<40x160xf32>
    %236 = vector.extract_strided_slice %119 {offsets = [8, 0], sizes = [40, 168], strides = [1, 1]} : vector<56x168xf32> to vector<40x168xf32>
    %237 = arith.truncf %236 : vector<40x168xf32> to vector<40x168xbf16>
    %238 = arith.extf %237 : vector<40x168xbf16> to vector<40x168xf32>
    %239 = arith.subf %236, %238 : vector<40x168xf32>
    %240 = arith.truncf %239 : vector<40x168xf32> to vector<40x168xbf16>
    %cst_95 = arith.constant dense<0.000000e+00> : vector<40x160xf32>
    %241 = tpu.matmul %237, %13, %cst_95 {dimension_numbers = #tpu.dot_dimension_numbers<[1], [0], [0], [1], [0, 0, 1, 1], [], []>} : vector<40x168xbf16>, vector<168x160xbf16>, vector<40x160xf32> -> vector<40x160xf32>
    %cst_96 = arith.constant dense<0.000000e+00> : vector<40x160xf32>
    %242 = tpu.matmul %237, %16, %cst_96 {dimension_numbers = #tpu.dot_dimension_numbers<[1], [0], [0], [1], [0, 0, 1, 1], [], []>} : vector<40x168xbf16>, vector<168x160xbf16>, vector<40x160xf32> -> vector<40x160xf32>
    %cst_97 = arith.constant dense<0.000000e+00> : vector<40x160xf32>
    %243 = tpu.matmul %240, %13, %cst_97 {dimension_numbers = #tpu.dot_dimension_numbers<[1], [0], [0], [1], [0, 0, 1, 1], [], []>} : vector<40x168xbf16>, vector<168x160xbf16>, vector<40x160xf32> -> vector<40x160xf32>
    %244 = arith.addf %242, %243 : vector<40x160xf32>
    %245 = arith.addf %241, %244 : vector<40x160xf32>
    %246 = arith.addf %235, %245 : vector<40x160xf32>
    %247 = vector.extract_strided_slice %162 {offsets = [8, 0], sizes = [40, 168], strides = [1, 1]} : vector<56x168xf32> to vector<40x168xf32>
    %248 = arith.truncf %247 : vector<40x168xf32> to vector<40x168xbf16>
    %249 = arith.extf %248 : vector<40x168xbf16> to vector<40x168xf32>
    %250 = arith.subf %247, %249 : vector<40x168xf32>
    %251 = arith.truncf %250 : vector<40x168xf32> to vector<40x168xbf16>
    %cst_98 = arith.constant dense<0.000000e+00> : vector<40x160xf32>
    %252 = tpu.matmul %248, %19, %cst_98 {dimension_numbers = #tpu.dot_dimension_numbers<[1], [0], [0], [1], [0, 0, 1, 1], [], []>} : vector<40x168xbf16>, vector<168x160xbf16>, vector<40x160xf32> -> vector<40x160xf32>
    %cst_99 = arith.constant dense<0.000000e+00> : vector<40x160xf32>
    %253 = tpu.matmul %248, %22, %cst_99 {dimension_numbers = #tpu.dot_dimension_numbers<[1], [0], [0], [1], [0, 0, 1, 1], [], []>} : vector<40x168xbf16>, vector<168x160xbf16>, vector<40x160xf32> -> vector<40x160xf32>
    %cst_100 = arith.constant dense<0.000000e+00> : vector<40x160xf32>
    %254 = tpu.matmul %251, %19, %cst_100 {dimension_numbers = #tpu.dot_dimension_numbers<[1], [0], [0], [1], [0, 0, 1, 1], [], []>} : vector<40x168xbf16>, vector<168x160xbf16>, vector<40x160xf32> -> vector<40x160xf32>
    %255 = arith.addf %253, %254 : vector<40x160xf32>
    %256 = arith.addf %252, %255 : vector<40x160xf32>
    %257 = arith.addf %246, %256 : vector<40x160xf32>
    %258 = vector.extract_strided_slice %119 {offsets = [16, 0], sizes = [40, 168], strides = [1, 1]} : vector<56x168xf32> to vector<40x168xf32>
    %259 = arith.truncf %258 : vector<40x168xf32> to vector<40x168xbf16>
    %260 = arith.extf %259 : vector<40x168xbf16> to vector<40x168xf32>
    %261 = arith.subf %258, %260 : vector<40x168xf32>
    %262 = arith.truncf %261 : vector<40x168xf32> to vector<40x168xbf16>
    %cst_101 = arith.constant dense<0.000000e+00> : vector<40x160xf32>
    %263 = tpu.matmul %259, %25, %cst_101 {dimension_numbers = #tpu.dot_dimension_numbers<[1], [0], [0], [1], [0, 0, 1, 1], [], []>} : vector<40x168xbf16>, vector<168x160xbf16>, vector<40x160xf32> -> vector<40x160xf32>
    %cst_102 = arith.constant dense<0.000000e+00> : vector<40x160xf32>
    %264 = tpu.matmul %259, %28, %cst_102 {dimension_numbers = #tpu.dot_dimension_numbers<[1], [0], [0], [1], [0, 0, 1, 1], [], []>} : vector<40x168xbf16>, vector<168x160xbf16>, vector<40x160xf32> -> vector<40x160xf32>
    %cst_103 = arith.constant dense<0.000000e+00> : vector<40x160xf32>
    %265 = tpu.matmul %262, %25, %cst_103 {dimension_numbers = #tpu.dot_dimension_numbers<[1], [0], [0], [1], [0, 0, 1, 1], [], []>} : vector<40x168xbf16>, vector<168x160xbf16>, vector<40x160xf32> -> vector<40x160xf32>
    %266 = arith.addf %264, %265 : vector<40x160xf32>
    %267 = arith.addf %263, %266 : vector<40x160xf32>
    %268 = arith.addf %257, %267 : vector<40x160xf32>
    %269 = vector.extract_strided_slice %162 {offsets = [16, 0], sizes = [40, 168], strides = [1, 1]} : vector<56x168xf32> to vector<40x168xf32>
    %270 = arith.truncf %269 : vector<40x168xf32> to vector<40x168xbf16>
    %271 = arith.extf %270 : vector<40x168xbf16> to vector<40x168xf32>
    %272 = arith.subf %269, %271 : vector<40x168xf32>
    %273 = arith.truncf %272 : vector<40x168xf32> to vector<40x168xbf16>
    %cst_104 = arith.constant dense<0.000000e+00> : vector<40x160xf32>
    %274 = tpu.matmul %270, %31, %cst_104 {dimension_numbers = #tpu.dot_dimension_numbers<[1], [0], [0], [1], [0, 0, 1, 1], [], []>} : vector<40x168xbf16>, vector<168x160xbf16>, vector<40x160xf32> -> vector<40x160xf32>
    %cst_105 = arith.constant dense<0.000000e+00> : vector<40x160xf32>
    %275 = tpu.matmul %270, %34, %cst_105 {dimension_numbers = #tpu.dot_dimension_numbers<[1], [0], [0], [1], [0, 0, 1, 1], [], []>} : vector<40x168xbf16>, vector<168x160xbf16>, vector<40x160xf32> -> vector<40x160xf32>
    %cst_106 = arith.constant dense<0.000000e+00> : vector<40x160xf32>
    %276 = tpu.matmul %273, %31, %cst_106 {dimension_numbers = #tpu.dot_dimension_numbers<[1], [0], [0], [1], [0, 0, 1, 1], [], []>} : vector<40x168xbf16>, vector<168x160xbf16>, vector<40x160xf32> -> vector<40x160xf32>
    %277 = arith.addf %275, %276 : vector<40x160xf32>
    %278 = arith.addf %274, %277 : vector<40x160xf32>
    %279 = arith.addf %268, %278 : vector<40x160xf32>
    %280 = vector.broadcast %76 : vector<1x160xf32> to vector<40x160xf32>
    %281 = arith.addf %279, %280 : vector<40x160xf32>
    %cst_107 = arith.constant 0.000000e+00 : f32
    %282 = vector.broadcast %cst_107 : f32 to vector<40x160xf32>
    %283 = arith.subf %282, %281 : vector<40x160xf32>
    %284 = math.exp %283 : vector<40x160xf32>
    %cst_108 = arith.constant 1.000000e+00 : f32
    %285 = vector.broadcast %cst_108 : f32 to vector<40x160xf32>
    %286 = arith.addf %285, %284 : vector<40x160xf32>
    %cst_109 = arith.constant 1.000000e+00 : f32
    %287 = vector.broadcast %cst_109 : f32 to vector<40x160xf32>
    %288 = arith.divf %287, %286 : vector<40x160xf32>
    %289 = arith.addf %225, %288 : vector<40x160xf32>
    %290 = vector.extract_strided_slice %289 {offsets = [0, 0], sizes = [8, 160], strides = [1, 1]} : vector<40x160xf32> to vector<8x160xf32>
    %291 = arith.truncf %290 : vector<8x160xf32> to vector<8x160xbf16>
    %292 = arith.extf %291 : vector<8x160xbf16> to vector<8x160xf32>
    %293 = arith.subf %290, %292 : vector<8x160xf32>
    %294 = arith.truncf %293 : vector<8x160xf32> to vector<8x160xbf16>
    %cst_110 = arith.constant dense<0.000000e+00> : vector<8x120xf32>
    %295 = tpu.matmul %291, %37, %cst_110 {dimension_numbers = #tpu.dot_dimension_numbers<[1], [0], [0], [1], [0, 0, 1, 1], [], []>} : vector<8x160xbf16>, vector<160x120xbf16>, vector<8x120xf32> -> vector<8x120xf32>
    %cst_111 = arith.constant dense<0.000000e+00> : vector<8x120xf32>
    %296 = tpu.matmul %291, %40, %cst_111 {dimension_numbers = #tpu.dot_dimension_numbers<[1], [0], [0], [1], [0, 0, 1, 1], [], []>} : vector<8x160xbf16>, vector<160x120xbf16>, vector<8x120xf32> -> vector<8x120xf32>
    %cst_112 = arith.constant dense<0.000000e+00> : vector<8x120xf32>
    %297 = tpu.matmul %294, %37, %cst_112 {dimension_numbers = #tpu.dot_dimension_numbers<[1], [0], [0], [1], [0, 0, 1, 1], [], []>} : vector<8x160xbf16>, vector<160x120xbf16>, vector<8x120xf32> -> vector<8x120xf32>
    %298 = arith.addf %296, %297 : vector<8x120xf32>
    %299 = arith.addf %295, %298 : vector<8x120xf32>
    %300 = vector.extract_strided_slice %289 {offsets = [8, 0], sizes = [8, 160], strides = [1, 1]} : vector<40x160xf32> to vector<8x160xf32>
    %301 = arith.truncf %300 : vector<8x160xf32> to vector<8x160xbf16>
    %302 = arith.extf %301 : vector<8x160xbf16> to vector<8x160xf32>
    %303 = arith.subf %300, %302 : vector<8x160xf32>
    %304 = arith.truncf %303 : vector<8x160xf32> to vector<8x160xbf16>
    %cst_113 = arith.constant dense<0.000000e+00> : vector<8x120xf32>
    %305 = tpu.matmul %301, %43, %cst_113 {dimension_numbers = #tpu.dot_dimension_numbers<[1], [0], [0], [1], [0, 0, 1, 1], [], []>} : vector<8x160xbf16>, vector<160x120xbf16>, vector<8x120xf32> -> vector<8x120xf32>
    %cst_114 = arith.constant dense<0.000000e+00> : vector<8x120xf32>
    %306 = tpu.matmul %301, %46, %cst_114 {dimension_numbers = #tpu.dot_dimension_numbers<[1], [0], [0], [1], [0, 0, 1, 1], [], []>} : vector<8x160xbf16>, vector<160x120xbf16>, vector<8x120xf32> -> vector<8x120xf32>
    %cst_115 = arith.constant dense<0.000000e+00> : vector<8x120xf32>
    %307 = tpu.matmul %304, %43, %cst_115 {dimension_numbers = #tpu.dot_dimension_numbers<[1], [0], [0], [1], [0, 0, 1, 1], [], []>} : vector<8x160xbf16>, vector<160x120xbf16>, vector<8x120xf32> -> vector<8x120xf32>
    %308 = arith.addf %306, %307 : vector<8x120xf32>
    %309 = arith.addf %305, %308 : vector<8x120xf32>
    %310 = arith.addf %299, %309 : vector<8x120xf32>
    %311 = vector.extract_strided_slice %289 {offsets = [16, 0], sizes = [8, 160], strides = [1, 1]} : vector<40x160xf32> to vector<8x160xf32>
    %312 = arith.truncf %311 : vector<8x160xf32> to vector<8x160xbf16>
    %313 = arith.extf %312 : vector<8x160xbf16> to vector<8x160xf32>
    %314 = arith.subf %311, %313 : vector<8x160xf32>
    %315 = arith.truncf %314 : vector<8x160xf32> to vector<8x160xbf16>
    %cst_116 = arith.constant dense<0.000000e+00> : vector<8x120xf32>
    %316 = tpu.matmul %312, %49, %cst_116 {dimension_numbers = #tpu.dot_dimension_numbers<[1], [0], [0], [1], [0, 0, 1, 1], [], []>} : vector<8x160xbf16>, vector<160x120xbf16>, vector<8x120xf32> -> vector<8x120xf32>
    %cst_117 = arith.constant dense<0.000000e+00> : vector<8x120xf32>
    %317 = tpu.matmul %312, %52, %cst_117 {dimension_numbers = #tpu.dot_dimension_numbers<[1], [0], [0], [1], [0, 0, 1, 1], [], []>} : vector<8x160xbf16>, vector<160x120xbf16>, vector<8x120xf32> -> vector<8x120xf32>
    %cst_118 = arith.constant dense<0.000000e+00> : vector<8x120xf32>
    %318 = tpu.matmul %315, %49, %cst_118 {dimension_numbers = #tpu.dot_dimension_numbers<[1], [0], [0], [1], [0, 0, 1, 1], [], []>} : vector<8x160xbf16>, vector<160x120xbf16>, vector<8x120xf32> -> vector<8x120xf32>
    %319 = arith.addf %317, %318 : vector<8x120xf32>
    %320 = arith.addf %316, %319 : vector<8x120xf32>
    %321 = arith.addf %310, %320 : vector<8x120xf32>
    %322 = vector.extract_strided_slice %289 {offsets = [24, 0], sizes = [8, 160], strides = [1, 1]} : vector<40x160xf32> to vector<8x160xf32>
    %323 = arith.truncf %322 : vector<8x160xf32> to vector<8x160xbf16>
    %324 = arith.extf %323 : vector<8x160xbf16> to vector<8x160xf32>
    %325 = arith.subf %322, %324 : vector<8x160xf32>
    %326 = arith.truncf %325 : vector<8x160xf32> to vector<8x160xbf16>
    %cst_119 = arith.constant dense<0.000000e+00> : vector<8x120xf32>
    %327 = tpu.matmul %323, %55, %cst_119 {dimension_numbers = #tpu.dot_dimension_numbers<[1], [0], [0], [1], [0, 0, 1, 1], [], []>} : vector<8x160xbf16>, vector<160x120xbf16>, vector<8x120xf32> -> vector<8x120xf32>
    %cst_120 = arith.constant dense<0.000000e+00> : vector<8x120xf32>
    %328 = tpu.matmul %323, %58, %cst_120 {dimension_numbers = #tpu.dot_dimension_numbers<[1], [0], [0], [1], [0, 0, 1, 1], [], []>} : vector<8x160xbf16>, vector<160x120xbf16>, vector<8x120xf32> -> vector<8x120xf32>
    %cst_121 = arith.constant dense<0.000000e+00> : vector<8x120xf32>
    %329 = tpu.matmul %326, %55, %cst_121 {dimension_numbers = #tpu.dot_dimension_numbers<[1], [0], [0], [1], [0, 0, 1, 1], [], []>} : vector<8x160xbf16>, vector<160x120xbf16>, vector<8x120xf32> -> vector<8x120xf32>
    %330 = arith.addf %328, %329 : vector<8x120xf32>
    %331 = arith.addf %327, %330 : vector<8x120xf32>
    %332 = arith.addf %321, %331 : vector<8x120xf32>
    %333 = vector.extract_strided_slice %289 {offsets = [32, 0], sizes = [8, 160], strides = [1, 1]} : vector<40x160xf32> to vector<8x160xf32>
    %334 = arith.truncf %333 : vector<8x160xf32> to vector<8x160xbf16>
    %335 = arith.extf %334 : vector<8x160xbf16> to vector<8x160xf32>
    %336 = arith.subf %333, %335 : vector<8x160xf32>
    %337 = arith.truncf %336 : vector<8x160xf32> to vector<8x160xbf16>
    %cst_122 = arith.constant dense<0.000000e+00> : vector<8x120xf32>
    %338 = tpu.matmul %334, %61, %cst_122 {dimension_numbers = #tpu.dot_dimension_numbers<[1], [0], [0], [1], [0, 0, 1, 1], [], []>} : vector<8x160xbf16>, vector<160x120xbf16>, vector<8x120xf32> -> vector<8x120xf32>
    %cst_123 = arith.constant dense<0.000000e+00> : vector<8x120xf32>
    %339 = tpu.matmul %334, %64, %cst_123 {dimension_numbers = #tpu.dot_dimension_numbers<[1], [0], [0], [1], [0, 0, 1, 1], [], []>} : vector<8x160xbf16>, vector<160x120xbf16>, vector<8x120xf32> -> vector<8x120xf32>
    %cst_124 = arith.constant dense<0.000000e+00> : vector<8x120xf32>
    %340 = tpu.matmul %337, %61, %cst_124 {dimension_numbers = #tpu.dot_dimension_numbers<[1], [0], [0], [1], [0, 0, 1, 1], [], []>} : vector<8x160xbf16>, vector<160x120xbf16>, vector<8x120xf32> -> vector<8x120xf32>
    %341 = arith.addf %339, %340 : vector<8x120xf32>
    %342 = arith.addf %338, %341 : vector<8x120xf32>
    %343 = arith.addf %332, %342 : vector<8x120xf32>
    %c0_125 = arith.constant 0 : index
    %c0_126 = arith.constant 0 : index
    %344 = vector.load %arg7[%c0_125, %c0_126] : memref<1x120xf32, #tpu.memory_space<vmem>>, vector<1x120xf32>
    %345 = vector.broadcast %344 : vector<1x120xf32> to vector<8x120xf32>
    %346 = arith.addf %343, %345 : vector<8x120xf32>
    %cst_127 = arith.constant 0.000000e+00 : f32
    %347 = vector.broadcast %cst_127 : f32 to vector<8x120xf32>
    %348 = arith.subf %347, %346 : vector<8x120xf32>
    %349 = math.exp %348 : vector<8x120xf32>
    %cst_128 = arith.constant 1.000000e+00 : f32
    %350 = vector.broadcast %cst_128 : f32 to vector<8x120xf32>
    %351 = arith.addf %350, %349 : vector<8x120xf32>
    %cst_129 = arith.constant 1.000000e+00 : f32
    %352 = vector.broadcast %cst_129 : f32 to vector<8x120xf32>
    %353 = arith.divf %352, %351 : vector<8x120xf32>
    %354 = arith.truncf %353 : vector<8x120xf32> to vector<8x120xbf16>
    %355 = arith.extf %354 : vector<8x120xbf16> to vector<8x120xf32>
    %356 = arith.subf %353, %355 : vector<8x120xf32>
    %357 = arith.truncf %356 : vector<8x120xf32> to vector<8x120xbf16>
    %cst_130 = arith.constant dense<0.000000e+00> : vector<8x84xf32>
    %358 = tpu.matmul %354, %66, %cst_130 {dimension_numbers = #tpu.dot_dimension_numbers<[1], [0], [0], [1], [0, 0, 1, 1], [], []>} : vector<8x120xbf16>, vector<120x84xbf16>, vector<8x84xf32> -> vector<8x84xf32>
    %cst_131 = arith.constant dense<0.000000e+00> : vector<8x84xf32>
    %359 = tpu.matmul %354, %69, %cst_131 {dimension_numbers = #tpu.dot_dimension_numbers<[1], [0], [0], [1], [0, 0, 1, 1], [], []>} : vector<8x120xbf16>, vector<120x84xbf16>, vector<8x84xf32> -> vector<8x84xf32>
    %cst_132 = arith.constant dense<0.000000e+00> : vector<8x84xf32>
    %360 = tpu.matmul %357, %66, %cst_132 {dimension_numbers = #tpu.dot_dimension_numbers<[1], [0], [0], [1], [0, 0, 1, 1], [], []>} : vector<8x120xbf16>, vector<120x84xbf16>, vector<8x84xf32> -> vector<8x84xf32>
    %361 = arith.addf %359, %360 : vector<8x84xf32>
    %362 = arith.addf %358, %361 : vector<8x84xf32>
    %c0_133 = arith.constant 0 : index
    %c0_134 = arith.constant 0 : index
    %363 = vector.load %arg9[%c0_133, %c0_134] : memref<1x84xf32, #tpu.memory_space<vmem>>, vector<1x84xf32>
    %364 = vector.broadcast %363 : vector<1x84xf32> to vector<8x84xf32>
    %365 = arith.addf %362, %364 : vector<8x84xf32>
    %cst_135 = arith.constant 0.000000e+00 : f32
    %366 = vector.broadcast %cst_135 : f32 to vector<8x84xf32>
    %367 = arith.subf %366, %365 : vector<8x84xf32>
    %368 = math.exp %367 : vector<8x84xf32>
    %cst_136 = arith.constant 1.000000e+00 : f32
    %369 = vector.broadcast %cst_136 : f32 to vector<8x84xf32>
    %370 = arith.addf %369, %368 : vector<8x84xf32>
    %cst_137 = arith.constant 1.000000e+00 : f32
    %371 = vector.broadcast %cst_137 : f32 to vector<8x84xf32>
    %372 = arith.divf %371, %370 : vector<8x84xf32>
    %373 = arith.truncf %372 : vector<8x84xf32> to vector<8x84xbf16>
    %374 = arith.extf %373 : vector<8x84xbf16> to vector<8x84xf32>
    %375 = arith.subf %372, %374 : vector<8x84xf32>
    %376 = arith.truncf %375 : vector<8x84xf32> to vector<8x84xbf16>
    %cst_138 = arith.constant dense<0.000000e+00> : vector<8x128xf32>
    %377 = tpu.matmul %373, %71, %cst_138 {dimension_numbers = #tpu.dot_dimension_numbers<[1], [0], [0], [1], [0, 0, 1, 1], [], []>} : vector<8x84xbf16>, vector<84x128xbf16>, vector<8x128xf32> -> vector<8x128xf32>
    %cst_139 = arith.constant dense<0.000000e+00> : vector<8x128xf32>
    %378 = tpu.matmul %373, %74, %cst_139 {dimension_numbers = #tpu.dot_dimension_numbers<[1], [0], [0], [1], [0, 0, 1, 1], [], []>} : vector<8x84xbf16>, vector<84x128xbf16>, vector<8x128xf32> -> vector<8x128xf32>
    %cst_140 = arith.constant dense<0.000000e+00> : vector<8x128xf32>
    %379 = tpu.matmul %376, %71, %cst_140 {dimension_numbers = #tpu.dot_dimension_numbers<[1], [0], [0], [1], [0, 0, 1, 1], [], []>} : vector<8x84xbf16>, vector<84x128xbf16>, vector<8x128xf32> -> vector<8x128xf32>
    %380 = arith.addf %378, %379 : vector<8x128xf32>
    %381 = arith.addf %377, %380 : vector<8x128xf32>
    %c0_141 = arith.constant 0 : index
    %c0_142 = arith.constant 0 : index
    %382 = vector.load %arg11[%c0_141, %c0_142] : memref<1x128xf32, #tpu.memory_space<vmem>>, vector<1x128xf32>
    %383 = vector.broadcast %382 : vector<1x128xf32> to vector<8x128xf32>
    %384 = arith.addf %381, %383 : vector<8x128xf32>
    %c0_143 = arith.constant 0 : index
    %c0_144 = arith.constant 0 : index
    %385 = vector.load %arg12[%c0_143, %c0_144] : memref<8x128xf32, #tpu.memory_space<vmem>>, vector<8x128xf32>
    tpu.vector_store %arg12[%c0_143, %c0_144], %384 {strides = array<i32>} : memref<8x128xf32, #tpu.memory_space<vmem>>, vector<8x128xf32>,
    return
  }
  func.func @transform_0(%arg0: i32) -> (i32, i32, i32, i32) {
    %c0_i32 = arith.constant 0 : i32
    %c0_i32_0 = arith.constant 0 : i32
    %c0_i32_1 = arith.constant 0 : i32
    %c0_i32_2 = arith.constant 0 : i32
    return %c0_i32, %c0_i32_0, %arg0, %c0_i32_1 : i32, i32, i32, i32
  }
  func.func @transform_1(%arg0: i32) -> (i32, i32) {
    %c0_i32 = arith.constant 0 : i32
    %c0_i32_0 = arith.constant 0 : i32
    %c0_i32_1 = arith.constant 0 : i32
    return %c0_i32, %c0_i32_0 : i32, i32
  }
  func.func @transform_2(%arg0: i32) -> (i32, i32) {
    %c0_i32 = arith.constant 0 : i32
    %c0_i32_0 = arith.constant 0 : i32
    %c0_i32_1 = arith.constant 0 : i32
    return %c0_i32, %c0_i32_0 : i32, i32
  }
  func.func @transform_3(%arg0: i32) -> (i32, i32, i32) {
    %c0_i32 = arith.constant 0 : i32
    %c0_i32_0 = arith.constant 0 : i32
    %c0_i32_1 = arith.constant 0 : i32
    %c0_i32_2 = arith.constant 0 : i32
    return %c0_i32, %c0_i32_0, %c0_i32_1 : i32, i32, i32
  }
  func.func @transform_4(%arg0: i32) -> (i32, i32) {
    %c0_i32 = arith.constant 0 : i32
    %c0_i32_0 = arith.constant 0 : i32
    %c0_i32_1 = arith.constant 0 : i32
    return %c0_i32, %c0_i32_0 : i32, i32
  }
  func.func @transform_5(%arg0: i32) -> (i32, i32, i32) {
    %c0_i32 = arith.constant 0 : i32
    %c0_i32_0 = arith.constant 0 : i32
    %c0_i32_1 = arith.constant 0 : i32
    %c0_i32_2 = arith.constant 0 : i32
    return %c0_i32, %c0_i32_0, %c0_i32_1 : i32, i32, i32
  }
  func.func @transform_6(%arg0: i32) -> (i32, i32) {
    %c0_i32 = arith.constant 0 : i32
    %c0_i32_0 = arith.constant 0 : i32
    %c0_i32_1 = arith.constant 0 : i32
    return %c0_i32, %c0_i32_0 : i32, i32
  }
  func.func @transform_7(%arg0: i32) -> (i32, i32) {
    %c0_i32 = arith.constant 0 : i32
    %c0_i32_0 = arith.constant 0 : i32
    %c0_i32_1 = arith.constant 0 : i32
    return %c0_i32, %c0_i32_0 : i32, i32
  }
  func.func @transform_8(%arg0: i32) -> (i32, i32) {
    %c0_i32 = arith.constant 0 : i32
    %c0_i32_0 = arith.constant 0 : i32
    %c0_i32_1 = arith.constant 0 : i32
    return %c0_i32, %c0_i32_0 : i32, i32
  }
  func.func @transform_9(%arg0: i32) -> (i32, i32) {
    %c0_i32 = arith.constant 0 : i32
    %c0_i32_0 = arith.constant 0 : i32
    %c0_i32_1 = arith.constant 0 : i32
    return %c0_i32, %c0_i32_0 : i32, i32
  }
  func.func @transform_10(%arg0: i32) -> (i32, i32) {
    %c0_i32 = arith.constant 0 : i32
    %c0_i32_0 = arith.constant 0 : i32
    %c0_i32_1 = arith.constant 0 : i32
    return %c0_i32, %c0_i32_0 : i32, i32
  }
  func.func @transform_11(%arg0: i32) -> (i32, i32) {
    %c0_i32 = arith.constant 0 : i32
    %c0_i32_0 = arith.constant 0 : i32
    return %arg0, %c0_i32 : i32, i32
  }
}

</mosaic_0001>

<llo_original>
// kernel: tpu_custom_call.1
$region0: #{tpu_custom_call.1}
  #allocation0 [shape = 'u32[]', space=smem, size = 0x4, offset = 0x4, fixed_abs, tag = 'smem constant byte address 0x4 - core index']
  #allocation1 [shape = 'u32[144,128]{1,0:T(1,128)}', space=vmem, size = 0x12000, scoped, tag = 'internal scratch']
  %s0 = inlined_call_operand.vmem [shape: f32[4,7,8,160], index: 0, kind: input, shape index: {}]
  %s1 = inlined_call_operand.vmem [shape: f32[160,168], index: 1, kind: input, shape index: {}]
  %s2 = inlined_call_operand.vmem [shape: f32[1,168], index: 2, kind: input, shape index: {}]
  %s3 = inlined_call_operand.vmem [shape: f32[5,168,160], index: 3, kind: input, shape index: {}]
  %s4 = inlined_call_operand.vmem [shape: f32[1,160], index: 4, kind: input, shape index: {}]
  %s5 = inlined_call_operand.vmem [shape: f32[5,160,120], index: 5, kind: input, shape index: {}]
  %s6 = inlined_call_operand.vmem [shape: f32[1,120], index: 6, kind: input, shape index: {}]
  %s7 = inlined_call_operand.vmem [shape: f32[120,84], index: 7, kind: input, shape index: {}]
  %s8 = inlined_call_operand.vmem [shape: f32[1,84], index: 8, kind: input, shape index: {}]
  %s9 = inlined_call_operand.vmem [shape: f32[84,128], index: 9, kind: input, shape index: {}]
  %s10 = inlined_call_operand.vmem [shape: f32[1,128], index: 10, kind: input, shape index: {}]
  %s11 = inlined_call_operand.hbm [shape: f32[8,128], index: 11, kind: output, shape index: {}]
  %s12 = sld [smem:[#allocation0]]
  $region54: #{tpu_custom_call.1} parent=0
    _
  %s14 = ssub.s32 1, %s12
  %s15 = scalar_select 0, %s14, %s12
  $region1: #{tpu_custom_call.1} parent=0
    #allocation2 [shape = 'u8[4096]{0}', space=vmem, size = 0x1000, scoped, tag = 'output window, operand 0, single buffered']
    #allocation3 [shape = 's32[1]{0}', space=sflag, size = 0x4, scoped, tag = 'scoped memory for tpu_custom_call.1']
    %16 = vsyncpa [#allocation3], 0
    // Predicated region
    $region2: #{tpu_custom_call.1} parent=1 // pred_check
      _
    $region3: #{tpu_custom_call.1} parent=1 // pred_check_branch
      %18 = sbr.rel (0) target = $region5
    $region4: #{tpu_custom_call.1} parent=1 // pred_region
      _
    $region5: #{tpu_custom_call.1} parent=1 // pred_fallthru
      _
    // Predicated region
    $region6: #{tpu_custom_call.1} parent=1 // pred_check
      _
    $region7: #{tpu_custom_call.1} parent=1 // pred_check_branch
      %20 = sbr.rel (0) target = $region9
    $region8: #{tpu_custom_call.1} parent=1 // pred_region
      _
    $region9: #{tpu_custom_call.1} parent=1 // pred_fallthru
      _
    // Predicated region
    $region10: #{tpu_custom_call.1} parent=1 // pred_check
      _
    $region11: #{tpu_custom_call.1} parent=1 // pred_check_branch
      %22 = sbr.rel (0) target = $region13
    $region12: #{tpu_custom_call.1} parent=1 // pred_region
      _
    $region13: #{tpu_custom_call.1} parent=1 // pred_fallthru
      _
    // Predicated region
    $region14: #{tpu_custom_call.1} parent=1 // pred_check
      _
    $region15: #{tpu_custom_call.1} parent=1 // pred_check_branch
      %24 = sbr.rel (0) target = $region17
    $region16: #{tpu_custom_call.1} parent=1 // pred_region
      _
    $region17: #{tpu_custom_call.1} parent=1 // pred_fallthru
      _
    // Predicated region
    $region18: #{tpu_custom_call.1} parent=1 // pred_check
      _
    $region19: #{tpu_custom_call.1} parent=1 // pred_check_branch
      %26 = sbr.rel (0) target = $region21
    $region20: #{tpu_custom_call.1} parent=1 // pred_region
      _
    $region21: #{tpu_custom_call.1} parent=1 // pred_fallthru
      _
    // Predicated region
    $region22: #{tpu_custom_call.1} parent=1 // pred_check
      _
    $region23: #{tpu_custom_call.1} parent=1 // pred_check_branch
      %28 = sbr.rel (0) target = $region25
    $region24: #{tpu_custom_call.1} parent=1 // pred_region
      _
    $region25: #{tpu_custom_call.1} parent=1 // pred_fallthru
      _
    // Predicated region
    $region26: #{tpu_custom_call.1} parent=1 // pred_check
      _
    $region27: #{tpu_custom_call.1} parent=1 // pred_check_branch
      %30 = sbr.rel (0) target = $region29
    $region28: #{tpu_custom_call.1} parent=1 // pred_region
      _
    $region29: #{tpu_custom_call.1} parent=1 // pred_fallthru
      _
    // Predicated region
    $region30: #{tpu_custom_call.1} parent=1 // pred_check
      _
    $region31: #{tpu_custom_call.1} parent=1 // pred_check_branch
      %32 = sbr.rel (0) target = $region33
    $region32: #{tpu_custom_call.1} parent=1 // pred_region
      _
    $region33: #{tpu_custom_call.1} parent=1 // pred_fallthru
      _
    // Predicated region
    $region34: #{tpu_custom_call.1} parent=1 // pred_check
      _
    $region35: #{tpu_custom_call.1} parent=1 // pred_check_branch
      %34 = sbr.rel (0) target = $region37
    $region36: #{tpu_custom_call.1} parent=1 // pred_region
      _
    $region37: #{tpu_custom_call.1} parent=1 // pred_fallthru
      _
    // Predicated region
    $region38: #{tpu_custom_call.1} parent=1 // pred_check
      _
    $region39: #{tpu_custom_call.1} parent=1 // pred_check_branch
      %36 = sbr.rel (0) target = $region41
    $region40: #{tpu_custom_call.1} parent=1 // pred_region
      _
    $region41: #{tpu_custom_call.1} parent=1 // pred_fallthru
      _
    // Predicated region
    $region42: #{tpu_custom_call.1} parent=1 // pred_check
      _
    $region43: #{tpu_custom_call.1} parent=1 // pred_check_branch
      %38 = sbr.rel (0) target = $region45
    $region44: #{tpu_custom_call.1} parent=1 // pred_region
      _
    $region45: #{tpu_custom_call.1} parent=1 // pred_fallthru
      _
    %v40 = vld [vmem:[%s1] sm:$0xff]
    %v41 = vld [vmem:[%s1 + $0x8] sm:$0xff]
    %v42 = vld [vmem:[%s1 + $0x10] sm:$0xff]
    %v43 = vld [vmem:[%s1 + $0x18] sm:$0xff]
    %v44 = vld [vmem:[%s1 + $0x20] sm:$0xff]
    %v45 = vld [vmem:[%s1 + $0x28] sm:$0xff]
    %v46 = vld [vmem:[%s1 + $0x30] sm:$0xff]
    %v47 = vld [vmem:[%s1 + $0x38] sm:$0xff]
    %v48 = vld [vmem:[%s1 + $0x40] sm:$0xff]
    %v49 = vld [vmem:[%s1 + $0x48] sm:$0xff]
    %v50 = vld [vmem:[%s1 + $0x50] sm:$0xff]
    %v51 = vld [vmem:[%s1 + $0x58] sm:$0xff]
    %v52 = vld [vmem:[%s1 + $0x60] sm:$0xff]
    %v53 = vld [vmem:[%s1 + $0x68] sm:$0xff]
    %v54 = vld [vmem:[%s1 + $0x70] sm:$0xff]
    %v55 = vld [vmem:[%s1 + $0x78] sm:$0xff]
    %v56 = vld [vmem:[%s1 + $0x80] sm:$0xff]
    %v57 = vld [vmem:[%s1 + $0x88] sm:$0xff]
    %v58 = vld [vmem:[%s1 + $0x90] sm:$0xff]
    %v59 = vld [vmem:[%s1 + $0x98] sm:$0xff]
    %v60 = vld [vmem:[%s1 + $0xa0] sm:$0xff]
    %v61 = vld [vmem:[%s1 + $0xa8] sm:$0xff]
    %v62 = vld [vmem:[%s1 + $0xb0] sm:$0xff]
    %v63 = vld [vmem:[%s1 + $0xb8] sm:$0xff]
    %v64 = vld [vmem:[%s1 + $0xc0] sm:$0xff]
    %v65 = vld [vmem:[%s1 + $0xc8] sm:$0xff]
    %v66 = vld [vmem:[%s1 + $0xd0] sm:$0xff]
    %v67 = vld [vmem:[%s1 + $0xd8] sm:$0xff]
    %v68 = vld [vmem:[%s1 + $0xe0] sm:$0xff]
    %v69 = vld [vmem:[%s1 + $0xe8] sm:$0xff]
    %v70 = vld [vmem:[%s1 + $0xf0] sm:$0xff]
    %v71 = vld [vmem:[%s1 + $0xf8] sm:$0xff]
    %v72 = vld [vmem:[%s1 + $0x100] sm:$0xff]
    %v73 = vld [vmem:[%s1 + $0x108] sm:$0xff]
    %v74 = vld [vmem:[%s1 + $0x110] sm:$0xff]
    %v75 = vld [vmem:[%s1 + $0x118] sm:$0xff]
    %v76 = vld [vmem:[%s1 + $0x120] sm:$0xff]
    %v77 = vld [vmem:[%s1 + $0x128] sm:$0xff]
    %v78 = vld [vmem:[%s1 + $0x130] sm:$0xff]
    %v79 = vld [vmem:[%s1 + $0x138] sm:$0xff]
    %v80 = vpack.c.bf16 %v42, %v40
    %v81 = vpack.c.bf16 %v43, %v41
    %v82 = vpack.c.bf16 %v46, %v44
    %v83 = vpack.c.bf16 %v47, %v45
    %v84 = vpack.c.bf16 %v50, %v48
    %v85 = vpack.c.bf16 %v51, %v49
    %v86 = vpack.c.bf16 %v54, %v52
    %v87 = vpack.c.bf16 %v55, %v53
    %v88 = vpack.c.bf16 %v58, %v56
    %v89 = vpack.c.bf16 %v59, %v57
    %v90 = vpack.c.bf16 %v62, %v60
    %v91 = vpack.c.bf16 %v63, %v61
    %v92 = vpack.c.bf16 %v66, %v64
    %v93 = vpack.c.bf16 %v67, %v65
    %v94 = vpack.c.bf16 %v70, %v68
    %v95 = vpack.c.bf16 %v71, %v69
    %v96 = vpack.c.bf16 %v74, %v72
    %v97 = vpack.c.bf16 %v75, %v73
    %v98 = vpack.c.bf16 %v78, %v76
    %v99 = vpack.c.bf16 %v79, %v77
    %v100 = vunpack.c.l.bf16 %v80
    %v101 = vunpack.c.l.bf16 %v81
    %v102 = vunpack.c.h.bf16 %v80
    %v103 = vunpack.c.h.bf16 %v81
    %v104 = vunpack.c.l.bf16 %v82
    %v105 = vunpack.c.l.bf16 %v83
    %v106 = vunpack.c.h.bf16 %v82
    %v107 = vunpack.c.h.bf16 %v83
    %v108 = vunpack.c.l.bf16 %v84
    %v109 = vunpack.c.l.bf16 %v85
    %v110 = vunpack.c.h.bf16 %v84
    %v111 = vunpack.c.h.bf16 %v85
    %v112 = vunpack.c.l.bf16 %v86
    %v113 = vunpack.c.l.bf16 %v87
    %v114 = vunpack.c.h.bf16 %v86
    %v115 = vunpack.c.h.bf16 %v87
    %v116 = vunpack.c.l.bf16 %v88
    %v117 = vunpack.c.l.bf16 %v89
    %v118 = vunpack.c.h.bf16 %v88
    %v119 = vunpack.c.h.bf16 %v89
    %v120 = vunpack.c.l.bf16 %v90
    %v121 = vunpack.c.l.bf16 %v91
    %v122 = vunpack.c.h.bf16 %v90
    %v123 = vunpack.c.h.bf16 %v91
    %v124 = vunpack.c.l.bf16 %v92
    %v125 = vunpack.c.l.bf16 %v93
    %v126 = vunpack.c.h.bf16 %v92
    %v127 = vunpack.c.h.bf16 %v93
    %v128 = vunpack.c.l.bf16 %v94
    %v129 = vunpack.c.l.bf16 %v95
    %v130 = vunpack.c.h.bf16 %v94
    %v131 = vunpack.c.h.bf16 %v95
    %v132 = vunpack.c.l.bf16 %v96
    %v133 = vunpack.c.l.bf16 %v97
    %v134 = vunpack.c.h.bf16 %v96
    %v135 = vunpack.c.h.bf16 %v97
    %v136 = vunpack.c.l.bf16 %v98
    %v137 = vunpack.c.l.bf16 %v99
    %v138 = vunpack.c.h.bf16 %v98
    %v139 = vunpack.c.h.bf16 %v99
    %v140 = vsub.f32 %v40, %v100
    %v141 = vsub.f32 %v41, %v101
    %v142 = vsub.f32 %v42, %v102
    %v143 = vsub.f32 %v43, %v103
    %v144 = vsub.f32 %v44, %v104
    %v145 = vsub.f32 %v45, %v105
    %v146 = vsub.f32 %v46, %v106
    %v147 = vsub.f32 %v47, %v107
    %v148 = vsub.f32 %v48, %v108
    %v149 = vsub.f32 %v49, %v109
    %v150 = vsub.f32 %v50, %v110
    %v151 = vsub.f32 %v51, %v111
    %v152 = vsub.f32 %v52, %v112
    %v153 = vsub.f32 %v53, %v113
    %v154 = vsub.f32 %v54, %v114
    %v155 = vsub.f32 %v55, %v115
    %v156 = vsub.f32 %v56, %v116
    %v157 = vsub.f32 %v57, %v117
    %v158 = vsub.f32 %v58, %v118
    %v159 = vsub.f32 %v59, %v119
    %v160 = vsub.f32 %v60, %v120
    %v161 = vsub.f32 %v61, %v121
    %v162 = vsub.f32 %v62, %v122
    %v163 = vsub.f32 %v63, %v123
    %v164 = vsub.f32 %v64, %v124
    %v165 = vsub.f32 %v65, %v125
    %v166 = vsub.f32 %v66, %v126
    %v167 = vsub.f32 %v67, %v127
    %v168 = vsub.f32 %v68, %v128
    %v169 = vsub.f32 %v69, %v129
    %v170 = vsub.f32 %v70, %v130
    %v171 = vsub.f32 %v71, %v131
    %v172 = vsub.f32 %v72, %v132
    %v173 = vsub.f32 %v73, %v133
    %v174 = vsub.f32 %v74, %v134
    %v175 = vsub.f32 %v75, %v135
    %v176 = vsub.f32 %v76, %v136
    %v177 = vsub.f32 %v77, %v137
    %v178 = vsub.f32 %v78, %v138
    %v179 = vsub.f32 %v79, %v139
    %v180 = vpack.c.bf16 %v142, %v140
    %v181 = vpack.c.bf16 %v143, %v141
    %v182 = vpack.c.bf16 %v146, %v144
    %v183 = vpack.c.bf16 %v147, %v145
    %v184 = vpack.c.bf16 %v150, %v148
    %v185 = vpack.c.bf16 %v151, %v149
    %v186 = vpack.c.bf16 %v154, %v152
    %v187 = vpack.c.bf16 %v155, %v153
    %v188 = vpack.c.bf16 %v158, %v156
    %v189 = vpack.c.bf16 %v159, %v157
    %v190 = vpack.c.bf16 %v162, %v160
    %v191 = vpack.c.bf16 %v163, %v161
    %v192 = vpack.c.bf16 %v166, %v164
    %v193 = vpack.c.bf16 %v167, %v165
    %v194 = vpack.c.bf16 %v170, %v168
    %v195 = vpack.c.bf16 %v171, %v169
    %v196 = vpack.c.bf16 %v174, %v172
    %v197 = vpack.c.bf16 %v175, %v173
    %v198 = vpack.c.bf16 %v178, %v176
    %v199 = vpack.c.bf16 %v179, %v177
    %v200 = vld [vmem:[%s3] sm:$0xff]
    %v201 = vld [vmem:[%s3 + $0x8] sm:$0xff]
    %v202 = vld [vmem:[%s3 + $0x10] sm:$0xff]
    %v203 = vld [vmem:[%s3 + $0x18] sm:$0xff]
    %v204 = vld [vmem:[%s3 + $0x20] sm:$0xff]
    %v205 = vld [vmem:[%s3 + $0x28] sm:$0xff]
    %v206 = vld [vmem:[%s3 + $0x30] sm:$0xff]
    %v207 = vld [vmem:[%s3 + $0x38] sm:$0xff]
    %v208 = vld [vmem:[%s3 + $0x40] sm:$0xff]
    %v209 = vld [vmem:[%s3 + $0x48] sm:$0xff]
    %v210 = vld [vmem:[%s3 + $0x50] sm:$0xff]
    %v211 = vld [vmem:[%s3 + $0x58] sm:$0xff]
    %v212 = vld [vmem:[%s3 + $0x60] sm:$0xff]
    %v213 = vld [vmem:[%s3 + $0x68] sm:$0xff]
    %v214 = vld [vmem:[%s3 + $0x70] sm:$0xff]
    %v215 = vld [vmem:[%s3 + $0x78] sm:$0xff]
    %v216 = vld [vmem:[%s3 + $0x80] sm:$0xff]
    %v217 = vld [vmem:[%s3 + $0x88] sm:$0xff]
    %v218 = vld [vmem:[%s3 + $0x90] sm:$0xff]
    %v219 = vld [vmem:[%s3 + $0x98] sm:$0xff]
    %v220 = vld [vmem:[%s3 + $0xa0] sm:$0xff]
    %v221 = vld [vmem:[%s3 + $0xa8] sm:$0xff]
    %v222 = vld [vmem:[%s3 + $0xb0] sm:$0xff]
    %v223 = vld [vmem:[%s3 + $0xb8] sm:$0xff]
    %v224 = vld [vmem:[%s3 + $0xc0] sm:$0xff]
    %v225 = vld [vmem:[%s3 + $0xc8] sm:$0xff]
    %v226 = vld [vmem:[%s3 + $0xd0] sm:$0xff]
    %v227 = vld [vmem:[%s3 + $0xd8] sm:$0xff]
    %v228 = vld [vmem:[%s3 + $0xe0] sm:$0xff]
    %v229 = vld [vmem:[%s3 + $0xe8] sm:$0xff]
    %v230 = vld [vmem:[%s3 + $0xf0] sm:$0xff]
    %v231 = vld [vmem:[%s3 + $0xf8] sm:$0xff]
    %v232 = vld [vmem:[%s3 + $0x100] sm:$0xff]
    %v233 = vld [vmem:[%s3 + $0x108] sm:$0xff]
    %v234 = vld [vmem:[%s3 + $0x110] sm:$0xff]
    %v235 = vld [vmem:[%s3 + $0x118] sm:$0xff]
    %v236 = vld [vmem:[%s3 + $0x120] sm:$0xff]
    %v237 = vld [vmem:[%s3 + $0x128] sm:$0xff]
    %v238 = vld [vmem:[%s3 + $0x130] sm:$0xff]
    %v239 = vld [vmem:[%s3 + $0x138] sm:$0xff]
    %v240 = vld [vmem:[%s3 + $0x140] sm:$0xff]
    %v241 = vld [vmem:[%s3 + $0x148] sm:$0xff]
    %v242 = vpack.c.bf16 %v202, %v200
    %v243 = vpack.c.bf16 %v203, %v201
    %v244 = vpack.c.bf16 %v206, %v204
    %v245 = vpack.c.bf16 %v207, %v205
    %v246 = vpack.c.bf16 %v210, %v208
    %v247 = vpack.c.bf16 %v211, %v209
    %v248 = vpack.c.bf16 %v214, %v212
    %v249 = vpack.c.bf16 %v215, %v213
    %v250 = vpack.c.bf16 %v218, %v216
    %v251 = vpack.c.bf16 %v219, %v217
    %v252 = vpack.c.bf16 %v222, %v220
    %v253 = vpack.c.bf16 %v223, %v221
    %v254 = vpack.c.bf16 %v226, %v224
    %v255 = vpack.c.bf16 %v227, %v225
    %v256 = vpack.c.bf16 %v230, %v228
    %v257 = vpack.c.bf16 %v231, %v229
    %v258 = vpack.c.bf16 %v234, %v232
    %v259 = vpack.c.bf16 %v235, %v233
    %v260 = vpack.c.bf16 %v238, %v236
    %v261 = vpack.c.bf16 %v239, %v237
    %v262 = vpack.c.bf16 %v240, %v240
    %v263 = vpack.c.bf16 %v241, %v241
    %v264 = vunpack.c.l.bf16 %v242
    %v265 = vunpack.c.l.bf16 %v243
    %v266 = vunpack.c.h.bf16 %v242
    %v267 = vunpack.c.h.bf16 %v243
    %v268 = vunpack.c.l.bf16 %v244
    %v269 = vunpack.c.l.bf16 %v245
    %v270 = vunpack.c.h.bf16 %v244
    %v271 = vunpack.c.h.bf16 %v245
    %v272 = vunpack.c.l.bf16 %v246
    %v273 = vunpack.c.l.bf16 %v247
    %v274 = vunpack.c.h.bf16 %v246
    %v275 = vunpack.c.h.bf16 %v247
    %v276 = vunpack.c.l.bf16 %v248
    %v277 = vunpack.c.l.bf16 %v249
    %v278 = vunpack.c.h.bf16 %v248
    %v279 = vunpack.c.h.bf16 %v249
    %v280 = vunpack.c.l.bf16 %v250
    %v281 = vunpack.c.l.bf16 %v251
    %v282 = vunpack.c.h.bf16 %v250
    %v283 = vunpack.c.h.bf16 %v251
    %v284 = vunpack.c.l.bf16 %v252
    %v285 = vunpack.c.l.bf16 %v253
    %v286 = vunpack.c.h.bf16 %v252
    %v287 = vunpack.c.h.bf16 %v253
    %v288 = vunpack.c.l.bf16 %v254
    %v289 = vunpack.c.l.bf16 %v255
    %v290 = vunpack.c.h.bf16 %v254
    %v291 = vunpack.c.h.bf16 %v255
    %v292 = vunpack.c.l.bf16 %v256
    %v293 = vunpack.c.l.bf16 %v257
    %v294 = vunpack.c.h.bf16 %v256
    %v295 = vunpack.c.h.bf16 %v257
    %v296 = vunpack.c.l.bf16 %v258
    %v297 = vunpack.c.l.bf16 %v259
    %v298 = vunpack.c.h.bf16 %v258
    %v299 = vunpack.c.h.bf16 %v259
    %v300 = vunpack.c.l.bf16 %v260
    %v301 = vunpack.c.l.bf16 %v261
    %v302 = vunpack.c.h.bf16 %v260
    %v303 = vunpack.c.h.bf16 %v261
    %v304 = vunpack.c.l.bf16 %v262
    %v305 = vunpack.c.l.bf16 %v263
    %v306 = vsub.f32 %v200, %v264
    %v307 = vsub.f32 %v201, %v265
    %v308 = vsub.f32 %v202, %v266
    %v309 = vsub.f32 %v203, %v267
    %v310 = vsub.f32 %v204, %v268
    %v311 = vsub.f32 %v205, %v269
    %v312 = vsub.f32 %v206, %v270
    %v313 = vsub.f32 %v207, %v271
    %v314 = vsub.f32 %v208, %v272
    %v315 = vsub.f32 %v209, %v273
    %v316 = vsub.f32 %v210, %v274
    %v317 = vsub.f32 %v211, %v275
    %v318 = vsub.f32 %v212, %v276
    %v319 = vsub.f32 %v213, %v277
    %v320 = vsub.f32 %v214, %v278
    %v321 = vsub.f32 %v215, %v279
    %v322 = vsub.f32 %v216, %v280
    %v323 = vsub.f32 %v217, %v281
    %v324 = vsub.f32 %v218, %v282
    %v325 = vsub.f32 %v219, %v283
    %v326 = vsub.f32 %v220, %v284
    %v327 = vsub.f32 %v221, %v285
    %v328 = vsub.f32 %v222, %v286
    %v329 = vsub.f32 %v223, %v287
    %v330 = vsub.f32 %v224, %v288
    %v331 = vsub.f32 %v225, %v289
    %v332 = vsub.f32 %v226, %v290
    %v333 = vsub.f32 %v227, %v291
    %v334 = vsub.f32 %v228, %v292
    %v335 = vsub.f32 %v229, %v293
    %v336 = vsub.f32 %v230, %v294
    %v337 = vsub.f32 %v231, %v295
    %v338 = vsub.f32 %v232, %v296
    %v339 = vsub.f32 %v233, %v297
    %v340 = vsub.f32 %v234, %v298
    %v341 = vsub.f32 %v235, %v299
    %v342 = vsub.f32 %v236, %v300
    %v343 = vsub.f32 %v237, %v301
    %v344 = vsub.f32 %v238, %v302
    %v345 = vsub.f32 %v239, %v303
    %v346 = vsub.f32 %v240, %v304
    %v347 = vsub.f32 %v241, %v305
    %v348 = vpack.c.bf16 %v308, %v306
    %v349 = vpack.c.bf16 %v309, %v307
    %v350 = vpack.c.bf16 %v312, %v310
    %v351 = vpack.c.bf16 %v313, %v311
    %v352 = vpack.c.bf16 %v316, %v314
    %v353 = vpack.c.bf16 %v317, %v315
    %v354 = vpack.c.bf16 %v320, %v318
    %v355 = vpack.c.bf16 %v321, %v319
    %v356 = vpack.c.bf16 %v324, %v322
    %v357 = vpack.c.bf16 %v325, %v323
    %v358 = vpack.c.bf16 %v328, %v326
    %v359 = vpack.c.bf16 %v329, %v327
    %v360 = vpack.c.bf16 %v332, %v330
    %v361 = vpack.c.bf16 %v333, %v331
    %v362 = vpack.c.bf16 %v336, %v334
    %v363 = vpack.c.bf16 %v337, %v335
    %v364 = vpack.c.bf16 %v340, %v338
    %v365 = vpack.c.bf16 %v341, %v339
    %v366 = vpack.c.bf16 %v344, %v342
    %v367 = vpack.c.bf16 %v345, %v343
    %v368 = vpack.c.bf16 %v346, %v346
    %v369 = vpack.c.bf16 %v347, %v347
    %s370 = scalar_lea.vmem %s3, 336
    %v371 = vld [vmem:[%s370] sm:$0xff]
    %v372 = vld [vmem:[%s370 + $0x8] sm:$0xff]
    %v373 = vld [vmem:[%s370 + $0x10] sm:$0xff]
    %v374 = vld [vmem:[%s370 + $0x18] sm:$0xff]
    %v375 = vld [vmem:[%s370 + $0x20] sm:$0xff]
    %v376 = vld [vmem:[%s370 + $0x28] sm:$0xff]
    %v377 = vld [vmem:[%s370 + $0x30] sm:$0xff]
    %v378 = vld [vmem:[%s370 + $0x38] sm:$0xff]
    %v379 = vld [vmem:[%s370 + $0x40] sm:$0xff]
    %v380 = vld [vmem:[%s370 + $0x48] sm:$0xff]
    %v381 = vld [vmem:[%s370 + $0x50] sm:$0xff]
    %v382 = vld [vmem:[%s370 + $0x58] sm:$0xff]
    %v383 = vld [vmem:[%s370 + $0x60] sm:$0xff]
    %v384 = vld [vmem:[%s370 + $0x68] sm:$0xff]
    %v385 = vld [vmem:[%s370 + $0x70] sm:$0xff]
    %v386 = vld [vmem:[%s370 + $0x78] sm:$0xff]
    %v387 = vld [vmem:[%s370 + $0x80] sm:$0xff]
    %v388 = vld [vmem:[%s370 + $0x88] sm:$0xff]
    %v389 = vld [vmem:[%s370 + $0x90] sm:$0xff]
    %v390 = vld [vmem:[%s370 + $0x98] sm:$0xff]
    %v391 = vld [vmem:[%s370 + $0xa0] sm:$0xff]
    %v392 = vld [vmem:[%s370 + $0xa8] sm:$0xff]
    %v393 = vld [vmem:[%s370 + $0xb0] sm:$0xff]
    %v394 = vld [vmem:[%s370 + $0xb8] sm:$0xff]
    %v395 = vld [vmem:[%s370 + $0xc0] sm:$0xff]
    %v396 = vld [vmem:[%s370 + $0xc8] sm:$0xff]
    %v397 = vld [vmem:[%s370 + $0xd0] sm:$0xff]
    %v398 = vld [vmem:[%s370 + $0xd8] sm:$0xff]
    %v399 = vld [vmem:[%s370 + $0xe0] sm:$0xff]
    %v400 = vld [vmem:[%s370 + $0xe8] sm:$0xff]
    %v401 = vld [vmem:[%s370 + $0xf0] sm:$0xff]
    %v402 = vld [vmem:[%s370 + $0xf8] sm:$0xff]
    %v403 = vld [vmem:[%s370 + $0x100] sm:$0xff]
    %v404 = vld [vmem:[%s370 + $0x108] sm:$0xff]
    %v405 = vld [vmem:[%s370 + $0x110] sm:$0xff]
    %v406 = vld [vmem:[%s370 + $0x118] sm:$0xff]
    %v407 = vld [vmem:[%s370 + $0x120] sm:$0xff]
    %v408 = vld [vmem:[%s370 + $0x128] sm:$0xff]
    %v409 = vld [vmem:[%s370 + $0x130] sm:$0xff]
    %v410 = vld [vmem:[%s370 + $0x138] sm:$0xff]
    %v411 = vld [vmem:[%s370 + $0x140] sm:$0xff]
    %v412 = vld [vmem:[%s370 + $0x148] sm:$0xff]
    %v413 = vpack.c.bf16 %v373, %v371
    %v414 = vpack.c.bf16 %v374, %v372
    %v415 = vpack.c.bf16 %v377, %v375
    %v416 = vpack.c.bf16 %v378, %v376
    %v417 = vpack.c.bf16 %v381, %v379
    %v418 = vpack.c.bf16 %v382, %v380
    %v419 = vpack.c.bf16 %v385, %v383
    %v420 = vpack.c.bf16 %v386, %v384
    %v421 = vpack.c.bf16 %v389, %v387
    %v422 = vpack.c.bf16 %v390, %v388
    %v423 = vpack.c.bf16 %v393, %v391
    %v424 = vpack.c.bf16 %v394, %v392
    %v425 = vpack.c.bf16 %v397, %v395
    %v426 = vpack.c.bf16 %v398, %v396
    %v427 = vpack.c.bf16 %v401, %v399
    %v428 = vpack.c.bf16 %v402, %v400
    %v429 = vpack.c.bf16 %v405, %v403
    %v430 = vpack.c.bf16 %v406, %v404
    %v431 = vpack.c.bf16 %v409, %v407
    %v432 = vpack.c.bf16 %v410, %v408
    %v433 = vpack.c.bf16 %v411, %v411
    %v434 = vpack.c.bf16 %v412, %v412
    %v435 = vunpack.c.l.bf16 %v413
    %v436 = vunpack.c.l.bf16 %v414
    %v437 = vunpack.c.h.bf16 %v413
    %v438 = vunpack.c.h.bf16 %v414
    %v439 = vunpack.c.l.bf16 %v415
    %v440 = vunpack.c.l.bf16 %v416
    %v441 = vunpack.c.h.bf16 %v415
    %v442 = vunpack.c.h.bf16 %v416
    %v443 = vunpack.c.l.bf16 %v417
    %v444 = vunpack.c.l.bf16 %v418
    %v445 = vunpack.c.h.bf16 %v417
    %v446 = vunpack.c.h.bf16 %v418
    %v447 = vunpack.c.l.bf16 %v419
    %v448 = vunpack.c.l.bf16 %v420
    %v449 = vunpack.c.h.bf16 %v419
    %v450 = vunpack.c.h.bf16 %v420
    %v451 = vunpack.c.l.bf16 %v421
    %v452 = vunpack.c.l.bf16 %v422
    %v453 = vunpack.c.h.bf16 %v421
    %v454 = vunpack.c.h.bf16 %v422
    %v455 = vunpack.c.l.bf16 %v423
    %v456 = vunpack.c.l.bf16 %v424
    %v457 = vunpack.c.h.bf16 %v423
    %v458 = vunpack.c.h.bf16 %v424
    %v459 = vunpack.c.l.bf16 %v425
    %v460 = vunpack.c.l.bf16 %v426
    %v461 = vunpack.c.h.bf16 %v425
    %v462 = vunpack.c.h.bf16 %v426
    %v463 = vunpack.c.l.bf16 %v427
    %v464 = vunpack.c.l.bf16 %v428
    %v465 = vunpack.c.h.bf16 %v427
    %v466 = vunpack.c.h.bf16 %v428
    %v467 = vunpack.c.l.bf16 %v429
    %v468 = vunpack.c.l.bf16 %v430
    %v469 = vunpack.c.h.bf16 %v429
    %v470 = vunpack.c.h.bf16 %v430
    %v471 = vunpack.c.l.bf16 %v431
    %v472 = vunpack.c.l.bf16 %v432
    %v473 = vunpack.c.h.bf16 %v431
    %v474 = vunpack.c.h.bf16 %v432
    %v475 = vunpack.c.l.bf16 %v433
    %v476 = vunpack.c.l.bf16 %v434
    %v477 = vsub.f32 %v371, %v435
    %v478 = vsub.f32 %v372, %v436
    %v479 = vsub.f32 %v373, %v437
    %v480 = vsub.f32 %v374, %v438
    %v481 = vsub.f32 %v375, %v439
    %v482 = vsub.f32 %v376, %v440
    %v483 = vsub.f32 %v377, %v441
    %v484 = vsub.f32 %v378, %v442
    %v485 = vsub.f32 %v379, %v443
    %v486 = vsub.f32 %v380, %v444
    %v487 = vsub.f32 %v381, %v445
    %v488 = vsub.f32 %v382, %v446
    %v489 = vsub.f32 %v383, %v447
    %v490 = vsub.f32 %v384, %v448
    %v491 = vsub.f32 %v385, %v449
    %v492 = vsub.f32 %v386, %v450
    %v493 = vsub.f32 %v387, %v451
    %v494 = vsub.f32 %v388, %v452
    %v495 = vsub.f32 %v389, %v453
    %v496 = vsub.f32 %v390, %v454
    %v497 = vsub.f32 %v391, %v455
    %v498 = vsub.f32 %v392, %v456
    %v499 = vsub.f32 %v393, %v457
    %v500 = vsub.f32 %v394, %v458
    %v501 = vsub.f32 %v395, %v459
    %v502 = vsub.f32 %v396, %v460
    %v503 = vsub.f32 %v397, %v461
    %v504 = vsub.f32 %v398, %v462
    %v505 = vsub.f32 %v399, %v463
    %v506 = vsub.f32 %v400, %v464
    %v507 = vsub.f32 %v401, %v465
    %v508 = vsub.f32 %v402, %v466
    %v509 = vsub.f32 %v403, %v467
    %v510 = vsub.f32 %v404, %v468
    %v511 = vsub.f32 %v405, %v469
    %v512 = vsub.f32 %v406, %v470
    %v513 = vsub.f32 %v407, %v471
    %v514 = vsub.f32 %v408, %v472
    %v515 = vsub.f32 %v409, %v473
    %v516 = vsub.f32 %v410, %v474
    %v517 = vsub.f32 %v411, %v475
    %v518 = vsub.f32 %v412, %v476
    %v519 = vpack.c.bf16 %v479, %v477
    %v520 = vpack.c.bf16 %v480, %v478
    %v521 = vpack.c.bf16 %v483, %v481
    %v522 = vpack.c.bf16 %v484, %v482
    %v523 = vpack.c.bf16 %v487, %v485
    %v524 = vpack.c.bf16 %v488, %v486
    %v525 = vpack.c.bf16 %v491, %v489
    %v526 = vpack.c.bf16 %v492, %v490
    %v527 = vpack.c.bf16 %v495, %v493
    %v528 = vpack.c.bf16 %v496, %v494
    %v529 = vpack.c.bf16 %v499, %v497
    %v530 = vpack.c.bf16 %v500, %v498
    %v531 = vpack.c.bf16 %v503, %v501
    %v532 = vpack.c.bf16 %v504, %v502
    %v533 = vpack.c.bf16 %v507, %v505
    %v534 = vpack.c.bf16 %v508, %v506
    %v535 = vpack.c.bf16 %v511, %v509
    %v536 = vpack.c.bf16 %v512, %v510
    %v537 = vpack.c.bf16 %v515, %v513
    %v538 = vpack.c.bf16 %v516, %v514
    %v539 = vpack.c.bf16 %v517, %v517
    %v540 = vpack.c.bf16 %v518, %v518
    %s541 = scalar_lea.vmem %s3, 672
    %v542 = vld [vmem:[%s541] sm:$0xff]
    %v543 = vld [vmem:[%s541 + $0x8] sm:$0xff]
    %v544 = vld [vmem:[%s541 + $0x10] sm:$0xff]
    %v545 = vld [vmem:[%s541 + $0x18] sm:$0xff]
    %v546 = vld [vmem:[%s541 + $0x20] sm:$0xff]
    %v547 = vld [vmem:[%s541 + $0x28] sm:$0xff]
    %v548 = vld [vmem:[%s541 + $0x30] sm:$0xff]
    %v549 = vld [vmem:[%s541 + $0x38] sm:$0xff]
    %v550 = vld [vmem:[%s541 + $0x40] sm:$0xff]
    %v551 = vld [vmem:[%s541 + $0x48] sm:$0xff]
    %v552 = vld [vmem:[%s541 + $0x50] sm:$0xff]
    %v553 = vld [vmem:[%s541 + $0x58] sm:$0xff]
    %v554 = vld [vmem:[%s541 + $0x60] sm:$0xff]
    %v555 = vld [vmem:[%s541 + $0x68] sm:$0xff]
    %v556 = vld [vmem:[%s541 + $0x70] sm:$0xff]
    %v557 = vld [vmem:[%s541 + $0x78] sm:$0xff]
    %v558 = vld [vmem:[%s541 + $0x80] sm:$0xff]
    %v559 = vld [vmem:[%s541 + $0x88] sm:$0xff]
    %v560 = vld [vmem:[%s541 + $0x90] sm:$0xff]
    %v561 = vld [vmem:[%s541 + $0x98] sm:$0xff]
    %v562 = vld [vmem:[%s541 + $0xa0] sm:$0xff]
    %v563 = vld [vmem:[%s541 + $0xa8] sm:$0xff]
    %v564 = vld [vmem:[%s541 + $0xb0] sm:$0xff]
    %v565 = vld [vmem:[%s541 + $0xb8] sm:$0xff]
    %v566 = vld [vmem:[%s541 + $0xc0] sm:$0xff]
    %v567 = vld [vmem:[%s541 + $0xc8] sm:$0xff]
    %v568 = vld [vmem:[%s541 + $0xd0] sm:$0xff]
    %v569 = vld [vmem:[%s541 + $0xd8] sm:$0xff]
    %v570 = vld [vmem:[%s541 + $0xe0] sm:$0xff]
    %v571 = vld [vmem:[%s541 + $0xe8] sm:$0xff]
    %v572 = vld [vmem:[%s541 + $0xf0] sm:$0xff]
    %v573 = vld [vmem:[%s541 + $0xf8] sm:$0xff]
    %v574 = vld [vmem:[%s541 + $0x100] sm:$0xff]
    %v575 = vld [vmem:[%s541 + $0x108] sm:$0xff]
    %v576 = vld [vmem:[%s541 + $0x110] sm:$0xff]
    %v577 = vld [vmem:[%s541 + $0x118] sm:$0xff]
    %v578 = vld [vmem:[%s541 + $0x120] sm:$0xff]
    %v579 = vld [vmem:[%s541 + $0x128] sm:$0xff]
    %v580 = vld [vmem:[%s541 + $0x130] sm:$0xff]
    %v581 = vld [vmem:[%s541 + $0x138] sm:$0xff]
    %v582 = vld [vmem:[%s541 + $0x140] sm:$0xff]
    %v583 = vld [vmem:[%s541 + $0x148] sm:$0xff]
    %v584 = vpack.c.bf16 %v544, %v542
    %v585 = vpack.c.bf16 %v545, %v543
    %v586 = vpack.c.bf16 %v548, %v546
    %v587 = vpack.c.bf16 %v549, %v547
    %v588 = vpack.c.bf16 %v552, %v550
    %v589 = vpack.c.bf16 %v553, %v551
    %v590 = vpack.c.bf16 %v556, %v554
    %v591 = vpack.c.bf16 %v557, %v555
    %v592 = vpack.c.bf16 %v560, %v558
    %v593 = vpack.c.bf16 %v561, %v559
    %v594 = vpack.c.bf16 %v564, %v562
    %v595 = vpack.c.bf16 %v565, %v563
    %v596 = vpack.c.bf16 %v568, %v566
    %v597 = vpack.c.bf16 %v569, %v567
    %v598 = vpack.c.bf16 %v572, %v570
    %v599 = vpack.c.bf16 %v573, %v571
    %v600 = vpack.c.bf16 %v576, %v574
    %v601 = vpack.c.bf16 %v577, %v575
    %v602 = vpack.c.bf16 %v580, %v578
    %v603 = vpack.c.bf16 %v581, %v579
    %v604 = vpack.c.bf16 %v582, %v582
    %v605 = vpack.c.bf16 %v583, %v583
    %v606 = vunpack.c.l.bf16 %v584
    %v607 = vunpack.c.l.bf16 %v585
    %v608 = vunpack.c.h.bf16 %v584
    %v609 = vunpack.c.h.bf16 %v585
    %v610 = vunpack.c.l.bf16 %v586
    %v611 = vunpack.c.l.bf16 %v587
    %v612 = vunpack.c.h.bf16 %v586
    %v613 = vunpack.c.h.bf16 %v587
    %v614 = vunpack.c.l.bf16 %v588
    %v615 = vunpack.c.l.bf16 %v589
    %v616 = vunpack.c.h.bf16 %v588
    %v617 = vunpack.c.h.bf16 %v589
    %v618 = vunpack.c.l.bf16 %v590
    %v619 = vunpack.c.l.bf16 %v591
    %v620 = vunpack.c.h.bf16 %v590
    %v621 = vunpack.c.h.bf16 %v591
    %v622 = vunpack.c.l.bf16 %v592
    %v623 = vunpack.c.l.bf16 %v593
    %v624 = vunpack.c.h.bf16 %v592
    %v625 = vunpack.c.h.bf16 %v593
    %v626 = vunpack.c.l.bf16 %v594
    %v627 = vunpack.c.l.bf16 %v595
    %v628 = vunpack.c.h.bf16 %v594
    %v629 = vunpack.c.h.bf16 %v595
    %v630 = vunpack.c.l.bf16 %v596
    %v631 = vunpack.c.l.bf16 %v597
    %v632 = vunpack.c.h.bf16 %v596
    %v633 = vunpack.c.h.bf16 %v597
    %v634 = vunpack.c.l.bf16 %v598
    %v635 = vunpack.c.l.bf16 %v599
    %v636 = vunpack.c.h.bf16 %v598
    %v637 = vunpack.c.h.bf16 %v599
    %v638 = vunpack.c.l.bf16 %v600
    %v639 = vunpack.c.l.bf16 %v601
    %v640 = vunpack.c.h.bf16 %v600
    %v641 = vunpack.c.h.bf16 %v601
    %v642 = vunpack.c.l.bf16 %v602
    %v643 = vunpack.c.l.bf16 %v603
    %v644 = vunpack.c.h.bf16 %v602
    %v645 = vunpack.c.h.bf16 %v603
    %v646 = vunpack.c.l.bf16 %v604
    %v647 = vunpack.c.l.bf16 %v605
    %v648 = vsub.f32 %v542, %v606
    %v649 = vsub.f32 %v543, %v607
    %v650 = vsub.f32 %v544, %v608
    %v651 = vsub.f32 %v545, %v609
    %v652 = vsub.f32 %v546, %v610
    %v653 = vsub.f32 %v547, %v611
    %v654 = vsub.f32 %v548, %v612
    %v655 = vsub.f32 %v549, %v613
    %v656 = vsub.f32 %v550, %v614
    %v657 = vsub.f32 %v551, %v615
    %v658 = vsub.f32 %v552, %v616
    %v659 = vsub.f32 %v553, %v617
    %v660 = vsub.f32 %v554, %v618
    %v661 = vsub.f32 %v555, %v619
    %v662 = vsub.f32 %v556, %v620
    %v663 = vsub.f32 %v557, %v621
    %v664 = vsub.f32 %v558, %v622
    %v665 = vsub.f32 %v559, %v623
    %v666 = vsub.f32 %v560, %v624
    %v667 = vsub.f32 %v561, %v625
    %v668 = vsub.f32 %v562, %v626
    %v669 = vsub.f32 %v563, %v627
    %v670 = vsub.f32 %v564, %v628
    %v671 = vsub.f32 %v565, %v629
    %v672 = vsub.f32 %v566, %v630
    %v673 = vsub.f32 %v567, %v631
    %v674 = vsub.f32 %v568, %v632
    %v675 = vsub.f32 %v569, %v633
    %v676 = vsub.f32 %v570, %v634
    %v677 = vsub.f32 %v571, %v635
    %v678 = vsub.f32 %v572, %v636
    %v679 = vsub.f32 %v573, %v637
    %v680 = vsub.f32 %v574, %v638
    %v681 = vsub.f32 %v575, %v639
    %v682 = vsub.f32 %v576, %v640
    %v683 = vsub.f32 %v577, %v641
    %v684 = vsub.f32 %v578, %v642
    %v685 = vsub.f32 %v579, %v643
    %v686 = vsub.f32 %v580, %v644
    %v687 = vsub.f32 %v581, %v645
    %v688 = vsub.f32 %v582, %v646
    %v689 = vsub.f32 %v583, %v647
    %v690 = vpack.c.bf16 %v650, %v648
    %v691 = vpack.c.bf16 %v651, %v649
    %v692 = vpack.c.bf16 %v654, %v652
    %v693 = vpack.c.bf16 %v655, %v653
    %v694 = vpack.c.bf16 %v658, %v656
    %v695 = vpack.c.bf16 %v659, %v657
    %v696 = vpack.c.bf16 %v662, %v660
    %v697 = vpack.c.bf16 %v663, %v661
    %v698 = vpack.c.bf16 %v666, %v664
    %v699 = vpack.c.bf16 %v667, %v665
    %v700 = vpack.c.bf16 %v670, %v668
    %v701 = vpack.c.bf16 %v671, %v669
    %v702 = vpack.c.bf16 %v674, %v672
    %v703 = vpack.c.bf16 %v675, %v673
    %v704 = vpack.c.bf16 %v678, %v676
    %v705 = vpack.c.bf16 %v679, %v677
    %v706 = vpack.c.bf16 %v682, %v680
    %v707 = vpack.c.bf16 %v683, %v681
    %v708 = vpack.c.bf16 %v686, %v684
    %v709 = vpack.c.bf16 %v687, %v685
    %v710 = vpack.c.bf16 %v688, %v688
    %v711 = vpack.c.bf16 %v689, %v689
    %s712 = scalar_lea.vmem %s3, 1008
    %v713 = vld [vmem:[%s712] sm:$0xff]
    %v714 = vld [vmem:[%s712 + $0x8] sm:$0xff]
    %v715 = vld [vmem:[%s712 + $0x10] sm:$0xff]
    %v716 = vld [vmem:[%s712 + $0x18] sm:$0xff]
    %v717 = vld [vmem:[%s712 + $0x20] sm:$0xff]
    %v718 = vld [vmem:[%s712 + $0x28] sm:$0xff]
    %v719 = vld [vmem:[%s712 + $0x30] sm:$0xff]
    %v720 = vld [vmem:[%s712 + $0x38] sm:$0xff]
    %v721 = vld [vmem:[%s712 + $0x40] sm:$0xff]
    %v722 = vld [vmem:[%s712 + $0x48] sm:$0xff]
    %v723 = vld [vmem:[%s712 + $0x50] sm:$0xff]
    %v724 = vld [vmem:[%s712 + $0x58] sm:$0xff]
    %v725 = vld [vmem:[%s712 + $0x60] sm:$0xff]
    %v726 = vld [vmem:[%s712 + $0x68] sm:$0xff]
    %v727 = vld [vmem:[%s712 + $0x70] sm:$0xff]
    %v728 = vld [vmem:[%s712 + $0x78] sm:$0xff]
    %v729 = vld [vmem:[%s712 + $0x80] sm:$0xff]
    %v730 = vld [vmem:[%s712 + $0x88] sm:$0xff]
    %v731 = vld [vmem:[%s712 + $0x90] sm:$0xff]
    %v732 = vld [vmem:[%s712 + $0x98] sm:$0xff]
    %v733 = vld [vmem:[%s712 + $0xa0] sm:$0xff]
    %v734 = vld [vmem:[%s712 + $0xa8] sm:$0xff]
    %v735 = vld [vmem:[%s712 + $0xb0] sm:$0xff]
    %v736 = vld [vmem:[%s712 + $0xb8] sm:$0xff]
    %v737 = vld [vmem:[%s712 + $0xc0] sm:$0xff]
    %v738 = vld [vmem:[%s712 + $0xc8] sm:$0xff]
    %v739 = vld [vmem:[%s712 + $0xd0] sm:$0xff]
    %v740 = vld [vmem:[%s712 + $0xd8] sm:$0xff]
    %v741 = vld [vmem:[%s712 + $0xe0] sm:$0xff]
    %v742 = vld [vmem:[%s712 + $0xe8] sm:$0xff]
    %v743 = vld [vmem:[%s712 + $0xf0] sm:$0xff]
    %v744 = vld [vmem:[%s712 + $0xf8] sm:$0xff]
    %v745 = vld [vmem:[%s712 + $0x100] sm:$0xff]
    %v746 = vld [vmem:[%s712 + $0x108] sm:$0xff]
    %v747 = vld [vmem:[%s712 + $0x110] sm:$0xff]
    %v748 = vld [vmem:[%s712 + $0x118] sm:$0xff]
    %v749 = vld [vmem:[%s712 + $0x120] sm:$0xff]
    %v750 = vld [vmem:[%s712 + $0x128] sm:$0xff]
    %v751 = vld [vmem:[%s712 + $0x130] sm:$0xff]
    %v752 = vld [vmem:[%s712 + $0x138] sm:$0xff]
    %v753 = vld [vmem:[%s712 + $0x140] sm:$0xff]
    %v754 = vld [vmem:[%s712 + $0x148] sm:$0xff]
    %v755 = vpack.c.bf16 %v715, %v713
    %v756 = vpack.c.bf16 %v716, %v714
    %v757 = vpack.c.bf16 %v719, %v717
    %v758 = vpack.c.bf16 %v720, %v718
    %v759 = vpack.c.bf16 %v723, %v721
    %v760 = vpack.c.bf16 %v724, %v722
    %v761 = vpack.c.bf16 %v727, %v725
    %v762 = vpack.c.bf16 %v728, %v726
    %v763 = vpack.c.bf16 %v731, %v729
    %v764 = vpack.c.bf16 %v732, %v730
    %v765 = vpack.c.bf16 %v735, %v733
    %v766 = vpack.c.bf16 %v736, %v734
    %v767 = vpack.c.bf16 %v739, %v737
    %v768 = vpack.c.bf16 %v740, %v738
    %v769 = vpack.c.bf16 %v743, %v741
    %v770 = vpack.c.bf16 %v744, %v742
    %v771 = vpack.c.bf16 %v747, %v745
    %v772 = vpack.c.bf16 %v748, %v746
    %v773 = vpack.c.bf16 %v751, %v749
    %v774 = vpack.c.bf16 %v752, %v750
    %v775 = vpack.c.bf16 %v753, %v753
    %v776 = vpack.c.bf16 %v754, %v754
    %v777 = vunpack.c.l.bf16 %v755
    %v778 = vunpack.c.l.bf16 %v756
    %v779 = vunpack.c.h.bf16 %v755
    %v780 = vunpack.c.h.bf16 %v756
    %v781 = vunpack.c.l.bf16 %v757
    %v782 = vunpack.c.l.bf16 %v758
    %v783 = vunpack.c.h.bf16 %v757
    %v784 = vunpack.c.h.bf16 %v758
    %v785 = vunpack.c.l.bf16 %v759
    %v786 = vunpack.c.l.bf16 %v760
    %v787 = vunpack.c.h.bf16 %v759
    %v788 = vunpack.c.h.bf16 %v760
    %v789 = vunpack.c.l.bf16 %v761
    %v790 = vunpack.c.l.bf16 %v762
    %v791 = vunpack.c.h.bf16 %v761
    %v792 = vunpack.c.h.bf16 %v762
    %v793 = vunpack.c.l.bf16 %v763
    %v794 = vunpack.c.l.bf16 %v764
    %v795 = vunpack.c.h.bf16 %v763
    %v796 = vunpack.c.h.bf16 %v764
    %v797 = vunpack.c.l.bf16 %v765
    %v798 = vunpack.c.l.bf16 %v766
    %v799 = vunpack.c.h.bf16 %v765
    %v800 = vunpack.c.h.bf16 %v766
    %v801 = vunpack.c.l.bf16 %v767
    %v802 = vunpack.c.l.bf16 %v768
    %v803 = vunpack.c.h.bf16 %v767
    %v804 = vunpack.c.h.bf16 %v768
    %v805 = vunpack.c.l.bf16 %v769
    %v806 = vunpack.c.l.bf16 %v770
    %v807 = vunpack.c.h.bf16 %v769
    %v808 = vunpack.c.h.bf16 %v770
    %v809 = vunpack.c.l.bf16 %v771
    %v810 = vunpack.c.l.bf16 %v772
    %v811 = vunpack.c.h.bf16 %v771
    %v812 = vunpack.c.h.bf16 %v772
    %v813 = vunpack.c.l.bf16 %v773
    %v814 = vunpack.c.l.bf16 %v774
    %v815 = vunpack.c.h.bf16 %v773
    %v816 = vunpack.c.h.bf16 %v774
    %v817 = vunpack.c.l.bf16 %v775
    %v818 = vunpack.c.l.bf16 %v776
    %v819 = vsub.f32 %v713, %v777
    %v820 = vsub.f32 %v714, %v778
    %v821 = vsub.f32 %v715, %v779
    %v822 = vsub.f32 %v716, %v780
    %v823 = vsub.f32 %v717, %v781
    %v824 = vsub.f32 %v718, %v782
    %v825 = vsub.f32 %v719, %v783
    %v826 = vsub.f32 %v720, %v784
    %v827 = vsub.f32 %v721, %v785
    %v828 = vsub.f32 %v722, %v786
    %v829 = vsub.f32 %v723, %v787
    %v830 = vsub.f32 %v724, %v788
    %v831 = vsub.f32 %v725, %v789
    %v832 = vsub.f32 %v726, %v790
    %v833 = vsub.f32 %v727, %v791
    %v834 = vsub.f32 %v728, %v792
    %v835 = vsub.f32 %v729, %v793
    %v836 = vsub.f32 %v730, %v794
    %v837 = vsub.f32 %v731, %v795
    %v838 = vsub.f32 %v732, %v796
    %v839 = vsub.f32 %v733, %v797
    %v840 = vsub.f32 %v734, %v798
    %v841 = vsub.f32 %v735, %v799
    %v842 = vsub.f32 %v736, %v800
    %v843 = vsub.f32 %v737, %v801
    %v844 = vsub.f32 %v738, %v802
    %v845 = vsub.f32 %v739, %v803
    %v846 = vsub.f32 %v740, %v804
    %v847 = vsub.f32 %v741, %v805
    %v848 = vsub.f32 %v742, %v806
    %v849 = vsub.f32 %v743, %v807
    %v850 = vsub.f32 %v744, %v808
    %v851 = vsub.f32 %v745, %v809
    %v852 = vsub.f32 %v746, %v810
    %v853 = vsub.f32 %v747, %v811
    %v854 = vsub.f32 %v748, %v812
    %v855 = vsub.f32 %v749, %v813
    %v856 = vsub.f32 %v750, %v814
    %v857 = vsub.f32 %v751, %v815
    %v858 = vsub.f32 %v752, %v816
    %v859 = vsub.f32 %v753, %v817
    %v860 = vsub.f32 %v754, %v818
    %v861 = vpack.c.bf16 %v821, %v819
    %v862 = vpack.c.bf16 %v822, %v820
    %v863 = vpack.c.bf16 %v825, %v823
    %v864 = vpack.c.bf16 %v826, %v824
    %v865 = vpack.c.bf16 %v829, %v827
    %v866 = vpack.c.bf16 %v830, %v828
    %v867 = vpack.c.bf16 %v833, %v831
    %v868 = vpack.c.bf16 %v834, %v832
    %v869 = vpack.c.bf16 %v837, %v835
    %v870 = vpack.c.bf16 %v838, %v836
    %v871 = vpack.c.bf16 %v841, %v839
    %v872 = vpack.c.bf16 %v842, %v840
    %v873 = vpack.c.bf16 %v845, %v843
    %v874 = vpack.c.bf16 %v846, %v844
    %v875 = vpack.c.bf16 %v849, %v847
    %v876 = vpack.c.bf16 %v850, %v848
    %v877 = vpack.c.bf16 %v853, %v851
    %v878 = vpack.c.bf16 %v854, %v852
    %v879 = vpack.c.bf16 %v857, %v855
    %v880 = vpack.c.bf16 %v858, %v856
    %v881 = vpack.c.bf16 %v859, %v859
    %v882 = vpack.c.bf16 %v860, %v860
    %s883 = scalar_lea.vmem %s3, 1344
    %v884 = vld [vmem:[%s883] sm:$0xff]
    %v885 = vld [vmem:[%s883 + $0x8] sm:$0xff]
    %v886 = vld [vmem:[%s883 + $0x10] sm:$0xff]
    %v887 = vld [vmem:[%s883 + $0x18] sm:$0xff]
    %v888 = vld [vmem:[%s883 + $0x20] sm:$0xff]
    %v889 = vld [vmem:[%s883 + $0x28] sm:$0xff]
    %v890 = vld [vmem:[%s883 + $0x30] sm:$0xff]
    %v891 = vld [vmem:[%s883 + $0x38] sm:$0xff]
    %v892 = vld [vmem:[%s883 + $0x40] sm:$0xff]
    %v893 = vld [vmem:[%s883 + $0x48] sm:$0xff]
    %v894 = vld [vmem:[%s883 + $0x50] sm:$0xff]
    %v895 = vld [vmem:[%s883 + $0x58] sm:$0xff]
    %v896 = vld [vmem:[%s883 + $0x60] sm:$0xff]
    %v897 = vld [vmem:[%s883 + $0x68] sm:$0xff]
    %v898 = vld [vmem:[%s883 + $0x70] sm:$0xff]
    %v899 = vld [vmem:[%s883 + $0x78] sm:$0xff]
    %v900 = vld [vmem:[%s883 + $0x80] sm:$0xff]
    %v901 = vld [vmem:[%s883 + $0x88] sm:$0xff]
    %v902 = vld [vmem:[%s883 + $0x90] sm:$0xff]
    %v903 = vld [vmem:[%s883 + $0x98] sm:$0xff]
    %v904 = vld [vmem:[%s883 + $0xa0] sm:$0xff]
    %v905 = vld [vmem:[%s883 + $0xa8] sm:$0xff]
    %v906 = vld [vmem:[%s883 + $0xb0] sm:$0xff]
    %v907 = vld [vmem:[%s883 + $0xb8] sm:$0xff]
    %v908 = vld [vmem:[%s883 + $0xc0] sm:$0xff]
    %v909 = vld [vmem:[%s883 + $0xc8] sm:$0xff]
    %v910 = vld [vmem:[%s883 + $0xd0] sm:$0xff]
    %v911 = vld [vmem:[%s883 + $0xd8] sm:$0xff]
    %v912 = vld [vmem:[%s883 + $0xe0] sm:$0xff]
    %v913 = vld [vmem:[%s883 + $0xe8] sm:$0xff]
    %v914 = vld [vmem:[%s883 + $0xf0] sm:$0xff]
    %v915 = vld [vmem:[%s883 + $0xf8] sm:$0xff]
    %v916 = vld [vmem:[%s883 + $0x100] sm:$0xff]
    %v917 = vld [vmem:[%s883 + $0x108] sm:$0xff]
    %v918 = vld [vmem:[%s883 + $0x110] sm:$0xff]
    %v919 = vld [vmem:[%s883 + $0x118] sm:$0xff]
    %v920 = vld [vmem:[%s883 + $0x120] sm:$0xff]
    %v921 = vld [vmem:[%s883 + $0x128] sm:$0xff]
    %v922 = vld [vmem:[%s883 + $0x130] sm:$0xff]
    %v923 = vld [vmem:[%s883 + $0x138] sm:$0xff]
    %v924 = vld [vmem:[%s883 + $0x140] sm:$0xff]
    %v925 = vld [vmem:[%s883 + $0x148] sm:$0xff]
    %v926 = vpack.c.bf16 %v886, %v884
    %v927 = vpack.c.bf16 %v887, %v885
    %v928 = vpack.c.bf16 %v890, %v888
    %v929 = vpack.c.bf16 %v891, %v889
    %v930 = vpack.c.bf16 %v894, %v892
    %v931 = vpack.c.bf16 %v895, %v893
    %v932 = vpack.c.bf16 %v898, %v896
    %v933 = vpack.c.bf16 %v899, %v897
    %v934 = vpack.c.bf16 %v902, %v900
    %v935 = vpack.c.bf16 %v903, %v901
    %v936 = vpack.c.bf16 %v906, %v904
    %v937 = vpack.c.bf16 %v907, %v905
    %v938 = vpack.c.bf16 %v910, %v908
    %v939 = vpack.c.bf16 %v911, %v909
    %v940 = vpack.c.bf16 %v914, %v912
    %v941 = vpack.c.bf16 %v915, %v913
    %v942 = vpack.c.bf16 %v918, %v916
    %v943 = vpack.c.bf16 %v919, %v917
    %v944 = vpack.c.bf16 %v922, %v920
    %v945 = vpack.c.bf16 %v923, %v921
    %v946 = vpack.c.bf16 %v924, %v924
    %v947 = vpack.c.bf16 %v925, %v925
    %v948 = vunpack.c.l.bf16 %v926
    %v949 = vunpack.c.l.bf16 %v927
    %v950 = vunpack.c.h.bf16 %v926
    %v951 = vunpack.c.h.bf16 %v927
    %v952 = vunpack.c.l.bf16 %v928
    %v953 = vunpack.c.l.bf16 %v929
    %v954 = vunpack.c.h.bf16 %v928
    %v955 = vunpack.c.h.bf16 %v929
    %v956 = vunpack.c.l.bf16 %v930
    %v957 = vunpack.c.l.bf16 %v931
    %v958 = vunpack.c.h.bf16 %v930
    %v959 = vunpack.c.h.bf16 %v931
    %v960 = vunpack.c.l.bf16 %v932
    %v961 = vunpack.c.l.bf16 %v933
    %v962 = vunpack.c.h.bf16 %v932
    %v963 = vunpack.c.h.bf16 %v933
    %v964 = vunpack.c.l.bf16 %v934
    %v965 = vunpack.c.l.bf16 %v935
    %v966 = vunpack.c.h.bf16 %v934
    %v967 = vunpack.c.h.bf16 %v935
    %v968 = vunpack.c.l.bf16 %v936
    %v969 = vunpack.c.l.bf16 %v937
    %v970 = vunpack.c.h.bf16 %v936
    %v971 = vunpack.c.h.bf16 %v937
    %v972 = vunpack.c.l.bf16 %v938
    %v973 = vunpack.c.l.bf16 %v939
    %v974 = vunpack.c.h.bf16 %v938
    %v975 = vunpack.c.h.bf16 %v939
    %v976 = vunpack.c.l.bf16 %v940
    %v977 = vunpack.c.l.bf16 %v941
    %v978 = vunpack.c.h.bf16 %v940
    %v979 = vunpack.c.h.bf16 %v941
    %v980 = vunpack.c.l.bf16 %v942
    %v981 = vunpack.c.l.bf16 %v943
    %v982 = vunpack.c.h.bf16 %v942
    %v983 = vunpack.c.h.bf16 %v943
    %v984 = vunpack.c.l.bf16 %v944
    %v985 = vunpack.c.l.bf16 %v945
    %v986 = vunpack.c.h.bf16 %v944
    %v987 = vunpack.c.h.bf16 %v945
    %v988 = vunpack.c.l.bf16 %v946
    %v989 = vunpack.c.l.bf16 %v947
    %v990 = vsub.f32 %v884, %v948
    %v991 = vsub.f32 %v885, %v949
    %v992 = vsub.f32 %v886, %v950
    %v993 = vsub.f32 %v887, %v951
    %v994 = vsub.f32 %v888, %v952
    %v995 = vsub.f32 %v889, %v953
    %v996 = vsub.f32 %v890, %v954
    %v997 = vsub.f32 %v891, %v955
    %v998 = vsub.f32 %v892, %v956
    %v999 = vsub.f32 %v893, %v957
    %v1000 = vsub.f32 %v894, %v958
    %v1001 = vsub.f32 %v895, %v959
    %v1002 = vsub.f32 %v896, %v960
    %v1003 = vsub.f32 %v897, %v961
    %v1004 = vsub.f32 %v898, %v962
    %v1005 = vsub.f32 %v899, %v963
    %v1006 = vsub.f32 %v900, %v964
    %v1007 = vsub.f32 %v901, %v965
    %v1008 = vsub.f32 %v902, %v966
    %v1009 = vsub.f32 %v903, %v967
    %v1010 = vsub.f32 %v904, %v968
    %v1011 = vsub.f32 %v905, %v969
    %v1012 = vsub.f32 %v906, %v970
    %v1013 = vsub.f32 %v907, %v971
    %v1014 = vsub.f32 %v908, %v972
    %v1015 = vsub.f32 %v909, %v973
    %v1016 = vsub.f32 %v910, %v974
    %v1017 = vsub.f32 %v911, %v975
    %v1018 = vsub.f32 %v912, %v976
    %v1019 = vsub.f32 %v913, %v977
    %v1020 = vsub.f32 %v914, %v978
    %v1021 = vsub.f32 %v915, %v979
    %v1022 = vsub.f32 %v916, %v980
    %v1023 = vsub.f32 %v917, %v981
    %v1024 = vsub.f32 %v918, %v982
    %v1025 = vsub.f32 %v919, %v983
    %v1026 = vsub.f32 %v920, %v984
    %v1027 = vsub.f32 %v921, %v985
    %v1028 = vsub.f32 %v922, %v986
    %v1029 = vsub.f32 %v923, %v987
    %v1030 = vsub.f32 %v924, %v988
    %v1031 = vsub.f32 %v925, %v989
    %v1032 = vpack.c.bf16 %v992, %v990
    %v1033 = vpack.c.bf16 %v993, %v991
    %v1034 = vpack.c.bf16 %v996, %v994
    %v1035 = vpack.c.bf16 %v997, %v995
    %v1036 = vpack.c.bf16 %v1000, %v998
    %v1037 = vpack.c.bf16 %v1001, %v999
    %v1038 = vpack.c.bf16 %v1004, %v1002
    %v1039 = vpack.c.bf16 %v1005, %v1003
    %v1040 = vpack.c.bf16 %v1008, %v1006
    %v1041 = vpack.c.bf16 %v1009, %v1007
    %v1042 = vpack.c.bf16 %v1012, %v1010
    %v1043 = vpack.c.bf16 %v1013, %v1011
    %v1044 = vpack.c.bf16 %v1016, %v1014
    %v1045 = vpack.c.bf16 %v1017, %v1015
    %v1046 = vpack.c.bf16 %v1020, %v1018
    %v1047 = vpack.c.bf16 %v1021, %v1019
    %v1048 = vpack.c.bf16 %v1024, %v1022
    %v1049 = vpack.c.bf16 %v1025, %v1023
    %v1050 = vpack.c.bf16 %v1028, %v1026
    %v1051 = vpack.c.bf16 %v1029, %v1027
    %v1052 = vpack.c.bf16 %v1030, %v1030
    %v1053 = vpack.c.bf16 %v1031, %v1031
    %v1054 = vld [vmem:[%s5] sm:$0xff]
    %v1055 = vld [vmem:[%s5 + $0x8] sm:$0xff]
    %v1056 = vld [vmem:[%s5 + $0x10] sm:$0xff]
    %v1057 = vld [vmem:[%s5 + $0x18] sm:$0xff]
    %v1058 = vld [vmem:[%s5 + $0x20] sm:$0xff]
    %v1059 = vld [vmem:[%s5 + $0x28] sm:$0xff]
    %v1060 = vld [vmem:[%s5 + $0x30] sm:$0xff]
    %v1061 = vld [vmem:[%s5 + $0x38] sm:$0xff]
    %v1062 = vld [vmem:[%s5 + $0x40] sm:$0xff]
    %v1063 = vld [vmem:[%s5 + $0x48] sm:$0xff]
    %v1064 = vld [vmem:[%s5 + $0x50] sm:$0xff]
    %v1065 = vld [vmem:[%s5 + $0x58] sm:$0xff]
    %v1066 = vld [vmem:[%s5 + $0x60] sm:$0xff]
    %v1067 = vld [vmem:[%s5 + $0x68] sm:$0xff]
    %v1068 = vld [vmem:[%s5 + $0x70] sm:$0xff]
    %v1069 = vld [vmem:[%s5 + $0x78] sm:$0xff]
    %v1070 = vld [vmem:[%s5 + $0x80] sm:$0xff]
    %v1071 = vld [vmem:[%s5 + $0x88] sm:$0xff]
    %v1072 = vld [vmem:[%s5 + $0x90] sm:$0xff]
    %v1073 = vld [vmem:[%s5 + $0x98] sm:$0xff]
    %v1074 = vpack.c.bf16 %v1055, %v1054
    %v1075 = vpack.c.bf16 %v1057, %v1056
    %v1076 = vpack.c.bf16 %v1059, %v1058
    %v1077 = vpack.c.bf16 %v1061, %v1060
    %v1078 = vpack.c.bf16 %v1063, %v1062
    %v1079 = vpack.c.bf16 %v1065, %v1064
    %v1080 = vpack.c.bf16 %v1067, %v1066
    %v1081 = vpack.c.bf16 %v1069, %v1068
    %v1082 = vpack.c.bf16 %v1071, %v1070
    %v1083 = vpack.c.bf16 %v1073, %v1072
    %v1084 = vunpack.c.l.bf16 %v1074
    %v1085 = vunpack.c.h.bf16 %v1074
    %v1086 = vunpack.c.l.bf16 %v1075
    %v1087 = vunpack.c.h.bf16 %v1075
    %v1088 = vunpack.c.l.bf16 %v1076
    %v1089 = vunpack.c.h.bf16 %v1076
    %v1090 = vunpack.c.l.bf16 %v1077
    %v1091 = vunpack.c.h.bf16 %v1077
    %v1092 = vunpack.c.l.bf16 %v1078
    %v1093 = vunpack.c.h.bf16 %v1078
    %v1094 = vunpack.c.l.bf16 %v1079
    %v1095 = vunpack.c.h.bf16 %v1079
    %v1096 = vunpack.c.l.bf16 %v1080
    %v1097 = vunpack.c.h.bf16 %v1080
    %v1098 = vunpack.c.l.bf16 %v1081
    %v1099 = vunpack.c.h.bf16 %v1081
    %v1100 = vunpack.c.l.bf16 %v1082
    %v1101 = vunpack.c.h.bf16 %v1082
    %v1102 = vunpack.c.l.bf16 %v1083
    %v1103 = vunpack.c.h.bf16 %v1083
    %v1104 = vsub.f32 %v1054, %v1084
    %v1105 = vsub.f32 %v1055, %v1085
    %v1106 = vsub.f32 %v1056, %v1086
    %v1107 = vsub.f32 %v1057, %v1087
    %v1108 = vsub.f32 %v1058, %v1088
    %v1109 = vsub.f32 %v1059, %v1089
    %v1110 = vsub.f32 %v1060, %v1090
    %v1111 = vsub.f32 %v1061, %v1091
    %v1112 = vsub.f32 %v1062, %v1092
    %v1113 = vsub.f32 %v1063, %v1093
    %v1114 = vsub.f32 %v1064, %v1094
    %v1115 = vsub.f32 %v1065, %v1095
    %v1116 = vsub.f32 %v1066, %v1096
    %v1117 = vsub.f32 %v1067, %v1097
    %v1118 = vsub.f32 %v1068, %v1098
    %v1119 = vsub.f32 %v1069, %v1099
    %v1120 = vsub.f32 %v1070, %v1100
    %v1121 = vsub.f32 %v1071, %v1101
    %v1122 = vsub.f32 %v1072, %v1102
    %v1123 = vsub.f32 %v1073, %v1103
    %v1124 = vpack.c.bf16 %v1105, %v1104
    %v1125 = vpack.c.bf16 %v1107, %v1106
    %v1126 = vpack.c.bf16 %v1109, %v1108
    %v1127 = vpack.c.bf16 %v1111, %v1110
    %v1128 = vpack.c.bf16 %v1113, %v1112
    %v1129 = vpack.c.bf16 %v1115, %v1114
    %v1130 = vpack.c.bf16 %v1117, %v1116
    %v1131 = vpack.c.bf16 %v1119, %v1118
    %v1132 = vpack.c.bf16 %v1121, %v1120
    %v1133 = vpack.c.bf16 %v1123, %v1122
    %s1134 = scalar_lea.vmem %s5, 160
    %v1135 = vld [vmem:[%s1134] sm:$0xff]
    %v1136 = vld [vmem:[%s1134 + $0x8] sm:$0xff]
    %v1137 = vld [vmem:[%s1134 + $0x10] sm:$0xff]
    %v1138 = vld [vmem:[%s1134 + $0x18] sm:$0xff]
    %v1139 = vld [vmem:[%s1134 + $0x20] sm:$0xff]
    %v1140 = vld [vmem:[%s1134 + $0x28] sm:$0xff]
    %v1141 = vld [vmem:[%s1134 + $0x30] sm:$0xff]
    %v1142 = vld [vmem:[%s1134 + $0x38] sm:$0xff]
    %v1143 = vld [vmem:[%s1134 + $0x40] sm:$0xff]
    %v1144 = vld [vmem:[%s1134 + $0x48] sm:$0xff]
    %v1145 = vld [vmem:[%s1134 + $0x50] sm:$0xff]
    %v1146 = vld [vmem:[%s1134 + $0x58] sm:$0xff]
    %v1147 = vld [vmem:[%s1134 + $0x60] sm:$0xff]
    %v1148 = vld [vmem:[%s1134 + $0x68] sm:$0xff]
    %v1149 = vld [vmem:[%s1134 + $0x70] sm:$0xff]
    %v1150 = vld [vmem:[%s1134 + $0x78] sm:$0xff]
    %v1151 = vld [vmem:[%s1134 + $0x80] sm:$0xff]
    %v1152 = vld [vmem:[%s1134 + $0x88] sm:$0xff]
    %v1153 = vld [vmem:[%s1134 + $0x90] sm:$0xff]
    %v1154 = vld [vmem:[%s1134 + $0x98] sm:$0xff]
    %v1155 = vpack.c.bf16 %v1136, %v1135
    %v1156 = vpack.c.bf16 %v1138, %v1137
    %v1157 = vpack.c.bf16 %v1140, %v1139
    %v1158 = vpack.c.bf16 %v1142, %v1141
    %v1159 = vpack.c.bf16 %v1144, %v1143
    %v1160 = vpack.c.bf16 %v1146, %v1145
    %v1161 = vpack.c.bf16 %v1148, %v1147
    %v1162 = vpack.c.bf16 %v1150, %v1149
    %v1163 = vpack.c.bf16 %v1152, %v1151
    %v1164 = vpack.c.bf16 %v1154, %v1153
    %v1165 = vunpack.c.l.bf16 %v1155
    %v1166 = vunpack.c.h.bf16 %v1155
    %v1167 = vunpack.c.l.bf16 %v1156
    %v1168 = vunpack.c.h.bf16 %v1156
    %v1169 = vunpack.c.l.bf16 %v1157
    %v1170 = vunpack.c.h.bf16 %v1157
    %v1171 = vunpack.c.l.bf16 %v1158
    %v1172 = vunpack.c.h.bf16 %v1158
    %v1173 = vunpack.c.l.bf16 %v1159
    %v1174 = vunpack.c.h.bf16 %v1159
    %v1175 = vunpack.c.l.bf16 %v1160
    %v1176 = vunpack.c.h.bf16 %v1160
    %v1177 = vunpack.c.l.bf16 %v1161
    %v1178 = vunpack.c.h.bf16 %v1161
    %v1179 = vunpack.c.l.bf16 %v1162
    %v1180 = vunpack.c.h.bf16 %v1162
    %v1181 = vunpack.c.l.bf16 %v1163
    %v1182 = vunpack.c.h.bf16 %v1163
    %v1183 = vunpack.c.l.bf16 %v1164
    %v1184 = vunpack.c.h.bf16 %v1164
    %v1185 = vsub.f32 %v1135, %v1165
    %v1186 = vsub.f32 %v1136, %v1166
    %v1187 = vsub.f32 %v1137, %v1167
    %v1188 = vsub.f32 %v1138, %v1168
    %v1189 = vsub.f32 %v1139, %v1169
    %v1190 = vsub.f32 %v1140, %v1170
    %v1191 = vsub.f32 %v1141, %v1171
    %v1192 = vsub.f32 %v1142, %v1172
    %v1193 = vsub.f32 %v1143, %v1173
    %v1194 = vsub.f32 %v1144, %v1174
    %v1195 = vsub.f32 %v1145, %v1175
    %v1196 = vsub.f32 %v1146, %v1176
    %v1197 = vsub.f32 %v1147, %v1177
    %v1198 = vsub.f32 %v1148, %v1178
    %v1199 = vsub.f32 %v1149, %v1179
    %v1200 = vsub.f32 %v1150, %v1180
    %v1201 = vsub.f32 %v1151, %v1181
    %v1202 = vsub.f32 %v1152, %v1182
    %v1203 = vsub.f32 %v1153, %v1183
    %v1204 = vsub.f32 %v1154, %v1184
    %v1205 = vpack.c.bf16 %v1186, %v1185
    %v1206 = vpack.c.bf16 %v1188, %v1187
    %v1207 = vpack.c.bf16 %v1190, %v1189
    %v1208 = vpack.c.bf16 %v1192, %v1191
    %v1209 = vpack.c.bf16 %v1194, %v1193
    %v1210 = vpack.c.bf16 %v1196, %v1195
    %v1211 = vpack.c.bf16 %v1198, %v1197
    %v1212 = vpack.c.bf16 %v1200, %v1199
    %v1213 = vpack.c.bf16 %v1202, %v1201
    %v1214 = vpack.c.bf16 %v1204, %v1203
    %s1215 = scalar_lea.vmem %s5, 320
    %v1216 = vld [vmem:[%s1215] sm:$0xff]
    %v1217 = vld [vmem:[%s1215 + $0x8] sm:$0xff]
    %v1218 = vld [vmem:[%s1215 + $0x10] sm:$0xff]
    %v1219 = vld [vmem:[%s1215 + $0x18] sm:$0xff]
    %v1220 = vld [vmem:[%s1215 + $0x20] sm:$0xff]
    %v1221 = vld [vmem:[%s1215 + $0x28] sm:$0xff]
    %v1222 = vld [vmem:[%s1215 + $0x30] sm:$0xff]
    %v1223 = vld [vmem:[%s1215 + $0x38] sm:$0xff]
    %v1224 = vld [vmem:[%s1215 + $0x40] sm:$0xff]
    %v1225 = vld [vmem:[%s1215 + $0x48] sm:$0xff]
    %v1226 = vld [vmem:[%s1215 + $0x50] sm:$0xff]
    %v1227 = vld [vmem:[%s1215 + $0x58] sm:$0xff]
    %v1228 = vld [vmem:[%s1215 + $0x60] sm:$0xff]
    %v1229 = vld [vmem:[%s1215 + $0x68] sm:$0xff]
    %v1230 = vld [vmem:[%s1215 + $0x70] sm:$0xff]
    %v1231 = vld [vmem:[%s1215 + $0x78] sm:$0xff]
    %v1232 = vld [vmem:[%s1215 + $0x80] sm:$0xff]
    %v1233 = vld [vmem:[%s1215 + $0x88] sm:$0xff]
    %v1234 = vld [vmem:[%s1215 + $0x90] sm:$0xff]
    %v1235 = vld [vmem:[%s1215 + $0x98] sm:$0xff]
    %v1236 = vpack.c.bf16 %v1217, %v1216
    %v1237 = vpack.c.bf16 %v1219, %v1218
    %v1238 = vpack.c.bf16 %v1221, %v1220
    %v1239 = vpack.c.bf16 %v1223, %v1222
    %v1240 = vpack.c.bf16 %v1225, %v1224
    %v1241 = vpack.c.bf16 %v1227, %v1226
    %v1242 = vpack.c.bf16 %v1229, %v1228
    %v1243 = vpack.c.bf16 %v1231, %v1230
    %v1244 = vpack.c.bf16 %v1233, %v1232
    %v1245 = vpack.c.bf16 %v1235, %v1234
    %v1246 = vunpack.c.l.bf16 %v1236
    %v1247 = vunpack.c.h.bf16 %v1236
    %v1248 = vunpack.c.l.bf16 %v1237
    %v1249 = vunpack.c.h.bf16 %v1237
    %v1250 = vunpack.c.l.bf16 %v1238
    %v1251 = vunpack.c.h.bf16 %v1238
    %v1252 = vunpack.c.l.bf16 %v1239
    %v1253 = vunpack.c.h.bf16 %v1239
    %v1254 = vunpack.c.l.bf16 %v1240
    %v1255 = vunpack.c.h.bf16 %v1240
    %v1256 = vunpack.c.l.bf16 %v1241
    %v1257 = vunpack.c.h.bf16 %v1241
    %v1258 = vunpack.c.l.bf16 %v1242
    %v1259 = vunpack.c.h.bf16 %v1242
    %v1260 = vunpack.c.l.bf16 %v1243
    %v1261 = vunpack.c.h.bf16 %v1243
    %v1262 = vunpack.c.l.bf16 %v1244
    %v1263 = vunpack.c.h.bf16 %v1244
    %v1264 = vunpack.c.l.bf16 %v1245
    %v1265 = vunpack.c.h.bf16 %v1245
    %v1266 = vsub.f32 %v1216, %v1246
    %v1267 = vsub.f32 %v1217, %v1247
    %v1268 = vsub.f32 %v1218, %v1248
    %v1269 = vsub.f32 %v1219, %v1249
    %v1270 = vsub.f32 %v1220, %v1250
    %v1271 = vsub.f32 %v1221, %v1251
    %v1272 = vsub.f32 %v1222, %v1252
    %v1273 = vsub.f32 %v1223, %v1253
    %v1274 = vsub.f32 %v1224, %v1254
    %v1275 = vsub.f32 %v1225, %v1255
    %v1276 = vsub.f32 %v1226, %v1256
    %v1277 = vsub.f32 %v1227, %v1257
    %v1278 = vsub.f32 %v1228, %v1258
    %v1279 = vsub.f32 %v1229, %v1259
    %v1280 = vsub.f32 %v1230, %v1260
    %v1281 = vsub.f32 %v1231, %v1261
    %v1282 = vsub.f32 %v1232, %v1262
    %v1283 = vsub.f32 %v1233, %v1263
    %v1284 = vsub.f32 %v1234, %v1264
    %v1285 = vsub.f32 %v1235, %v1265
    %v1286 = vpack.c.bf16 %v1267, %v1266
    %v1287 = vpack.c.bf16 %v1269, %v1268
    %v1288 = vpack.c.bf16 %v1271, %v1270
    %v1289 = vpack.c.bf16 %v1273, %v1272
    %v1290 = vpack.c.bf16 %v1275, %v1274
    %v1291 = vpack.c.bf16 %v1277, %v1276
    %v1292 = vpack.c.bf16 %v1279, %v1278
    %v1293 = vpack.c.bf16 %v1281, %v1280
    %v1294 = vpack.c.bf16 %v1283, %v1282
    %v1295 = vpack.c.bf16 %v1285, %v1284
    %s1296 = scalar_lea.vmem %s5, 480
    %v1297 = vld [vmem:[%s1296] sm:$0xff]
    %v1298 = vld [vmem:[%s1296 + $0x8] sm:$0xff]
    %v1299 = vld [vmem:[%s1296 + $0x10] sm:$0xff]
    %v1300 = vld [vmem:[%s1296 + $0x18] sm:$0xff]
    %v1301 = vld [vmem:[%s1296 + $0x20] sm:$0xff]
    %v1302 = vld [vmem:[%s1296 + $0x28] sm:$0xff]
    %v1303 = vld [vmem:[%s1296 + $0x30] sm:$0xff]
    %v1304 = vld [vmem:[%s1296 + $0x38] sm:$0xff]
    %v1305 = vld [vmem:[%s1296 + $0x40] sm:$0xff]
    %v1306 = vld [vmem:[%s1296 + $0x48] sm:$0xff]
    %v1307 = vld [vmem:[%s1296 + $0x50] sm:$0xff]
    %v1308 = vld [vmem:[%s1296 + $0x58] sm:$0xff]
    %v1309 = vld [vmem:[%s1296 + $0x60] sm:$0xff]
    %v1310 = vld [vmem:[%s1296 + $0x68] sm:$0xff]
    %v1311 = vld [vmem:[%s1296 + $0x70] sm:$0xff]
    %v1312 = vld [vmem:[%s1296 + $0x78] sm:$0xff]
    %v1313 = vld [vmem:[%s1296 + $0x80] sm:$0xff]
    %v1314 = vld [vmem:[%s1296 + $0x88] sm:$0xff]
    %v1315 = vld [vmem:[%s1296 + $0x90] sm:$0xff]
    %v1316 = vld [vmem:[%s1296 + $0x98] sm:$0xff]
    %v1317 = vpack.c.bf16 %v1298, %v1297
    %v1318 = vpack.c.bf16 %v1300, %v1299
    %v1319 = vpack.c.bf16 %v1302, %v1301
    %v1320 = vpack.c.bf16 %v1304, %v1303
    %v1321 = vpack.c.bf16 %v1306, %v1305
    %v1322 = vpack.c.bf16 %v1308, %v1307
    %v1323 = vpack.c.bf16 %v1310, %v1309
    %v1324 = vpack.c.bf16 %v1312, %v1311
    %v1325 = vpack.c.bf16 %v1314, %v1313
    %v1326 = vpack.c.bf16 %v1316, %v1315
    %v1327 = vunpack.c.l.bf16 %v1317
    %v1328 = vunpack.c.h.bf16 %v1317
    %v1329 = vunpack.c.l.bf16 %v1318
    %v1330 = vunpack.c.h.bf16 %v1318
    %v1331 = vunpack.c.l.bf16 %v1319
    %v1332 = vunpack.c.h.bf16 %v1319
    %v1333 = vunpack.c.l.bf16 %v1320
    %v1334 = vunpack.c.h.bf16 %v1320
    %v1335 = vunpack.c.l.bf16 %v1321
    %v1336 = vunpack.c.h.bf16 %v1321
    %v1337 = vunpack.c.l.bf16 %v1322
    %v1338 = vunpack.c.h.bf16 %v1322
    %v1339 = vunpack.c.l.bf16 %v1323
    %v1340 = vunpack.c.h.bf16 %v1323
    %v1341 = vunpack.c.l.bf16 %v1324
    %v1342 = vunpack.c.h.bf16 %v1324
    %v1343 = vunpack.c.l.bf16 %v1325
    %v1344 = vunpack.c.h.bf16 %v1325
    %v1345 = vunpack.c.l.bf16 %v1326
    %v1346 = vunpack.c.h.bf16 %v1326
    %v1347 = vsub.f32 %v1297, %v1327
    %v1348 = vsub.f32 %v1298, %v1328
    %v1349 = vsub.f32 %v1299, %v1329
    %v1350 = vsub.f32 %v1300, %v1330
    %v1351 = vsub.f32 %v1301, %v1331
    %v1352 = vsub.f32 %v1302, %v1332
    %v1353 = vsub.f32 %v1303, %v1333
    %v1354 = vsub.f32 %v1304, %v1334
    %v1355 = vsub.f32 %v1305, %v1335
    %v1356 = vsub.f32 %v1306, %v1336
    %v1357 = vsub.f32 %v1307, %v1337
    %v1358 = vsub.f32 %v1308, %v1338
    %v1359 = vsub.f32 %v1309, %v1339
    %v1360 = vsub.f32 %v1310, %v1340
    %v1361 = vsub.f32 %v1311, %v1341
    %v1362 = vsub.f32 %v1312, %v1342
    %v1363 = vsub.f32 %v1313, %v1343
    %v1364 = vsub.f32 %v1314, %v1344
    %v1365 = vsub.f32 %v1315, %v1345
    %v1366 = vsub.f32 %v1316, %v1346
    %v1367 = vpack.c.bf16 %v1348, %v1347
    %v1368 = vpack.c.bf16 %v1350, %v1349
    %v1369 = vpack.c.bf16 %v1352, %v1351
    %v1370 = vpack.c.bf16 %v1354, %v1353
    %v1371 = vpack.c.bf16 %v1356, %v1355
    %v1372 = vpack.c.bf16 %v1358, %v1357
    %v1373 = vpack.c.bf16 %v1360, %v1359
    %v1374 = vpack.c.bf16 %v1362, %v1361
    %v1375 = vpack.c.bf16 %v1364, %v1363
    %v1376 = vpack.c.bf16 %v1366, %v1365
    %s1377 = scalar_lea.vmem %s5, 640
    %v1378 = vld [vmem:[%s1377] sm:$0xff]
    %v1379 = vld [vmem:[%s1377 + $0x8] sm:$0xff]
    %v1380 = vld [vmem:[%s1377 + $0x10] sm:$0xff]
    %v1381 = vld [vmem:[%s1377 + $0x18] sm:$0xff]
    %v1382 = vld [vmem:[%s1377 + $0x20] sm:$0xff]
    %v1383 = vld [vmem:[%s1377 + $0x28] sm:$0xff]
    %v1384 = vld [vmem:[%s1377 + $0x30] sm:$0xff]
    %v1385 = vld [vmem:[%s1377 + $0x38] sm:$0xff]
    %v1386 = vld [vmem:[%s1377 + $0x40] sm:$0xff]
    %v1387 = vld [vmem:[%s1377 + $0x48] sm:$0xff]
    %v1388 = vld [vmem:[%s1377 + $0x50] sm:$0xff]
    %v1389 = vld [vmem:[%s1377 + $0x58] sm:$0xff]
    %v1390 = vld [vmem:[%s1377 + $0x60] sm:$0xff]
    %v1391 = vld [vmem:[%s1377 + $0x68] sm:$0xff]
    %v1392 = vld [vmem:[%s1377 + $0x70] sm:$0xff]
    %v1393 = vld [vmem:[%s1377 + $0x78] sm:$0xff]
    %v1394 = vld [vmem:[%s1377 + $0x80] sm:$0xff]
    %v1395 = vld [vmem:[%s1377 + $0x88] sm:$0xff]
    %v1396 = vld [vmem:[%s1377 + $0x90] sm:$0xff]
    %v1397 = vld [vmem:[%s1377 + $0x98] sm:$0xff]
    %v1398 = vpack.c.bf16 %v1379, %v1378
    %v1399 = vpack.c.bf16 %v1381, %v1380
    %v1400 = vpack.c.bf16 %v1383, %v1382
    %v1401 = vpack.c.bf16 %v1385, %v1384
    %v1402 = vpack.c.bf16 %v1387, %v1386
    %v1403 = vpack.c.bf16 %v1389, %v1388
    %v1404 = vpack.c.bf16 %v1391, %v1390
    %v1405 = vpack.c.bf16 %v1393, %v1392
    %v1406 = vpack.c.bf16 %v1395, %v1394
    %v1407 = vpack.c.bf16 %v1397, %v1396
    %v1408 = vunpack.c.l.bf16 %v1398
    %v1409 = vunpack.c.h.bf16 %v1398
    %v1410 = vunpack.c.l.bf16 %v1399
    %v1411 = vunpack.c.h.bf16 %v1399
    %v1412 = vunpack.c.l.bf16 %v1400
    %v1413 = vunpack.c.h.bf16 %v1400
    %v1414 = vunpack.c.l.bf16 %v1401
    %v1415 = vunpack.c.h.bf16 %v1401
    %v1416 = vunpack.c.l.bf16 %v1402
    %v1417 = vunpack.c.h.bf16 %v1402
    %v1418 = vunpack.c.l.bf16 %v1403
    %v1419 = vunpack.c.h.bf16 %v1403
    %v1420 = vunpack.c.l.bf16 %v1404
    %v1421 = vunpack.c.h.bf16 %v1404
    %v1422 = vunpack.c.l.bf16 %v1405
    %v1423 = vunpack.c.h.bf16 %v1405
    %v1424 = vunpack.c.l.bf16 %v1406
    %v1425 = vunpack.c.h.bf16 %v1406
    %v1426 = vunpack.c.l.bf16 %v1407
    %v1427 = vunpack.c.h.bf16 %v1407
    %v1428 = vsub.f32 %v1378, %v1408
    %v1429 = vsub.f32 %v1379, %v1409
    %v1430 = vsub.f32 %v1380, %v1410
    %v1431 = vsub.f32 %v1381, %v1411
    %v1432 = vsub.f32 %v1382, %v1412
    %v1433 = vsub.f32 %v1383, %v1413
    %v1434 = vsub.f32 %v1384, %v1414
    %v1435 = vsub.f32 %v1385, %v1415
    %v1436 = vsub.f32 %v1386, %v1416
    %v1437 = vsub.f32 %v1387, %v1417
    %v1438 = vsub.f32 %v1388, %v1418
    %v1439 = vsub.f32 %v1389, %v1419
    %v1440 = vsub.f32 %v1390, %v1420
    %v1441 = vsub.f32 %v1391, %v1421
    %v1442 = vsub.f32 %v1392, %v1422
    %v1443 = vsub.f32 %v1393, %v1423
    %v1444 = vsub.f32 %v1394, %v1424
    %v1445 = vsub.f32 %v1395, %v1425
    %v1446 = vsub.f32 %v1396, %v1426
    %v1447 = vsub.f32 %v1397, %v1427
    %v1448 = vpack.c.bf16 %v1429, %v1428
    %v1449 = vpack.c.bf16 %v1431, %v1430
    %v1450 = vpack.c.bf16 %v1433, %v1432
    %v1451 = vpack.c.bf16 %v1435, %v1434
    %v1452 = vpack.c.bf16 %v1437, %v1436
    %v1453 = vpack.c.bf16 %v1439, %v1438
    %v1454 = vpack.c.bf16 %v1441, %v1440
    %v1455 = vpack.c.bf16 %v1443, %v1442
    %v1456 = vpack.c.bf16 %v1445, %v1444
    %v1457 = vpack.c.bf16 %v1447, %v1446
    %v1458 = vld [vmem:[%s7] sm:$0xff]
    %v1459 = vld [vmem:[%s7 + $0x8] sm:$0xff]
    %v1460 = vld [vmem:[%s7 + $0x10] sm:$0xff]
    %v1461 = vld [vmem:[%s7 + $0x18] sm:$0xff]
    %v1462 = vld [vmem:[%s7 + $0x20] sm:$0xff]
    %v1463 = vld [vmem:[%s7 + $0x28] sm:$0xff]
    %v1464 = vld [vmem:[%s7 + $0x30] sm:$0xff]
    %v1465 = vld [vmem:[%s7 + $0x38] sm:$0xff]
    %v1466 = vld [vmem:[%s7 + $0x40] sm:$0xff]
    %v1467 = vld [vmem:[%s7 + $0x48] sm:$0xff]
    %v1468 = vld [vmem:[%s7 + $0x50] sm:$0xff]
    %v1469 = vld [vmem:[%s7 + $0x58] sm:$0xff]
    %v1470 = vld [vmem:[%s7 + $0x60] sm:$0xff]
    %v1471 = vld [vmem:[%s7 + $0x68] sm:$0xff]
    %v1472 = vld [vmem:[%s7 + $0x70] sm:$0xff]
    %v1473 = vpack.c.bf16 %v1459, %v1458
    %v1474 = vpack.c.bf16 %v1461, %v1460
    %v1475 = vpack.c.bf16 %v1463, %v1462
    %v1476 = vpack.c.bf16 %v1465, %v1464
    %v1477 = vpack.c.bf16 %v1467, %v1466
    %v1478 = vpack.c.bf16 %v1469, %v1468
    %v1479 = vpack.c.bf16 %v1471, %v1470
    %v1480 = vpack.c.bf16 %v1472, %v1472
    %v1481 = vunpack.c.l.bf16 %v1473
    %v1482 = vunpack.c.h.bf16 %v1473
    %v1483 = vunpack.c.l.bf16 %v1474
    %v1484 = vunpack.c.h.bf16 %v1474
    %v1485 = vunpack.c.l.bf16 %v1475
    %v1486 = vunpack.c.h.bf16 %v1475
    %v1487 = vunpack.c.l.bf16 %v1476
    %v1488 = vunpack.c.h.bf16 %v1476
    %v1489 = vunpack.c.l.bf16 %v1477
    %v1490 = vunpack.c.h.bf16 %v1477
    %v1491 = vunpack.c.l.bf16 %v1478
    %v1492 = vunpack.c.h.bf16 %v1478
    %v1493 = vunpack.c.l.bf16 %v1479
    %v1494 = vunpack.c.h.bf16 %v1479
    %v1495 = vunpack.c.l.bf16 %v1480
    %v1496 = vsub.f32 %v1458, %v1481
    %v1497 = vsub.f32 %v1459, %v1482
    %v1498 = vsub.f32 %v1460, %v1483
    %v1499 = vsub.f32 %v1461, %v1484
    %v1500 = vsub.f32 %v1462, %v1485
    %v1501 = vsub.f32 %v1463, %v1486
    %v1502 = vsub.f32 %v1464, %v1487
    %v1503 = vsub.f32 %v1465, %v1488
    %v1504 = vsub.f32 %v1466, %v1489
    %v1505 = vsub.f32 %v1467, %v1490
    %v1506 = vsub.f32 %v1468, %v1491
    %v1507 = vsub.f32 %v1469, %v1492
    %v1508 = vsub.f32 %v1470, %v1493
    %v1509 = vsub.f32 %v1471, %v1494
    %v1510 = vsub.f32 %v1472, %v1495
    %v1511 = vpack.c.bf16 %v1497, %v1496
    %v1512 = vpack.c.bf16 %v1499, %v1498
    %v1513 = vpack.c.bf16 %v1501, %v1500
    %v1514 = vpack.c.bf16 %v1503, %v1502
    %v1515 = vpack.c.bf16 %v1505, %v1504
    %v1516 = vpack.c.bf16 %v1507, %v1506
    %v1517 = vpack.c.bf16 %v1509, %v1508
    %v1518 = vpack.c.bf16 %v1510, %v1510
    %v1519 = vld [vmem:[%s9] sm:$0xff]
    %v1520 = vld [vmem:[%s9 + $0x8] sm:$0xff]
    %v1521 = vld [vmem:[%s9 + $0x10] sm:$0xff]
    %v1522 = vld [vmem:[%s9 + $0x18] sm:$0xff]
    %v1523 = vld [vmem:[%s9 + $0x20] sm:$0xff]
    %v1524 = vld [vmem:[%s9 + $0x28] sm:$0xff]
    %v1525 = vld [vmem:[%s9 + $0x30] sm:$0xff]
    %v1526 = vld [vmem:[%s9 + $0x38] sm:$0xff]
    %v1527 = vld [vmem:[%s9 + $0x40] sm:$0xff]
    %v1528 = vld [vmem:[%s9 + $0x48] sm:$0xff]
    %v1529 = vld [vmem:[%s9 + $0x50] sm:$0xf]
    %v1530 = vpack.c.bf16 %v1520, %v1519
    %v1531 = vpack.c.bf16 %v1522, %v1521
    %v1532 = vpack.c.bf16 %v1524, %v1523
    %v1533 = vpack.c.bf16 %v1526, %v1525
    %v1534 = vpack.c.bf16 %v1528, %v1527
    %v1535 = vpack.c.bf16 %v1529, %v1529
    %v1536 = vunpack.c.l.bf16 %v1530
    %v1537 = vunpack.c.h.bf16 %v1530
    %v1538 = vunpack.c.l.bf16 %v1531
    %v1539 = vunpack.c.h.bf16 %v1531
    %v1540 = vunpack.c.l.bf16 %v1532
    %v1541 = vunpack.c.h.bf16 %v1532
    %v1542 = vunpack.c.l.bf16 %v1533
    %v1543 = vunpack.c.h.bf16 %v1533
    %v1544 = vunpack.c.l.bf16 %v1534
    %v1545 = vunpack.c.h.bf16 %v1534
    %v1546 = vunpack.c.l.bf16 %v1535
    %v1547 = vsub.f32 %v1519, %v1536
    %v1548 = vsub.f32 %v1520, %v1537
    %v1549 = vsub.f32 %v1521, %v1538
    %v1550 = vsub.f32 %v1522, %v1539
    %v1551 = vsub.f32 %v1523, %v1540
    %v1552 = vsub.f32 %v1524, %v1541
    %v1553 = vsub.f32 %v1525, %v1542
    %v1554 = vsub.f32 %v1526, %v1543
    %v1555 = vsub.f32 %v1527, %v1544
    %v1556 = vsub.f32 %v1528, %v1545
    %v1557 = vsub.f32 %v1529, %v1546
    %v1558 = vpack.c.bf16 %v1548, %v1547
    %v1559 = vpack.c.bf16 %v1550, %v1549
    %v1560 = vpack.c.bf16 %v1552, %v1551
    %v1561 = vpack.c.bf16 %v1554, %v1553
    %v1562 = vpack.c.bf16 %v1556, %v1555
    %v1563 = vpack.c.bf16 %v1557, %v1557
    %v1564 = vld [vmem:[%s2] sm:$0x3]
    %v1565 = vld [vmem:[%s4] sm:$0x3]
    %v1566 = vld [vmem:[%s0] sm:$0xff]
    %v1567 = vld [vmem:[%s0 + $0x8] sm:$0xff]
    %v1568 = vld [vmem:[%s0 + $0x10] sm:$0xff]
    %v1569 = vld [vmem:[%s0 + $0x18] sm:$0xff]
    %v1570 = vld [vmem:[%s0 + $0x20] sm:$0xff]
    %v1571 = vld [vmem:[%s0 + $0x28] sm:$0xff]
    %v1572 = vld [vmem:[%s0 + $0x30] sm:$0xff]
    %v1573 = vld [vmem:[%s0 + $0x38] sm:$0xff]
    %v1574 = vld [vmem:[%s0 + $0x40] sm:$0xff]
    %v1575 = vld [vmem:[%s0 + $0x48] sm:$0xff]
    %v1576 = vld [vmem:[%s0 + $0x50] sm:$0xff]
    %v1577 = vld [vmem:[%s0 + $0x58] sm:$0xff]
    %v1578 = vld [vmem:[%s0 + $0x60] sm:$0xff]
    %v1579 = vld [vmem:[%s0 + $0x68] sm:$0xff]
    %v1580 = vpack.c.bf16 %v1568, %v1566
    %v1581 = vpack.c.bf16 %v1569, %v1567
    %v1582 = vpack.c.bf16 %v1572, %v1570
    %v1583 = vpack.c.bf16 %v1573, %v1571
    %v1584 = vpack.c.bf16 %v1576, %v1574
    %v1585 = vpack.c.bf16 %v1577, %v1575
    %v1586 = vpack.c.bf16 %v1578, %v1578
    %v1587 = vpack.c.bf16 %v1579, %v1579
    %v1588 = vunpack.c.l.bf16 %v1580
    %v1589 = vunpack.c.l.bf16 %v1581
    %v1590 = vunpack.c.h.bf16 %v1580
    %v1591 = vunpack.c.h.bf16 %v1581
    %v1592 = vunpack.c.l.bf16 %v1582
    %v1593 = vunpack.c.l.bf16 %v1583
    %v1594 = vunpack.c.h.bf16 %v1582
    %v1595 = vunpack.c.h.bf16 %v1583
    %v1596 = vunpack.c.l.bf16 %v1584
    %v1597 = vunpack.c.l.bf16 %v1585
    %v1598 = vunpack.c.h.bf16 %v1584
    %v1599 = vunpack.c.h.bf16 %v1585
    %v1600 = vunpack.c.l.bf16 %v1586
    %v1601 = vunpack.c.l.bf16 %v1587
    %v1602 = vsub.f32 %v1566, %v1588
    %v1603 = vsub.f32 %v1567, %v1589
    %v1604 = vsub.f32 %v1568, %v1590
    %v1605 = vsub.f32 %v1569, %v1591
    %v1606 = vsub.f32 %v1570, %v1592
    %v1607 = vsub.f32 %v1571, %v1593
    %v1608 = vsub.f32 %v1572, %v1594
    %v1609 = vsub.f32 %v1573, %v1595
    %v1610 = vsub.f32 %v1574, %v1596
    %v1611 = vsub.f32 %v1575, %v1597
    %v1612 = vsub.f32 %v1576, %v1598
    %v1613 = vsub.f32 %v1577, %v1599
    %v1614 = vsub.f32 %v1578, %v1600
    %v1615 = vsub.f32 %v1579, %v1601
    %v1616 = vpack.c.bf16 %v1604, %v1602
    %v1617 = vpack.c.bf16 %v1605, %v1603
    %v1618 = vpack.c.bf16 %v1608, %v1606
    %v1619 = vpack.c.bf16 %v1609, %v1607
    %v1620 = vpack.c.bf16 %v1612, %v1610
    %v1621 = vpack.c.bf16 %v1613, %v1611
    %v1622 = vpack.c.bf16 %v1614, %v1614
    %v1623 = vpack.c.bf16 %v1615, %v1615
    %vm1624 = vcmask 261120
    %v1626 = vsel %vm1624, %v1617, 0
    %v1629 = vsel %vm1624, %v1619, 0
    %v1632 = vsel %vm1624, %v1621, 0
    %v1635 = vsel %vm1624, %v1623, 0
    %1637 = vmatprep.subr.bf16.mxu0 %v95
    %1638 = vmatpush1.bf16.msra.mxu0 %v94
    %1639 = vmatprep.subr.bf16.mxu0 %v93
    %1640 = vmatpush1.bf16.msra.mxu0 %v92
    %1641 = vmatprep.subr.bf16.mxu0 %v91
    %1642 = vmatpush1.bf16.msra.mxu0 %v90
    %1643 = vmatprep.subr.bf16.mxu0 %v89
    %1644 = vmatpush1.bf16.msra.mxu0 %v88
    %1645 = vmatprep.subr.bf16.mxu0 %v87
    %1646 = vmatpush1.bf16.msra.mxu0 %v86
    %1647 = vmatprep.subr.bf16.mxu0 %v85
    %1648 = vmatpush1.bf16.msra.mxu0 %v84
    %1649 = vmatprep.subr.bf16.mxu0 %v83
    %1650 = vmatpush1.bf16.msra.mxu0 %v82
    %1651 = vmatprep.subr.bf16.mxu0 %v81
    %1652 = vmatpush1.bf16.msra.mxu0 %v80
    %1653 = vmatprep.subr.bf16.mxu0 0
    %1654 = vmatpush2.bf16.msra.mxu0 0
    %1655 = vmatprep.subr.bf16.mxu0 0
    %1656 = vmatpush2.bf16.msra.mxu0 0
    %1657 = vmatprep.subr.bf16.mxu0 0
    %1658 = vmatpush2.bf16.msra.mxu0 0
    %1659 = vmatprep.subr.bf16.mxu0 0
    %1660 = vmatpush2.bf16.msra.mxu0 0
    %1661 = vmatprep.subr.bf16.mxu0 0
    %1662 = vmatpush2.bf16.msra.mxu0 0
    %1663 = vmatprep.subr.bf16.mxu0 0
    %1664 = vmatpush2.bf16.msra.mxu0 0
    %1665 = vmatprep.subr.bf16.mxu0 %v99
    %1666 = vmatpush2.bf16.msra.mxu0 %v98
    %1667 = vmatprep.subr.bf16.mxu0 %v97
    %1668 = vmatpush2.bf16.msra.mxu0 %v96
    %1669 = vmatprep.mubr.bf16.mxu0 %v1626
    %1670 = vmatmul.mubr.bf16.gmra.mxu0 %v1616
    %v1671 = vpop.f32.mrf.mxu0
    %v1672 = vadd.f32 0.0, %v1671
    %v1673 = vpop.f32.mrf.mxu0
    %v1674 = vadd.f32 0.0, %v1673
    %v1675 = vpop.f32.mrf.mxu0
    %v1676 = vadd.f32 0.0, %v1675
    %v1677 = vpop.f32.mrf.mxu0
    %v1678 = vadd.f32 0.0, %v1677
    %1679 = vmatprep.mubr.bf16.mxu0 %v1629
    %1680 = vmatmul.mubr.bf16.gmra.mxu0 %v1618
    %v1681 = vpop.f32.mrf.mxu0
    %v1682 = vadd.f32 0.0, %v1681
    %v1683 = vpop.f32.mrf.mxu0
    %v1684 = vadd.f32 0.0, %v1683
    %v1685 = vpop.f32.mrf.mxu0
    %v1686 = vadd.f32 0.0, %v1685
    %v1687 = vpop.f32.mrf.mxu0
    %v1688 = vadd.f32 0.0, %v1687
    %1689 = vmatprep.mubr.bf16.mxu0 %v1632
    %1690 = vmatmul.mubr.bf16.gmra.mxu0 %v1620
    %v1691 = vpop.f32.mrf.mxu0
    %v1692 = vadd.f32 0.0, %v1691
    %v1693 = vpop.f32.mrf.mxu0
    %v1694 = vadd.f32 0.0, %v1693
    %v1695 = vpop.f32.mrf.mxu0
    %v1696 = vadd.f32 0.0, %v1695
    %v1697 = vpop.f32.mrf.mxu0
    %v1698 = vadd.f32 0.0, %v1697
    %1699 = vmatprep.mubr.bf16.mxu0 %v1635
    %1700 = vmatmul.mubr.bf16.gmra.mxu0 %v1622
    %v1701 = vpop.f32.mrf.mxu0
    %v1702 = vadd.f32 0.0, %v1701
    %v1703 = vpop.f32.mrf.mxu0
    %v1704 = vadd.f32 0.0, %v1703
    %v1705 = vpop.f32.mrf.mxu0
    %v1706 = vpop.f32.mrf.mxu0
    %1707 = vdwg.mxu0
    %v1709 = vsel %vm1624, %v1581, 0
    %v1712 = vsel %vm1624, %v1583, 0
    %v1715 = vsel %vm1624, %v1585, 0
    %v1718 = vsel %vm1624, %v1587, 0
    %1720 = vmatprep.subr.bf16.mxu0 %v195
    %1721 = vmatpush1.bf16.msra.mxu0 %v194
    %1722 = vmatprep.subr.bf16.mxu0 %v193
    %1723 = vmatpush1.bf16.msra.mxu0 %v192
    %1724 = vmatprep.subr.bf16.mxu0 %v191
    %1725 = vmatpush1.bf16.msra.mxu0 %v190
    %1726 = vmatprep.subr.bf16.mxu0 %v189
    %1727 = vmatpush1.bf16.msra.mxu0 %v188
    %1728 = vmatprep.subr.bf16.mxu0 %v187
    %1729 = vmatpush1.bf16.msra.mxu0 %v186
    %1730 = vmatprep.subr.bf16.mxu0 %v185
    %1731 = vmatpush1.bf16.msra.mxu0 %v184
    %1732 = vmatprep.subr.bf16.mxu0 %v183
    %1733 = vmatpush1.bf16.msra.mxu0 %v182
    %1734 = vmatprep.subr.bf16.mxu0 %v181
    %1735 = vmatpush1.bf16.msra.mxu0 %v180
    %1736 = vmatprep.subr.bf16.mxu0 0
    %1737 = vmatpush2.bf16.msra.mxu0 0
    %1738 = vmatprep.subr.bf16.mxu0 0
    %1739 = vmatpush2.bf16.msra.mxu0 0
    %1740 = vmatprep.subr.bf16.mxu0 0
    %1741 = vmatpush2.bf16.msra.mxu0 0
    %1742 = vmatprep.subr.bf16.mxu0 0
    %1743 = vmatpush2.bf16.msra.mxu0 0
    %1744 = vmatprep.subr.bf16.mxu0 0
    %1745 = vmatpush2.bf16.msra.mxu0 0
    %1746 = vmatprep.subr.bf16.mxu0 0
    %1747 = vmatpush2.bf16.msra.mxu0 0
    %1748 = vmatprep.subr.bf16.mxu0 %v199
    %1749 = vmatpush2.bf16.msra.mxu0 %v198
    %1750 = vmatprep.subr.bf16.mxu0 %v197
    %1751 = vmatpush2.bf16.msra.mxu0 %v196
    %1752 = vmatprep.mubr.bf16.mxu0 %v1709
    %1753 = vmatmul.mubr.bf16.gmra.mxu0 %v1580
    %v1754 = vpop.f32.mrf.mxu0
    %v1755 = vadd.f32 %v1672, %v1754
    %v1756 = vpop.f32.mrf.mxu0
    %v1757 = vadd.f32 %v1674, %v1756
    %v1758 = vpop.f32.mrf.mxu0
    %v1759 = vadd.f32 %v1676, %v1758
    %v1760 = vpop.f32.mrf.mxu0
    %v1761 = vadd.f32 %v1678, %v1760
    %1762 = vmatprep.mubr.bf16.mxu0 %v1712
    %1763 = vmatmul.mubr.bf16.gmra.mxu0 %v1582
    %v1764 = vpop.f32.mrf.mxu0
    %v1765 = vadd.f32 %v1682, %v1764
    %v1766 = vpop.f32.mrf.mxu0
    %v1767 = vadd.f32 %v1684, %v1766
    %v1768 = vpop.f32.mrf.mxu0
    %v1769 = vadd.f32 %v1686, %v1768
    %v1770 = vpop.f32.mrf.mxu0
    %v1771 = vadd.f32 %v1688, %v1770
    %1772 = vmatprep.mubr.bf16.mxu0 %v1715
    %1773 = vmatmul.mubr.bf16.gmra.mxu0 %v1584
    %v1774 = vpop.f32.mrf.mxu0
    %v1775 = vadd.f32 %v1692, %v1774
    %v1776 = vpop.f32.mrf.mxu0
    %v1777 = vadd.f32 %v1694, %v1776
    %v1778 = vpop.f32.mrf.mxu0
    %v1779 = vadd.f32 %v1696, %v1778
    %v1780 = vpop.f32.mrf.mxu0
    %v1781 = vadd.f32 %v1698, %v1780
    %1782 = vmatprep.mubr.bf16.mxu0 %v1718
    %1783 = vmatmul.mubr.bf16.gmra.mxu0 %v1586
    %v1784 = vpop.f32.mrf.mxu0
    %v1785 = vadd.f32 %v1702, %v1784
    %v1786 = vpop.f32.mrf.mxu0
    %v1787 = vadd.f32 %v1704, %v1786
    %v1788 = vpop.f32.mrf.mxu0
    %v1789 = vpop.f32.mrf.mxu0
    %1790 = vdwg.mxu0
    %1791 = vmatprep.subr.bf16.mxu0 %v95
    %1792 = vmatpush1.bf16.msra.mxu0 %v94
    %1793 = vmatprep.subr.bf16.mxu0 %v93
    %1794 = vmatpush1.bf16.msra.mxu0 %v92
    %1795 = vmatprep.subr.bf16.mxu0 %v91
    %1796 = vmatpush1.bf16.msra.mxu0 %v90
    %1797 = vmatprep.subr.bf16.mxu0 %v89
    %1798 = vmatpush1.bf16.msra.mxu0 %v88
    %1799 = vmatprep.subr.bf16.mxu0 %v87
    %1800 = vmatpush1.bf16.msra.mxu0 %v86
    %1801 = vmatprep.subr.bf16.mxu0 %v85
    %1802 = vmatpush1.bf16.msra.mxu0 %v84
    %1803 = vmatprep.subr.bf16.mxu0 %v83
    %1804 = vmatpush1.bf16.msra.mxu0 %v82
    %1805 = vmatprep.subr.bf16.mxu0 %v81
    %1806 = vmatpush1.bf16.msra.mxu0 %v80
    %1807 = vmatprep.subr.bf16.mxu0 0
    %1808 = vmatpush2.bf16.msra.mxu0 0
    %1809 = vmatprep.subr.bf16.mxu0 0
    %1810 = vmatpush2.bf16.msra.mxu0 0
    %1811 = vmatprep.subr.bf16.mxu0 0
    %1812 = vmatpush2.bf16.msra.mxu0 0
    %1813 = vmatprep.subr.bf16.mxu0 0
    %1814 = vmatpush2.bf16.msra.mxu0 0
    %1815 = vmatprep.subr.bf16.mxu0 0
    %1816 = vmatpush2.bf16.msra.mxu0 0
    %1817 = vmatprep.subr.bf16.mxu0 0
    %1818 = vmatpush2.bf16.msra.mxu0 0
    %1819 = vmatprep.subr.bf16.mxu0 %v99
    %1820 = vmatpush2.bf16.msra.mxu0 %v98
    %1821 = vmatprep.subr.bf16.mxu0 %v97
    %1822 = vmatpush2.bf16.msra.mxu0 %v96
    %1823 = vmatprep.mubr.bf16.mxu0 %v1709
    %1824 = vmatmul.mubr.bf16.gmra.mxu0 %v1580
    %v1825 = vpop.f32.mrf.mxu0
    %v1826 = vadd.f32 %v1755, %v1825
    %v1827 = vpop.f32.mrf.mxu0
    %v1828 = vadd.f32 %v1757, %v1827
    %v1829 = vpop.f32.mrf.mxu0
    %v1830 = vadd.f32 %v1759, %v1829
    %v1831 = vpop.f32.mrf.mxu0
    %v1832 = vadd.f32 %v1761, %v1831
    %1833 = vmatprep.mubr.bf16.mxu0 %v1712
    %1834 = vmatmul.mubr.bf16.gmra.mxu0 %v1582
    %v1835 = vpop.f32.mrf.mxu0
    %v1836 = vadd.f32 %v1765, %v1835
    %v1837 = vpop.f32.mrf.mxu0
    %v1838 = vadd.f32 %v1767, %v1837
    %v1839 = vpop.f32.mrf.mxu0
    %v1840 = vadd.f32 %v1769, %v1839
    %v1841 = vpop.f32.mrf.mxu0
    %v1842 = vadd.f32 %v1771, %v1841
    %1843 = vmatprep.mubr.bf16.mxu0 %v1715
    %1844 = vmatmul.mubr.bf16.gmra.mxu0 %v1584
    %v1845 = vpop.f32.mrf.mxu0
    %v1846 = vadd.f32 %v1775, %v1845
    %v1847 = vpop.f32.mrf.mxu0
    %v1848 = vadd.f32 %v1777, %v1847
    %v1849 = vpop.f32.mrf.mxu0
    %v1850 = vadd.f32 %v1779, %v1849
    %v1851 = vpop.f32.mrf.mxu0
    %v1852 = vadd.f32 %v1781, %v1851
    %1853 = vmatprep.mubr.bf16.mxu0 %v1718
    %1854 = vmatmul.mubr.bf16.gmra.mxu0 %v1586
    %v1855 = vpop.f32.mrf.mxu0
    %v1856 = vadd.f32 %v1785, %v1855
    %v1857 = vpop.f32.mrf.mxu0
    %v1858 = vadd.f32 %v1787, %v1857
    %v1859 = vpop.f32.mrf.mxu0
    %v1860 = vpop.f32.mrf.mxu0
    %1861 = vdwg.mxu0
    %v1863 = vlaneseq
    %v1864 = vshrl.u32 %v1863, 7
    %v1865 = vsub.s32 0, %v1864
    %v1866 = vrot.slane %v1564, %v1865
    %v1867 = vlaneseq
    %v1868 = vshrl.u32 %v1867, 7
    %v1869 = vsub.s32 1, %v1868
    %v1870 = vrot.slane %v1564, %v1869
    %v1873 = vadd.f32 %v1826, %v1866
    %v1874 = vadd.f32 %v1828, %v1870
    %v1875 = vadd.f32 %v1830, %v1866
    %v1876 = vadd.f32 %v1832, %v1870
    %v1877 = vadd.f32 %v1836, %v1866
    %v1878 = vadd.f32 %v1838, %v1870
    %v1879 = vadd.f32 %v1840, %v1866
    %v1880 = vadd.f32 %v1842, %v1870
    %v1881 = vadd.f32 %v1846, %v1866
    %v1882 = vadd.f32 %v1848, %v1870
    %v1883 = vadd.f32 %v1850, %v1866
    %v1884 = vadd.f32 %v1852, %v1870
    %v1885 = vadd.f32 %v1856, %v1866
    %v1886 = vadd.f32 %v1858, %v1870
    %v1887 = vsub.f32 0.0, %v1873
    %v1888 = vsub.f32 0.0, %v1874
    %v1889 = vsub.f32 0.0, %v1875
    %v1890 = vsub.f32 0.0, %v1876
    %v1891 = vsub.f32 0.0, %v1877
    %v1892 = vsub.f32 0.0, %v1878
    %v1893 = vsub.f32 0.0, %v1879
    %v1894 = vsub.f32 0.0, %v1880
    %v1895 = vsub.f32 0.0, %v1881
    %v1896 = vsub.f32 0.0, %v1882
    %v1897 = vsub.f32 0.0, %v1883
    %v1898 = vsub.f32 0.0, %v1884
    %v1899 = vsub.f32 0.0, %v1885
    %v1900 = vsub.f32 0.0, %v1886
    %v1901 = vmul.f32 %v1887, 1.442695
    %v1902 = vpow.pop %v1901
    %v1903 = vmul.f32 %v1888, 1.442695
    %v1904 = vpow.pop %v1903
    %v1905 = vmul.f32 %v1889, 1.442695
    %v1906 = vpow.pop %v1905
    %v1907 = vmul.f32 %v1890, 1.442695
    %v1908 = vpow.pop %v1907
    %v1909 = vmul.f32 %v1891, 1.442695
    %v1910 = vpow.pop %v1909
    %v1911 = vmul.f32 %v1892, 1.442695
    %v1912 = vpow.pop %v1911
    %v1913 = vmul.f32 %v1893, 1.442695
    %v1914 = vpow.pop %v1913
    %v1915 = vmul.f32 %v1894, 1.442695
    %v1916 = vpow.pop %v1915
    %v1917 = vmul.f32 %v1895, 1.442695
    %v1918 = vpow.pop %v1917
    %v1919 = vmul.f32 %v1896, 1.442695
    %v1920 = vpow.pop %v1919
    %v1921 = vmul.f32 %v1897, 1.442695
    %v1922 = vpow.pop %v1921
    %v1923 = vmul.f32 %v1898, 1.442695
    %v1924 = vpow.pop %v1923
    %v1925 = vmul.f32 %v1899, 1.442695
    %v1926 = vpow.pop %v1925
    %v1927 = vmul.f32 %v1900, 1.442695
    %v1928 = vpow.pop %v1927
    %v1929 = vadd.f32 %v1902, 1.0
    %v1930 = vadd.f32 %v1904, 1.0
    %v1931 = vadd.f32 %v1906, 1.0
    %v1932 = vadd.f32 %v1908, 1.0
    %v1933 = vadd.f32 %v1910, 1.0
    %v1934 = vadd.f32 %v1912, 1.0
    %v1935 = vadd.f32 %v1914, 1.0
    %v1936 = vadd.f32 %v1916, 1.0
    %v1937 = vadd.f32 %v1918, 1.0
    %v1938 = vadd.f32 %v1920, 1.0
    %v1939 = vadd.f32 %v1922, 1.0
    %v1940 = vadd.f32 %v1924, 1.0
    %v1941 = vadd.f32 %v1926, 1.0
    %v1942 = vadd.f32 %v1928, 1.0
    %v1943 = vrcp.pop %v1929
    %v1944 = vmul.f32 1.0, %v1943
    %v1945 = vrcp.pop %v1930
    %v1946 = vmul.f32 1.0, %v1945
    %v1947 = vrcp.pop %v1931
    %v1948 = vmul.f32 1.0, %v1947
    %v1949 = vrcp.pop %v1932
    %v1950 = vmul.f32 1.0, %v1949
    %v1951 = vrcp.pop %v1933
    %v1952 = vmul.f32 1.0, %v1951
    %v1953 = vrcp.pop %v1934
    %v1954 = vmul.f32 1.0, %v1953
    %v1955 = vrcp.pop %v1935
    %v1956 = vmul.f32 1.0, %v1955
    %v1957 = vrcp.pop %v1936
    %v1958 = vmul.f32 1.0, %v1957
    %v1959 = vrcp.pop %v1937
    %v1960 = vmul.f32 1.0, %v1959
    %v1961 = vrcp.pop %v1938
    %v1962 = vmul.f32 1.0, %v1961
    %v1963 = vrcp.pop %v1939
    %v1964 = vmul.f32 1.0, %v1963
    %v1965 = vrcp.pop %v1940
    %v1966 = vmul.f32 1.0, %v1965
    %v1967 = vrcp.pop %v1941
    %v1968 = vmul.f32 1.0, %v1967
    %v1969 = vrcp.pop %v1942
    %v1970 = vmul.f32 1.0, %v1969
    %s1971 = scalar_lea.vmem %s0, 112
    %v1972 = vld [vmem:[%s1971] sm:$0xff]
    %v1973 = vld [vmem:[%s1971 + $0x8] sm:$0xff]
    %v1974 = vld [vmem:[%s1971 + $0x10] sm:$0xff]
    %v1975 = vld [vmem:[%s1971 + $0x18] sm:$0xff]
    %v1976 = vld [vmem:[%s1971 + $0x20] sm:$0xff]
    %v1977 = vld [vmem:[%s1971 + $0x28] sm:$0xff]
    %v1978 = vld [vmem:[%s1971 + $0x30] sm:$0xff]
    %v1979 = vld [vmem:[%s1971 + $0x38] sm:$0xff]
    %v1980 = vld [vmem:[%s1971 + $0x40] sm:$0xff]
    %v1981 = vld [vmem:[%s1971 + $0x48] sm:$0xff]
    %v1982 = vld [vmem:[%s1971 + $0x50] sm:$0xff]
    %v1983 = vld [vmem:[%s1971 + $0x58] sm:$0xff]
    %v1984 = vld [vmem:[%s1971 + $0x60] sm:$0xff]
    %v1985 = vld [vmem:[%s1971 + $0x68] sm:$0xff]
    %v1986 = vpack.c.bf16 %v1974, %v1972
    %v1987 = vpack.c.bf16 %v1975, %v1973
    %v1988 = vpack.c.bf16 %v1978, %v1976
    %v1989 = vpack.c.bf16 %v1979, %v1977
    %v1990 = vpack.c.bf16 %v1982, %v1980
    %v1991 = vpack.c.bf16 %v1983, %v1981
    %v1992 = vpack.c.bf16 %v1984, %v1984
    %v1993 = vpack.c.bf16 %v1985, %v1985
    %v1994 = vunpack.c.l.bf16 %v1986
    %v1995 = vunpack.c.l.bf16 %v1987
    %v1996 = vunpack.c.h.bf16 %v1986
    %v1997 = vunpack.c.h.bf16 %v1987
    %v1998 = vunpack.c.l.bf16 %v1988
    %v1999 = vunpack.c.l.bf16 %v1989
    %v2000 = vunpack.c.h.bf16 %v1988
    %v2001 = vunpack.c.h.bf16 %v1989
    %v2002 = vunpack.c.l.bf16 %v1990
    %v2003 = vunpack.c.l.bf16 %v1991
    %v2004 = vunpack.c.h.bf16 %v1990
    %v2005 = vunpack.c.h.bf16 %v1991
    %v2006 = vunpack.c.l.bf16 %v1992
    %v2007 = vunpack.c.l.bf16 %v1993
    %v2008 = vsub.f32 %v1972, %v1994
    %v2009 = vsub.f32 %v1973, %v1995
    %v2010 = vsub.f32 %v1974, %v1996
    %v2011 = vsub.f32 %v1975, %v1997
    %v2012 = vsub.f32 %v1976, %v1998
    %v2013 = vsub.f32 %v1977, %v1999
    %v2014 = vsub.f32 %v1978, %v2000
    %v2015 = vsub.f32 %v1979, %v2001
    %v2016 = vsub.f32 %v1980, %v2002
    %v2017 = vsub.f32 %v1981, %v2003
    %v2018 = vsub.f32 %v1982, %v2004
    %v2019 = vsub.f32 %v1983, %v2005
    %v2020 = vsub.f32 %v1984, %v2006
    %v2021 = vsub.f32 %v1985, %v2007
    %v2022 = vpack.c.bf16 %v2010, %v2008
    %v2023 = vpack.c.bf16 %v2011, %v2009
    %v2024 = vpack.c.bf16 %v2014, %v2012
    %v2025 = vpack.c.bf16 %v2015, %v2013
    %v2026 = vpack.c.bf16 %v2018, %v2016
    %v2027 = vpack.c.bf16 %v2019, %v2017
    %v2028 = vpack.c.bf16 %v2020, %v2020
    %v2029 = vpack.c.bf16 %v2021, %v2021
    %v2031 = vsel %vm1624, %v2023, 0
    %v2034 = vsel %vm1624, %v2025, 0
    %v2037 = vsel %vm1624, %v2027, 0
    %v2040 = vsel %vm1624, %v2029, 0
    %2042 = vmatprep.subr.bf16.mxu0 %v95
    %2043 = vmatpush1.bf16.msra.mxu0 %v94
    %2044 = vmatprep.subr.bf16.mxu0 %v93
    %2045 = vmatpush1.bf16.msra.mxu0 %v92
    %2046 = vmatprep.subr.bf16.mxu0 %v91
    %2047 = vmatpush1.bf16.msra.mxu0 %v90
    %2048 = vmatprep.subr.bf16.mxu0 %v89
    %2049 = vmatpush1.bf16.msra.mxu0 %v88
    %2050 = vmatprep.subr.bf16.mxu0 %v87
    %2051 = vmatpush1.bf16.msra.mxu0 %v86
    %2052 = vmatprep.subr.bf16.mxu0 %v85
    %2053 = vmatpush1.bf16.msra.mxu0 %v84
    %2054 = vmatprep.subr.bf16.mxu0 %v83
    %2055 = vmatpush1.bf16.msra.mxu0 %v82
    %2056 = vmatprep.subr.bf16.mxu0 %v81
    %2057 = vmatpush1.bf16.msra.mxu0 %v80
    %2058 = vmatprep.subr.bf16.mxu0 0
    %2059 = vmatpush2.bf16.msra.mxu0 0
    %2060 = vmatprep.subr.bf16.mxu0 0
    %2061 = vmatpush2.bf16.msra.mxu0 0
    %2062 = vmatprep.subr.bf16.mxu0 0
    %2063 = vmatpush2.bf16.msra.mxu0 0
    %2064 = vmatprep.subr.bf16.mxu0 0
    %2065 = vmatpush2.bf16.msra.mxu0 0
    %2066 = vmatprep.subr.bf16.mxu0 0
    %2067 = vmatpush2.bf16.msra.mxu0 0
    %2068 = vmatprep.subr.bf16.mxu0 0
    %2069 = vmatpush2.bf16.msra.mxu0 0
    %2070 = vmatprep.subr.bf16.mxu0 %v99
    %2071 = vmatpush2.bf16.msra.mxu0 %v98
    %2072 = vmatprep.subr.bf16.mxu0 %v97
    %2073 = vmatpush2.bf16.msra.mxu0 %v96
    %2074 = vmatprep.mubr.bf16.mxu0 %v2031
    %2075 = vmatmul.mubr.bf16.gmra.mxu0 %v2022
    %v2076 = vpop.f32.mrf.mxu0
    %v2077 = vadd.f32 0.0, %v2076
    %v2078 = vpop.f32.mrf.mxu0
    %v2079 = vadd.f32 0.0, %v2078
    %v2080 = vpop.f32.mrf.mxu0
    %v2081 = vadd.f32 0.0, %v2080
    %v2082 = vpop.f32.mrf.mxu0
    %v2083 = vadd.f32 0.0, %v2082
    %2084 = vmatprep.mubr.bf16.mxu0 %v2034
    %2085 = vmatmul.mubr.bf16.gmra.mxu0 %v2024
    %v2086 = vpop.f32.mrf.mxu0
    %v2087 = vadd.f32 0.0, %v2086
    %v2088 = vpop.f32.mrf.mxu0
    %v2089 = vadd.f32 0.0, %v2088
    %v2090 = vpop.f32.mrf.mxu0
    %v2091 = vadd.f32 0.0, %v2090
    %v2092 = vpop.f32.mrf.mxu0
    %v2093 = vadd.f32 0.0, %v2092
    %2094 = vmatprep.mubr.bf16.mxu0 %v2037
    %2095 = vmatmul.mubr.bf16.gmra.mxu0 %v2026
    %v2096 = vpop.f32.mrf.mxu0
    %v2097 = vadd.f32 0.0, %v2096
    %v2098 = vpop.f32.mrf.mxu0
    %v2099 = vadd.f32 0.0, %v2098
    %v2100 = vpop.f32.mrf.mxu0
    %v2101 = vadd.f32 0.0, %v2100
    %v2102 = vpop.f32.mrf.mxu0
    %v2103 = vadd.f32 0.0, %v2102
    %2104 = vmatprep.mubr.bf16.mxu0 %v2040
    %2105 = vmatmul.mubr.bf16.gmra.mxu0 %v2028
    %v2106 = vpop.f32.mrf.mxu0
    %v2107 = vadd.f32 0.0, %v2106
    %v2108 = vpop.f32.mrf.mxu0
    %v2109 = vadd.f32 0.0, %v2108
    %v2110 = vpop.f32.mrf.mxu0
    %v2111 = vpop.f32.mrf.mxu0
    %2112 = vdwg.mxu0
    %v2114 = vsel %vm1624, %v1987, 0
    %v2117 = vsel %vm1624, %v1989, 0
    %v2120 = vsel %vm1624, %v1991, 0
    %v2123 = vsel %vm1624, %v1993, 0
    %2125 = vmatprep.subr.bf16.mxu0 %v195
    %2126 = vmatpush1.bf16.msra.mxu0 %v194
    %2127 = vmatprep.subr.bf16.mxu0 %v193
    %2128 = vmatpush1.bf16.msra.mxu0 %v192
    %2129 = vmatprep.subr.bf16.mxu0 %v191
    %2130 = vmatpush1.bf16.msra.mxu0 %v190
    %2131 = vmatprep.subr.bf16.mxu0 %v189
    %2132 = vmatpush1.bf16.msra.mxu0 %v188
    %2133 = vmatprep.subr.bf16.mxu0 %v187
    %2134 = vmatpush1.bf16.msra.mxu0 %v186
    %2135 = vmatprep.subr.bf16.mxu0 %v185
    %2136 = vmatpush1.bf16.msra.mxu0 %v184
    %2137 = vmatprep.subr.bf16.mxu0 %v183
    %2138 = vmatpush1.bf16.msra.mxu0 %v182
    %2139 = vmatprep.subr.bf16.mxu0 %v181
    %2140 = vmatpush1.bf16.msra.mxu0 %v180
    %2141 = vmatprep.subr.bf16.mxu0 0
    %2142 = vmatpush2.bf16.msra.mxu0 0
    %2143 = vmatprep.subr.bf16.mxu0 0
    %2144 = vmatpush2.bf16.msra.mxu0 0
    %2145 = vmatprep.subr.bf16.mxu0 0
    %2146 = vmatpush2.bf16.msra.mxu0 0
    %2147 = vmatprep.subr.bf16.mxu0 0
    %2148 = vmatpush2.bf16.msra.mxu0 0
    %2149 = vmatprep.subr.bf16.mxu0 0
    %2150 = vmatpush2.bf16.msra.mxu0 0
    %2151 = vmatprep.subr.bf16.mxu0 0
    %2152 = vmatpush2.bf16.msra.mxu0 0
    %2153 = vmatprep.subr.bf16.mxu0 %v199
    %2154 = vmatpush2.bf16.msra.mxu0 %v198
    %2155 = vmatprep.subr.bf16.mxu0 %v197
    %2156 = vmatpush2.bf16.msra.mxu0 %v196
    %2157 = vmatprep.mubr.bf16.mxu0 %v2114
    %2158 = vmatmul.mubr.bf16.gmra.mxu0 %v1986
    %v2159 = vpop.f32.mrf.mxu0
    %v2160 = vadd.f32 %v2077, %v2159
    %v2161 = vpop.f32.mrf.mxu0
    %v2162 = vadd.f32 %v2079, %v2161
    %v2163 = vpop.f32.mrf.mxu0
    %v2164 = vadd.f32 %v2081, %v2163
    %v2165 = vpop.f32.mrf.mxu0
    %v2166 = vadd.f32 %v2083, %v2165
    %2167 = vmatprep.mubr.bf16.mxu0 %v2117
    %2168 = vmatmul.mubr.bf16.gmra.mxu0 %v1988
    %v2169 = vpop.f32.mrf.mxu0
    %v2170 = vadd.f32 %v2087, %v2169
    %v2171 = vpop.f32.mrf.mxu0
    %v2172 = vadd.f32 %v2089, %v2171
    %v2173 = vpop.f32.mrf.mxu0
    %v2174 = vadd.f32 %v2091, %v2173
    %v2175 = vpop.f32.mrf.mxu0
    %v2176 = vadd.f32 %v2093, %v2175
    %2177 = vmatprep.mubr.bf16.mxu0 %v2120
    %2178 = vmatmul.mubr.bf16.gmra.mxu0 %v1990
    %v2179 = vpop.f32.mrf.mxu0
    %v2180 = vadd.f32 %v2097, %v2179
    %v2181 = vpop.f32.mrf.mxu0
    %v2182 = vadd.f32 %v2099, %v2181
    %v2183 = vpop.f32.mrf.mxu0
    %v2184 = vadd.f32 %v2101, %v2183
    %v2185 = vpop.f32.mrf.mxu0
    %v2186 = vadd.f32 %v2103, %v2185
    %2187 = vmatprep.mubr.bf16.mxu0 %v2123
    %2188 = vmatmul.mubr.bf16.gmra.mxu0 %v1992
    %v2189 = vpop.f32.mrf.mxu0
    %v2190 = vadd.f32 %v2107, %v2189
    %v2191 = vpop.f32.mrf.mxu0
    %v2192 = vadd.f32 %v2109, %v2191
    %v2193 = vpop.f32.mrf.mxu0
    %v2194 = vpop.f32.mrf.mxu0
    %2195 = vdwg.mxu0
    %2196 = vmatprep.subr.bf16.mxu0 %v95
    %2197 = vmatpush1.bf16.msra.mxu0 %v94
    %2198 = vmatprep.subr.bf16.mxu0 %v93
    %2199 = vmatpush1.bf16.msra.mxu0 %v92
    %2200 = vmatprep.subr.bf16.mxu0 %v91
    %2201 = vmatpush1.bf16.msra.mxu0 %v90
    %2202 = vmatprep.subr.bf16.mxu0 %v89
    %2203 = vmatpush1.bf16.msra.mxu0 %v88
    %2204 = vmatprep.subr.bf16.mxu0 %v87
    %2205 = vmatpush1.bf16.msra.mxu0 %v86
    %2206 = vmatprep.subr.bf16.mxu0 %v85
    %2207 = vmatpush1.bf16.msra.mxu0 %v84
    %2208 = vmatprep.subr.bf16.mxu0 %v83
    %2209 = vmatpush1.bf16.msra.mxu0 %v82
    %2210 = vmatprep.subr.bf16.mxu0 %v81
    %2211 = vmatpush1.bf16.msra.mxu0 %v80
    %2212 = vmatprep.subr.bf16.mxu0 0
    %2213 = vmatpush2.bf16.msra.mxu0 0
    %2214 = vmatprep.subr.bf16.mxu0 0
    %2215 = vmatpush2.bf16.msra.mxu0 0
    %2216 = vmatprep.subr.bf16.mxu0 0
    %2217 = vmatpush2.bf16.msra.mxu0 0
    %2218 = vmatprep.subr.bf16.mxu0 0
    %2219 = vmatpush2.bf16.msra.mxu0 0
    %2220 = vmatprep.subr.bf16.mxu0 0
    %2221 = vmatpush2.bf16.msra.mxu0 0
    %2222 = vmatprep.subr.bf16.mxu0 0
    %2223 = vmatpush2.bf16.msra.mxu0 0
    %2224 = vmatprep.subr.bf16.mxu0 %v99
    %2225 = vmatpush2.bf16.msra.mxu0 %v98
    %2226 = vmatprep.subr.bf16.mxu0 %v97
    %2227 = vmatpush2.bf16.msra.mxu0 %v96
    %2228 = vmatprep.mubr.bf16.mxu0 %v2114
    %2229 = vmatmul.mubr.bf16.gmra.mxu0 %v1986
    %v2230 = vpop.f32.mrf.mxu0
    %v2231 = vadd.f32 %v2160, %v2230
    %v2232 = vpop.f32.mrf.mxu0
    %v2233 = vadd.f32 %v2162, %v2232
    %v2234 = vpop.f32.mrf.mxu0
    %v2235 = vadd.f32 %v2164, %v2234
    %v2236 = vpop.f32.mrf.mxu0
    %v2237 = vadd.f32 %v2166, %v2236
    %2238 = vmatprep.mubr.bf16.mxu0 %v2117
    %2239 = vmatmul.mubr.bf16.gmra.mxu0 %v1988
    %v2240 = vpop.f32.mrf.mxu0
    %v2241 = vadd.f32 %v2170, %v2240
    %v2242 = vpop.f32.mrf.mxu0
    %v2243 = vadd.f32 %v2172, %v2242
    %v2244 = vpop.f32.mrf.mxu0
    %v2245 = vadd.f32 %v2174, %v2244
    %v2246 = vpop.f32.mrf.mxu0
    %v2247 = vadd.f32 %v2176, %v2246
    %2248 = vmatprep.mubr.bf16.mxu0 %v2120
    %2249 = vmatmul.mubr.bf16.gmra.mxu0 %v1990
    %v2250 = vpop.f32.mrf.mxu0
    %v2251 = vadd.f32 %v2180, %v2250
    %v2252 = vpop.f32.mrf.mxu0
    %v2253 = vadd.f32 %v2182, %v2252
    %v2254 = vpop.f32.mrf.mxu0
    %v2255 = vadd.f32 %v2184, %v2254
    %v2256 = vpop.f32.mrf.mxu0
    %v2257 = vadd.f32 %v2186, %v2256
    %2258 = vmatprep.mubr.bf16.mxu0 %v2123
    %2259 = vmatmul.mubr.bf16.gmra.mxu0 %v1992
    %v2260 = vpop.f32.mrf.mxu0
    %v2261 = vadd.f32 %v2190, %v2260
    %v2262 = vpop.f32.mrf.mxu0
    %v2263 = vadd.f32 %v2192, %v2262
    %v2264 = vpop.f32.mrf.mxu0
    %v2265 = vpop.f32.mrf.mxu0
    %2266 = vdwg.mxu0
    %v2267 = vadd.f32 %v2231, %v1866
    %v2268 = vadd.f32 %v2233, %v1870
    %v2269 = vadd.f32 %v2235, %v1866
    %v2270 = vadd.f32 %v2237, %v1870
    %v2271 = vadd.f32 %v2241, %v1866
    %v2272 = vadd.f32 %v2243, %v1870
    %v2273 = vadd.f32 %v2245, %v1866
    %v2274 = vadd.f32 %v2247, %v1870
    %v2275 = vadd.f32 %v2251, %v1866
    %v2276 = vadd.f32 %v2253, %v1870
    %v2277 = vadd.f32 %v2255, %v1866
    %v2278 = vadd.f32 %v2257, %v1870
    %v2279 = vadd.f32 %v2261, %v1866
    %v2280 = vadd.f32 %v2263, %v1870
    %v2281 = vsub.f32 0.0, %v2267
    %v2282 = vsub.f32 0.0, %v2268
    %v2283 = vsub.f32 0.0, %v2269
    %v2284 = vsub.f32 0.0, %v2270
    %v2285 = vsub.f32 0.0, %v2271
    %v2286 = vsub.f32 0.0, %v2272
    %v2287 = vsub.f32 0.0, %v2273
    %v2288 = vsub.f32 0.0, %v2274
    %v2289 = vsub.f32 0.0, %v2275
    %v2290 = vsub.f32 0.0, %v2276
    %v2291 = vsub.f32 0.0, %v2277
    %v2292 = vsub.f32 0.0, %v2278
    %v2293 = vsub.f32 0.0, %v2279
    %v2294 = vsub.f32 0.0, %v2280
    %v2295 = vmul.f32 %v2281, 1.442695
    %v2296 = vpow.pop %v2295
    %v2297 = vmul.f32 %v2282, 1.442695
    %v2298 = vpow.pop %v2297
    %v2299 = vmul.f32 %v2283, 1.442695
    %v2300 = vpow.pop %v2299
    %v2301 = vmul.f32 %v2284, 1.442695
    %v2302 = vpow.pop %v2301
    %v2303 = vmul.f32 %v2285, 1.442695
    %v2304 = vpow.pop %v2303
    %v2305 = vmul.f32 %v2286, 1.442695
    %v2306 = vpow.pop %v2305
    %v2307 = vmul.f32 %v2287, 1.442695
    %v2308 = vpow.pop %v2307
    %v2309 = vmul.f32 %v2288, 1.442695
    %v2310 = vpow.pop %v2309
    %v2311 = vmul.f32 %v2289, 1.442695
    %v2312 = vpow.pop %v2311
    %v2313 = vmul.f32 %v2290, 1.442695
    %v2314 = vpow.pop %v2313
    %v2315 = vmul.f32 %v2291, 1.442695
    %v2316 = vpow.pop %v2315
    %v2317 = vmul.f32 %v2292, 1.442695
    %v2318 = vpow.pop %v2317
    %v2319 = vmul.f32 %v2293, 1.442695
    %v2320 = vpow.pop %v2319
    %v2321 = vmul.f32 %v2294, 1.442695
    %v2322 = vpow.pop %v2321
    %v2323 = vadd.f32 %v2296, 1.0
    %v2324 = vadd.f32 %v2298, 1.0
    %v2325 = vadd.f32 %v2300, 1.0
    %v2326 = vadd.f32 %v2302, 1.0
    %v2327 = vadd.f32 %v2304, 1.0
    %v2328 = vadd.f32 %v2306, 1.0
    %v2329 = vadd.f32 %v2308, 1.0
    %v2330 = vadd.f32 %v2310, 1.0
    %v2331 = vadd.f32 %v2312, 1.0
    %v2332 = vadd.f32 %v2314, 1.0
    %v2333 = vadd.f32 %v2316, 1.0
    %v2334 = vadd.f32 %v2318, 1.0
    %v2335 = vadd.f32 %v2320, 1.0
    %v2336 = vadd.f32 %v2322, 1.0
    %v2337 = vrcp.pop %v2323
    %v2338 = vmul.f32 1.0, %v2337
    %v2339 = vrcp.pop %v2324
    %v2340 = vmul.f32 1.0, %v2339
    %v2341 = vrcp.pop %v2325
    %v2342 = vmul.f32 1.0, %v2341
    %v2343 = vrcp.pop %v2326
    %v2344 = vmul.f32 1.0, %v2343
    %v2345 = vrcp.pop %v2327
    %v2346 = vmul.f32 1.0, %v2345
    %v2347 = vrcp.pop %v2328
    %v2348 = vmul.f32 1.0, %v2347
    %v2349 = vrcp.pop %v2329
    %v2350 = vmul.f32 1.0, %v2349
    %v2351 = vrcp.pop %v2330
    %v2352 = vmul.f32 1.0, %v2351
    %v2353 = vrcp.pop %v2331
    %v2354 = vmul.f32 1.0, %v2353
    %v2355 = vrcp.pop %v2332
    %v2356 = vmul.f32 1.0, %v2355
    %v2357 = vrcp.pop %v2333
    %v2358 = vmul.f32 1.0, %v2357
    %v2359 = vrcp.pop %v2334
    %v2360 = vmul.f32 1.0, %v2359
    %v2361 = vrcp.pop %v2335
    %v2362 = vmul.f32 1.0, %v2361
    %v2363 = vrcp.pop %v2336
    %v2364 = vmul.f32 1.0, %v2363
    %v2365 = vadd.f32 %v1944, %v2338
    %v2366 = vadd.f32 %v1946, %v2340
    %v2367 = vadd.f32 %v1948, %v2342
    %v2368 = vadd.f32 %v1950, %v2344
    %v2369 = vadd.f32 %v1952, %v2346
    %v2370 = vadd.f32 %v1954, %v2348
    %v2371 = vadd.f32 %v1956, %v2350
    %v2372 = vadd.f32 %v1958, %v2352
    %v2373 = vadd.f32 %v1960, %v2354
    %v2374 = vadd.f32 %v1962, %v2356
    %v2375 = vadd.f32 %v1964, %v2358
    %v2376 = vadd.f32 %v1966, %v2360
    %v2377 = vadd.f32 %v1968, %v2362
    %v2378 = vadd.f32 %v1970, %v2364
    %s2379 = scalar_lea.vmem %s0, 224
    %v2380 = vld [vmem:[%s2379] sm:$0xff]
    %v2381 = vld [vmem:[%s2379 + $0x8] sm:$0xff]
    %v2382 = vld [vmem:[%s2379 + $0x10] sm:$0xff]
    %v2383 = vld [vmem:[%s2379 + $0x18] sm:$0xff]
    %v2384 = vld [vmem:[%s2379 + $0x20] sm:$0xff]
    %v2385 = vld [vmem:[%s2379 + $0x28] sm:$0xff]
    %v2386 = vld [vmem:[%s2379 + $0x30] sm:$0xff]
    %v2387 = vld [vmem:[%s2379 + $0x38] sm:$0xff]
    %v2388 = vld [vmem:[%s2379 + $0x40] sm:$0xff]
    %v2389 = vld [vmem:[%s2379 + $0x48] sm:$0xff]
    %v2390 = vld [vmem:[%s2379 + $0x50] sm:$0xff]
    %v2391 = vld [vmem:[%s2379 + $0x58] sm:$0xff]
    %v2392 = vld [vmem:[%s2379 + $0x60] sm:$0xff]
    %v2393 = vld [vmem:[%s2379 + $0x68] sm:$0xff]
    %v2394 = vpack.c.bf16 %v2382, %v2380
    %v2395 = vpack.c.bf16 %v2383, %v2381
    %v2396 = vpack.c.bf16 %v2386, %v2384
    %v2397 = vpack.c.bf16 %v2387, %v2385
    %v2398 = vpack.c.bf16 %v2390, %v2388
    %v2399 = vpack.c.bf16 %v2391, %v2389
    %v2400 = vpack.c.bf16 %v2392, %v2392
    %v2401 = vpack.c.bf16 %v2393, %v2393
    %v2402 = vunpack.c.l.bf16 %v2394
    %v2403 = vunpack.c.l.bf16 %v2395
    %v2404 = vunpack.c.h.bf16 %v2394
    %v2405 = vunpack.c.h.bf16 %v2395
    %v2406 = vunpack.c.l.bf16 %v2396
    %v2407 = vunpack.c.l.bf16 %v2397
    %v2408 = vunpack.c.h.bf16 %v2396
    %v2409 = vunpack.c.h.bf16 %v2397
    %v2410 = vunpack.c.l.bf16 %v2398
    %v2411 = vunpack.c.l.bf16 %v2399
    %v2412 = vunpack.c.h.bf16 %v2398
    %v2413 = vunpack.c.h.bf16 %v2399
    %v2414 = vunpack.c.l.bf16 %v2400
    %v2415 = vunpack.c.l.bf16 %v2401
    %v2416 = vsub.f32 %v2380, %v2402
    %v2417 = vsub.f32 %v2381, %v2403
    %v2418 = vsub.f32 %v2382, %v2404
    %v2419 = vsub.f32 %v2383, %v2405
    %v2420 = vsub.f32 %v2384, %v2406
    %v2421 = vsub.f32 %v2385, %v2407
    %v2422 = vsub.f32 %v2386, %v2408
    %v2423 = vsub.f32 %v2387, %v2409
    %v2424 = vsub.f32 %v2388, %v2410
    %v2425 = vsub.f32 %v2389, %v2411
    %v2426 = vsub.f32 %v2390, %v2412
    %v2427 = vsub.f32 %v2391, %v2413
    %v2428 = vsub.f32 %v2392, %v2414
    %v2429 = vsub.f32 %v2393, %v2415
    %v2430 = vpack.c.bf16 %v2418, %v2416
    %v2431 = vpack.c.bf16 %v2419, %v2417
    %v2432 = vpack.c.bf16 %v2422, %v2420
    %v2433 = vpack.c.bf16 %v2423, %v2421
    %v2434 = vpack.c.bf16 %v2426, %v2424
    %v2435 = vpack.c.bf16 %v2427, %v2425
    %v2436 = vpack.c.bf16 %v2428, %v2428
    %v2437 = vpack.c.bf16 %v2429, %v2429
    %v2439 = vsel %vm1624, %v2431, 0
    %v2442 = vsel %vm1624, %v2433, 0
    %v2445 = vsel %vm1624, %v2435, 0
    %v2448 = vsel %vm1624, %v2437, 0
    %2450 = vmatprep.subr.bf16.mxu0 %v95
    %2451 = vmatpush1.bf16.msra.mxu0 %v94
    %2452 = vmatprep.subr.bf16.mxu0 %v93
    %2453 = vmatpush1.bf16.msra.mxu0 %v92
    %2454 = vmatprep.subr.bf16.mxu0 %v91
    %2455 = vmatpush1.bf16.msra.mxu0 %v90
    %2456 = vmatprep.subr.bf16.mxu0 %v89
    %2457 = vmatpush1.bf16.msra.mxu0 %v88
    %2458 = vmatprep.subr.bf16.mxu0 %v87
    %2459 = vmatpush1.bf16.msra.mxu0 %v86
    %2460 = vmatprep.subr.bf16.mxu0 %v85
    %2461 = vmatpush1.bf16.msra.mxu0 %v84
    %2462 = vmatprep.subr.bf16.mxu0 %v83
    %2463 = vmatpush1.bf16.msra.mxu0 %v82
    %2464 = vmatprep.subr.bf16.mxu0 %v81
    %2465 = vmatpush1.bf16.msra.mxu0 %v80
    %2466 = vmatprep.subr.bf16.mxu0 0
    %2467 = vmatpush2.bf16.msra.mxu0 0
    %2468 = vmatprep.subr.bf16.mxu0 0
    %2469 = vmatpush2.bf16.msra.mxu0 0
    %2470 = vmatprep.subr.bf16.mxu0 0
    %2471 = vmatpush2.bf16.msra.mxu0 0
    %2472 = vmatprep.subr.bf16.mxu0 0
    %2473 = vmatpush2.bf16.msra.mxu0 0
    %2474 = vmatprep.subr.bf16.mxu0 0
    %2475 = vmatpush2.bf16.msra.mxu0 0
    %2476 = vmatprep.subr.bf16.mxu0 0
    %2477 = vmatpush2.bf16.msra.mxu0 0
    %2478 = vmatprep.subr.bf16.mxu0 %v99
    %2479 = vmatpush2.bf16.msra.mxu0 %v98
    %2480 = vmatprep.subr.bf16.mxu0 %v97
    %2481 = vmatpush2.bf16.msra.mxu0 %v96
    %2482 = vmatprep.mubr.bf16.mxu0 %v2439
    %2483 = vmatmul.mubr.bf16.gmra.mxu0 %v2430
    %v2484 = vpop.f32.mrf.mxu0
    %v2485 = vadd.f32 0.0, %v2484
    %v2486 = vpop.f32.mrf.mxu0
    %v2487 = vadd.f32 0.0, %v2486
    %v2488 = vpop.f32.mrf.mxu0
    %v2489 = vadd.f32 0.0, %v2488
    %v2490 = vpop.f32.mrf.mxu0
    %v2491 = vadd.f32 0.0, %v2490
    %2492 = vmatprep.mubr.bf16.mxu0 %v2442
    %2493 = vmatmul.mubr.bf16.gmra.mxu0 %v2432
    %v2494 = vpop.f32.mrf.mxu0
    %v2495 = vadd.f32 0.0, %v2494
    %v2496 = vpop.f32.mrf.mxu0
    %v2497 = vadd.f32 0.0, %v2496
    %v2498 = vpop.f32.mrf.mxu0
    %v2499 = vadd.f32 0.0, %v2498
    %v2500 = vpop.f32.mrf.mxu0
    %v2501 = vadd.f32 0.0, %v2500
    %2502 = vmatprep.mubr.bf16.mxu0 %v2445
    %2503 = vmatmul.mubr.bf16.gmra.mxu0 %v2434
    %v2504 = vpop.f32.mrf.mxu0
    %v2505 = vadd.f32 0.0, %v2504
    %v2506 = vpop.f32.mrf.mxu0
    %v2507 = vadd.f32 0.0, %v2506
    %v2508 = vpop.f32.mrf.mxu0
    %v2509 = vadd.f32 0.0, %v2508
    %v2510 = vpop.f32.mrf.mxu0
    %v2511 = vadd.f32 0.0, %v2510
    %2512 = vmatprep.mubr.bf16.mxu0 %v2448
    %2513 = vmatmul.mubr.bf16.gmra.mxu0 %v2436
    %v2514 = vpop.f32.mrf.mxu0
    %v2515 = vadd.f32 0.0, %v2514
    %v2516 = vpop.f32.mrf.mxu0
    %v2517 = vadd.f32 0.0, %v2516
    %v2518 = vpop.f32.mrf.mxu0
    %v2519 = vpop.f32.mrf.mxu0
    %2520 = vdwg.mxu0
    %v2522 = vsel %vm1624, %v2395, 0
    %v2525 = vsel %vm1624, %v2397, 0
    %v2528 = vsel %vm1624, %v2399, 0
    %v2531 = vsel %vm1624, %v2401, 0
    %2533 = vmatprep.subr.bf16.mxu0 %v195
    %2534 = vmatpush1.bf16.msra.mxu0 %v194
    %2535 = vmatprep.subr.bf16.mxu0 %v193
    %2536 = vmatpush1.bf16.msra.mxu0 %v192
    %2537 = vmatprep.subr.bf16.mxu0 %v191
    %2538 = vmatpush1.bf16.msra.mxu0 %v190
    %2539 = vmatprep.subr.bf16.mxu0 %v189
    %2540 = vmatpush1.bf16.msra.mxu0 %v188
    %2541 = vmatprep.subr.bf16.mxu0 %v187
    %2542 = vmatpush1.bf16.msra.mxu0 %v186
    %2543 = vmatprep.subr.bf16.mxu0 %v185
    %2544 = vmatpush1.bf16.msra.mxu0 %v184
    %2545 = vmatprep.subr.bf16.mxu0 %v183
    %2546 = vmatpush1.bf16.msra.mxu0 %v182
    %2547 = vmatprep.subr.bf16.mxu0 %v181
    %2548 = vmatpush1.bf16.msra.mxu0 %v180
    %2549 = vmatprep.subr.bf16.mxu0 0
    %2550 = vmatpush2.bf16.msra.mxu0 0
    %2551 = vmatprep.subr.bf16.mxu0 0
    %2552 = vmatpush2.bf16.msra.mxu0 0
    %2553 = vmatprep.subr.bf16.mxu0 0
    %2554 = vmatpush2.bf16.msra.mxu0 0
    %2555 = vmatprep.subr.bf16.mxu0 0
    %2556 = vmatpush2.bf16.msra.mxu0 0
    %2557 = vmatprep.subr.bf16.mxu0 0
    %2558 = vmatpush2.bf16.msra.mxu0 0
    %2559 = vmatprep.subr.bf16.mxu0 0
    %2560 = vmatpush2.bf16.msra.mxu0 0
    %2561 = vmatprep.subr.bf16.mxu0 %v199
    %2562 = vmatpush2.bf16.msra.mxu0 %v198
    %2563 = vmatprep.subr.bf16.mxu0 %v197
    %2564 = vmatpush2.bf16.msra.mxu0 %v196
    %2565 = vmatprep.mubr.bf16.mxu0 %v2522
    %2566 = vmatmul.mubr.bf16.gmra.mxu0 %v2394
    %v2567 = vpop.f32.mrf.mxu0
    %v2568 = vadd.f32 %v2485, %v2567
    %v2569 = vpop.f32.mrf.mxu0
    %v2570 = vadd.f32 %v2487, %v2569
    %v2571 = vpop.f32.mrf.mxu0
    %v2572 = vadd.f32 %v2489, %v2571
    %v2573 = vpop.f32.mrf.mxu0
    %v2574 = vadd.f32 %v2491, %v2573
    %2575 = vmatprep.mubr.bf16.mxu0 %v2525
    %2576 = vmatmul.mubr.bf16.gmra.mxu0 %v2396
    %v2577 = vpop.f32.mrf.mxu0
    %v2578 = vadd.f32 %v2495, %v2577
    %v2579 = vpop.f32.mrf.mxu0
    %v2580 = vadd.f32 %v2497, %v2579
    %v2581 = vpop.f32.mrf.mxu0
    %v2582 = vadd.f32 %v2499, %v2581
    %v2583 = vpop.f32.mrf.mxu0
    %v2584 = vadd.f32 %v2501, %v2583
    %2585 = vmatprep.mubr.bf16.mxu0 %v2528
    %2586 = vmatmul.mubr.bf16.gmra.mxu0 %v2398
    %v2587 = vpop.f32.mrf.mxu0
    %v2588 = vadd.f32 %v2505, %v2587
    %v2589 = vpop.f32.mrf.mxu0
    %v2590 = vadd.f32 %v2507, %v2589
    %v2591 = vpop.f32.mrf.mxu0
    %v2592 = vadd.f32 %v2509, %v2591
    %v2593 = vpop.f32.mrf.mxu0
    %v2594 = vadd.f32 %v2511, %v2593
    %2595 = vmatprep.mubr.bf16.mxu0 %v2531
    %2596 = vmatmul.mubr.bf16.gmra.mxu0 %v2400
    %v2597 = vpop.f32.mrf.mxu0
    %v2598 = vadd.f32 %v2515, %v2597
    %v2599 = vpop.f32.mrf.mxu0
    %v2600 = vadd.f32 %v2517, %v2599
    %v2601 = vpop.f32.mrf.mxu0
    %v2602 = vpop.f32.mrf.mxu0
    %2603 = vdwg.mxu0
    %2604 = vmatprep.subr.bf16.mxu0 %v95
    %2605 = vmatpush1.bf16.msra.mxu0 %v94
    %2606 = vmatprep.subr.bf16.mxu0 %v93
    %2607 = vmatpush1.bf16.msra.mxu0 %v92
    %2608 = vmatprep.subr.bf16.mxu0 %v91
    %2609 = vmatpush1.bf16.msra.mxu0 %v90
    %2610 = vmatprep.subr.bf16.mxu0 %v89
    %2611 = vmatpush1.bf16.msra.mxu0 %v88
    %2612 = vmatprep.subr.bf16.mxu0 %v87
    %2613 = vmatpush1.bf16.msra.mxu0 %v86
    %2614 = vmatprep.subr.bf16.mxu0 %v85
    %2615 = vmatpush1.bf16.msra.mxu0 %v84
    %2616 = vmatprep.subr.bf16.mxu0 %v83
    %2617 = vmatpush1.bf16.msra.mxu0 %v82
    %2618 = vmatprep.subr.bf16.mxu0 %v81
    %2619 = vmatpush1.bf16.msra.mxu0 %v80
    %2620 = vmatprep.subr.bf16.mxu0 0
    %2621 = vmatpush2.bf16.msra.mxu0 0
    %2622 = vmatprep.subr.bf16.mxu0 0
    %2623 = vmatpush2.bf16.msra.mxu0 0
    %2624 = vmatprep.subr.bf16.mxu0 0
    %2625 = vmatpush2.bf16.msra.mxu0 0
    %2626 = vmatprep.subr.bf16.mxu0 0
    %2627 = vmatpush2.bf16.msra.mxu0 0
    %2628 = vmatprep.subr.bf16.mxu0 0
    %2629 = vmatpush2.bf16.msra.mxu0 0
    %2630 = vmatprep.subr.bf16.mxu0 0
    %2631 = vmatpush2.bf16.msra.mxu0 0
    %2632 = vmatprep.subr.bf16.mxu0 %v99
    %2633 = vmatpush2.bf16.msra.mxu0 %v98
    %2634 = vmatprep.subr.bf16.mxu0 %v97
    %2635 = vmatpush2.bf16.msra.mxu0 %v96
    %2636 = vmatprep.mubr.bf16.mxu0 %v2522
    %2637 = vmatmul.mubr.bf16.gmra.mxu0 %v2394
    %v2638 = vpop.f32.mrf.mxu0
    %v2639 = vadd.f32 %v2568, %v2638
    %v2640 = vpop.f32.mrf.mxu0
    %v2641 = vadd.f32 %v2570, %v2640
    %v2642 = vpop.f32.mrf.mxu0
    %v2643 = vadd.f32 %v2572, %v2642
    %v2644 = vpop.f32.mrf.mxu0
    %v2645 = vadd.f32 %v2574, %v2644
    %2646 = vmatprep.mubr.bf16.mxu0 %v2525
    %2647 = vmatmul.mubr.bf16.gmra.mxu0 %v2396
    %v2648 = vpop.f32.mrf.mxu0
    %v2649 = vadd.f32 %v2578, %v2648
    %v2650 = vpop.f32.mrf.mxu0
    %v2651 = vadd.f32 %v2580, %v2650
    %v2652 = vpop.f32.mrf.mxu0
    %v2653 = vadd.f32 %v2582, %v2652
    %v2654 = vpop.f32.mrf.mxu0
    %v2655 = vadd.f32 %v2584, %v2654
    %2656 = vmatprep.mubr.bf16.mxu0 %v2528
    %2657 = vmatmul.mubr.bf16.gmra.mxu0 %v2398
    %v2658 = vpop.f32.mrf.mxu0
    %v2659 = vadd.f32 %v2588, %v2658
    %v2660 = vpop.f32.mrf.mxu0
    %v2661 = vadd.f32 %v2590, %v2660
    %v2662 = vpop.f32.mrf.mxu0
    %v2663 = vadd.f32 %v2592, %v2662
    %v2664 = vpop.f32.mrf.mxu0
    %v2665 = vadd.f32 %v2594, %v2664
    %2666 = vmatprep.mubr.bf16.mxu0 %v2531
    %2667 = vmatmul.mubr.bf16.gmra.mxu0 %v2400
    %v2668 = vpop.f32.mrf.mxu0
    %v2669 = vadd.f32 %v2598, %v2668
    %v2670 = vpop.f32.mrf.mxu0
    %v2671 = vadd.f32 %v2600, %v2670
    %v2672 = vpop.f32.mrf.mxu0
    %v2673 = vpop.f32.mrf.mxu0
    %2674 = vdwg.mxu0
    %v2675 = vadd.f32 %v2639, %v1866
    %v2676 = vadd.f32 %v2641, %v1870
    %v2677 = vadd.f32 %v2643, %v1866
    %v2678 = vadd.f32 %v2645, %v1870
    %v2679 = vadd.f32 %v2649, %v1866
    %v2680 = vadd.f32 %v2651, %v1870
    %v2681 = vadd.f32 %v2653, %v1866
    %v2682 = vadd.f32 %v2655, %v1870
    %v2683 = vadd.f32 %v2659, %v1866
    %v2684 = vadd.f32 %v2661, %v1870
    %v2685 = vadd.f32 %v2663, %v1866
    %v2686 = vadd.f32 %v2665, %v1870
    %v2687 = vadd.f32 %v2669, %v1866
    %v2688 = vadd.f32 %v2671, %v1870
    %v2689 = vsub.f32 0.0, %v2675
    %v2690 = vsub.f32 0.0, %v2676
    %v2691 = vsub.f32 0.0, %v2677
    %v2692 = vsub.f32 0.0, %v2678
    %v2693 = vsub.f32 0.0, %v2679
    %v2694 = vsub.f32 0.0, %v2680
    %v2695 = vsub.f32 0.0, %v2681
    %v2696 = vsub.f32 0.0, %v2682
    %v2697 = vsub.f32 0.0, %v2683
    %v2698 = vsub.f32 0.0, %v2684
    %v2699 = vsub.f32 0.0, %v2685
    %v2700 = vsub.f32 0.0, %v2686
    %v2701 = vsub.f32 0.0, %v2687
    %v2702 = vsub.f32 0.0, %v2688
    %v2703 = vmul.f32 %v2689, 1.442695
    %v2704 = vpow.pop %v2703
    %v2705 = vmul.f32 %v2690, 1.442695
    %v2706 = vpow.pop %v2705
    %v2707 = vmul.f32 %v2691, 1.442695
    %v2708 = vpow.pop %v2707
    %v2709 = vmul.f32 %v2692, 1.442695
    %v2710 = vpow.pop %v2709
    %v2711 = vmul.f32 %v2693, 1.442695
    %v2712 = vpow.pop %v2711
    %v2713 = vmul.f32 %v2694, 1.442695
    %v2714 = vpow.pop %v2713
    %v2715 = vmul.f32 %v2695, 1.442695
    %v2716 = vpow.pop %v2715
    %v2717 = vmul.f32 %v2696, 1.442695
    %v2718 = vpow.pop %v2717
    %v2719 = vmul.f32 %v2697, 1.442695
    %v2720 = vpow.pop %v2719
    %v2721 = vmul.f32 %v2698, 1.442695
    %v2722 = vpow.pop %v2721
    %v2723 = vmul.f32 %v2699, 1.442695
    %v2724 = vpow.pop %v2723
    %v2725 = vmul.f32 %v2700, 1.442695
    %v2726 = vpow.pop %v2725
    %v2727 = vmul.f32 %v2701, 1.442695
    %v2728 = vpow.pop %v2727
    %v2729 = vmul.f32 %v2702, 1.442695
    %v2730 = vpow.pop %v2729
    %v2731 = vadd.f32 %v2704, 1.0
    %v2732 = vadd.f32 %v2706, 1.0
    %v2733 = vadd.f32 %v2708, 1.0
    %v2734 = vadd.f32 %v2710, 1.0
    %v2735 = vadd.f32 %v2712, 1.0
    %v2736 = vadd.f32 %v2714, 1.0
    %v2737 = vadd.f32 %v2716, 1.0
    %v2738 = vadd.f32 %v2718, 1.0
    %v2739 = vadd.f32 %v2720, 1.0
    %v2740 = vadd.f32 %v2722, 1.0
    %v2741 = vadd.f32 %v2724, 1.0
    %v2742 = vadd.f32 %v2726, 1.0
    %v2743 = vadd.f32 %v2728, 1.0
    %v2744 = vadd.f32 %v2730, 1.0
    %v2745 = vrcp.pop %v2731
    %v2746 = vmul.f32 1.0, %v2745
    %v2747 = vrcp.pop %v2732
    %v2748 = vmul.f32 1.0, %v2747
    %v2749 = vrcp.pop %v2733
    %v2750 = vmul.f32 1.0, %v2749
    %v2751 = vrcp.pop %v2734
    %v2752 = vmul.f32 1.0, %v2751
    %v2753 = vrcp.pop %v2735
    %v2754 = vmul.f32 1.0, %v2753
    %v2755 = vrcp.pop %v2736
    %v2756 = vmul.f32 1.0, %v2755
    %v2757 = vrcp.pop %v2737
    %v2758 = vmul.f32 1.0, %v2757
    %v2759 = vrcp.pop %v2738
    %v2760 = vmul.f32 1.0, %v2759
    %v2761 = vrcp.pop %v2739
    %v2762 = vmul.f32 1.0, %v2761
    %v2763 = vrcp.pop %v2740
    %v2764 = vmul.f32 1.0, %v2763
    %v2765 = vrcp.pop %v2741
    %v2766 = vmul.f32 1.0, %v2765
    %v2767 = vrcp.pop %v2742
    %v2768 = vmul.f32 1.0, %v2767
    %v2769 = vrcp.pop %v2743
    %v2770 = vmul.f32 1.0, %v2769
    %v2771 = vrcp.pop %v2744
    %v2772 = vmul.f32 1.0, %v2771
    %s2773 = scalar_lea.vmem %s0, 336
    %v2774 = vld [vmem:[%s2773] sm:$0xff]
    %v2775 = vld [vmem:[%s2773 + $0x8] sm:$0xff]
    %v2776 = vld [vmem:[%s2773 + $0x10] sm:$0xff]
    %v2777 = vld [vmem:[%s2773 + $0x18] sm:$0xff]
    %v2778 = vld [vmem:[%s2773 + $0x20] sm:$0xff]
    %v2779 = vld [vmem:[%s2773 + $0x28] sm:$0xff]
    %v2780 = vld [vmem:[%s2773 + $0x30] sm:$0xff]
    %v2781 = vld [vmem:[%s2773 + $0x38] sm:$0xff]
    %v2782 = vld [vmem:[%s2773 + $0x40] sm:$0xff]
    %v2783 = vld [vmem:[%s2773 + $0x48] sm:$0xff]
    %v2784 = vld [vmem:[%s2773 + $0x50] sm:$0xff]
    %v2785 = vld [vmem:[%s2773 + $0x58] sm:$0xff]
    %v2786 = vld [vmem:[%s2773 + $0x60] sm:$0xff]
    %v2787 = vld [vmem:[%s2773 + $0x68] sm:$0xff]
    %v2788 = vpack.c.bf16 %v2776, %v2774
    %v2789 = vpack.c.bf16 %v2777, %v2775
    %v2790 = vpack.c.bf16 %v2780, %v2778
    %v2791 = vpack.c.bf16 %v2781, %v2779
    %v2792 = vpack.c.bf16 %v2784, %v2782
    %v2793 = vpack.c.bf16 %v2785, %v2783
    %v2794 = vpack.c.bf16 %v2786, %v2786
    %v2795 = vpack.c.bf16 %v2787, %v2787
    %v2796 = vunpack.c.l.bf16 %v2788
    %v2797 = vunpack.c.l.bf16 %v2789
    %v2798 = vunpack.c.h.bf16 %v2788
    %v2799 = vunpack.c.h.bf16 %v2789
    %v2800 = vunpack.c.l.bf16 %v2790
    %v2801 = vunpack.c.l.bf16 %v2791
    %v2802 = vunpack.c.h.bf16 %v2790
    %v2803 = vunpack.c.h.bf16 %v2791
    %v2804 = vunpack.c.l.bf16 %v2792
    %v2805 = vunpack.c.l.bf16 %v2793
    %v2806 = vunpack.c.h.bf16 %v2792
    %v2807 = vunpack.c.h.bf16 %v2793
    %v2808 = vunpack.c.l.bf16 %v2794
    %v2809 = vunpack.c.l.bf16 %v2795
    %v2810 = vsub.f32 %v2774, %v2796
    %v2811 = vsub.f32 %v2775, %v2797
    %v2812 = vsub.f32 %v2776, %v2798
    %v2813 = vsub.f32 %v2777, %v2799
    %v2814 = vsub.f32 %v2778, %v2800
    %v2815 = vsub.f32 %v2779, %v2801
    %v2816 = vsub.f32 %v2780, %v2802
    %v2817 = vsub.f32 %v2781, %v2803
    %v2818 = vsub.f32 %v2782, %v2804
    %v2819 = vsub.f32 %v2783, %v2805
    %v2820 = vsub.f32 %v2784, %v2806
    %v2821 = vsub.f32 %v2785, %v2807
    %v2822 = vsub.f32 %v2786, %v2808
    %v2823 = vsub.f32 %v2787, %v2809
    %v2824 = vpack.c.bf16 %v2812, %v2810
    %v2825 = vpack.c.bf16 %v2813, %v2811
    %v2826 = vpack.c.bf16 %v2816, %v2814
    %v2827 = vpack.c.bf16 %v2817, %v2815
    %v2828 = vpack.c.bf16 %v2820, %v2818
    %v2829 = vpack.c.bf16 %v2821, %v2819
    %v2830 = vpack.c.bf16 %v2822, %v2822
    %v2831 = vpack.c.bf16 %v2823, %v2823
    %v2833 = vsel %vm1624, %v2825, 0
    %v2836 = vsel %vm1624, %v2827, 0
    %v2839 = vsel %vm1624, %v2829, 0
    %v2842 = vsel %vm1624, %v2831, 0
    %2844 = vmatprep.subr.bf16.mxu0 %v95
    %2845 = vmatpush1.bf16.msra.mxu0 %v94
    %2846 = vmatprep.subr.bf16.mxu0 %v93
    %2847 = vmatpush1.bf16.msra.mxu0 %v92
    %2848 = vmatprep.subr.bf16.mxu0 %v91
    %2849 = vmatpush1.bf16.msra.mxu0 %v90
    %2850 = vmatprep.subr.bf16.mxu0 %v89
    %2851 = vmatpush1.bf16.msra.mxu0 %v88
    %2852 = vmatprep.subr.bf16.mxu0 %v87
    %2853 = vmatpush1.bf16.msra.mxu0 %v86
    %2854 = vmatprep.subr.bf16.mxu0 %v85
    %2855 = vmatpush1.bf16.msra.mxu0 %v84
    %2856 = vmatprep.subr.bf16.mxu0 %v83
    %2857 = vmatpush1.bf16.msra.mxu0 %v82
    %2858 = vmatprep.subr.bf16.mxu0 %v81
    %2859 = vmatpush1.bf16.msra.mxu0 %v80
    %2860 = vmatprep.subr.bf16.mxu0 0
    %2861 = vmatpush2.bf16.msra.mxu0 0
    %2862 = vmatprep.subr.bf16.mxu0 0
    %2863 = vmatpush2.bf16.msra.mxu0 0
    %2864 = vmatprep.subr.bf16.mxu0 0
    %2865 = vmatpush2.bf16.msra.mxu0 0
    %2866 = vmatprep.subr.bf16.mxu0 0
    %2867 = vmatpush2.bf16.msra.mxu0 0
    %2868 = vmatprep.subr.bf16.mxu0 0
    %2869 = vmatpush2.bf16.msra.mxu0 0
    %2870 = vmatprep.subr.bf16.mxu0 0
    %2871 = vmatpush2.bf16.msra.mxu0 0
    %2872 = vmatprep.subr.bf16.mxu0 %v99
    %2873 = vmatpush2.bf16.msra.mxu0 %v98
    %2874 = vmatprep.subr.bf16.mxu0 %v97
    %2875 = vmatpush2.bf16.msra.mxu0 %v96
    %2876 = vmatprep.mubr.bf16.mxu0 %v2833
    %2877 = vmatmul.mubr.bf16.gmra.mxu0 %v2824
    %v2878 = vpop.f32.mrf.mxu0
    %v2879 = vadd.f32 0.0, %v2878
    %v2880 = vpop.f32.mrf.mxu0
    %v2881 = vadd.f32 0.0, %v2880
    %v2882 = vpop.f32.mrf.mxu0
    %v2883 = vadd.f32 0.0, %v2882
    %v2884 = vpop.f32.mrf.mxu0
    %v2885 = vadd.f32 0.0, %v2884
    %2886 = vmatprep.mubr.bf16.mxu0 %v2836
    %2887 = vmatmul.mubr.bf16.gmra.mxu0 %v2826
    %v2888 = vpop.f32.mrf.mxu0
    %v2889 = vadd.f32 0.0, %v2888
    %v2890 = vpop.f32.mrf.mxu0
    %v2891 = vadd.f32 0.0, %v2890
    %v2892 = vpop.f32.mrf.mxu0
    %v2893 = vadd.f32 0.0, %v2892
    %v2894 = vpop.f32.mrf.mxu0
    %v2895 = vadd.f32 0.0, %v2894
    %2896 = vmatprep.mubr.bf16.mxu0 %v2839
    %2897 = vmatmul.mubr.bf16.gmra.mxu0 %v2828
    %v2898 = vpop.f32.mrf.mxu0
    %v2899 = vadd.f32 0.0, %v2898
    %v2900 = vpop.f32.mrf.mxu0
    %v2901 = vadd.f32 0.0, %v2900
    %v2902 = vpop.f32.mrf.mxu0
    %v2903 = vadd.f32 0.0, %v2902
    %v2904 = vpop.f32.mrf.mxu0
    %v2905 = vadd.f32 0.0, %v2904
    %2906 = vmatprep.mubr.bf16.mxu0 %v2842
    %2907 = vmatmul.mubr.bf16.gmra.mxu0 %v2830
    %v2908 = vpop.f32.mrf.mxu0
    %v2909 = vadd.f32 0.0, %v2908
    %v2910 = vpop.f32.mrf.mxu0
    %v2911 = vadd.f32 0.0, %v2910
    %v2912 = vpop.f32.mrf.mxu0
    %v2913 = vpop.f32.mrf.mxu0
    %2914 = vdwg.mxu0
    %v2916 = vsel %vm1624, %v2789, 0
    %v2919 = vsel %vm1624, %v2791, 0
    %v2922 = vsel %vm1624, %v2793, 0
    %v2925 = vsel %vm1624, %v2795, 0
    %2927 = vmatprep.subr.bf16.mxu0 %v195
    %2928 = vmatpush1.bf16.msra.mxu0 %v194
    %2929 = vmatprep.subr.bf16.mxu0 %v193
    %2930 = vmatpush1.bf16.msra.mxu0 %v192
    %2931 = vmatprep.subr.bf16.mxu0 %v191
    %2932 = vmatpush1.bf16.msra.mxu0 %v190
    %2933 = vmatprep.subr.bf16.mxu0 %v189
    %2934 = vmatpush1.bf16.msra.mxu0 %v188
    %2935 = vmatprep.subr.bf16.mxu0 %v187
    %2936 = vmatpush1.bf16.msra.mxu0 %v186
    %2937 = vmatprep.subr.bf16.mxu0 %v185
    %2938 = vmatpush1.bf16.msra.mxu0 %v184
    %2939 = vmatprep.subr.bf16.mxu0 %v183
    %2940 = vmatpush1.bf16.msra.mxu0 %v182
    %2941 = vmatprep.subr.bf16.mxu0 %v181
    %2942 = vmatpush1.bf16.msra.mxu0 %v180
    %2943 = vmatprep.subr.bf16.mxu0 0
    %2944 = vmatpush2.bf16.msra.mxu0 0
    %2945 = vmatprep.subr.bf16.mxu0 0
    %2946 = vmatpush2.bf16.msra.mxu0 0
    %2947 = vmatprep.subr.bf16.mxu0 0
    %2948 = vmatpush2.bf16.msra.mxu0 0
    %2949 = vmatprep.subr.bf16.mxu0 0
    %2950 = vmatpush2.bf16.msra.mxu0 0
    %2951 = vmatprep.subr.bf16.mxu0 0
    %2952 = vmatpush2.bf16.msra.mxu0 0
    %2953 = vmatprep.subr.bf16.mxu0 0
    %2954 = vmatpush2.bf16.msra.mxu0 0
    %2955 = vmatprep.subr.bf16.mxu0 %v199
    %2956 = vmatpush2.bf16.msra.mxu0 %v198
    %2957 = vmatprep.subr.bf16.mxu0 %v197
    %2958 = vmatpush2.bf16.msra.mxu0 %v196
    %2959 = vmatprep.mubr.bf16.mxu0 %v2916
    %2960 = vmatmul.mubr.bf16.gmra.mxu0 %v2788
    %v2961 = vpop.f32.mrf.mxu0
    %v2962 = vadd.f32 %v2879, %v2961
    %v2963 = vpop.f32.mrf.mxu0
    %v2964 = vadd.f32 %v2881, %v2963
    %v2965 = vpop.f32.mrf.mxu0
    %v2966 = vadd.f32 %v2883, %v2965
    %v2967 = vpop.f32.mrf.mxu0
    %v2968 = vadd.f32 %v2885, %v2967
    %2969 = vmatprep.mubr.bf16.mxu0 %v2919
    %2970 = vmatmul.mubr.bf16.gmra.mxu0 %v2790
    %v2971 = vpop.f32.mrf.mxu0
    %v2972 = vadd.f32 %v2889, %v2971
    %v2973 = vpop.f32.mrf.mxu0
    %v2974 = vadd.f32 %v2891, %v2973
    %v2975 = vpop.f32.mrf.mxu0
    %v2976 = vadd.f32 %v2893, %v2975
    %v2977 = vpop.f32.mrf.mxu0
    %v2978 = vadd.f32 %v2895, %v2977
    %2979 = vmatprep.mubr.bf16.mxu0 %v2922
    %2980 = vmatmul.mubr.bf16.gmra.mxu0 %v2792
    %v2981 = vpop.f32.mrf.mxu0
    %v2982 = vadd.f32 %v2899, %v2981
    %v2983 = vpop.f32.mrf.mxu0
    %v2984 = vadd.f32 %v2901, %v2983
    %v2985 = vpop.f32.mrf.mxu0
    %v2986 = vadd.f32 %v2903, %v2985
    %v2987 = vpop.f32.mrf.mxu0
    %v2988 = vadd.f32 %v2905, %v2987
    %2989 = vmatprep.mubr.bf16.mxu0 %v2925
    %2990 = vmatmul.mubr.bf16.gmra.mxu0 %v2794
    %v2991 = vpop.f32.mrf.mxu0
    %v2992 = vadd.f32 %v2909, %v2991
    %v2993 = vpop.f32.mrf.mxu0
    %v2994 = vadd.f32 %v2911, %v2993
    %v2995 = vpop.f32.mrf.mxu0
    %v2996 = vpop.f32.mrf.mxu0
    %2997 = vdwg.mxu0
    %2998 = vmatprep.subr.bf16.mxu0 %v95
    %2999 = vmatpush1.bf16.msra.mxu0 %v94
    %3000 = vmatprep.subr.bf16.mxu0 %v93
    %3001 = vmatpush1.bf16.msra.mxu0 %v92
    %3002 = vmatprep.subr.bf16.mxu0 %v91
    %3003 = vmatpush1.bf16.msra.mxu0 %v90
    %3004 = vmatprep.subr.bf16.mxu0 %v89
    %3005 = vmatpush1.bf16.msra.mxu0 %v88
    %3006 = vmatprep.subr.bf16.mxu0 %v87
    %3007 = vmatpush1.bf16.msra.mxu0 %v86
    %3008 = vmatprep.subr.bf16.mxu0 %v85
    %3009 = vmatpush1.bf16.msra.mxu0 %v84
    %3010 = vmatprep.subr.bf16.mxu0 %v83
    %3011 = vmatpush1.bf16.msra.mxu0 %v82
    %3012 = vmatprep.subr.bf16.mxu0 %v81
    %3013 = vmatpush1.bf16.msra.mxu0 %v80
    %3014 = vmatprep.subr.bf16.mxu0 0
    %3015 = vmatpush2.bf16.msra.mxu0 0
    %3016 = vmatprep.subr.bf16.mxu0 0
    %3017 = vmatpush2.bf16.msra.mxu0 0
    %3018 = vmatprep.subr.bf16.mxu0 0
    %3019 = vmatpush2.bf16.msra.mxu0 0
    %3020 = vmatprep.subr.bf16.mxu0 0
    %3021 = vmatpush2.bf16.msra.mxu0 0
    %3022 = vmatprep.subr.bf16.mxu0 0
    %3023 = vmatpush2.bf16.msra.mxu0 0
    %3024 = vmatprep.subr.bf16.mxu0 0
    %3025 = vmatpush2.bf16.msra.mxu0 0
    %3026 = vmatprep.subr.bf16.mxu0 %v99
    %3027 = vmatpush2.bf16.msra.mxu0 %v98
    %3028 = vmatprep.subr.bf16.mxu0 %v97
    %3029 = vmatpush2.bf16.msra.mxu0 %v96
    %3030 = vmatprep.mubr.bf16.mxu0 %v2916
    %3031 = vmatmul.mubr.bf16.gmra.mxu0 %v2788
    %v3032 = vpop.f32.mrf.mxu0
    %v3033 = vadd.f32 %v2962, %v3032
    %v3034 = vpop.f32.mrf.mxu0
    %v3035 = vadd.f32 %v2964, %v3034
    %v3036 = vpop.f32.mrf.mxu0
    %v3037 = vadd.f32 %v2966, %v3036
    %v3038 = vpop.f32.mrf.mxu0
    %v3039 = vadd.f32 %v2968, %v3038
    %3040 = vmatprep.mubr.bf16.mxu0 %v2919
    %3041 = vmatmul.mubr.bf16.gmra.mxu0 %v2790
    %v3042 = vpop.f32.mrf.mxu0
    %v3043 = vadd.f32 %v2972, %v3042
    %v3044 = vpop.f32.mrf.mxu0
    %v3045 = vadd.f32 %v2974, %v3044
    %v3046 = vpop.f32.mrf.mxu0
    %v3047 = vadd.f32 %v2976, %v3046
    %v3048 = vpop.f32.mrf.mxu0
    %v3049 = vadd.f32 %v2978, %v3048
    %3050 = vmatprep.mubr.bf16.mxu0 %v2922
    %3051 = vmatmul.mubr.bf16.gmra.mxu0 %v2792
    %v3052 = vpop.f32.mrf.mxu0
    %v3053 = vadd.f32 %v2982, %v3052
    %v3054 = vpop.f32.mrf.mxu0
    %v3055 = vadd.f32 %v2984, %v3054
    %v3056 = vpop.f32.mrf.mxu0
    %v3057 = vadd.f32 %v2986, %v3056
    %v3058 = vpop.f32.mrf.mxu0
    %v3059 = vadd.f32 %v2988, %v3058
    %3060 = vmatprep.mubr.bf16.mxu0 %v2925
    %3061 = vmatmul.mubr.bf16.gmra.mxu0 %v2794
    %v3062 = vpop.f32.mrf.mxu0
    %v3063 = vadd.f32 %v2992, %v3062
    %v3064 = vpop.f32.mrf.mxu0
    %v3065 = vadd.f32 %v2994, %v3064
    %v3066 = vpop.f32.mrf.mxu0
    %v3067 = vpop.f32.mrf.mxu0
    %3068 = vdwg.mxu0
    %v3069 = vadd.f32 %v3033, %v1866
    %v3070 = vadd.f32 %v3035, %v1870
    %v3071 = vadd.f32 %v3037, %v1866
    %v3072 = vadd.f32 %v3039, %v1870
    %v3073 = vadd.f32 %v3043, %v1866
    %v3074 = vadd.f32 %v3045, %v1870
    %v3075 = vadd.f32 %v3047, %v1866
    %v3076 = vadd.f32 %v3049, %v1870
    %v3077 = vadd.f32 %v3053, %v1866
    %v3078 = vadd.f32 %v3055, %v1870
    %v3079 = vadd.f32 %v3057, %v1866
    %v3080 = vadd.f32 %v3059, %v1870
    %v3081 = vadd.f32 %v3063, %v1866
    %v3082 = vadd.f32 %v3065, %v1870
    %v3083 = vsub.f32 0.0, %v3069
    %v3084 = vsub.f32 0.0, %v3070
    %v3085 = vsub.f32 0.0, %v3071
    %v3086 = vsub.f32 0.0, %v3072
    %v3087 = vsub.f32 0.0, %v3073
    %v3088 = vsub.f32 0.0, %v3074
    %v3089 = vsub.f32 0.0, %v3075
    %v3090 = vsub.f32 0.0, %v3076
    %v3091 = vsub.f32 0.0, %v3077
    %v3092 = vsub.f32 0.0, %v3078
    %v3093 = vsub.f32 0.0, %v3079
    %v3094 = vsub.f32 0.0, %v3080
    %v3095 = vsub.f32 0.0, %v3081
    %v3096 = vsub.f32 0.0, %v3082
    %v3097 = vmul.f32 %v3083, 1.442695
    %v3098 = vpow.pop %v3097
    %v3099 = vmul.f32 %v3084, 1.442695
    %v3100 = vpow.pop %v3099
    %v3101 = vmul.f32 %v3085, 1.442695
    %v3102 = vpow.pop %v3101
    %v3103 = vmul.f32 %v3086, 1.442695
    %v3104 = vpow.pop %v3103
    %v3105 = vmul.f32 %v3087, 1.442695
    %v3106 = vpow.pop %v3105
    %v3107 = vmul.f32 %v3088, 1.442695
    %v3108 = vpow.pop %v3107
    %v3109 = vmul.f32 %v3089, 1.442695
    %v3110 = vpow.pop %v3109
    %v3111 = vmul.f32 %v3090, 1.442695
    %v3112 = vpow.pop %v3111
    %v3113 = vmul.f32 %v3091, 1.442695
    %v3114 = vpow.pop %v3113
    %v3115 = vmul.f32 %v3092, 1.442695
    %v3116 = vpow.pop %v3115
    %v3117 = vmul.f32 %v3093, 1.442695
    %v3118 = vpow.pop %v3117
    %v3119 = vmul.f32 %v3094, 1.442695
    %v3120 = vpow.pop %v3119
    %v3121 = vmul.f32 %v3095, 1.442695
    %v3122 = vpow.pop %v3121
    %v3123 = vmul.f32 %v3096, 1.442695
    %v3124 = vpow.pop %v3123
    %v3125 = vadd.f32 %v3098, 1.0
    %v3126 = vadd.f32 %v3100, 1.0
    %v3127 = vadd.f32 %v3102, 1.0
    %v3128 = vadd.f32 %v3104, 1.0
    %v3129 = vadd.f32 %v3106, 1.0
    %v3130 = vadd.f32 %v3108, 1.0
    %v3131 = vadd.f32 %v3110, 1.0
    %v3132 = vadd.f32 %v3112, 1.0
    %v3133 = vadd.f32 %v3114, 1.0
    %v3134 = vadd.f32 %v3116, 1.0
    %v3135 = vadd.f32 %v3118, 1.0
    %v3136 = vadd.f32 %v3120, 1.0
    %v3137 = vadd.f32 %v3122, 1.0
    %v3138 = vadd.f32 %v3124, 1.0
    %v3139 = vrcp.pop %v3125
    %v3140 = vmul.f32 1.0, %v3139
    %v3141 = vrcp.pop %v3126
    %v3142 = vmul.f32 1.0, %v3141
    %v3143 = vrcp.pop %v3127
    %v3144 = vmul.f32 1.0, %v3143
    %v3145 = vrcp.pop %v3128
    %v3146 = vmul.f32 1.0, %v3145
    %v3147 = vrcp.pop %v3129
    %v3148 = vmul.f32 1.0, %v3147
    %v3149 = vrcp.pop %v3130
    %v3150 = vmul.f32 1.0, %v3149
    %v3151 = vrcp.pop %v3131
    %v3152 = vmul.f32 1.0, %v3151
    %v3153 = vrcp.pop %v3132
    %v3154 = vmul.f32 1.0, %v3153
    %v3155 = vrcp.pop %v3133
    %v3156 = vmul.f32 1.0, %v3155
    %v3157 = vrcp.pop %v3134
    %v3158 = vmul.f32 1.0, %v3157
    %v3159 = vrcp.pop %v3135
    %v3160 = vmul.f32 1.0, %v3159
    %v3161 = vrcp.pop %v3136
    %v3162 = vmul.f32 1.0, %v3161
    %v3163 = vrcp.pop %v3137
    %v3164 = vmul.f32 1.0, %v3163
    %v3165 = vrcp.pop %v3138
    %v3166 = vmul.f32 1.0, %v3165
    %v3167 = vadd.f32 %v2746, %v3140
    %v3168 = vadd.f32 %v2748, %v3142
    %v3169 = vadd.f32 %v2750, %v3144
    %v3170 = vadd.f32 %v2752, %v3146
    %v3171 = vadd.f32 %v2754, %v3148
    %v3172 = vadd.f32 %v2756, %v3150
    %v3173 = vadd.f32 %v2758, %v3152
    %v3174 = vadd.f32 %v2760, %v3154
    %v3175 = vadd.f32 %v2762, %v3156
    %v3176 = vadd.f32 %v2764, %v3158
    %v3177 = vadd.f32 %v2766, %v3160
    %v3178 = vadd.f32 %v2768, %v3162
    %v3179 = vadd.f32 %v2770, %v3164
    %v3180 = vadd.f32 %v2772, %v3166
    %v3181 = vpack.c.bf16 %v2367, %v2365
    %v3182 = vpack.c.bf16 %v2368, %v2366
    %v3183 = vpack.c.bf16 %v2371, %v2369
    %v3184 = vpack.c.bf16 %v2372, %v2370
    %v3185 = vpack.c.bf16 %v2373, %v2373
    %v3186 = vpack.c.bf16 %v2374, %v2374
    %v3187 = vunpack.c.l.bf16 %v3181
    %v3188 = vunpack.c.l.bf16 %v3182
    %v3189 = vunpack.c.h.bf16 %v3181
    %v3190 = vunpack.c.h.bf16 %v3182
    %v3191 = vunpack.c.l.bf16 %v3183
    %v3192 = vunpack.c.l.bf16 %v3184
    %v3193 = vunpack.c.h.bf16 %v3183
    %v3194 = vunpack.c.h.bf16 %v3184
    %v3195 = vunpack.c.l.bf16 %v3185
    %v3196 = vunpack.c.l.bf16 %v3186
    %v3197 = vsub.f32 %v2365, %v3187
    %v3198 = vsub.f32 %v2366, %v3188
    %v3199 = vsub.f32 %v2367, %v3189
    %v3200 = vsub.f32 %v2368, %v3190
    %v3201 = vsub.f32 %v2369, %v3191
    %v3202 = vsub.f32 %v2370, %v3192
    %v3203 = vsub.f32 %v2371, %v3193
    %v3204 = vsub.f32 %v2372, %v3194
    %v3205 = vsub.f32 %v2373, %v3195
    %v3206 = vsub.f32 %v2374, %v3196
    %v3207 = vpack.c.bf16 %v3199, %v3197
    %v3208 = vpack.c.bf16 %v3200, %v3198
    %v3209 = vpack.c.bf16 %v3203, %v3201
    %v3210 = vpack.c.bf16 %v3204, %v3202
    %v3211 = vpack.c.bf16 %v3205, %v3205
    %v3212 = vpack.c.bf16 %v3206, %v3206
    %vm3213 = vcmask 326656
    %v3215 = vsel %vm3213, %v3208, 0
    %v3218 = vsel %vm3213, %v3210, 0
    %v3221 = vsel %vm3213, %v3212, 0
    %vm3223 = vcmask 1043456
    %v3225 = vsel %vm3223, %v262, 0
    %v3228 = vsel %vm3223, %v263, 0
    %3230 = vmatprep.subr.bf16.mxu0 %v257
    %3231 = vmatpush1.bf16.msra.mxu0 %v256
    %3232 = vmatprep.subr.bf16.mxu0 %v255
    %3233 = vmatpush1.bf16.msra.mxu0 %v254
    %3234 = vmatprep.subr.bf16.mxu0 %v253
    %3235 = vmatpush1.bf16.msra.mxu0 %v252
    %3236 = vmatprep.subr.bf16.mxu0 %v251
    %3237 = vmatpush1.bf16.msra.mxu0 %v250
    %3238 = vmatprep.subr.bf16.mxu0 %v249
    %3239 = vmatpush1.bf16.msra.mxu0 %v248
    %3240 = vmatprep.subr.bf16.mxu0 %v247
    %3241 = vmatpush1.bf16.msra.mxu0 %v246
    %3242 = vmatprep.subr.bf16.mxu0 %v245
    %3243 = vmatpush1.bf16.msra.mxu0 %v244
    %3244 = vmatprep.subr.bf16.mxu0 %v243
    %3245 = vmatpush1.bf16.msra.mxu0 %v242
    %3246 = vmatprep.subr.bf16.mxu0 0
    %3247 = vmatpush2.bf16.msra.mxu0 0
    %3248 = vmatprep.subr.bf16.mxu0 0
    %3249 = vmatpush2.bf16.msra.mxu0 0
    %3250 = vmatprep.subr.bf16.mxu0 0
    %3251 = vmatpush2.bf16.msra.mxu0 0
    %3252 = vmatprep.subr.bf16.mxu0 0
    %3253 = vmatpush2.bf16.msra.mxu0 0
    %3254 = vmatprep.subr.bf16.mxu0 0
    %3255 = vmatpush2.bf16.msra.mxu0 0
    %3256 = vmatprep.subr.bf16.mxu0 %v3228
    %3257 = vmatpush2.bf16.msra.mxu0 %v3225
    %3258 = vmatprep.subr.bf16.mxu0 %v261
    %3259 = vmatpush2.bf16.msra.mxu0 %v260
    %3260 = vmatprep.subr.bf16.mxu0 %v259
    %3261 = vmatpush2.bf16.msra.mxu0 %v258
    %3262 = vmatprep.mubr.bf16.mxu0 %v3215
    %3263 = vmatmul.mubr.bf16.gmra.mxu0 %v3207
    %v3264 = vpop.f32.mrf.mxu0
    %v3265 = vadd.f32 0.0, %v3264
    %v3266 = vpop.f32.mrf.mxu0
    %v3267 = vadd.f32 0.0, %v3266
    %v3268 = vpop.f32.mrf.mxu0
    %v3269 = vadd.f32 0.0, %v3268
    %v3270 = vpop.f32.mrf.mxu0
    %v3271 = vadd.f32 0.0, %v3270
    %3272 = vmatprep.mubr.bf16.mxu0 %v3218
    %3273 = vmatmul.mubr.bf16.gmra.mxu0 %v3209
    %v3274 = vpop.f32.mrf.mxu0
    %v3275 = vadd.f32 0.0, %v3274
    %v3276 = vpop.f32.mrf.mxu0
    %v3277 = vadd.f32 0.0, %v3276
    %v3278 = vpop.f32.mrf.mxu0
    %v3279 = vadd.f32 0.0, %v3278
    %v3280 = vpop.f32.mrf.mxu0
    %v3281 = vadd.f32 0.0, %v3280
    %3282 = vmatprep.mubr.bf16.mxu0 %v3221
    %3283 = vmatmul.mubr.bf16.gmra.mxu0 %v3211
    %v3284 = vpop.f32.mrf.mxu0
    %v3285 = vadd.f32 0.0, %v3284
    %v3286 = vpop.f32.mrf.mxu0
    %v3287 = vadd.f32 0.0, %v3286
    %v3288 = vpop.f32.mrf.mxu0
    %v3289 = vpop.f32.mrf.mxu0
    %3290 = vdwg.mxu0
    %v3292 = vsel %vm3213, %v3182, 0
    %v3295 = vsel %vm3213, %v3184, 0
    %v3298 = vsel %vm3213, %v3186, 0
    %v3301 = vsel %vm3223, %v368, 0
    %v3304 = vsel %vm3223, %v369, 0
    %3306 = vmatprep.subr.bf16.mxu0 %v363
    %3307 = vmatpush1.bf16.msra.mxu0 %v362
    %3308 = vmatprep.subr.bf16.mxu0 %v361
    %3309 = vmatpush1.bf16.msra.mxu0 %v360
    %3310 = vmatprep.subr.bf16.mxu0 %v359
    %3311 = vmatpush1.bf16.msra.mxu0 %v358
    %3312 = vmatprep.subr.bf16.mxu0 %v357
    %3313 = vmatpush1.bf16.msra.mxu0 %v356
    %3314 = vmatprep.subr.bf16.mxu0 %v355
    %3315 = vmatpush1.bf16.msra.mxu0 %v354
    %3316 = vmatprep.subr.bf16.mxu0 %v353
    %3317 = vmatpush1.bf16.msra.mxu0 %v352
    %3318 = vmatprep.subr.bf16.mxu0 %v351
    %3319 = vmatpush1.bf16.msra.mxu0 %v350
    %3320 = vmatprep.subr.bf16.mxu0 %v349
    %3321 = vmatpush1.bf16.msra.mxu0 %v348
    %3322 = vmatprep.subr.bf16.mxu0 0
    %3323 = vmatpush2.bf16.msra.mxu0 0
    %3324 = vmatprep.subr.bf16.mxu0 0
    %3325 = vmatpush2.bf16.msra.mxu0 0
    %3326 = vmatprep.subr.bf16.mxu0 0
    %3327 = vmatpush2.bf16.msra.mxu0 0
    %3328 = vmatprep.subr.bf16.mxu0 0
    %3329 = vmatpush2.bf16.msra.mxu0 0
    %3330 = vmatprep.subr.bf16.mxu0 0
    %3331 = vmatpush2.bf16.msra.mxu0 0
    %3332 = vmatprep.subr.bf16.mxu0 %v3304
    %3333 = vmatpush2.bf16.msra.mxu0 %v3301
    %3334 = vmatprep.subr.bf16.mxu0 %v367
    %3335 = vmatpush2.bf16.msra.mxu0 %v366
    %3336 = vmatprep.subr.bf16.mxu0 %v365
    %3337 = vmatpush2.bf16.msra.mxu0 %v364
    %3338 = vmatprep.mubr.bf16.mxu0 %v3292
    %3339 = vmatmul.mubr.bf16.gmra.mxu0 %v3181
    %v3340 = vpop.f32.mrf.mxu0
    %v3341 = vadd.f32 %v3265, %v3340
    %v3342 = vpop.f32.mrf.mxu0
    %v3343 = vadd.f32 %v3267, %v3342
    %v3344 = vpop.f32.mrf.mxu0
    %v3345 = vadd.f32 %v3269, %v3344
    %v3346 = vpop.f32.mrf.mxu0
    %v3347 = vadd.f32 %v3271, %v3346
    %3348 = vmatprep.mubr.bf16.mxu0 %v3295
    %3349 = vmatmul.mubr.bf16.gmra.mxu0 %v3183
    %v3350 = vpop.f32.mrf.mxu0
    %v3351 = vadd.f32 %v3275, %v3350
    %v3352 = vpop.f32.mrf.mxu0
    %v3353 = vadd.f32 %v3277, %v3352
    %v3354 = vpop.f32.mrf.mxu0
    %v3355 = vadd.f32 %v3279, %v3354
    %v3356 = vpop.f32.mrf.mxu0
    %v3357 = vadd.f32 %v3281, %v3356
    %3358 = vmatprep.mubr.bf16.mxu0 %v3298
    %3359 = vmatmul.mubr.bf16.gmra.mxu0 %v3185
    %v3360 = vpop.f32.mrf.mxu0
    %v3361 = vadd.f32 %v3285, %v3360
    %v3362 = vpop.f32.mrf.mxu0
    %v3363 = vadd.f32 %v3287, %v3362
    %v3364 = vpop.f32.mrf.mxu0
    %v3365 = vpop.f32.mrf.mxu0
    %3366 = vdwg.mxu0
    %3367 = vmatprep.subr.bf16.mxu0 %v257
    %3368 = vmatpush1.bf16.msra.mxu0 %v256
    %3369 = vmatprep.subr.bf16.mxu0 %v255
    %3370 = vmatpush1.bf16.msra.mxu0 %v254
    %3371 = vmatprep.subr.bf16.mxu0 %v253
    %3372 = vmatpush1.bf16.msra.mxu0 %v252
    %3373 = vmatprep.subr.bf16.mxu0 %v251
    %3374 = vmatpush1.bf16.msra.mxu0 %v250
    %3375 = vmatprep.subr.bf16.mxu0 %v249
    %3376 = vmatpush1.bf16.msra.mxu0 %v248
    %3377 = vmatprep.subr.bf16.mxu0 %v247
    %3378 = vmatpush1.bf16.msra.mxu0 %v246
    %3379 = vmatprep.subr.bf16.mxu0 %v245
    %3380 = vmatpush1.bf16.msra.mxu0 %v244
    %3381 = vmatprep.subr.bf16.mxu0 %v243
    %3382 = vmatpush1.bf16.msra.mxu0 %v242
    %3383 = vmatprep.subr.bf16.mxu0 0
    %3384 = vmatpush2.bf16.msra.mxu0 0
    %3385 = vmatprep.subr.bf16.mxu0 0
    %3386 = vmatpush2.bf16.msra.mxu0 0
    %3387 = vmatprep.subr.bf16.mxu0 0
    %3388 = vmatpush2.bf16.msra.mxu0 0
    %3389 = vmatprep.subr.bf16.mxu0 0
    %3390 = vmatpush2.bf16.msra.mxu0 0
    %3391 = vmatprep.subr.bf16.mxu0 0
    %3392 = vmatpush2.bf16.msra.mxu0 0
    %3393 = vmatprep.subr.bf16.mxu0 %v3228
    %3394 = vmatpush2.bf16.msra.mxu0 %v3225
    %3395 = vmatprep.subr.bf16.mxu0 %v261
    %3396 = vmatpush2.bf16.msra.mxu0 %v260
    %3397 = vmatprep.subr.bf16.mxu0 %v259
    %3398 = vmatpush2.bf16.msra.mxu0 %v258
    %3399 = vmatprep.mubr.bf16.mxu0 %v3292
    %3400 = vmatmul.mubr.bf16.gmra.mxu0 %v3181
    %v3401 = vpop.f32.mrf.mxu0
    %v3402 = vadd.f32 %v3341, %v3401
    %v3403 = vpop.f32.mrf.mxu0
    %v3404 = vadd.f32 %v3343, %v3403
    %v3405 = vpop.f32.mrf.mxu0
    %v3406 = vadd.f32 %v3345, %v3405
    %v3407 = vpop.f32.mrf.mxu0
    %v3408 = vadd.f32 %v3347, %v3407
    %3409 = vmatprep.mubr.bf16.mxu0 %v3295
    %3410 = vmatmul.mubr.bf16.gmra.mxu0 %v3183
    %v3411 = vpop.f32.mrf.mxu0
    %v3412 = vadd.f32 %v3351, %v3411
    %v3413 = vpop.f32.mrf.mxu0
    %v3414 = vadd.f32 %v3353, %v3413
    %v3415 = vpop.f32.mrf.mxu0
    %v3416 = vadd.f32 %v3355, %v3415
    %v3417 = vpop.f32.mrf.mxu0
    %v3418 = vadd.f32 %v3357, %v3417
    %3419 = vmatprep.mubr.bf16.mxu0 %v3298
    %3420 = vmatmul.mubr.bf16.gmra.mxu0 %v3185
    %v3421 = vpop.f32.mrf.mxu0
    %v3422 = vadd.f32 %v3361, %v3421
    %v3423 = vpop.f32.mrf.mxu0
    %v3424 = vadd.f32 %v3363, %v3423
    %v3425 = vpop.f32.mrf.mxu0
    %v3426 = vpop.f32.mrf.mxu0
    %3427 = vdwg.mxu0
    %v3428 = vpack.c.bf16 %v3169, %v3167
    %v3429 = vpack.c.bf16 %v3170, %v3168
    %v3430 = vpack.c.bf16 %v3173, %v3171
    %v3431 = vpack.c.bf16 %v3174, %v3172
    %v3432 = vpack.c.bf16 %v3175, %v3175
    %v3433 = vpack.c.bf16 %v3176, %v3176
    %v3434 = vunpack.c.l.bf16 %v3428
    %v3435 = vunpack.c.l.bf16 %v3429
    %v3436 = vunpack.c.h.bf16 %v3428
    %v3437 = vunpack.c.h.bf16 %v3429
    %v3438 = vunpack.c.l.bf16 %v3430
    %v3439 = vunpack.c.l.bf16 %v3431
    %v3440 = vunpack.c.h.bf16 %v3430
    %v3441 = vunpack.c.h.bf16 %v3431
    %v3442 = vunpack.c.l.bf16 %v3432
    %v3443 = vunpack.c.l.bf16 %v3433
    %v3444 = vsub.f32 %v3167, %v3434
    %v3445 = vsub.f32 %v3168, %v3435
    %v3446 = vsub.f32 %v3169, %v3436
    %v3447 = vsub.f32 %v3170, %v3437
    %v3448 = vsub.f32 %v3171, %v3438
    %v3449 = vsub.f32 %v3172, %v3439
    %v3450 = vsub.f32 %v3173, %v3440
    %v3451 = vsub.f32 %v3174, %v3441
    %v3452 = vsub.f32 %v3175, %v3442
    %v3453 = vsub.f32 %v3176, %v3443
    %v3454 = vpack.c.bf16 %v3446, %v3444
    %v3455 = vpack.c.bf16 %v3447, %v3445
    %v3456 = vpack.c.bf16 %v3450, %v3448
    %v3457 = vpack.c.bf16 %v3451, %v3449
    %v3458 = vpack.c.bf16 %v3452, %v3452
    %v3459 = vpack.c.bf16 %v3453, %v3453
    %v3461 = vsel %vm3213, %v3455, 0
    %v3464 = vsel %vm3213, %v3457, 0
    %v3467 = vsel %vm3213, %v3459, 0
    %v3470 = vsel %vm3223, %v433, 0
    %v3473 = vsel %vm3223, %v434, 0
    %3475 = vmatprep.subr.bf16.mxu0 %v428
    %3476 = vmatpush1.bf16.msra.mxu0 %v427
    %3477 = vmatprep.subr.bf16.mxu0 %v426
    %3478 = vmatpush1.bf16.msra.mxu0 %v425
    %3479 = vmatprep.subr.bf16.mxu0 %v424
    %3480 = vmatpush1.bf16.msra.mxu0 %v423
    %3481 = vmatprep.subr.bf16.mxu0 %v422
    %3482 = vmatpush1.bf16.msra.mxu0 %v421
    %3483 = vmatprep.subr.bf16.mxu0 %v420
    %3484 = vmatpush1.bf16.msra.mxu0 %v419
    %3485 = vmatprep.subr.bf16.mxu0 %v418
    %3486 = vmatpush1.bf16.msra.mxu0 %v417
    %3487 = vmatprep.subr.bf16.mxu0 %v416
    %3488 = vmatpush1.bf16.msra.mxu0 %v415
    %3489 = vmatprep.subr.bf16.mxu0 %v414
    %3490 = vmatpush1.bf16.msra.mxu0 %v413
    %3491 = vmatprep.subr.bf16.mxu0 0
    %3492 = vmatpush2.bf16.msra.mxu0 0
    %3493 = vmatprep.subr.bf16.mxu0 0
    %3494 = vmatpush2.bf16.msra.mxu0 0
    %3495 = vmatprep.subr.bf16.mxu0 0
    %3496 = vmatpush2.bf16.msra.mxu0 0
    %3497 = vmatprep.subr.bf16.mxu0 0
    %3498 = vmatpush2.bf16.msra.mxu0 0
    %3499 = vmatprep.subr.bf16.mxu0 0
    %3500 = vmatpush2.bf16.msra.mxu0 0
    %3501 = vmatprep.subr.bf16.mxu0 %v3473
    %3502 = vmatpush2.bf16.msra.mxu0 %v3470
    %3503 = vmatprep.subr.bf16.mxu0 %v432
    %3504 = vmatpush2.bf16.msra.mxu0 %v431
    %3505 = vmatprep.subr.bf16.mxu0 %v430
    %3506 = vmatpush2.bf16.msra.mxu0 %v429
    %3507 = vmatprep.mubr.bf16.mxu0 %v3461
    %3508 = vmatmul.mubr.bf16.gmra.mxu0 %v3454
    %v3509 = vpop.f32.mrf.mxu0
    %v3510 = vadd.f32 0.0, %v3509
    %v3511 = vpop.f32.mrf.mxu0
    %v3512 = vadd.f32 0.0, %v3511
    %v3513 = vpop.f32.mrf.mxu0
    %v3514 = vadd.f32 0.0, %v3513
    %v3515 = vpop.f32.mrf.mxu0
    %v3516 = vadd.f32 0.0, %v3515
    %3517 = vmatprep.mubr.bf16.mxu0 %v3464
    %3518 = vmatmul.mubr.bf16.gmra.mxu0 %v3456
    %v3519 = vpop.f32.mrf.mxu0
    %v3520 = vadd.f32 0.0, %v3519
    %v3521 = vpop.f32.mrf.mxu0
    %v3522 = vadd.f32 0.0, %v3521
    %v3523 = vpop.f32.mrf.mxu0
    %v3524 = vadd.f32 0.0, %v3523
    %v3525 = vpop.f32.mrf.mxu0
    %v3526 = vadd.f32 0.0, %v3525
    %3527 = vmatprep.mubr.bf16.mxu0 %v3467
    %3528 = vmatmul.mubr.bf16.gmra.mxu0 %v3458
    %v3529 = vpop.f32.mrf.mxu0
    %v3530 = vadd.f32 0.0, %v3529
    %v3531 = vpop.f32.mrf.mxu0
    %v3532 = vadd.f32 0.0, %v3531
    %v3533 = vpop.f32.mrf.mxu0
    %v3534 = vpop.f32.mrf.mxu0
    %3535 = vdwg.mxu0
    %v3537 = vsel %vm3213, %v3429, 0
    %v3540 = vsel %vm3213, %v3431, 0
    %v3543 = vsel %vm3213, %v3433, 0
    %v3546 = vsel %vm3223, %v539, 0
    %v3549 = vsel %vm3223, %v540, 0
    %3551 = vmatprep.subr.bf16.mxu0 %v534
    %3552 = vmatpush1.bf16.msra.mxu0 %v533
    %3553 = vmatprep.subr.bf16.mxu0 %v532
    %3554 = vmatpush1.bf16.msra.mxu0 %v531
    %3555 = vmatprep.subr.bf16.mxu0 %v530
    %3556 = vmatpush1.bf16.msra.mxu0 %v529
    %3557 = vmatprep.subr.bf16.mxu0 %v528
    %3558 = vmatpush1.bf16.msra.mxu0 %v527
    %3559 = vmatprep.subr.bf16.mxu0 %v526
    %3560 = vmatpush1.bf16.msra.mxu0 %v525
    %3561 = vmatprep.subr.bf16.mxu0 %v524
    %3562 = vmatpush1.bf16.msra.mxu0 %v523
    %3563 = vmatprep.subr.bf16.mxu0 %v522
    %3564 = vmatpush1.bf16.msra.mxu0 %v521
    %3565 = vmatprep.subr.bf16.mxu0 %v520
    %3566 = vmatpush1.bf16.msra.mxu0 %v519
    %3567 = vmatprep.subr.bf16.mxu0 0
    %3568 = vmatpush2.bf16.msra.mxu0 0
    %3569 = vmatprep.subr.bf16.mxu0 0
    %3570 = vmatpush2.bf16.msra.mxu0 0
    %3571 = vmatprep.subr.bf16.mxu0 0
    %3572 = vmatpush2.bf16.msra.mxu0 0
    %3573 = vmatprep.subr.bf16.mxu0 0
    %3574 = vmatpush2.bf16.msra.mxu0 0
    %3575 = vmatprep.subr.bf16.mxu0 0
    %3576 = vmatpush2.bf16.msra.mxu0 0
    %3577 = vmatprep.subr.bf16.mxu0 %v3549
    %3578 = vmatpush2.bf16.msra.mxu0 %v3546
    %3579 = vmatprep.subr.bf16.mxu0 %v538
    %3580 = vmatpush2.bf16.msra.mxu0 %v537
    %3581 = vmatprep.subr.bf16.mxu0 %v536
    %3582 = vmatpush2.bf16.msra.mxu0 %v535
    %3583 = vmatprep.mubr.bf16.mxu0 %v3537
    %3584 = vmatmul.mubr.bf16.gmra.mxu0 %v3428
    %v3585 = vpop.f32.mrf.mxu0
    %v3586 = vadd.f32 %v3510, %v3585
    %v3587 = vpop.f32.mrf.mxu0
    %v3588 = vadd.f32 %v3512, %v3587
    %v3589 = vpop.f32.mrf.mxu0
    %v3590 = vadd.f32 %v3514, %v3589
    %v3591 = vpop.f32.mrf.mxu0
    %v3592 = vadd.f32 %v3516, %v3591
    %3593 = vmatprep.mubr.bf16.mxu0 %v3540
    %3594 = vmatmul.mubr.bf16.gmra.mxu0 %v3430
    %v3595 = vpop.f32.mrf.mxu0
    %v3596 = vadd.f32 %v3520, %v3595
    %v3597 = vpop.f32.mrf.mxu0
    %v3598 = vadd.f32 %v3522, %v3597
    %v3599 = vpop.f32.mrf.mxu0
    %v3600 = vadd.f32 %v3524, %v3599
    %v3601 = vpop.f32.mrf.mxu0
    %v3602 = vadd.f32 %v3526, %v3601
    %3603 = vmatprep.mubr.bf16.mxu0 %v3543
    %3604 = vmatmul.mubr.bf16.gmra.mxu0 %v3432
    %v3605 = vpop.f32.mrf.mxu0
    %v3606 = vadd.f32 %v3530, %v3605
    %v3607 = vpop.f32.mrf.mxu0
    %v3608 = vadd.f32 %v3532, %v3607
    %v3609 = vpop.f32.mrf.mxu0
    %v3610 = vpop.f32.mrf.mxu0
    %3611 = vdwg.mxu0
    %3612 = vmatprep.subr.bf16.mxu0 %v428
    %3613 = vmatpush1.bf16.msra.mxu0 %v427
    %3614 = vmatprep.subr.bf16.mxu0 %v426
    %3615 = vmatpush1.bf16.msra.mxu0 %v425
    %3616 = vmatprep.subr.bf16.mxu0 %v424
    %3617 = vmatpush1.bf16.msra.mxu0 %v423
    %3618 = vmatprep.subr.bf16.mxu0 %v422
    %3619 = vmatpush1.bf16.msra.mxu0 %v421
    %3620 = vmatprep.subr.bf16.mxu0 %v420
    %3621 = vmatpush1.bf16.msra.mxu0 %v419
    %3622 = vmatprep.subr.bf16.mxu0 %v418
    %3623 = vmatpush1.bf16.msra.mxu0 %v417
    %3624 = vmatprep.subr.bf16.mxu0 %v416
    %3625 = vmatpush1.bf16.msra.mxu0 %v415
    %3626 = vmatprep.subr.bf16.mxu0 %v414
    %3627 = vmatpush1.bf16.msra.mxu0 %v413
    %3628 = vmatprep.subr.bf16.mxu0 0
    %3629 = vmatpush2.bf16.msra.mxu0 0
    %3630 = vmatprep.subr.bf16.mxu0 0
    %3631 = vmatpush2.bf16.msra.mxu0 0
    %3632 = vmatprep.subr.bf16.mxu0 0
    %3633 = vmatpush2.bf16.msra.mxu0 0
    %3634 = vmatprep.subr.bf16.mxu0 0
    %3635 = vmatpush2.bf16.msra.mxu0 0
    %3636 = vmatprep.subr.bf16.mxu0 0
    %3637 = vmatpush2.bf16.msra.mxu0 0
    %3638 = vmatprep.subr.bf16.mxu0 %v3473
    %3639 = vmatpush2.bf16.msra.mxu0 %v3470
    %3640 = vmatprep.subr.bf16.mxu0 %v432
    %3641 = vmatpush2.bf16.msra.mxu0 %v431
    %3642 = vmatprep.subr.bf16.mxu0 %v430
    %3643 = vmatpush2.bf16.msra.mxu0 %v429
    %3644 = vmatprep.mubr.bf16.mxu0 %v3537
    %3645 = vmatmul.mubr.bf16.gmra.mxu0 %v3428
    %v3646 = vpop.f32.mrf.mxu0
    %v3647 = vadd.f32 %v3586, %v3646
    %v3648 = vpop.f32.mrf.mxu0
    %v3649 = vadd.f32 %v3588, %v3648
    %v3650 = vpop.f32.mrf.mxu0
    %v3651 = vadd.f32 %v3590, %v3650
    %v3652 = vpop.f32.mrf.mxu0
    %v3653 = vadd.f32 %v3592, %v3652
    %3654 = vmatprep.mubr.bf16.mxu0 %v3540
    %3655 = vmatmul.mubr.bf16.gmra.mxu0 %v3430
    %v3656 = vpop.f32.mrf.mxu0
    %v3657 = vadd.f32 %v3596, %v3656
    %v3658 = vpop.f32.mrf.mxu0
    %v3659 = vadd.f32 %v3598, %v3658
    %v3660 = vpop.f32.mrf.mxu0
    %v3661 = vadd.f32 %v3600, %v3660
    %v3662 = vpop.f32.mrf.mxu0
    %v3663 = vadd.f32 %v3602, %v3662
    %3664 = vmatprep.mubr.bf16.mxu0 %v3543
    %3665 = vmatmul.mubr.bf16.gmra.mxu0 %v3432
    %v3666 = vpop.f32.mrf.mxu0
    %v3667 = vadd.f32 %v3606, %v3666
    %v3668 = vpop.f32.mrf.mxu0
    %v3669 = vadd.f32 %v3608, %v3668
    %v3670 = vpop.f32.mrf.mxu0
    %v3671 = vpop.f32.mrf.mxu0
    %3672 = vdwg.mxu0
    %v3673 = vadd.f32 %v3402, %v3647
    %v3674 = vadd.f32 %v3404, %v3649
    %v3675 = vadd.f32 %v3406, %v3651
    %v3676 = vadd.f32 %v3408, %v3653
    %v3677 = vadd.f32 %v3412, %v3657
    %v3678 = vadd.f32 %v3414, %v3659
    %v3679 = vadd.f32 %v3416, %v3661
    %v3680 = vadd.f32 %v3418, %v3663
    %v3681 = vadd.f32 %v3422, %v3667
    %v3682 = vadd.f32 %v3424, %v3669
    %v3683 = vpack.c.bf16 %v2369, %v2367
    %v3684 = vpack.c.bf16 %v2370, %v2368
    %v3685 = vpack.c.bf16 %v2373, %v2371
    %v3686 = vpack.c.bf16 %v2374, %v2372
    %v3687 = vpack.c.bf16 %v2375, %v2375
    %v3688 = vpack.c.bf16 %v2376, %v2376
    %v3689 = vunpack.c.l.bf16 %v3683
    %v3690 = vunpack.c.l.bf16 %v3684
    %v3691 = vunpack.c.h.bf16 %v3683
    %v3692 = vunpack.c.h.bf16 %v3684
    %v3693 = vunpack.c.l.bf16 %v3685
    %v3694 = vunpack.c.l.bf16 %v3686
    %v3695 = vunpack.c.h.bf16 %v3685
    %v3696 = vunpack.c.h.bf16 %v3686
    %v3697 = vunpack.c.l.bf16 %v3687
    %v3698 = vunpack.c.l.bf16 %v3688
    %v3699 = vsub.f32 %v2367, %v3689
    %v3700 = vsub.f32 %v2368, %v3690
    %v3701 = vsub.f32 %v2369, %v3691
    %v3702 = vsub.f32 %v2370, %v3692
    %v3703 = vsub.f32 %v2371, %v3693
    %v3704 = vsub.f32 %v2372, %v3694
    %v3705 = vsub.f32 %v2373, %v3695
    %v3706 = vsub.f32 %v2374, %v3696
    %v3707 = vsub.f32 %v2375, %v3697
    %v3708 = vsub.f32 %v2376, %v3698
    %v3709 = vpack.c.bf16 %v3701, %v3699
    %v3710 = vpack.c.bf16 %v3702, %v3700
    %v3711 = vpack.c.bf16 %v3705, %v3703
    %v3712 = vpack.c.bf16 %v3706, %v3704
    %v3713 = vpack.c.bf16 %v3707, %v3707
    %v3714 = vpack.c.bf16 %v3708, %v3708
    %v3716 = vsel %vm3213, %v3710, 0
    %v3719 = vsel %vm3213, %v3712, 0
    %v3722 = vsel %vm3213, %v3714, 0
    %v3725 = vsel %vm3223, %v604, 0
    %v3728 = vsel %vm3223, %v605, 0
    %3730 = vmatprep.subr.bf16.mxu0 %v599
    %3731 = vmatpush1.bf16.msra.mxu0 %v598
    %3732 = vmatprep.subr.bf16.mxu0 %v597
    %3733 = vmatpush1.bf16.msra.mxu0 %v596
    %3734 = vmatprep.subr.bf16.mxu0 %v595
    %3735 = vmatpush1.bf16.msra.mxu0 %v594
    %3736 = vmatprep.subr.bf16.mxu0 %v593
    %3737 = vmatpush1.bf16.msra.mxu0 %v592
    %3738 = vmatprep.subr.bf16.mxu0 %v591
    %3739 = vmatpush1.bf16.msra.mxu0 %v590
    %3740 = vmatprep.subr.bf16.mxu0 %v589
    %3741 = vmatpush1.bf16.msra.mxu0 %v588
    %3742 = vmatprep.subr.bf16.mxu0 %v587
    %3743 = vmatpush1.bf16.msra.mxu0 %v586
    %3744 = vmatprep.subr.bf16.mxu0 %v585
    %3745 = vmatpush1.bf16.msra.mxu0 %v584
    %3746 = vmatprep.subr.bf16.mxu0 0
    %3747 = vmatpush2.bf16.msra.mxu0 0
    %3748 = vmatprep.subr.bf16.mxu0 0
    %3749 = vmatpush2.bf16.msra.mxu0 0
    %3750 = vmatprep.subr.bf16.mxu0 0
    %3751 = vmatpush2.bf16.msra.mxu0 0
    %3752 = vmatprep.subr.bf16.mxu0 0
    %3753 = vmatpush2.bf16.msra.mxu0 0
    %3754 = vmatprep.subr.bf16.mxu0 0
    %3755 = vmatpush2.bf16.msra.mxu0 0
    %3756 = vmatprep.subr.bf16.mxu0 %v3728
    %3757 = vmatpush2.bf16.msra.mxu0 %v3725
    %3758 = vmatprep.subr.bf16.mxu0 %v603
    %3759 = vmatpush2.bf16.msra.mxu0 %v602
    %3760 = vmatprep.subr.bf16.mxu0 %v601
    %3761 = vmatpush2.bf16.msra.mxu0 %v600
    %3762 = vmatprep.mubr.bf16.mxu0 %v3716
    %3763 = vmatmul.mubr.bf16.gmra.mxu0 %v3709
    %v3764 = vpop.f32.mrf.mxu0
    %v3765 = vadd.f32 0.0, %v3764
    %v3766 = vpop.f32.mrf.mxu0
    %v3767 = vadd.f32 0.0, %v3766
    %v3768 = vpop.f32.mrf.mxu0
    %v3769 = vadd.f32 0.0, %v3768
    %v3770 = vpop.f32.mrf.mxu0
    %v3771 = vadd.f32 0.0, %v3770
    %3772 = vmatprep.mubr.bf16.mxu0 %v3719
    %3773 = vmatmul.mubr.bf16.gmra.mxu0 %v3711
    %v3774 = vpop.f32.mrf.mxu0
    %v3775 = vadd.f32 0.0, %v3774
    %v3776 = vpop.f32.mrf.mxu0
    %v3777 = vadd.f32 0.0, %v3776
    %v3778 = vpop.f32.mrf.mxu0
    %v3779 = vadd.f32 0.0, %v3778
    %v3780 = vpop.f32.mrf.mxu0
    %v3781 = vadd.f32 0.0, %v3780
    %3782 = vmatprep.mubr.bf16.mxu0 %v3722
    %3783 = vmatmul.mubr.bf16.gmra.mxu0 %v3713
    %v3784 = vpop.f32.mrf.mxu0
    %v3785 = vadd.f32 0.0, %v3784
    %v3786 = vpop.f32.mrf.mxu0
    %v3787 = vadd.f32 0.0, %v3786
    %v3788 = vpop.f32.mrf.mxu0
    %v3789 = vpop.f32.mrf.mxu0
    %3790 = vdwg.mxu0
    %v3792 = vsel %vm3213, %v3684, 0
    %v3795 = vsel %vm3213, %v3686, 0
    %v3798 = vsel %vm3213, %v3688, 0
    %v3801 = vsel %vm3223, %v710, 0
    %v3804 = vsel %vm3223, %v711, 0
    %3806 = vmatprep.subr.bf16.mxu0 %v705
    %3807 = vmatpush1.bf16.msra.mxu0 %v704
    %3808 = vmatprep.subr.bf16.mxu0 %v703
    %3809 = vmatpush1.bf16.msra.mxu0 %v702
    %3810 = vmatprep.subr.bf16.mxu0 %v701
    %3811 = vmatpush1.bf16.msra.mxu0 %v700
    %3812 = vmatprep.subr.bf16.mxu0 %v699
    %3813 = vmatpush1.bf16.msra.mxu0 %v698
    %3814 = vmatprep.subr.bf16.mxu0 %v697
    %3815 = vmatpush1.bf16.msra.mxu0 %v696
    %3816 = vmatprep.subr.bf16.mxu0 %v695
    %3817 = vmatpush1.bf16.msra.mxu0 %v694
    %3818 = vmatprep.subr.bf16.mxu0 %v693
    %3819 = vmatpush1.bf16.msra.mxu0 %v692
    %3820 = vmatprep.subr.bf16.mxu0 %v691
    %3821 = vmatpush1.bf16.msra.mxu0 %v690
    %3822 = vmatprep.subr.bf16.mxu0 0
    %3823 = vmatpush2.bf16.msra.mxu0 0
    %3824 = vmatprep.subr.bf16.mxu0 0
    %3825 = vmatpush2.bf16.msra.mxu0 0
    %3826 = vmatprep.subr.bf16.mxu0 0
    %3827 = vmatpush2.bf16.msra.mxu0 0
    %3828 = vmatprep.subr.bf16.mxu0 0
    %3829 = vmatpush2.bf16.msra.mxu0 0
    %3830 = vmatprep.subr.bf16.mxu0 0
    %3831 = vmatpush2.bf16.msra.mxu0 0
    %3832 = vmatprep.subr.bf16.mxu0 %v3804
    %3833 = vmatpush2.bf16.msra.mxu0 %v3801
    %3834 = vmatprep.subr.bf16.mxu0 %v709
    %3835 = vmatpush2.bf16.msra.mxu0 %v708
    %3836 = vmatprep.subr.bf16.mxu0 %v707
    %3837 = vmatpush2.bf16.msra.mxu0 %v706
    %3838 = vmatprep.mubr.bf16.mxu0 %v3792
    %3839 = vmatmul.mubr.bf16.gmra.mxu0 %v3683
    %v3840 = vpop.f32.mrf.mxu0
    %v3841 = vadd.f32 %v3765, %v3840
    %v3842 = vpop.f32.mrf.mxu0
    %v3843 = vadd.f32 %v3767, %v3842
    %v3844 = vpop.f32.mrf.mxu0
    %v3845 = vadd.f32 %v3769, %v3844
    %v3846 = vpop.f32.mrf.mxu0
    %v3847 = vadd.f32 %v3771, %v3846
    %3848 = vmatprep.mubr.bf16.mxu0 %v3795
    %3849 = vmatmul.mubr.bf16.gmra.mxu0 %v3685
    %v3850 = vpop.f32.mrf.mxu0
    %v3851 = vadd.f32 %v3775, %v3850
    %v3852 = vpop.f32.mrf.mxu0
    %v3853 = vadd.f32 %v3777, %v3852
    %v3854 = vpop.f32.mrf.mxu0
    %v3855 = vadd.f32 %v3779, %v3854
    %v3856 = vpop.f32.mrf.mxu0
    %v3857 = vadd.f32 %v3781, %v3856
    %3858 = vmatprep.mubr.bf16.mxu0 %v3798
    %3859 = vmatmul.mubr.bf16.gmra.mxu0 %v3687
    %v3860 = vpop.f32.mrf.mxu0
    %v3861 = vadd.f32 %v3785, %v3860
    %v3862 = vpop.f32.mrf.mxu0
    %v3863 = vadd.f32 %v3787, %v3862
    %v3864 = vpop.f32.mrf.mxu0
    %v3865 = vpop.f32.mrf.mxu0
    %3866 = vdwg.mxu0
    %3867 = vmatprep.subr.bf16.mxu0 %v599
    %3868 = vmatpush1.bf16.msra.mxu0 %v598
    %3869 = vmatprep.subr.bf16.mxu0 %v597
    %3870 = vmatpush1.bf16.msra.mxu0 %v596
    %3871 = vmatprep.subr.bf16.mxu0 %v595
    %3872 = vmatpush1.bf16.msra.mxu0 %v594
    %3873 = vmatprep.subr.bf16.mxu0 %v593
    %3874 = vmatpush1.bf16.msra.mxu0 %v592
    %3875 = vmatprep.subr.bf16.mxu0 %v591
    %3876 = vmatpush1.bf16.msra.mxu0 %v590
    %3877 = vmatprep.subr.bf16.mxu0 %v589
    %3878 = vmatpush1.bf16.msra.mxu0 %v588
    %3879 = vmatprep.subr.bf16.mxu0 %v587
    %3880 = vmatpush1.bf16.msra.mxu0 %v586
    %3881 = vmatprep.subr.bf16.mxu0 %v585
    %3882 = vmatpush1.bf16.msra.mxu0 %v584
    %3883 = vmatprep.subr.bf16.mxu0 0
    %3884 = vmatpush2.bf16.msra.mxu0 0
    %3885 = vmatprep.subr.bf16.mxu0 0
    %3886 = vmatpush2.bf16.msra.mxu0 0
    %3887 = vmatprep.subr.bf16.mxu0 0
    %3888 = vmatpush2.bf16.msra.mxu0 0
    %3889 = vmatprep.subr.bf16.mxu0 0
    %3890 = vmatpush2.bf16.msra.mxu0 0
    %3891 = vmatprep.subr.bf16.mxu0 0
    %3892 = vmatpush2.bf16.msra.mxu0 0
    %3893 = vmatprep.subr.bf16.mxu0 %v3728
    %3894 = vmatpush2.bf16.msra.mxu0 %v3725
    %3895 = vmatprep.subr.bf16.mxu0 %v603
    %3896 = vmatpush2.bf16.msra.mxu0 %v602
    %3897 = vmatprep.subr.bf16.mxu0 %v601
    %3898 = vmatpush2.bf16.msra.mxu0 %v600
    %3899 = vmatprep.mubr.bf16.mxu0 %v3792
    %3900 = vmatmul.mubr.bf16.gmra.mxu0 %v3683
    %v3901 = vpop.f32.mrf.mxu0
    %v3902 = vadd.f32 %v3841, %v3901
    %v3903 = vpop.f32.mrf.mxu0
    %v3904 = vadd.f32 %v3843, %v3903
    %v3905 = vpop.f32.mrf.mxu0
    %v3906 = vadd.f32 %v3845, %v3905
    %v3907 = vpop.f32.mrf.mxu0
    %v3908 = vadd.f32 %v3847, %v3907
    %3909 = vmatprep.mubr.bf16.mxu0 %v3795
    %3910 = vmatmul.mubr.bf16.gmra.mxu0 %v3685
    %v3911 = vpop.f32.mrf.mxu0
    %v3912 = vadd.f32 %v3851, %v3911
    %v3913 = vpop.f32.mrf.mxu0
    %v3914 = vadd.f32 %v3853, %v3913
    %v3915 = vpop.f32.mrf.mxu0
    %v3916 = vadd.f32 %v3855, %v3915
    %v3917 = vpop.f32.mrf.mxu0
    %v3918 = vadd.f32 %v3857, %v3917
    %3919 = vmatprep.mubr.bf16.mxu0 %v3798
    %3920 = vmatmul.mubr.bf16.gmra.mxu0 %v3687
    %v3921 = vpop.f32.mrf.mxu0
    %v3922 = vadd.f32 %v3861, %v3921
    %v3923 = vpop.f32.mrf.mxu0
    %v3924 = vadd.f32 %v3863, %v3923
    %v3925 = vpop.f32.mrf.mxu0
    %v3926 = vpop.f32.mrf.mxu0
    %3927 = vdwg.mxu0
    %v3928 = vadd.f32 %v3673, %v3902
    %v3929 = vadd.f32 %v3674, %v3904
    %v3930 = vadd.f32 %v3675, %v3906
    %v3931 = vadd.f32 %v3676, %v3908
    %v3932 = vadd.f32 %v3677, %v3912
    %v3933 = vadd.f32 %v3678, %v3914
    %v3934 = vadd.f32 %v3679, %v3916
    %v3935 = vadd.f32 %v3680, %v3918
    %v3936 = vadd.f32 %v3681, %v3922
    %v3937 = vadd.f32 %v3682, %v3924
    %v3938 = vpack.c.bf16 %v3171, %v3169
    %v3939 = vpack.c.bf16 %v3172, %v3170
    %v3940 = vpack.c.bf16 %v3175, %v3173
    %v3941 = vpack.c.bf16 %v3176, %v3174
    %v3942 = vpack.c.bf16 %v3177, %v3177
    %v3943 = vpack.c.bf16 %v3178, %v3178
    %v3944 = vunpack.c.l.bf16 %v3938
    %v3945 = vunpack.c.l.bf16 %v3939
    %v3946 = vunpack.c.h.bf16 %v3938
    %v3947 = vunpack.c.h.bf16 %v3939
    %v3948 = vunpack.c.l.bf16 %v3940
    %v3949 = vunpack.c.l.bf16 %v3941
    %v3950 = vunpack.c.h.bf16 %v3940
    %v3951 = vunpack.c.h.bf16 %v3941
    %v3952 = vunpack.c.l.bf16 %v3942
    %v3953 = vunpack.c.l.bf16 %v3943
    %v3954 = vsub.f32 %v3169, %v3944
    %v3955 = vsub.f32 %v3170, %v3945
    %v3956 = vsub.f32 %v3171, %v3946
    %v3957 = vsub.f32 %v3172, %v3947
    %v3958 = vsub.f32 %v3173, %v3948
    %v3959 = vsub.f32 %v3174, %v3949
    %v3960 = vsub.f32 %v3175, %v3950
    %v3961 = vsub.f32 %v3176, %v3951
    %v3962 = vsub.f32 %v3177, %v3952
    %v3963 = vsub.f32 %v3178, %v3953
    %v3964 = vpack.c.bf16 %v3956, %v3954
    %v3965 = vpack.c.bf16 %v3957, %v3955
    %v3966 = vpack.c.bf16 %v3960, %v3958
    %v3967 = vpack.c.bf16 %v3961, %v3959
    %v3968 = vpack.c.bf16 %v3962, %v3962
    %v3969 = vpack.c.bf16 %v3963, %v3963
    %v3971 = vsel %vm3213, %v3965, 0
    %v3974 = vsel %vm3213, %v3967, 0
    %v3977 = vsel %vm3213, %v3969, 0
    %v3980 = vsel %vm3223, %v775, 0
    %v3983 = vsel %vm3223, %v776, 0
    %3985 = vmatprep.subr.bf16.mxu0 %v770
    %3986 = vmatpush1.bf16.msra.mxu0 %v769
    %3987 = vmatprep.subr.bf16.mxu0 %v768
    %3988 = vmatpush1.bf16.msra.mxu0 %v767
    %3989 = vmatprep.subr.bf16.mxu0 %v766
    %3990 = vmatpush1.bf16.msra.mxu0 %v765
    %3991 = vmatprep.subr.bf16.mxu0 %v764
    %3992 = vmatpush1.bf16.msra.mxu0 %v763
    %3993 = vmatprep.subr.bf16.mxu0 %v762
    %3994 = vmatpush1.bf16.msra.mxu0 %v761
    %3995 = vmatprep.subr.bf16.mxu0 %v760
    %3996 = vmatpush1.bf16.msra.mxu0 %v759
    %3997 = vmatprep.subr.bf16.mxu0 %v758
    %3998 = vmatpush1.bf16.msra.mxu0 %v757
    %3999 = vmatprep.subr.bf16.mxu0 %v756
    %4000 = vmatpush1.bf16.msra.mxu0 %v755
    %4001 = vmatprep.subr.bf16.mxu0 0
    %4002 = vmatpush2.bf16.msra.mxu0 0
    %4003 = vmatprep.subr.bf16.mxu0 0
    %4004 = vmatpush2.bf16.msra.mxu0 0
    %4005 = vmatprep.subr.bf16.mxu0 0
    %4006 = vmatpush2.bf16.msra.mxu0 0
    %4007 = vmatprep.subr.bf16.mxu0 0
    %4008 = vmatpush2.bf16.msra.mxu0 0
    %4009 = vmatprep.subr.bf16.mxu0 0
    %4010 = vmatpush2.bf16.msra.mxu0 0
    %4011 = vmatprep.subr.bf16.mxu0 %v3983
    %4012 = vmatpush2.bf16.msra.mxu0 %v3980
    %4013 = vmatprep.subr.bf16.mxu0 %v774
    %4014 = vmatpush2.bf16.msra.mxu0 %v773
    %4015 = vmatprep.subr.bf16.mxu0 %v772
    %4016 = vmatpush2.bf16.msra.mxu0 %v771
    %4017 = vmatprep.mubr.bf16.mxu0 %v3971
    %4018 = vmatmul.mubr.bf16.gmra.mxu0 %v3964
    %v4019 = vpop.f32.mrf.mxu0
    %v4020 = vadd.f32 0.0, %v4019
    %v4021 = vpop.f32.mrf.mxu0
    %v4022 = vadd.f32 0.0, %v4021
    %v4023 = vpop.f32.mrf.mxu0
    %v4024 = vadd.f32 0.0, %v4023
    %v4025 = vpop.f32.mrf.mxu0
    %v4026 = vadd.f32 0.0, %v4025
    %4027 = vmatprep.mubr.bf16.mxu0 %v3974
    %4028 = vmatmul.mubr.bf16.gmra.mxu0 %v3966
    %v4029 = vpop.f32.mrf.mxu0
    %v4030 = vadd.f32 0.0, %v4029
    %v4031 = vpop.f32.mrf.mxu0
    %v4032 = vadd.f32 0.0, %v4031
    %v4033 = vpop.f32.mrf.mxu0
    %v4034 = vadd.f32 0.0, %v4033
    %v4035 = vpop.f32.mrf.mxu0
    %v4036 = vadd.f32 0.0, %v4035
    %4037 = vmatprep.mubr.bf16.mxu0 %v3977
    %4038 = vmatmul.mubr.bf16.gmra.mxu0 %v3968
    %v4039 = vpop.f32.mrf.mxu0
    %v4040 = vadd.f32 0.0, %v4039
    %v4041 = vpop.f32.mrf.mxu0
    %v4042 = vadd.f32 0.0, %v4041
    %v4043 = vpop.f32.mrf.mxu0
    %v4044 = vpop.f32.mrf.mxu0
    %4045 = vdwg.mxu0
    %v4047 = vsel %vm3213, %v3939, 0
    %v4050 = vsel %vm3213, %v3941, 0
    %v4053 = vsel %vm3213, %v3943, 0
    %v4056 = vsel %vm3223, %v881, 0
    %v4059 = vsel %vm3223, %v882, 0
    %4061 = vmatprep.subr.bf16.mxu0 %v876
    %4062 = vmatpush1.bf16.msra.mxu0 %v875
    %4063 = vmatprep.subr.bf16.mxu0 %v874
    %4064 = vmatpush1.bf16.msra.mxu0 %v873
    %4065 = vmatprep.subr.bf16.mxu0 %v872
    %4066 = vmatpush1.bf16.msra.mxu0 %v871
    %4067 = vmatprep.subr.bf16.mxu0 %v870
    %4068 = vmatpush1.bf16.msra.mxu0 %v869
    %4069 = vmatprep.subr.bf16.mxu0 %v868
    %4070 = vmatpush1.bf16.msra.mxu0 %v867
    %4071 = vmatprep.subr.bf16.mxu0 %v866
    %4072 = vmatpush1.bf16.msra.mxu0 %v865
    %4073 = vmatprep.subr.bf16.mxu0 %v864
    %4074 = vmatpush1.bf16.msra.mxu0 %v863
    %4075 = vmatprep.subr.bf16.mxu0 %v862
    %4076 = vmatpush1.bf16.msra.mxu0 %v861
    %4077 = vmatprep.subr.bf16.mxu0 0
    %4078 = vmatpush2.bf16.msra.mxu0 0
    %4079 = vmatprep.subr.bf16.mxu0 0
    %4080 = vmatpush2.bf16.msra.mxu0 0
    %4081 = vmatprep.subr.bf16.mxu0 0
    %4082 = vmatpush2.bf16.msra.mxu0 0
    %4083 = vmatprep.subr.bf16.mxu0 0
    %4084 = vmatpush2.bf16.msra.mxu0 0
    %4085 = vmatprep.subr.bf16.mxu0 0
    %4086 = vmatpush2.bf16.msra.mxu0 0
    %4087 = vmatprep.subr.bf16.mxu0 %v4059
    %4088 = vmatpush2.bf16.msra.mxu0 %v4056
    %4089 = vmatprep.subr.bf16.mxu0 %v880
    %4090 = vmatpush2.bf16.msra.mxu0 %v879
    %4091 = vmatprep.subr.bf16.mxu0 %v878
    %4092 = vmatpush2.bf16.msra.mxu0 %v877
    %4093 = vmatprep.mubr.bf16.mxu0 %v4047
    %4094 = vmatmul.mubr.bf16.gmra.mxu0 %v3938
    %v4095 = vpop.f32.mrf.mxu0
    %v4096 = vadd.f32 %v4020, %v4095
    %v4097 = vpop.f32.mrf.mxu0
    %v4098 = vadd.f32 %v4022, %v4097
    %v4099 = vpop.f32.mrf.mxu0
    %v4100 = vadd.f32 %v4024, %v4099
    %v4101 = vpop.f32.mrf.mxu0
    %v4102 = vadd.f32 %v4026, %v4101
    %4103 = vmatprep.mubr.bf16.mxu0 %v4050
    %4104 = vmatmul.mubr.bf16.gmra.mxu0 %v3940
    %v4105 = vpop.f32.mrf.mxu0
    %v4106 = vadd.f32 %v4030, %v4105
    %v4107 = vpop.f32.mrf.mxu0
    %v4108 = vadd.f32 %v4032, %v4107
    %v4109 = vpop.f32.mrf.mxu0
    %v4110 = vadd.f32 %v4034, %v4109
    %v4111 = vpop.f32.mrf.mxu0
    %v4112 = vadd.f32 %v4036, %v4111
    %4113 = vmatprep.mubr.bf16.mxu0 %v4053
    %4114 = vmatmul.mubr.bf16.gmra.mxu0 %v3942
    %v4115 = vpop.f32.mrf.mxu0
    %v4116 = vadd.f32 %v4040, %v4115
    %v4117 = vpop.f32.mrf.mxu0
    %v4118 = vadd.f32 %v4042, %v4117
    %v4119 = vpop.f32.mrf.mxu0
    %v4120 = vpop.f32.mrf.mxu0
    %4121 = vdwg.mxu0
    %4122 = vmatprep.subr.bf16.mxu0 %v770
    %4123 = vmatpush1.bf16.msra.mxu0 %v769
    %4124 = vmatprep.subr.bf16.mxu0 %v768
    %4125 = vmatpush1.bf16.msra.mxu0 %v767
    %4126 = vmatprep.subr.bf16.mxu0 %v766
    %4127 = vmatpush1.bf16.msra.mxu0 %v765
    %4128 = vmatprep.subr.bf16.mxu0 %v764
    %4129 = vmatpush1.bf16.msra.mxu0 %v763
    %4130 = vmatprep.subr.bf16.mxu0 %v762
    %4131 = vmatpush1.bf16.msra.mxu0 %v761
    %4132 = vmatprep.subr.bf16.mxu0 %v760
    %4133 = vmatpush1.bf16.msra.mxu0 %v759
    %4134 = vmatprep.subr.bf16.mxu0 %v758
    %4135 = vmatpush1.bf16.msra.mxu0 %v757
    %4136 = vmatprep.subr.bf16.mxu0 %v756
    %4137 = vmatpush1.bf16.msra.mxu0 %v755
    %4138 = vmatprep.subr.bf16.mxu0 0
    %4139 = vmatpush2.bf16.msra.mxu0 0
    %4140 = vmatprep.subr.bf16.mxu0 0
    %4141 = vmatpush2.bf16.msra.mxu0 0
    %4142 = vmatprep.subr.bf16.mxu0 0
    %4143 = vmatpush2.bf16.msra.mxu0 0
    %4144 = vmatprep.subr.bf16.mxu0 0
    %4145 = vmatpush2.bf16.msra.mxu0 0
    %4146 = vmatprep.subr.bf16.mxu0 0
    %4147 = vmatpush2.bf16.msra.mxu0 0
    %4148 = vmatprep.subr.bf16.mxu0 %v3983
    %4149 = vmatpush2.bf16.msra.mxu0 %v3980
    %4150 = vmatprep.subr.bf16.mxu0 %v774
    %4151 = vmatpush2.bf16.msra.mxu0 %v773
    %4152 = vmatprep.subr.bf16.mxu0 %v772
    %4153 = vmatpush2.bf16.msra.mxu0 %v771
    %4154 = vmatprep.mubr.bf16.mxu0 %v4047
    %4155 = vmatmul.mubr.bf16.gmra.mxu0 %v3938
    %v4156 = vpop.f32.mrf.mxu0
    %v4157 = vadd.f32 %v4096, %v4156
    %v4158 = vpop.f32.mrf.mxu0
    %v4159 = vadd.f32 %v4098, %v4158
    %v4160 = vpop.f32.mrf.mxu0
    %v4161 = vadd.f32 %v4100, %v4160
    %v4162 = vpop.f32.mrf.mxu0
    %v4163 = vadd.f32 %v4102, %v4162
    %4164 = vmatprep.mubr.bf16.mxu0 %v4050
    %4165 = vmatmul.mubr.bf16.gmra.mxu0 %v3940
    %v4166 = vpop.f32.mrf.mxu0
    %v4167 = vadd.f32 %v4106, %v4166
    %v4168 = vpop.f32.mrf.mxu0
    %v4169 = vadd.f32 %v4108, %v4168
    %v4170 = vpop.f32.mrf.mxu0
    %v4171 = vadd.f32 %v4110, %v4170
    %v4172 = vpop.f32.mrf.mxu0
    %v4173 = vadd.f32 %v4112, %v4172
    %4174 = vmatprep.mubr.bf16.mxu0 %v4053
    %4175 = vmatmul.mubr.bf16.gmra.mxu0 %v3942
    %v4176 = vpop.f32.mrf.mxu0
    %v4177 = vadd.f32 %v4116, %v4176
    %v4178 = vpop.f32.mrf.mxu0
    %v4179 = vadd.f32 %v4118, %v4178
    %v4180 = vpop.f32.mrf.mxu0
    %v4181 = vpop.f32.mrf.mxu0
    %4182 = vdwg.mxu0
    %v4183 = vadd.f32 %v3928, %v4157
    %v4184 = vadd.f32 %v3929, %v4159
    %v4185 = vadd.f32 %v3930, %v4161
    %v4186 = vadd.f32 %v3931, %v4163
    %v4187 = vadd.f32 %v3932, %v4167
    %v4188 = vadd.f32 %v3933, %v4169
    %v4189 = vadd.f32 %v3934, %v4171
    %v4190 = vadd.f32 %v3935, %v4173
    %v4191 = vadd.f32 %v3936, %v4177
    %v4192 = vadd.f32 %v3937, %v4179
    %v4193 = vpack.c.bf16 %v2375, %v2373
    %v4194 = vpack.c.bf16 %v2376, %v2374
    %v4195 = vpack.c.bf16 %v2377, %v2377
    %v4196 = vpack.c.bf16 %v2378, %v2378
    %v4197 = vunpack.c.l.bf16 %v4193
    %v4198 = vunpack.c.l.bf16 %v4194
    %v4199 = vunpack.c.h.bf16 %v4193
    %v4200 = vunpack.c.h.bf16 %v4194
    %v4201 = vunpack.c.l.bf16 %v4195
    %v4202 = vunpack.c.l.bf16 %v4196
    %v4203 = vsub.f32 %v2373, %v4197
    %v4204 = vsub.f32 %v2374, %v4198
    %v4205 = vsub.f32 %v2375, %v4199
    %v4206 = vsub.f32 %v2376, %v4200
    %v4207 = vsub.f32 %v2377, %v4201
    %v4208 = vsub.f32 %v2378, %v4202
    %v4209 = vpack.c.bf16 %v4205, %v4203
    %v4210 = vpack.c.bf16 %v4206, %v4204
    %v4211 = vpack.c.bf16 %v4207, %v4207
    %v4212 = vpack.c.bf16 %v4208, %v4208
    %v4214 = vsel %vm3213, %v4210, 0
    %v4217 = vsel %vm3213, %v4212, 0
    %v4220 = vsel %vm3223, %v946, 0
    %v4223 = vsel %vm3223, %v947, 0
    %4225 = vmatprep.subr.bf16.mxu0 %v941
    %4226 = vmatpush1.bf16.msra.mxu0 %v940
    %4227 = vmatprep.subr.bf16.mxu0 %v939
    %4228 = vmatpush1.bf16.msra.mxu0 %v938
    %4229 = vmatprep.subr.bf16.mxu0 %v937
    %4230 = vmatpush1.bf16.msra.mxu0 %v936
    %4231 = vmatprep.subr.bf16.mxu0 %v935
    %4232 = vmatpush1.bf16.msra.mxu0 %v934
    %4233 = vmatprep.subr.bf16.mxu0 %v933
    %4234 = vmatpush1.bf16.msra.mxu0 %v932
    %4235 = vmatprep.subr.bf16.mxu0 %v931
    %4236 = vmatpush1.bf16.msra.mxu0 %v930
    %4237 = vmatprep.subr.bf16.mxu0 %v929
    %4238 = vmatpush1.bf16.msra.mxu0 %v928
    %4239 = vmatprep.subr.bf16.mxu0 %v927
    %4240 = vmatpush1.bf16.msra.mxu0 %v926
    %4241 = vmatprep.subr.bf16.mxu0 0
    %4242 = vmatpush2.bf16.msra.mxu0 0
    %4243 = vmatprep.subr.bf16.mxu0 0
    %4244 = vmatpush2.bf16.msra.mxu0 0
    %4245 = vmatprep.subr.bf16.mxu0 0
    %4246 = vmatpush2.bf16.msra.mxu0 0
    %4247 = vmatprep.subr.bf16.mxu0 0
    %4248 = vmatpush2.bf16.msra.mxu0 0
    %4249 = vmatprep.subr.bf16.mxu0 0
    %4250 = vmatpush2.bf16.msra.mxu0 0
    %4251 = vmatprep.subr.bf16.mxu0 %v4223
    %4252 = vmatpush2.bf16.msra.mxu0 %v4220
    %4253 = vmatprep.subr.bf16.mxu0 %v945
    %4254 = vmatpush2.bf16.msra.mxu0 %v944
    %4255 = vmatprep.subr.bf16.mxu0 %v943
    %4256 = vmatpush2.bf16.msra.mxu0 %v942
    %4257 = vmatprep.mubr.bf16.mxu0 %v3218
    %4258 = vmatmul.mubr.bf16.gmra.mxu0 %v3209
    %v4259 = vpop.f32.mrf.mxu0
    %v4260 = vadd.f32 0.0, %v4259
    %v4261 = vpop.f32.mrf.mxu0
    %v4262 = vadd.f32 0.0, %v4261
    %v4263 = vpop.f32.mrf.mxu0
    %v4264 = vadd.f32 0.0, %v4263
    %v4265 = vpop.f32.mrf.mxu0
    %v4266 = vadd.f32 0.0, %v4265
    %4267 = vmatprep.mubr.bf16.mxu0 %v4214
    %4268 = vmatmul.mubr.bf16.gmra.mxu0 %v4209
    %v4269 = vpop.f32.mrf.mxu0
    %v4270 = vadd.f32 0.0, %v4269
    %v4271 = vpop.f32.mrf.mxu0
    %v4272 = vadd.f32 0.0, %v4271
    %v4273 = vpop.f32.mrf.mxu0
    %v4274 = vadd.f32 0.0, %v4273
    %v4275 = vpop.f32.mrf.mxu0
    %v4276 = vadd.f32 0.0, %v4275
    %4277 = vmatprep.mubr.bf16.mxu0 %v4217
    %4278 = vmatmul.mubr.bf16.gmra.mxu0 %v4211
    %v4279 = vpop.f32.mrf.mxu0
    %v4280 = vadd.f32 0.0, %v4279
    %v4281 = vpop.f32.mrf.mxu0
    %v4282 = vadd.f32 0.0, %v4281
    %v4283 = vpop.f32.mrf.mxu0
    %v4284 = vpop.f32.mrf.mxu0
    %4285 = vdwg.mxu0
    %v4287 = vsel %vm3213, %v4194, 0
    %v4290 = vsel %vm3213, %v4196, 0
    %v4293 = vsel %vm3223, %v1052, 0
    %v4296 = vsel %vm3223, %v1053, 0
    %4298 = vmatprep.subr.bf16.mxu0 %v1047
    %4299 = vmatpush1.bf16.msra.mxu0 %v1046
    %4300 = vmatprep.subr.bf16.mxu0 %v1045
    %4301 = vmatpush1.bf16.msra.mxu0 %v1044
    %4302 = vmatprep.subr.bf16.mxu0 %v1043
    %4303 = vmatpush1.bf16.msra.mxu0 %v1042
    %4304 = vmatprep.subr.bf16.mxu0 %v1041
    %4305 = vmatpush1.bf16.msra.mxu0 %v1040
    %4306 = vmatprep.subr.bf16.mxu0 %v1039
    %4307 = vmatpush1.bf16.msra.mxu0 %v1038
    %4308 = vmatprep.subr.bf16.mxu0 %v1037
    %4309 = vmatpush1.bf16.msra.mxu0 %v1036
    %4310 = vmatprep.subr.bf16.mxu0 %v1035
    %4311 = vmatpush1.bf16.msra.mxu0 %v1034
    %4312 = vmatprep.subr.bf16.mxu0 %v1033
    %4313 = vmatpush1.bf16.msra.mxu0 %v1032
    %4314 = vmatprep.subr.bf16.mxu0 0
    %4315 = vmatpush2.bf16.msra.mxu0 0
    %4316 = vmatprep.subr.bf16.mxu0 0
    %4317 = vmatpush2.bf16.msra.mxu0 0
    %4318 = vmatprep.subr.bf16.mxu0 0
    %4319 = vmatpush2.bf16.msra.mxu0 0
    %4320 = vmatprep.subr.bf16.mxu0 0
    %4321 = vmatpush2.bf16.msra.mxu0 0
    %4322 = vmatprep.subr.bf16.mxu0 0
    %4323 = vmatpush2.bf16.msra.mxu0 0
    %4324 = vmatprep.subr.bf16.mxu0 %v4296
    %4325 = vmatpush2.bf16.msra.mxu0 %v4293
    %4326 = vmatprep.subr.bf16.mxu0 %v1051
    %4327 = vmatpush2.bf16.msra.mxu0 %v1050
    %4328 = vmatprep.subr.bf16.mxu0 %v1049
    %4329 = vmatpush2.bf16.msra.mxu0 %v1048
    %4330 = vmatprep.mubr.bf16.mxu0 %v3295
    %4331 = vmatmul.mubr.bf16.gmra.mxu0 %v3183
    %v4332 = vpop.f32.mrf.mxu0
    %v4333 = vadd.f32 %v4260, %v4332
    %v4334 = vpop.f32.mrf.mxu0
    %v4335 = vadd.f32 %v4262, %v4334
    %v4336 = vpop.f32.mrf.mxu0
    %v4337 = vadd.f32 %v4264, %v4336
    %v4338 = vpop.f32.mrf.mxu0
    %v4339 = vadd.f32 %v4266, %v4338
    %4340 = vmatprep.mubr.bf16.mxu0 %v4287
    %4341 = vmatmul.mubr.bf16.gmra.mxu0 %v4193
    %v4342 = vpop.f32.mrf.mxu0
    %v4343 = vadd.f32 %v4270, %v4342
    %v4344 = vpop.f32.mrf.mxu0
    %v4345 = vadd.f32 %v4272, %v4344
    %v4346 = vpop.f32.mrf.mxu0
    %v4347 = vadd.f32 %v4274, %v4346
    %v4348 = vpop.f32.mrf.mxu0
    %v4349 = vadd.f32 %v4276, %v4348
    %4350 = vmatprep.mubr.bf16.mxu0 %v4290
    %4351 = vmatmul.mubr.bf16.gmra.mxu0 %v4195
    %v4352 = vpop.f32.mrf.mxu0
    %v4353 = vadd.f32 %v4280, %v4352
    %v4354 = vpop.f32.mrf.mxu0
    %v4355 = vadd.f32 %v4282, %v4354
    %v4356 = vpop.f32.mrf.mxu0
    %v4357 = vpop.f32.mrf.mxu0
    %4358 = vdwg.mxu0
    %4359 = vmatprep.subr.bf16.mxu0 %v941
    %4360 = vmatpush1.bf16.msra.mxu0 %v940
    %4361 = vmatprep.subr.bf16.mxu0 %v939
    %4362 = vmatpush1.bf16.msra.mxu0 %v938
    %4363 = vmatprep.subr.bf16.mxu0 %v937
    %4364 = vmatpush1.bf16.msra.mxu0 %v936
    %4365 = vmatprep.subr.bf16.mxu0 %v935
    %4366 = vmatpush1.bf16.msra.mxu0 %v934
    %4367 = vmatprep.subr.bf16.mxu0 %v933
    %4368 = vmatpush1.bf16.msra.mxu0 %v932
    %4369 = vmatprep.subr.bf16.mxu0 %v931
    %4370 = vmatpush1.bf16.msra.mxu0 %v930
    %4371 = vmatprep.subr.bf16.mxu0 %v929
    %4372 = vmatpush1.bf16.msra.mxu0 %v928
    %4373 = vmatprep.subr.bf16.mxu0 %v927
    %4374 = vmatpush1.bf16.msra.mxu0 %v926
    %4375 = vmatprep.subr.bf16.mxu0 0
    %4376 = vmatpush2.bf16.msra.mxu0 0
    %4377 = vmatprep.subr.bf16.mxu0 0
    %4378 = vmatpush2.bf16.msra.mxu0 0
    %4379 = vmatprep.subr.bf16.mxu0 0
    %4380 = vmatpush2.bf16.msra.mxu0 0
    %4381 = vmatprep.subr.bf16.mxu0 0
    %4382 = vmatpush2.bf16.msra.mxu0 0
    %4383 = vmatprep.subr.bf16.mxu0 0
    %4384 = vmatpush2.bf16.msra.mxu0 0
    %4385 = vmatprep.subr.bf16.mxu0 %v4223
    %4386 = vmatpush2.bf16.msra.mxu0 %v4220
    %4387 = vmatprep.subr.bf16.mxu0 %v945
    %4388 = vmatpush2.bf16.msra.mxu0 %v944
    %4389 = vmatprep.subr.bf16.mxu0 %v943
    %4390 = vmatpush2.bf16.msra.mxu0 %v942
    %4391 = vmatprep.mubr.bf16.mxu0 %v3295
    %4392 = vmatmul.mubr.bf16.gmra.mxu0 %v3183
    %v4393 = vpop.f32.mrf.mxu0
    %v4394 = vadd.f32 %v4333, %v4393
    %v4395 = vpop.f32.mrf.mxu0
    %v4396 = vadd.f32 %v4335, %v4395
    %v4397 = vpop.f32.mrf.mxu0
    %v4398 = vadd.f32 %v4337, %v4397
    %v4399 = vpop.f32.mrf.mxu0
    %v4400 = vadd.f32 %v4339, %v4399
    %4401 = vmatprep.mubr.bf16.mxu0 %v4287
    %4402 = vmatmul.mubr.bf16.gmra.mxu0 %v4193
    %v4403 = vpop.f32.mrf.mxu0
    %v4404 = vadd.f32 %v4343, %v4403
    %v4405 = vpop.f32.mrf.mxu0
    %v4406 = vadd.f32 %v4345, %v4405
    %v4407 = vpop.f32.mrf.mxu0
    %v4408 = vadd.f32 %v4347, %v4407
    %v4409 = vpop.f32.mrf.mxu0
    %v4410 = vadd.f32 %v4349, %v4409
    %4411 = vmatprep.mubr.bf16.mxu0 %v4290
    %4412 = vmatmul.mubr.bf16.gmra.mxu0 %v4195
    %v4413 = vpop.f32.mrf.mxu0
    %v4414 = vadd.f32 %v4353, %v4413
    %v4415 = vpop.f32.mrf.mxu0
    %v4416 = vadd.f32 %v4355, %v4415
    %v4417 = vpop.f32.mrf.mxu0
    %v4418 = vpop.f32.mrf.mxu0
    %4419 = vdwg.mxu0
    %v4420 = vadd.f32 %v4183, %v4394
    %v4421 = vadd.f32 %v4184, %v4396
    %v4422 = vadd.f32 %v4185, %v4398
    %v4423 = vadd.f32 %v4186, %v4400
    %v4424 = vadd.f32 %v4187, %v4404
    %v4425 = vadd.f32 %v4188, %v4406
    %v4426 = vadd.f32 %v4189, %v4408
    %v4427 = vadd.f32 %v4190, %v4410
    %v4428 = vadd.f32 %v4191, %v4414
    %v4429 = vadd.f32 %v4192, %v4416
    %v4431 = vlaneseq
    %v4432 = vshrl.u32 %v4431, 7
    %v4433 = vsub.s32 0, %v4432
    %v4434 = vrot.slane %v1565, %v4433
    %v4435 = vlaneseq
    %v4436 = vshrl.u32 %v4435, 7
    %v4437 = vsub.s32 1, %v4436
    %v4438 = vrot.slane %v1565, %v4437
    %v4441 = vadd.f32 %v4420, %v4434
    %v4442 = vadd.f32 %v4421, %v4438
    %v4443 = vadd.f32 %v4422, %v4434
    %v4444 = vadd.f32 %v4423, %v4438
    %v4445 = vadd.f32 %v4424, %v4434
    %v4446 = vadd.f32 %v4425, %v4438
    %v4447 = vadd.f32 %v4426, %v4434
    %v4448 = vadd.f32 %v4427, %v4438
    %v4449 = vadd.f32 %v4428, %v4434
    %v4450 = vadd.f32 %v4429, %v4438
    %v4451 = vsub.f32 0.0, %v4441
    %v4452 = vsub.f32 0.0, %v4442
    %v4453 = vsub.f32 0.0, %v4443
    %v4454 = vsub.f32 0.0, %v4444
    %v4455 = vsub.f32 0.0, %v4445
    %v4456 = vsub.f32 0.0, %v4446
    %v4457 = vsub.f32 0.0, %v4447
    %v4458 = vsub.f32 0.0, %v4448
    %v4459 = vsub.f32 0.0, %v4449
    %v4460 = vsub.f32 0.0, %v4450
    %v4461 = vmul.f32 %v4451, 1.442695
    %v4462 = vpow.pop %v4461
    %v4463 = vmul.f32 %v4452, 1.442695
    %v4464 = vpow.pop %v4463
    %v4465 = vmul.f32 %v4453, 1.442695
    %v4466 = vpow.pop %v4465
    %v4467 = vmul.f32 %v4454, 1.442695
    %v4468 = vpow.pop %v4467
    %v4469 = vmul.f32 %v4455, 1.442695
    %v4470 = vpow.pop %v4469
    %v4471 = vmul.f32 %v4456, 1.442695
    %v4472 = vpow.pop %v4471
    %v4473 = vmul.f32 %v4457, 1.442695
    %v4474 = vpow.pop %v4473
    %v4475 = vmul.f32 %v4458, 1.442695
    %v4476 = vpow.pop %v4475
    %v4477 = vmul.f32 %v4459, 1.442695
    %v4478 = vpow.pop %v4477
    %v4479 = vmul.f32 %v4460, 1.442695
    %v4480 = vpow.pop %v4479
    %v4481 = vadd.f32 %v4462, 1.0
    %v4482 = vadd.f32 %v4464, 1.0
    %v4483 = vadd.f32 %v4466, 1.0
    %v4484 = vadd.f32 %v4468, 1.0
    %v4485 = vadd.f32 %v4470, 1.0
    %v4486 = vadd.f32 %v4472, 1.0
    %v4487 = vadd.f32 %v4474, 1.0
    %v4488 = vadd.f32 %v4476, 1.0
    %v4489 = vadd.f32 %v4478, 1.0
    %v4490 = vadd.f32 %v4480, 1.0
    %v4491 = vrcp.pop %v4481
    %v4492 = vmul.f32 1.0, %v4491
    %v4493 = vrcp.pop %v4482
    %v4494 = vmul.f32 1.0, %v4493
    %v4495 = vrcp.pop %v4483
    %v4496 = vmul.f32 1.0, %v4495
    %v4497 = vrcp.pop %v4484
    %v4498 = vmul.f32 1.0, %v4497
    %v4499 = vrcp.pop %v4485
    %v4500 = vmul.f32 1.0, %v4499
    %v4501 = vrcp.pop %v4486
    %v4502 = vmul.f32 1.0, %v4501
    %v4503 = vrcp.pop %v4487
    %v4504 = vmul.f32 1.0, %v4503
    %v4505 = vrcp.pop %v4488
    %v4506 = vmul.f32 1.0, %v4505
    %v4507 = vrcp.pop %v4489
    %v4508 = vmul.f32 1.0, %v4507
    %v4509 = vrcp.pop %v4490
    %v4510 = vmul.f32 1.0, %v4509
    %4511 = vmatprep.subr.bf16.mxu0 %v257
    %4512 = vmatpush1.bf16.msra.mxu0 %v256
    %4513 = vmatprep.subr.bf16.mxu0 %v255
    %4514 = vmatpush1.bf16.msra.mxu0 %v254
    %4515 = vmatprep.subr.bf16.mxu0 %v253
    %4516 = vmatpush1.bf16.msra.mxu0 %v252
    %4517 = vmatprep.subr.bf16.mxu0 %v251
    %4518 = vmatpush1.bf16.msra.mxu0 %v250
    %4519 = vmatprep.subr.bf16.mxu0 %v249
    %4520 = vmatpush1.bf16.msra.mxu0 %v248
    %4521 = vmatprep.subr.bf16.mxu0 %v247
    %4522 = vmatpush1.bf16.msra.mxu0 %v246
    %4523 = vmatprep.subr.bf16.mxu0 %v245
    %4524 = vmatpush1.bf16.msra.mxu0 %v244
    %4525 = vmatprep.subr.bf16.mxu0 %v243
    %4526 = vmatpush1.bf16.msra.mxu0 %v242
    %4527 = vmatprep.subr.bf16.mxu0 0
    %4528 = vmatpush2.bf16.msra.mxu0 0
    %4529 = vmatprep.subr.bf16.mxu0 0
    %4530 = vmatpush2.bf16.msra.mxu0 0
    %4531 = vmatprep.subr.bf16.mxu0 0
    %4532 = vmatpush2.bf16.msra.mxu0 0
    %4533 = vmatprep.subr.bf16.mxu0 0
    %4534 = vmatpush2.bf16.msra.mxu0 0
    %4535 = vmatprep.subr.bf16.mxu0 0
    %4536 = vmatpush2.bf16.msra.mxu0 0
    %4537 = vmatprep.subr.bf16.mxu0 %v3228
    %4538 = vmatpush2.bf16.msra.mxu0 %v3225
    %4539 = vmatprep.subr.bf16.mxu0 %v261
    %4540 = vmatpush2.bf16.msra.mxu0 %v260
    %4541 = vmatprep.subr.bf16.mxu0 %v259
    %4542 = vmatpush2.bf16.msra.mxu0 %v258
    %4543 = vmatprep.mubr.bf16.mxu0 %v3461
    %4544 = vmatmul.mubr.bf16.gmra.mxu0 %v3454
    %v4545 = vpop.f32.mrf.mxu0
    %v4546 = vadd.f32 0.0, %v4545
    %v4547 = vpop.f32.mrf.mxu0
    %v4548 = vadd.f32 0.0, %v4547
    %v4549 = vpop.f32.mrf.mxu0
    %v4550 = vadd.f32 0.0, %v4549
    %v4551 = vpop.f32.mrf.mxu0
    %v4552 = vadd.f32 0.0, %v4551
    %4553 = vmatprep.mubr.bf16.mxu0 %v3464
    %4554 = vmatmul.mubr.bf16.gmra.mxu0 %v3456
    %v4555 = vpop.f32.mrf.mxu0
    %v4556 = vadd.f32 0.0, %v4555
    %v4557 = vpop.f32.mrf.mxu0
    %v4558 = vadd.f32 0.0, %v4557
    %v4559 = vpop.f32.mrf.mxu0
    %v4560 = vadd.f32 0.0, %v4559
    %v4561 = vpop.f32.mrf.mxu0
    %v4562 = vadd.f32 0.0, %v4561
    %4563 = vmatprep.mubr.bf16.mxu0 %v3467
    %4564 = vmatmul.mubr.bf16.gmra.mxu0 %v3458
    %v4565 = vpop.f32.mrf.mxu0
    %v4566 = vadd.f32 0.0, %v4565
    %v4567 = vpop.f32.mrf.mxu0
    %v4568 = vadd.f32 0.0, %v4567
    %v4569 = vpop.f32.mrf.mxu0
    %v4570 = vpop.f32.mrf.mxu0
    %4571 = vdwg.mxu0
    %4572 = vmatprep.subr.bf16.mxu0 %v363
    %4573 = vmatpush1.bf16.msra.mxu0 %v362
    %4574 = vmatprep.subr.bf16.mxu0 %v361
    %4575 = vmatpush1.bf16.msra.mxu0 %v360
    %4576 = vmatprep.subr.bf16.mxu0 %v359
    %4577 = vmatpush1.bf16.msra.mxu0 %v358
    %4578 = vmatprep.subr.bf16.mxu0 %v357
    %4579 = vmatpush1.bf16.msra.mxu0 %v356
    %4580 = vmatprep.subr.bf16.mxu0 %v355
    %4581 = vmatpush1.bf16.msra.mxu0 %v354
    %4582 = vmatprep.subr.bf16.mxu0 %v353
    %4583 = vmatpush1.bf16.msra.mxu0 %v352
    %4584 = vmatprep.subr.bf16.mxu0 %v351
    %4585 = vmatpush1.bf16.msra.mxu0 %v350
    %4586 = vmatprep.subr.bf16.mxu0 %v349
    %4587 = vmatpush1.bf16.msra.mxu0 %v348
    %4588 = vmatprep.subr.bf16.mxu0 0
    %4589 = vmatpush2.bf16.msra.mxu0 0
    %4590 = vmatprep.subr.bf16.mxu0 0
    %4591 = vmatpush2.bf16.msra.mxu0 0
    %4592 = vmatprep.subr.bf16.mxu0 0
    %4593 = vmatpush2.bf16.msra.mxu0 0
    %4594 = vmatprep.subr.bf16.mxu0 0
    %4595 = vmatpush2.bf16.msra.mxu0 0
    %4596 = vmatprep.subr.bf16.mxu0 0
    %4597 = vmatpush2.bf16.msra.mxu0 0
    %4598 = vmatprep.subr.bf16.mxu0 %v3304
    %4599 = vmatpush2.bf16.msra.mxu0 %v3301
    %4600 = vmatprep.subr.bf16.mxu0 %v367
    %4601 = vmatpush2.bf16.msra.mxu0 %v366
    %4602 = vmatprep.subr.bf16.mxu0 %v365
    %4603 = vmatpush2.bf16.msra.mxu0 %v364
    %4604 = vmatprep.mubr.bf16.mxu0 %v3537
    %4605 = vmatmul.mubr.bf16.gmra.mxu0 %v3428
    %v4606 = vpop.f32.mrf.mxu0
    %v4607 = vadd.f32 %v4546, %v4606
    %v4608 = vpop.f32.mrf.mxu0
    %v4609 = vadd.f32 %v4548, %v4608
    %v4610 = vpop.f32.mrf.mxu0
    %v4611 = vadd.f32 %v4550, %v4610
    %v4612 = vpop.f32.mrf.mxu0
    %v4613 = vadd.f32 %v4552, %v4612
    %4614 = vmatprep.mubr.bf16.mxu0 %v3540
    %4615 = vmatmul.mubr.bf16.gmra.mxu0 %v3430
    %v4616 = vpop.f32.mrf.mxu0
    %v4617 = vadd.f32 %v4556, %v4616
    %v4618 = vpop.f32.mrf.mxu0
    %v4619 = vadd.f32 %v4558, %v4618
    %v4620 = vpop.f32.mrf.mxu0
    %v4621 = vadd.f32 %v4560, %v4620
    %v4622 = vpop.f32.mrf.mxu0
    %v4623 = vadd.f32 %v4562, %v4622
    %4624 = vmatprep.mubr.bf16.mxu0 %v3543
    %4625 = vmatmul.mubr.bf16.gmra.mxu0 %v3432
    %v4626 = vpop.f32.mrf.mxu0
    %v4627 = vadd.f32 %v4566, %v4626
    %v4628 = vpop.f32.mrf.mxu0
    %v4629 = vadd.f32 %v4568, %v4628
    %v4630 = vpop.f32.mrf.mxu0
    %v4631 = vpop.f32.mrf.mxu0
    %4632 = vdwg.mxu0
    %4633 = vmatprep.subr.bf16.mxu0 %v257
    %4634 = vmatpush1.bf16.msra.mxu0 %v256
    %4635 = vmatprep.subr.bf16.mxu0 %v255
    %4636 = vmatpush1.bf16.msra.mxu0 %v254
    %4637 = vmatprep.subr.bf16.mxu0 %v253
    %4638 = vmatpush1.bf16.msra.mxu0 %v252
    %4639 = vmatprep.subr.bf16.mxu0 %v251
    %4640 = vmatpush1.bf16.msra.mxu0 %v250
    %4641 = vmatprep.subr.bf16.mxu0 %v249
    %4642 = vmatpush1.bf16.msra.mxu0 %v248
    %4643 = vmatprep.subr.bf16.mxu0 %v247
    %4644 = vmatpush1.bf16.msra.mxu0 %v246
    %4645 = vmatprep.subr.bf16.mxu0 %v245
    %4646 = vmatpush1.bf16.msra.mxu0 %v244
    %4647 = vmatprep.subr.bf16.mxu0 %v243
    %4648 = vmatpush1.bf16.msra.mxu0 %v242
    %4649 = vmatprep.subr.bf16.mxu0 0
    %4650 = vmatpush2.bf16.msra.mxu0 0
    %4651 = vmatprep.subr.bf16.mxu0 0
    %4652 = vmatpush2.bf16.msra.mxu0 0
    %4653 = vmatprep.subr.bf16.mxu0 0
    %4654 = vmatpush2.bf16.msra.mxu0 0
    %4655 = vmatprep.subr.bf16.mxu0 0
    %4656 = vmatpush2.bf16.msra.mxu0 0
    %4657 = vmatprep.subr.bf16.mxu0 0
    %4658 = vmatpush2.bf16.msra.mxu0 0
    %4659 = vmatprep.subr.bf16.mxu0 %v3228
    %4660 = vmatpush2.bf16.msra.mxu0 %v3225
    %4661 = vmatprep.subr.bf16.mxu0 %v261
    %4662 = vmatpush2.bf16.msra.mxu0 %v260
    %4663 = vmatprep.subr.bf16.mxu0 %v259
    %4664 = vmatpush2.bf16.msra.mxu0 %v258
    %4665 = vmatprep.mubr.bf16.mxu0 %v3537
    %4666 = vmatmul.mubr.bf16.gmra.mxu0 %v3428
    %v4667 = vpop.f32.mrf.mxu0
    %v4668 = vadd.f32 %v4607, %v4667
    %v4669 = vpop.f32.mrf.mxu0
    %v4670 = vadd.f32 %v4609, %v4669
    %v4671 = vpop.f32.mrf.mxu0
    %v4672 = vadd.f32 %v4611, %v4671
    %v4673 = vpop.f32.mrf.mxu0
    %v4674 = vadd.f32 %v4613, %v4673
    %4675 = vmatprep.mubr.bf16.mxu0 %v3540
    %4676 = vmatmul.mubr.bf16.gmra.mxu0 %v3430
    %v4677 = vpop.f32.mrf.mxu0
    %v4678 = vadd.f32 %v4617, %v4677
    %v4679 = vpop.f32.mrf.mxu0
    %v4680 = vadd.f32 %v4619, %v4679
    %v4681 = vpop.f32.mrf.mxu0
    %v4682 = vadd.f32 %v4621, %v4681
    %v4683 = vpop.f32.mrf.mxu0
    %v4684 = vadd.f32 %v4623, %v4683
    %4685 = vmatprep.mubr.bf16.mxu0 %v3543
    %4686 = vmatmul.mubr.bf16.gmra.mxu0 %v3432
    %v4687 = vpop.f32.mrf.mxu0
    %v4688 = vadd.f32 %v4627, %v4687
    %v4689 = vpop.f32.mrf.mxu0
    %v4690 = vadd.f32 %v4629, %v4689
    %v4691 = vpop.f32.mrf.mxu0
    %v4692 = vpop.f32.mrf.mxu0
    %4693 = vdwg.mxu0
    %4694 = vmatprep.subr.bf16.mxu0 %v428
    %4695 = vmatpush1.bf16.msra.mxu0 %v427
    %4696 = vmatprep.subr.bf16.mxu0 %v426
    %4697 = vmatpush1.bf16.msra.mxu0 %v425
    %4698 = vmatprep.subr.bf16.mxu0 %v424
    %4699 = vmatpush1.bf16.msra.mxu0 %v423
    %4700 = vmatprep.subr.bf16.mxu0 %v422
    %4701 = vmatpush1.bf16.msra.mxu0 %v421
    %4702 = vmatprep.subr.bf16.mxu0 %v420
    %4703 = vmatpush1.bf16.msra.mxu0 %v419
    %4704 = vmatprep.subr.bf16.mxu0 %v418
    %4705 = vmatpush1.bf16.msra.mxu0 %v417
    %4706 = vmatprep.subr.bf16.mxu0 %v416
    %4707 = vmatpush1.bf16.msra.mxu0 %v415
    %4708 = vmatprep.subr.bf16.mxu0 %v414
    %4709 = vmatpush1.bf16.msra.mxu0 %v413
    %4710 = vmatprep.subr.bf16.mxu0 0
    %4711 = vmatpush2.bf16.msra.mxu0 0
    %4712 = vmatprep.subr.bf16.mxu0 0
    %4713 = vmatpush2.bf16.msra.mxu0 0
    %4714 = vmatprep.subr.bf16.mxu0 0
    %4715 = vmatpush2.bf16.msra.mxu0 0
    %4716 = vmatprep.subr.bf16.mxu0 0
    %4717 = vmatpush2.bf16.msra.mxu0 0
    %4718 = vmatprep.subr.bf16.mxu0 0
    %4719 = vmatpush2.bf16.msra.mxu0 0
    %4720 = vmatprep.subr.bf16.mxu0 %v3473
    %4721 = vmatpush2.bf16.msra.mxu0 %v3470
    %4722 = vmatprep.subr.bf16.mxu0 %v432
    %4723 = vmatpush2.bf16.msra.mxu0 %v431
    %4724 = vmatprep.subr.bf16.mxu0 %v430
    %4725 = vmatpush2.bf16.msra.mxu0 %v429
    %4726 = vmatprep.mubr.bf16.mxu0 %v3716
    %4727 = vmatmul.mubr.bf16.gmra.mxu0 %v3709
    %v4728 = vpop.f32.mrf.mxu0
    %v4729 = vadd.f32 0.0, %v4728
    %v4730 = vpop.f32.mrf.mxu0
    %v4731 = vadd.f32 0.0, %v4730
    %v4732 = vpop.f32.mrf.mxu0
    %v4733 = vadd.f32 0.0, %v4732
    %v4734 = vpop.f32.mrf.mxu0
    %v4735 = vadd.f32 0.0, %v4734
    %4736 = vmatprep.mubr.bf16.mxu0 %v3719
    %4737 = vmatmul.mubr.bf16.gmra.mxu0 %v3711
    %v4738 = vpop.f32.mrf.mxu0
    %v4739 = vadd.f32 0.0, %v4738
    %v4740 = vpop.f32.mrf.mxu0
    %v4741 = vadd.f32 0.0, %v4740
    %v4742 = vpop.f32.mrf.mxu0
    %v4743 = vadd.f32 0.0, %v4742
    %v4744 = vpop.f32.mrf.mxu0
    %v4745 = vadd.f32 0.0, %v4744
    %4746 = vmatprep.mubr.bf16.mxu0 %v3722
    %4747 = vmatmul.mubr.bf16.gmra.mxu0 %v3713
    %v4748 = vpop.f32.mrf.mxu0
    %v4749 = vadd.f32 0.0, %v4748
    %v4750 = vpop.f32.mrf.mxu0
    %v4751 = vadd.f32 0.0, %v4750
    %v4752 = vpop.f32.mrf.mxu0
    %v4753 = vpop.f32.mrf.mxu0
    %4754 = vdwg.mxu0
    %4755 = vmatprep.subr.bf16.mxu0 %v534
    %4756 = vmatpush1.bf16.msra.mxu0 %v533
    %4757 = vmatprep.subr.bf16.mxu0 %v532
    %4758 = vmatpush1.bf16.msra.mxu0 %v531
    %4759 = vmatprep.subr.bf16.mxu0 %v530
    %4760 = vmatpush1.bf16.msra.mxu0 %v529
    %4761 = vmatprep.subr.bf16.mxu0 %v528
    %4762 = vmatpush1.bf16.msra.mxu0 %v527
    %4763 = vmatprep.subr.bf16.mxu0 %v526
    %4764 = vmatpush1.bf16.msra.mxu0 %v525
    %4765 = vmatprep.subr.bf16.mxu0 %v524
    %4766 = vmatpush1.bf16.msra.mxu0 %v523
    %4767 = vmatprep.subr.bf16.mxu0 %v522
    %4768 = vmatpush1.bf16.msra.mxu0 %v521
    %4769 = vmatprep.subr.bf16.mxu0 %v520
    %4770 = vmatpush1.bf16.msra.mxu0 %v519
    %4771 = vmatprep.subr.bf16.mxu0 0
    %4772 = vmatpush2.bf16.msra.mxu0 0
    %4773 = vmatprep.subr.bf16.mxu0 0
    %4774 = vmatpush2.bf16.msra.mxu0 0
    %4775 = vmatprep.subr.bf16.mxu0 0
    %4776 = vmatpush2.bf16.msra.mxu0 0
    %4777 = vmatprep.subr.bf16.mxu0 0
    %4778 = vmatpush2.bf16.msra.mxu0 0
    %4779 = vmatprep.subr.bf16.mxu0 0
    %4780 = vmatpush2.bf16.msra.mxu0 0
    %4781 = vmatprep.subr.bf16.mxu0 %v3549
    %4782 = vmatpush2.bf16.msra.mxu0 %v3546
    %4783 = vmatprep.subr.bf16.mxu0 %v538
    %4784 = vmatpush2.bf16.msra.mxu0 %v537
    %4785 = vmatprep.subr.bf16.mxu0 %v536
    %4786 = vmatpush2.bf16.msra.mxu0 %v535
    %4787 = vmatprep.mubr.bf16.mxu0 %v3792
    %4788 = vmatmul.mubr.bf16.gmra.mxu0 %v3683
    %v4789 = vpop.f32.mrf.mxu0
    %v4790 = vadd.f32 %v4729, %v4789
    %v4791 = vpop.f32.mrf.mxu0
    %v4792 = vadd.f32 %v4731, %v4791
    %v4793 = vpop.f32.mrf.mxu0
    %v4794 = vadd.f32 %v4733, %v4793
    %v4795 = vpop.f32.mrf.mxu0
    %v4796 = vadd.f32 %v4735, %v4795
    %4797 = vmatprep.mubr.bf16.mxu0 %v3795
    %4798 = vmatmul.mubr.bf16.gmra.mxu0 %v3685
    %v4799 = vpop.f32.mrf.mxu0
    %v4800 = vadd.f32 %v4739, %v4799
    %v4801 = vpop.f32.mrf.mxu0
    %v4802 = vadd.f32 %v4741, %v4801
    %v4803 = vpop.f32.mrf.mxu0
    %v4804 = vadd.f32 %v4743, %v4803
    %v4805 = vpop.f32.mrf.mxu0
    %v4806 = vadd.f32 %v4745, %v4805
    %4807 = vmatprep.mubr.bf16.mxu0 %v3798
    %4808 = vmatmul.mubr.bf16.gmra.mxu0 %v3687
    %v4809 = vpop.f32.mrf.mxu0
    %v4810 = vadd.f32 %v4749, %v4809
    %v4811 = vpop.f32.mrf.mxu0
    %v4812 = vadd.f32 %v4751, %v4811
    %v4813 = vpop.f32.mrf.mxu0
    %v4814 = vpop.f32.mrf.mxu0
    %4815 = vdwg.mxu0
    %4816 = vmatprep.subr.bf16.mxu0 %v428
    %4817 = vmatpush1.bf16.msra.mxu0 %v427
    %4818 = vmatprep.subr.bf16.mxu0 %v426
    %4819 = vmatpush1.bf16.msra.mxu0 %v425
    %4820 = vmatprep.subr.bf16.mxu0 %v424
    %4821 = vmatpush1.bf16.msra.mxu0 %v423
    %4822 = vmatprep.subr.bf16.mxu0 %v422
    %4823 = vmatpush1.bf16.msra.mxu0 %v421
    %4824 = vmatprep.subr.bf16.mxu0 %v420
    %4825 = vmatpush1.bf16.msra.mxu0 %v419
    %4826 = vmatprep.subr.bf16.mxu0 %v418
    %4827 = vmatpush1.bf16.msra.mxu0 %v417
    %4828 = vmatprep.subr.bf16.mxu0 %v416
    %4829 = vmatpush1.bf16.msra.mxu0 %v415
    %4830 = vmatprep.subr.bf16.mxu0 %v414
    %4831 = vmatpush1.bf16.msra.mxu0 %v413
    %4832 = vmatprep.subr.bf16.mxu0 0
    %4833 = vmatpush2.bf16.msra.mxu0 0
    %4834 = vmatprep.subr.bf16.mxu0 0
    %4835 = vmatpush2.bf16.msra.mxu0 0
    %4836 = vmatprep.subr.bf16.mxu0 0
    %4837 = vmatpush2.bf16.msra.mxu0 0
    %4838 = vmatprep.subr.bf16.mxu0 0
    %4839 = vmatpush2.bf16.msra.mxu0 0
    %4840 = vmatprep.subr.bf16.mxu0 0
    %4841 = vmatpush2.bf16.msra.mxu0 0
    %4842 = vmatprep.subr.bf16.mxu0 %v3473
    %4843 = vmatpush2.bf16.msra.mxu0 %v3470
    %4844 = vmatprep.subr.bf16.mxu0 %v432
    %4845 = vmatpush2.bf16.msra.mxu0 %v431
    %4846 = vmatprep.subr.bf16.mxu0 %v430
    %4847 = vmatpush2.bf16.msra.mxu0 %v429
    %4848 = vmatprep.mubr.bf16.mxu0 %v3792
    %4849 = vmatmul.mubr.bf16.gmra.mxu0 %v3683
    %v4850 = vpop.f32.mrf.mxu0
    %v4851 = vadd.f32 %v4790, %v4850
    %v4852 = vpop.f32.mrf.mxu0
    %v4853 = vadd.f32 %v4792, %v4852
    %v4854 = vpop.f32.mrf.mxu0
    %v4855 = vadd.f32 %v4794, %v4854
    %v4856 = vpop.f32.mrf.mxu0
    %v4857 = vadd.f32 %v4796, %v4856
    %4858 = vmatprep.mubr.bf16.mxu0 %v3795
    %4859 = vmatmul.mubr.bf16.gmra.mxu0 %v3685
    %v4860 = vpop.f32.mrf.mxu0
    %v4861 = vadd.f32 %v4800, %v4860
    %v4862 = vpop.f32.mrf.mxu0
    %v4863 = vadd.f32 %v4802, %v4862
    %v4864 = vpop.f32.mrf.mxu0
    %v4865 = vadd.f32 %v4804, %v4864
    %v4866 = vpop.f32.mrf.mxu0
    %v4867 = vadd.f32 %v4806, %v4866
    %4868 = vmatprep.mubr.bf16.mxu0 %v3798
    %4869 = vmatmul.mubr.bf16.gmra.mxu0 %v3687
    %v4870 = vpop.f32.mrf.mxu0
    %v4871 = vadd.f32 %v4810, %v4870
    %v4872 = vpop.f32.mrf.mxu0
    %v4873 = vadd.f32 %v4812, %v4872
    %v4874 = vpop.f32.mrf.mxu0
    %v4875 = vpop.f32.mrf.mxu0
    %4876 = vdwg.mxu0
    %v4877 = vadd.f32 %v4668, %v4851
    %v4878 = vadd.f32 %v4670, %v4853
    %v4879 = vadd.f32 %v4672, %v4855
    %v4880 = vadd.f32 %v4674, %v4857
    %v4881 = vadd.f32 %v4678, %v4861
    %v4882 = vadd.f32 %v4680, %v4863
    %v4883 = vadd.f32 %v4682, %v4865
    %v4884 = vadd.f32 %v4684, %v4867
    %v4885 = vadd.f32 %v4688, %v4871
    %v4886 = vadd.f32 %v4690, %v4873
    %4887 = vmatprep.subr.bf16.mxu0 %v599
    %4888 = vmatpush1.bf16.msra.mxu0 %v598
    %4889 = vmatprep.subr.bf16.mxu0 %v597
    %4890 = vmatpush1.bf16.msra.mxu0 %v596
    %4891 = vmatprep.subr.bf16.mxu0 %v595
    %4892 = vmatpush1.bf16.msra.mxu0 %v594
    %4893 = vmatprep.subr.bf16.mxu0 %v593
    %4894 = vmatpush1.bf16.msra.mxu0 %v592
    %4895 = vmatprep.subr.bf16.mxu0 %v591
    %4896 = vmatpush1.bf16.msra.mxu0 %v590
    %4897 = vmatprep.subr.bf16.mxu0 %v589
    %4898 = vmatpush1.bf16.msra.mxu0 %v588
    %4899 = vmatprep.subr.bf16.mxu0 %v587
    %4900 = vmatpush1.bf16.msra.mxu0 %v586
    %4901 = vmatprep.subr.bf16.mxu0 %v585
    %4902 = vmatpush1.bf16.msra.mxu0 %v584
    %4903 = vmatprep.subr.bf16.mxu0 0
    %4904 = vmatpush2.bf16.msra.mxu0 0
    %4905 = vmatprep.subr.bf16.mxu0 0
    %4906 = vmatpush2.bf16.msra.mxu0 0
    %4907 = vmatprep.subr.bf16.mxu0 0
    %4908 = vmatpush2.bf16.msra.mxu0 0
    %4909 = vmatprep.subr.bf16.mxu0 0
    %4910 = vmatpush2.bf16.msra.mxu0 0
    %4911 = vmatprep.subr.bf16.mxu0 0
    %4912 = vmatpush2.bf16.msra.mxu0 0
    %4913 = vmatprep.subr.bf16.mxu0 %v3728
    %4914 = vmatpush2.bf16.msra.mxu0 %v3725
    %4915 = vmatprep.subr.bf16.mxu0 %v603
    %4916 = vmatpush2.bf16.msra.mxu0 %v602
    %4917 = vmatprep.subr.bf16.mxu0 %v601
    %4918 = vmatpush2.bf16.msra.mxu0 %v600
    %4919 = vmatprep.mubr.bf16.mxu0 %v3971
    %4920 = vmatmul.mubr.bf16.gmra.mxu0 %v3964
    %v4921 = vpop.f32.mrf.mxu0
    %v4922 = vadd.f32 0.0, %v4921
    %v4923 = vpop.f32.mrf.mxu0
    %v4924 = vadd.f32 0.0, %v4923
    %v4925 = vpop.f32.mrf.mxu0
    %v4926 = vadd.f32 0.0, %v4925
    %v4927 = vpop.f32.mrf.mxu0
    %v4928 = vadd.f32 0.0, %v4927
    %4929 = vmatprep.mubr.bf16.mxu0 %v3974
    %4930 = vmatmul.mubr.bf16.gmra.mxu0 %v3966
    %v4931 = vpop.f32.mrf.mxu0
    %v4932 = vadd.f32 0.0, %v4931
    %v4933 = vpop.f32.mrf.mxu0
    %v4934 = vadd.f32 0.0, %v4933
    %v4935 = vpop.f32.mrf.mxu0
    %v4936 = vadd.f32 0.0, %v4935
    %v4937 = vpop.f32.mrf.mxu0
    %v4938 = vadd.f32 0.0, %v4937
    %4939 = vmatprep.mubr.bf16.mxu0 %v3977
    %4940 = vmatmul.mubr.bf16.gmra.mxu0 %v3968
    %v4941 = vpop.f32.mrf.mxu0
    %v4942 = vadd.f32 0.0, %v4941
    %v4943 = vpop.f32.mrf.mxu0
    %v4944 = vadd.f32 0.0, %v4943
    %v4945 = vpop.f32.mrf.mxu0
    %v4946 = vpop.f32.mrf.mxu0
    %4947 = vdwg.mxu0
    %4948 = vmatprep.subr.bf16.mxu0 %v705
    %4949 = vmatpush1.bf16.msra.mxu0 %v704
    %4950 = vmatprep.subr.bf16.mxu0 %v703
    %4951 = vmatpush1.bf16.msra.mxu0 %v702
    %4952 = vmatprep.subr.bf16.mxu0 %v701
    %4953 = vmatpush1.bf16.msra.mxu0 %v700
    %4954 = vmatprep.subr.bf16.mxu0 %v699
    %4955 = vmatpush1.bf16.msra.mxu0 %v698
    %4956 = vmatprep.subr.bf16.mxu0 %v697
    %4957 = vmatpush1.bf16.msra.mxu0 %v696
    %4958 = vmatprep.subr.bf16.mxu0 %v695
    %4959 = vmatpush1.bf16.msra.mxu0 %v694
    %4960 = vmatprep.subr.bf16.mxu0 %v693
    %4961 = vmatpush1.bf16.msra.mxu0 %v692
    %4962 = vmatprep.subr.bf16.mxu0 %v691
    %4963 = vmatpush1.bf16.msra.mxu0 %v690
    %4964 = vmatprep.subr.bf16.mxu0 0
    %4965 = vmatpush2.bf16.msra.mxu0 0
    %4966 = vmatprep.subr.bf16.mxu0 0
    %4967 = vmatpush2.bf16.msra.mxu0 0
    %4968 = vmatprep.subr.bf16.mxu0 0
    %4969 = vmatpush2.bf16.msra.mxu0 0
    %4970 = vmatprep.subr.bf16.mxu0 0
    %4971 = vmatpush2.bf16.msra.mxu0 0
    %4972 = vmatprep.subr.bf16.mxu0 0
    %4973 = vmatpush2.bf16.msra.mxu0 0
    %4974 = vmatprep.subr.bf16.mxu0 %v3804
    %4975 = vmatpush2.bf16.msra.mxu0 %v3801
    %4976 = vmatprep.subr.bf16.mxu0 %v709
    %4977 = vmatpush2.bf16.msra.mxu0 %v708
    %4978 = vmatprep.subr.bf16.mxu0 %v707
    %4979 = vmatpush2.bf16.msra.mxu0 %v706
    %4980 = vmatprep.mubr.bf16.mxu0 %v4047
    %4981 = vmatmul.mubr.bf16.gmra.mxu0 %v3938
    %v4982 = vpop.f32.mrf.mxu0
    %v4983 = vadd.f32 %v4922, %v4982
    %v4984 = vpop.f32.mrf.mxu0
    %v4985 = vadd.f32 %v4924, %v4984
    %v4986 = vpop.f32.mrf.mxu0
    %v4987 = vadd.f32 %v4926, %v4986
    %v4988 = vpop.f32.mrf.mxu0
    %v4989 = vadd.f32 %v4928, %v4988
    %4990 = vmatprep.mubr.bf16.mxu0 %v4050
    %4991 = vmatmul.mubr.bf16.gmra.mxu0 %v3940
    %v4992 = vpop.f32.mrf.mxu0
    %v4993 = vadd.f32 %v4932, %v4992
    %v4994 = vpop.f32.mrf.mxu0
    %v4995 = vadd.f32 %v4934, %v4994
    %v4996 = vpop.f32.mrf.mxu0
    %v4997 = vadd.f32 %v4936, %v4996
    %v4998 = vpop.f32.mrf.mxu0
    %v4999 = vadd.f32 %v4938, %v4998
    %5000 = vmatprep.mubr.bf16.mxu0 %v4053
    %5001 = vmatmul.mubr.bf16.gmra.mxu0 %v3942
    %v5002 = vpop.f32.mrf.mxu0
    %v5003 = vadd.f32 %v4942, %v5002
    %v5004 = vpop.f32.mrf.mxu0
    %v5005 = vadd.f32 %v4944, %v5004
    %v5006 = vpop.f32.mrf.mxu0
    %v5007 = vpop.f32.mrf.mxu0
    %5008 = vdwg.mxu0
    %5009 = vmatprep.subr.bf16.mxu0 %v599
    %5010 = vmatpush1.bf16.msra.mxu0 %v598
    %5011 = vmatprep.subr.bf16.mxu0 %v597
    %5012 = vmatpush1.bf16.msra.mxu0 %v596
    %5013 = vmatprep.subr.bf16.mxu0 %v595
    %5014 = vmatpush1.bf16.msra.mxu0 %v594
    %5015 = vmatprep.subr.bf16.mxu0 %v593
    %5016 = vmatpush1.bf16.msra.mxu0 %v592
    %5017 = vmatprep.subr.bf16.mxu0 %v591
    %5018 = vmatpush1.bf16.msra.mxu0 %v590
    %5019 = vmatprep.subr.bf16.mxu0 %v589
    %5020 = vmatpush1.bf16.msra.mxu0 %v588
    %5021 = vmatprep.subr.bf16.mxu0 %v587
    %5022 = vmatpush1.bf16.msra.mxu0 %v586
    %5023 = vmatprep.subr.bf16.mxu0 %v585
    %5024 = vmatpush1.bf16.msra.mxu0 %v584
    %5025 = vmatprep.subr.bf16.mxu0 0
    %5026 = vmatpush2.bf16.msra.mxu0 0
    %5027 = vmatprep.subr.bf16.mxu0 0
    %5028 = vmatpush2.bf16.msra.mxu0 0
    %5029 = vmatprep.subr.bf16.mxu0 0
    %5030 = vmatpush2.bf16.msra.mxu0 0
    %5031 = vmatprep.subr.bf16.mxu0 0
    %5032 = vmatpush2.bf16.msra.mxu0 0
    %5033 = vmatprep.subr.bf16.mxu0 0
    %5034 = vmatpush2.bf16.msra.mxu0 0
    %5035 = vmatprep.subr.bf16.mxu0 %v3728
    %5036 = vmatpush2.bf16.msra.mxu0 %v3725
    %5037 = vmatprep.subr.bf16.mxu0 %v603
    %5038 = vmatpush2.bf16.msra.mxu0 %v602
    %5039 = vmatprep.subr.bf16.mxu0 %v601
    %5040 = vmatpush2.bf16.msra.mxu0 %v600
    %5041 = vmatprep.mubr.bf16.mxu0 %v4047
    %5042 = vmatmul.mubr.bf16.gmra.mxu0 %v3938
    %v5043 = vpop.f32.mrf.mxu0
    %v5044 = vadd.f32 %v4983, %v5043
    %v5045 = vpop.f32.mrf.mxu0
    %v5046 = vadd.f32 %v4985, %v5045
    %v5047 = vpop.f32.mrf.mxu0
    %v5048 = vadd.f32 %v4987, %v5047
    %v5049 = vpop.f32.mrf.mxu0
    %v5050 = vadd.f32 %v4989, %v5049
    %5051 = vmatprep.mubr.bf16.mxu0 %v4050
    %5052 = vmatmul.mubr.bf16.gmra.mxu0 %v3940
    %v5053 = vpop.f32.mrf.mxu0
    %v5054 = vadd.f32 %v4993, %v5053
    %v5055 = vpop.f32.mrf.mxu0
    %v5056 = vadd.f32 %v4995, %v5055
    %v5057 = vpop.f32.mrf.mxu0
    %v5058 = vadd.f32 %v4997, %v5057
    %v5059 = vpop.f32.mrf.mxu0
    %v5060 = vadd.f32 %v4999, %v5059
    %5061 = vmatprep.mubr.bf16.mxu0 %v4053
    %5062 = vmatmul.mubr.bf16.gmra.mxu0 %v3942
    %v5063 = vpop.f32.mrf.mxu0
    %v5064 = vadd.f32 %v5003, %v5063
    %v5065 = vpop.f32.mrf.mxu0
    %v5066 = vadd.f32 %v5005, %v5065
    %v5067 = vpop.f32.mrf.mxu0
    %v5068 = vpop.f32.mrf.mxu0
    %5069 = vdwg.mxu0
    %v5070 = vadd.f32 %v4877, %v5044
    %v5071 = vadd.f32 %v4878, %v5046
    %v5072 = vadd.f32 %v4879, %v5048
    %v5073 = vadd.f32 %v4880, %v5050
    %v5074 = vadd.f32 %v4881, %v5054
    %v5075 = vadd.f32 %v4882, %v5056
    %v5076 = vadd.f32 %v4883, %v5058
    %v5077 = vadd.f32 %v4884, %v5060
    %v5078 = vadd.f32 %v4885, %v5064
    %v5079 = vadd.f32 %v4886, %v5066
    %5080 = vmatprep.subr.bf16.mxu0 %v770
    %5081 = vmatpush1.bf16.msra.mxu0 %v769
    %5082 = vmatprep.subr.bf16.mxu0 %v768
    %5083 = vmatpush1.bf16.msra.mxu0 %v767
    %5084 = vmatprep.subr.bf16.mxu0 %v766
    %5085 = vmatpush1.bf16.msra.mxu0 %v765
    %5086 = vmatprep.subr.bf16.mxu0 %v764
    %5087 = vmatpush1.bf16.msra.mxu0 %v763
    %5088 = vmatprep.subr.bf16.mxu0 %v762
    %5089 = vmatpush1.bf16.msra.mxu0 %v761
    %5090 = vmatprep.subr.bf16.mxu0 %v760
    %5091 = vmatpush1.bf16.msra.mxu0 %v759
    %5092 = vmatprep.subr.bf16.mxu0 %v758
    %5093 = vmatpush1.bf16.msra.mxu0 %v757
    %5094 = vmatprep.subr.bf16.mxu0 %v756
    %5095 = vmatpush1.bf16.msra.mxu0 %v755
    %5096 = vmatprep.subr.bf16.mxu0 0
    %5097 = vmatpush2.bf16.msra.mxu0 0
    %5098 = vmatprep.subr.bf16.mxu0 0
    %5099 = vmatpush2.bf16.msra.mxu0 0
    %5100 = vmatprep.subr.bf16.mxu0 0
    %5101 = vmatpush2.bf16.msra.mxu0 0
    %5102 = vmatprep.subr.bf16.mxu0 0
    %5103 = vmatpush2.bf16.msra.mxu0 0
    %5104 = vmatprep.subr.bf16.mxu0 0
    %5105 = vmatpush2.bf16.msra.mxu0 0
    %5106 = vmatprep.subr.bf16.mxu0 %v3983
    %5107 = vmatpush2.bf16.msra.mxu0 %v3980
    %5108 = vmatprep.subr.bf16.mxu0 %v774
    %5109 = vmatpush2.bf16.msra.mxu0 %v773
    %5110 = vmatprep.subr.bf16.mxu0 %v772
    %5111 = vmatpush2.bf16.msra.mxu0 %v771
    %5112 = vmatprep.mubr.bf16.mxu0 %v3218
    %5113 = vmatmul.mubr.bf16.gmra.mxu0 %v3209
    %v5114 = vpop.f32.mrf.mxu0
    %v5115 = vadd.f32 0.0, %v5114
    %v5116 = vpop.f32.mrf.mxu0
    %v5117 = vadd.f32 0.0, %v5116
    %v5118 = vpop.f32.mrf.mxu0
    %v5119 = vadd.f32 0.0, %v5118
    %v5120 = vpop.f32.mrf.mxu0
    %v5121 = vadd.f32 0.0, %v5120
    %5122 = vmatprep.mubr.bf16.mxu0 %v4214
    %5123 = vmatmul.mubr.bf16.gmra.mxu0 %v4209
    %v5124 = vpop.f32.mrf.mxu0
    %v5125 = vadd.f32 0.0, %v5124
    %v5126 = vpop.f32.mrf.mxu0
    %v5127 = vadd.f32 0.0, %v5126
    %v5128 = vpop.f32.mrf.mxu0
    %v5129 = vadd.f32 0.0, %v5128
    %v5130 = vpop.f32.mrf.mxu0
    %v5131 = vadd.f32 0.0, %v5130
    %5132 = vmatprep.mubr.bf16.mxu0 %v4217
    %5133 = vmatmul.mubr.bf16.gmra.mxu0 %v4211
    %v5134 = vpop.f32.mrf.mxu0
    %v5135 = vadd.f32 0.0, %v5134
    %v5136 = vpop.f32.mrf.mxu0
    %v5137 = vadd.f32 0.0, %v5136
    %v5138 = vpop.f32.mrf.mxu0
    %v5139 = vpop.f32.mrf.mxu0
    %5140 = vdwg.mxu0
    %5141 = vmatprep.subr.bf16.mxu0 %v876
    %5142 = vmatpush1.bf16.msra.mxu0 %v875
    %5143 = vmatprep.subr.bf16.mxu0 %v874
    %5144 = vmatpush1.bf16.msra.mxu0 %v873
    %5145 = vmatprep.subr.bf16.mxu0 %v872
    %5146 = vmatpush1.bf16.msra.mxu0 %v871
    %5147 = vmatprep.subr.bf16.mxu0 %v870
    %5148 = vmatpush1.bf16.msra.mxu0 %v869
    %5149 = vmatprep.subr.bf16.mxu0 %v868
    %5150 = vmatpush1.bf16.msra.mxu0 %v867
    %5151 = vmatprep.subr.bf16.mxu0 %v866
    %5152 = vmatpush1.bf16.msra.mxu0 %v865
    %5153 = vmatprep.subr.bf16.mxu0 %v864
    %5154 = vmatpush1.bf16.msra.mxu0 %v863
    %5155 = vmatprep.subr.bf16.mxu0 %v862
    %5156 = vmatpush1.bf16.msra.mxu0 %v861
    %5157 = vmatprep.subr.bf16.mxu0 0
    %5158 = vmatpush2.bf16.msra.mxu0 0
    %5159 = vmatprep.subr.bf16.mxu0 0
    %5160 = vmatpush2.bf16.msra.mxu0 0
    %5161 = vmatprep.subr.bf16.mxu0 0
    %5162 = vmatpush2.bf16.msra.mxu0 0
    %5163 = vmatprep.subr.bf16.mxu0 0
    %5164 = vmatpush2.bf16.msra.mxu0 0
    %5165 = vmatprep.subr.bf16.mxu0 0
    %5166 = vmatpush2.bf16.msra.mxu0 0
    %5167 = vmatprep.subr.bf16.mxu0 %v4059
    %5168 = vmatpush2.bf16.msra.mxu0 %v4056
    %5169 = vmatprep.subr.bf16.mxu0 %v880
    %5170 = vmatpush2.bf16.msra.mxu0 %v879
    %5171 = vmatprep.subr.bf16.mxu0 %v878
    %5172 = vmatpush2.bf16.msra.mxu0 %v877
    %5173 = vmatprep.mubr.bf16.mxu0 %v3295
    %5174 = vmatmul.mubr.bf16.gmra.mxu0 %v3183
    %v5175 = vpop.f32.mrf.mxu0
    %v5176 = vadd.f32 %v5115, %v5175
    %v5177 = vpop.f32.mrf.mxu0
    %v5178 = vadd.f32 %v5117, %v5177
    %v5179 = vpop.f32.mrf.mxu0
    %v5180 = vadd.f32 %v5119, %v5179
    %v5181 = vpop.f32.mrf.mxu0
    %v5182 = vadd.f32 %v5121, %v5181
    %5183 = vmatprep.mubr.bf16.mxu0 %v4287
    %5184 = vmatmul.mubr.bf16.gmra.mxu0 %v4193
    %v5185 = vpop.f32.mrf.mxu0
    %v5186 = vadd.f32 %v5125, %v5185
    %v5187 = vpop.f32.mrf.mxu0
    %v5188 = vadd.f32 %v5127, %v5187
    %v5189 = vpop.f32.mrf.mxu0
    %v5190 = vadd.f32 %v5129, %v5189
    %v5191 = vpop.f32.mrf.mxu0
    %v5192 = vadd.f32 %v5131, %v5191
    %5193 = vmatprep.mubr.bf16.mxu0 %v4290
    %5194 = vmatmul.mubr.bf16.gmra.mxu0 %v4195
    %v5195 = vpop.f32.mrf.mxu0
    %v5196 = vadd.f32 %v5135, %v5195
    %v5197 = vpop.f32.mrf.mxu0
    %v5198 = vadd.f32 %v5137, %v5197
    %v5199 = vpop.f32.mrf.mxu0
    %v5200 = vpop.f32.mrf.mxu0
    %5201 = vdwg.mxu0
    %5202 = vmatprep.subr.bf16.mxu0 %v770
    %5203 = vmatpush1.bf16.msra.mxu0 %v769
    %5204 = vmatprep.subr.bf16.mxu0 %v768
    %5205 = vmatpush1.bf16.msra.mxu0 %v767
    %5206 = vmatprep.subr.bf16.mxu0 %v766
    %5207 = vmatpush1.bf16.msra.mxu0 %v765
    %5208 = vmatprep.subr.bf16.mxu0 %v764
    %5209 = vmatpush1.bf16.msra.mxu0 %v763
    %5210 = vmatprep.subr.bf16.mxu0 %v762
    %5211 = vmatpush1.bf16.msra.mxu0 %v761
    %5212 = vmatprep.subr.bf16.mxu0 %v760
    %5213 = vmatpush1.bf16.msra.mxu0 %v759
    %5214 = vmatprep.subr.bf16.mxu0 %v758
    %5215 = vmatpush1.bf16.msra.mxu0 %v757
    %5216 = vmatprep.subr.bf16.mxu0 %v756
    %5217 = vmatpush1.bf16.msra.mxu0 %v755
    %5218 = vmatprep.subr.bf16.mxu0 0
    %5219 = vmatpush2.bf16.msra.mxu0 0
    %5220 = vmatprep.subr.bf16.mxu0 0
    %5221 = vmatpush2.bf16.msra.mxu0 0
    %5222 = vmatprep.subr.bf16.mxu0 0
    %5223 = vmatpush2.bf16.msra.mxu0 0
    %5224 = vmatprep.subr.bf16.mxu0 0
    %5225 = vmatpush2.bf16.msra.mxu0 0
    %5226 = vmatprep.subr.bf16.mxu0 0
    %5227 = vmatpush2.bf16.msra.mxu0 0
    %5228 = vmatprep.subr.bf16.mxu0 %v3983
    %5229 = vmatpush2.bf16.msra.mxu0 %v3980
    %5230 = vmatprep.subr.bf16.mxu0 %v774
    %5231 = vmatpush2.bf16.msra.mxu0 %v773
    %5232 = vmatprep.subr.bf16.mxu0 %v772
    %5233 = vmatpush2.bf16.msra.mxu0 %v771
    %5234 = vmatprep.mubr.bf16.mxu0 %v3295
    %5235 = vmatmul.mubr.bf16.gmra.mxu0 %v3183
    %v5236 = vpop.f32.mrf.mxu0
    %v5237 = vadd.f32 %v5176, %v5236
    %v5238 = vpop.f32.mrf.mxu0
    %v5239 = vadd.f32 %v5178, %v5238
    %v5240 = vpop.f32.mrf.mxu0
    %v5241 = vadd.f32 %v5180, %v5240
    %v5242 = vpop.f32.mrf.mxu0
    %v5243 = vadd.f32 %v5182, %v5242
    %5244 = vmatprep.mubr.bf16.mxu0 %v4287
    %5245 = vmatmul.mubr.bf16.gmra.mxu0 %v4193
    %v5246 = vpop.f32.mrf.mxu0
    %v5247 = vadd.f32 %v5186, %v5246
    %v5248 = vpop.f32.mrf.mxu0
    %v5249 = vadd.f32 %v5188, %v5248
    %v5250 = vpop.f32.mrf.mxu0
    %v5251 = vadd.f32 %v5190, %v5250
    %v5252 = vpop.f32.mrf.mxu0
    %v5253 = vadd.f32 %v5192, %v5252
    %5254 = vmatprep.mubr.bf16.mxu0 %v4290
    %5255 = vmatmul.mubr.bf16.gmra.mxu0 %v4195
    %v5256 = vpop.f32.mrf.mxu0
    %v5257 = vadd.f32 %v5196, %v5256
    %v5258 = vpop.f32.mrf.mxu0
    %v5259 = vadd.f32 %v5198, %v5258
    %v5260 = vpop.f32.mrf.mxu0
    %v5261 = vpop.f32.mrf.mxu0
    %5262 = vdwg.mxu0
    %v5263 = vadd.f32 %v5070, %v5237
    %v5264 = vadd.f32 %v5071, %v5239
    %v5265 = vadd.f32 %v5072, %v5241
    %v5266 = vadd.f32 %v5073, %v5243
    %v5267 = vadd.f32 %v5074, %v5247
    %v5268 = vadd.f32 %v5075, %v5249
    %v5269 = vadd.f32 %v5076, %v5251
    %v5270 = vadd.f32 %v5077, %v5253
    %v5271 = vadd.f32 %v5078, %v5257
    %v5272 = vadd.f32 %v5079, %v5259
    %v5273 = vpack.c.bf16 %v3177, %v3175
    %v5274 = vpack.c.bf16 %v3178, %v3176
    %v5275 = vpack.c.bf16 %v3179, %v3179
    %v5276 = vpack.c.bf16 %v3180, %v3180
    %v5277 = vunpack.c.l.bf16 %v5273
    %v5278 = vunpack.c.l.bf16 %v5274
    %v5279 = vunpack.c.h.bf16 %v5273
    %v5280 = vunpack.c.h.bf16 %v5274
    %v5281 = vunpack.c.l.bf16 %v5275
    %v5282 = vunpack.c.l.bf16 %v5276
    %v5283 = vsub.f32 %v3175, %v5277
    %v5284 = vsub.f32 %v3176, %v5278
    %v5285 = vsub.f32 %v3177, %v5279
    %v5286 = vsub.f32 %v3178, %v5280
    %v5287 = vsub.f32 %v3179, %v5281
    %v5288 = vsub.f32 %v3180, %v5282
    %v5289 = vpack.c.bf16 %v5285, %v5283
    %v5290 = vpack.c.bf16 %v5286, %v5284
    %v5291 = vpack.c.bf16 %v5287, %v5287
    %v5292 = vpack.c.bf16 %v5288, %v5288
    %v5294 = vsel %vm3213, %v5290, 0
    %v5297 = vsel %vm3213, %v5292, 0
    %5299 = vmatprep.subr.bf16.mxu0 %v941
    %5300 = vmatpush1.bf16.msra.mxu0 %v940
    %5301 = vmatprep.subr.bf16.mxu0 %v939
    %5302 = vmatpush1.bf16.msra.mxu0 %v938
    %5303 = vmatprep.subr.bf16.mxu0 %v937
    %5304 = vmatpush1.bf16.msra.mxu0 %v936
    %5305 = vmatprep.subr.bf16.mxu0 %v935
    %5306 = vmatpush1.bf16.msra.mxu0 %v934
    %5307 = vmatprep.subr.bf16.mxu0 %v933
    %5308 = vmatpush1.bf16.msra.mxu0 %v932
    %5309 = vmatprep.subr.bf16.mxu0 %v931
    %5310 = vmatpush1.bf16.msra.mxu0 %v930
    %5311 = vmatprep.subr.bf16.mxu0 %v929
    %5312 = vmatpush1.bf16.msra.mxu0 %v928
    %5313 = vmatprep.subr.bf16.mxu0 %v927
    %5314 = vmatpush1.bf16.msra.mxu0 %v926
    %5315 = vmatprep.subr.bf16.mxu0 0
    %5316 = vmatpush2.bf16.msra.mxu0 0
    %5317 = vmatprep.subr.bf16.mxu0 0
    %5318 = vmatpush2.bf16.msra.mxu0 0
    %5319 = vmatprep.subr.bf16.mxu0 0
    %5320 = vmatpush2.bf16.msra.mxu0 0
    %5321 = vmatprep.subr.bf16.mxu0 0
    %5322 = vmatpush2.bf16.msra.mxu0 0
    %5323 = vmatprep.subr.bf16.mxu0 0
    %5324 = vmatpush2.bf16.msra.mxu0 0
    %5325 = vmatprep.subr.bf16.mxu0 %v4223
    %5326 = vmatpush2.bf16.msra.mxu0 %v4220
    %5327 = vmatprep.subr.bf16.mxu0 %v945
    %5328 = vmatpush2.bf16.msra.mxu0 %v944
    %5329 = vmatprep.subr.bf16.mxu0 %v943
    %5330 = vmatpush2.bf16.msra.mxu0 %v942
    %5331 = vmatprep.mubr.bf16.mxu0 %v3464
    %5332 = vmatmul.mubr.bf16.gmra.mxu0 %v3456
    %v5333 = vpop.f32.mrf.mxu0
    %v5334 = vadd.f32 0.0, %v5333
    %v5335 = vpop.f32.mrf.mxu0
    %v5336 = vadd.f32 0.0, %v5335
    %v5337 = vpop.f32.mrf.mxu0
    %v5338 = vadd.f32 0.0, %v5337
    %v5339 = vpop.f32.mrf.mxu0
    %v5340 = vadd.f32 0.0, %v5339
    %5341 = vmatprep.mubr.bf16.mxu0 %v5294
    %5342 = vmatmul.mubr.bf16.gmra.mxu0 %v5289
    %v5343 = vpop.f32.mrf.mxu0
    %v5344 = vadd.f32 0.0, %v5343
    %v5345 = vpop.f32.mrf.mxu0
    %v5346 = vadd.f32 0.0, %v5345
    %v5347 = vpop.f32.mrf.mxu0
    %v5348 = vadd.f32 0.0, %v5347
    %v5349 = vpop.f32.mrf.mxu0
    %v5350 = vadd.f32 0.0, %v5349
    %5351 = vmatprep.mubr.bf16.mxu0 %v5297
    %5352 = vmatmul.mubr.bf16.gmra.mxu0 %v5291
    %v5353 = vpop.f32.mrf.mxu0
    %v5354 = vadd.f32 0.0, %v5353
    %v5355 = vpop.f32.mrf.mxu0
    %v5356 = vadd.f32 0.0, %v5355
    %v5357 = vpop.f32.mrf.mxu0
    %v5358 = vpop.f32.mrf.mxu0
    %5359 = vdwg.mxu0
    %v5361 = vsel %vm3213, %v5274, 0
    %v5364 = vsel %vm3213, %v5276, 0
    %5366 = vmatprep.subr.bf16.mxu0 %v1047
    %5367 = vmatpush1.bf16.msra.mxu0 %v1046
    %5368 = vmatprep.subr.bf16.mxu0 %v1045
    %5369 = vmatpush1.bf16.msra.mxu0 %v1044
    %5370 = vmatprep.subr.bf16.mxu0 %v1043
    %5371 = vmatpush1.bf16.msra.mxu0 %v1042
    %5372 = vmatprep.subr.bf16.mxu0 %v1041
    %5373 = vmatpush1.bf16.msra.mxu0 %v1040
    %5374 = vmatprep.subr.bf16.mxu0 %v1039
    %5375 = vmatpush1.bf16.msra.mxu0 %v1038
    %5376 = vmatprep.subr.bf16.mxu0 %v1037
    %5377 = vmatpush1.bf16.msra.mxu0 %v1036
    %5378 = vmatprep.subr.bf16.mxu0 %v1035
    %5379 = vmatpush1.bf16.msra.mxu0 %v1034
    %5380 = vmatprep.subr.bf16.mxu0 %v1033
    %5381 = vmatpush1.bf16.msra.mxu0 %v1032
    %5382 = vmatprep.subr.bf16.mxu0 0
    %5383 = vmatpush2.bf16.msra.mxu0 0
    %5384 = vmatprep.subr.bf16.mxu0 0
    %5385 = vmatpush2.bf16.msra.mxu0 0
    %5386 = vmatprep.subr.bf16.mxu0 0
    %5387 = vmatpush2.bf16.msra.mxu0 0
    %5388 = vmatprep.subr.bf16.mxu0 0
    %5389 = vmatpush2.bf16.msra.mxu0 0
    %5390 = vmatprep.subr.bf16.mxu0 0
    %5391 = vmatpush2.bf16.msra.mxu0 0
    %5392 = vmatprep.subr.bf16.mxu0 %v4296
    %5393 = vmatpush2.bf16.msra.mxu0 %v4293
    %5394 = vmatprep.subr.bf16.mxu0 %v1051
    %5395 = vmatpush2.bf16.msra.mxu0 %v1050
    %5396 = vmatprep.subr.bf16.mxu0 %v1049
    %5397 = vmatpush2.bf16.msra.mxu0 %v1048
    %5398 = vmatprep.mubr.bf16.mxu0 %v3540
    %5399 = vmatmul.mubr.bf16.gmra.mxu0 %v3430
    %v5400 = vpop.f32.mrf.mxu0
    %v5401 = vadd.f32 %v5334, %v5400
    %v5402 = vpop.f32.mrf.mxu0
    %v5403 = vadd.f32 %v5336, %v5402
    %v5404 = vpop.f32.mrf.mxu0
    %v5405 = vadd.f32 %v5338, %v5404
    %v5406 = vpop.f32.mrf.mxu0
    %v5407 = vadd.f32 %v5340, %v5406
    %5408 = vmatprep.mubr.bf16.mxu0 %v5361
    %5409 = vmatmul.mubr.bf16.gmra.mxu0 %v5273
    %v5410 = vpop.f32.mrf.mxu0
    %v5411 = vadd.f32 %v5344, %v5410
    %v5412 = vpop.f32.mrf.mxu0
    %v5413 = vadd.f32 %v5346, %v5412
    %v5414 = vpop.f32.mrf.mxu0
    %v5415 = vadd.f32 %v5348, %v5414
    %v5416 = vpop.f32.mrf.mxu0
    %v5417 = vadd.f32 %v5350, %v5416
    %5418 = vmatprep.mubr.bf16.mxu0 %v5364
    %5419 = vmatmul.mubr.bf16.gmra.mxu0 %v5275
    %v5420 = vpop.f32.mrf.mxu0
    %v5421 = vadd.f32 %v5354, %v5420
    %v5422 = vpop.f32.mrf.mxu0
    %v5423 = vadd.f32 %v5356, %v5422
    %v5424 = vpop.f32.mrf.mxu0
    %v5425 = vpop.f32.mrf.mxu0
    %5426 = vdwg.mxu0
    %5427 = vmatprep.subr.bf16.mxu0 %v941
    %5428 = vmatpush1.bf16.msra.mxu0 %v940
    %5429 = vmatprep.subr.bf16.mxu0 %v939
    %5430 = vmatpush1.bf16.msra.mxu0 %v938
    %5431 = vmatprep.subr.bf16.mxu0 %v937
    %5432 = vmatpush1.bf16.msra.mxu0 %v936
    %5433 = vmatprep.subr.bf16.mxu0 %v935
    %5434 = vmatpush1.bf16.msra.mxu0 %v934
    %5435 = vmatprep.subr.bf16.mxu0 %v933
    %5436 = vmatpush1.bf16.msra.mxu0 %v932
    %5437 = vmatprep.subr.bf16.mxu0 %v931
    %5438 = vmatpush1.bf16.msra.mxu0 %v930
    %5439 = vmatprep.subr.bf16.mxu0 %v929
    %5440 = vmatpush1.bf16.msra.mxu0 %v928
    %5441 = vmatprep.subr.bf16.mxu0 %v927
    %5442 = vmatpush1.bf16.msra.mxu0 %v926
    %5443 = vmatprep.subr.bf16.mxu0 0
    %5444 = vmatpush2.bf16.msra.mxu0 0
    %5445 = vmatprep.subr.bf16.mxu0 0
    %5446 = vmatpush2.bf16.msra.mxu0 0
    %5447 = vmatprep.subr.bf16.mxu0 0
    %5448 = vmatpush2.bf16.msra.mxu0 0
    %5449 = vmatprep.subr.bf16.mxu0 0
    %5450 = vmatpush2.bf16.msra.mxu0 0
    %5451 = vmatprep.subr.bf16.mxu0 0
    %5452 = vmatpush2.bf16.msra.mxu0 0
    %5453 = vmatprep.subr.bf16.mxu0 %v4223
    %5454 = vmatpush2.bf16.msra.mxu0 %v4220
    %5455 = vmatprep.subr.bf16.mxu0 %v945
    %5456 = vmatpush2.bf16.msra.mxu0 %v944
    %5457 = vmatprep.subr.bf16.mxu0 %v943
    %5458 = vmatpush2.bf16.msra.mxu0 %v942
    %5459 = vmatprep.mubr.bf16.mxu0 %v3540
    %5460 = vmatmul.mubr.bf16.gmra.mxu0 %v3430
    %v5461 = vpop.f32.mrf.mxu0
    %v5462 = vadd.f32 %v5401, %v5461
    %v5463 = vpop.f32.mrf.mxu0
    %v5464 = vadd.f32 %v5403, %v5463
    %v5465 = vpop.f32.mrf.mxu0
    %v5466 = vadd.f32 %v5405, %v5465
    %v5467 = vpop.f32.mrf.mxu0
    %v5468 = vadd.f32 %v5407, %v5467
    %5469 = vmatprep.mubr.bf16.mxu0 %v5361
    %5470 = vmatmul.mubr.bf16.gmra.mxu0 %v5273
    %v5471 = vpop.f32.mrf.mxu0
    %v5472 = vadd.f32 %v5411, %v5471
    %v5473 = vpop.f32.mrf.mxu0
    %v5474 = vadd.f32 %v5413, %v5473
    %v5475 = vpop.f32.mrf.mxu0
    %v5476 = vadd.f32 %v5415, %v5475
    %v5477 = vpop.f32.mrf.mxu0
    %v5478 = vadd.f32 %v5417, %v5477
    %5479 = vmatprep.mubr.bf16.mxu0 %v5364
    %5480 = vmatmul.mubr.bf16.gmra.mxu0 %v5275
    %v5481 = vpop.f32.mrf.mxu0
    %v5482 = vadd.f32 %v5421, %v5481
    %v5483 = vpop.f32.mrf.mxu0
    %v5484 = vadd.f32 %v5423, %v5483
    %v5485 = vpop.f32.mrf.mxu0
    %v5486 = vpop.f32.mrf.mxu0
    %5487 = vdwg.mxu0
    %v5488 = vadd.f32 %v5263, %v5462
    %v5489 = vadd.f32 %v5264, %v5464
    %v5490 = vadd.f32 %v5265, %v5466
    %v5491 = vadd.f32 %v5266, %v5468
    %v5492 = vadd.f32 %v5267, %v5472
    %v5493 = vadd.f32 %v5268, %v5474
    %v5494 = vadd.f32 %v5269, %v5476
    %v5495 = vadd.f32 %v5270, %v5478
    %v5496 = vadd.f32 %v5271, %v5482
    %v5497 = vadd.f32 %v5272, %v5484
    %v5498 = vadd.f32 %v5488, %v4434
    %v5499 = vadd.f32 %v5489, %v4438
    %v5500 = vadd.f32 %v5490, %v4434
    %v5501 = vadd.f32 %v5491, %v4438
    %v5502 = vadd.f32 %v5492, %v4434
    %v5503 = vadd.f32 %v5493, %v4438
    %v5504 = vadd.f32 %v5494, %v4434
    %v5505 = vadd.f32 %v5495, %v4438
    %v5506 = vadd.f32 %v5496, %v4434
    %v5507 = vadd.f32 %v5497, %v4438
    %v5508 = vsub.f32 0.0, %v5498
    %v5509 = vsub.f32 0.0, %v5499
    %v5510 = vsub.f32 0.0, %v5500
    %v5511 = vsub.f32 0.0, %v5501
    %v5512 = vsub.f32 0.0, %v5502
    %v5513 = vsub.f32 0.0, %v5503
    %v5514 = vsub.f32 0.0, %v5504
    %v5515 = vsub.f32 0.0, %v5505
    %v5516 = vsub.f32 0.0, %v5506
    %v5517 = vsub.f32 0.0, %v5507
    %v5518 = vmul.f32 %v5508, 1.442695
    %v5519 = vpow.pop %v5518
    %v5520 = vmul.f32 %v5509, 1.442695
    %v5521 = vpow.pop %v5520
    %v5522 = vmul.f32 %v5510, 1.442695
    %v5523 = vpow.pop %v5522
    %v5524 = vmul.f32 %v5511, 1.442695
    %v5525 = vpow.pop %v5524
    %v5526 = vmul.f32 %v5512, 1.442695
    %v5527 = vpow.pop %v5526
    %v5528 = vmul.f32 %v5513, 1.442695
    %v5529 = vpow.pop %v5528
    %v5530 = vmul.f32 %v5514, 1.442695
    %v5531 = vpow.pop %v5530
    %v5532 = vmul.f32 %v5515, 1.442695
    %v5533 = vpow.pop %v5532
    %v5534 = vmul.f32 %v5516, 1.442695
    %v5535 = vpow.pop %v5534
    %v5536 = vmul.f32 %v5517, 1.442695
    %v5537 = vpow.pop %v5536
    %v5538 = vadd.f32 %v5519, 1.0
    %v5539 = vadd.f32 %v5521, 1.0
    %v5540 = vadd.f32 %v5523, 1.0
    %v5541 = vadd.f32 %v5525, 1.0
    %v5542 = vadd.f32 %v5527, 1.0
    %v5543 = vadd.f32 %v5529, 1.0
    %v5544 = vadd.f32 %v5531, 1.0
    %v5545 = vadd.f32 %v5533, 1.0
    %v5546 = vadd.f32 %v5535, 1.0
    %v5547 = vadd.f32 %v5537, 1.0
    %v5548 = vrcp.pop %v5538
    %v5549 = vmul.f32 1.0, %v5548
    %v5550 = vrcp.pop %v5539
    %v5551 = vmul.f32 1.0, %v5550
    %v5552 = vrcp.pop %v5540
    %v5553 = vmul.f32 1.0, %v5552
    %v5554 = vrcp.pop %v5541
    %v5555 = vmul.f32 1.0, %v5554
    %v5556 = vrcp.pop %v5542
    %v5557 = vmul.f32 1.0, %v5556
    %v5558 = vrcp.pop %v5543
    %v5559 = vmul.f32 1.0, %v5558
    %v5560 = vrcp.pop %v5544
    %v5561 = vmul.f32 1.0, %v5560
    %v5562 = vrcp.pop %v5545
    %v5563 = vmul.f32 1.0, %v5562
    %v5564 = vrcp.pop %v5546
    %v5565 = vmul.f32 1.0, %v5564
    %v5566 = vrcp.pop %v5547
    %v5567 = vmul.f32 1.0, %v5566
    %v5568 = vadd.f32 %v4492, %v5549
    %v5569 = vadd.f32 %v4494, %v5551
    %v5570 = vadd.f32 %v4496, %v5553
    %v5571 = vadd.f32 %v4498, %v5555
    %v5572 = vadd.f32 %v4500, %v5557
    %v5573 = vadd.f32 %v4502, %v5559
    %v5574 = vadd.f32 %v4504, %v5561
    %v5575 = vadd.f32 %v4506, %v5563
    %v5576 = vadd.f32 %v4508, %v5565
    %v5577 = vadd.f32 %v4510, %v5567
    %v5578 = vpack.c.bf16 %v5568, %v5568
    %v5579 = vpack.c.bf16 %v5569, %v5569
    %v5580 = vunpack.c.l.bf16 %v5578
    %v5581 = vunpack.c.l.bf16 %v5579
    %v5582 = vsub.f32 %v5568, %v5580
    %v5583 = vsub.f32 %v5569, %v5581
    %v5584 = vpack.c.bf16 %v5582, %v5582
    %v5585 = vpack.c.bf16 %v5583, %v5583
    %v5587 = vsel %vm1624, %v5585, 0
    %5589 = vmatprep.subr.bf16.mxu0 0
    %5590 = vmatpush1.bf16.msra.mxu0 %v1081
    %5591 = vmatprep.subr.bf16.mxu0 0
    %5592 = vmatpush1.bf16.msra.mxu0 %v1080
    %5593 = vmatprep.subr.bf16.mxu0 0
    %5594 = vmatpush1.bf16.msra.mxu0 %v1079
    %5595 = vmatprep.subr.bf16.mxu0 0
    %5596 = vmatpush1.bf16.msra.mxu0 %v1078
    %5597 = vmatprep.subr.bf16.mxu0 0
    %5598 = vmatpush1.bf16.msra.mxu0 %v1077
    %5599 = vmatprep.subr.bf16.mxu0 0
    %5600 = vmatpush1.bf16.msra.mxu0 %v1076
    %5601 = vmatprep.subr.bf16.mxu0 0
    %5602 = vmatpush1.bf16.msra.mxu0 %v1075
    %5603 = vmatprep.subr.bf16.mxu0 0
    %5604 = vmatpush1.bf16.msra.mxu0 %v1074
    %5605 = vmatprep.subr.bf16.mxu0 0
    %5606 = vmatpush2.bf16.msra.mxu0 0
    %5607 = vmatprep.subr.bf16.mxu0 0
    %5608 = vmatpush2.bf16.msra.mxu0 0
    %5609 = vmatprep.subr.bf16.mxu0 0
    %5610 = vmatpush2.bf16.msra.mxu0 0
    %5611 = vmatprep.subr.bf16.mxu0 0
    %5612 = vmatpush2.bf16.msra.mxu0 0
    %5613 = vmatprep.subr.bf16.mxu0 0
    %5614 = vmatpush2.bf16.msra.mxu0 0
    %5615 = vmatprep.subr.bf16.mxu0 0
    %5616 = vmatpush2.bf16.msra.mxu0 0
    %5617 = vmatprep.subr.bf16.mxu0 0
    %5618 = vmatpush2.bf16.msra.mxu0 %v1083
    %5619 = vmatprep.subr.bf16.mxu0 0
    %5620 = vmatpush2.bf16.msra.mxu0 %v1082
    %5621 = vmatprep.mubr.bf16.mxu0 %v5587
    %5622 = vmatmul.mubr.bf16.gmra.mxu0 %v5584
    %v5623 = vpop.f32.mrf.mxu0
    %v5624 = vadd.f32 0.0, %v5623
    %v5625 = vpop.f32.mrf.mxu0
    %v5626 = vpop.f32.mrf.mxu0
    %v5627 = vpop.f32.mrf.mxu0
    %5628 = vdwg.mxu0
    %v5630 = vsel %vm1624, %v5579, 0
    %5632 = vmatprep.subr.bf16.mxu0 0
    %5633 = vmatpush1.bf16.msra.mxu0 %v1131
    %5634 = vmatprep.subr.bf16.mxu0 0
    %5635 = vmatpush1.bf16.msra.mxu0 %v1130
    %5636 = vmatprep.subr.bf16.mxu0 0
    %5637 = vmatpush1.bf16.msra.mxu0 %v1129
    %5638 = vmatprep.subr.bf16.mxu0 0
    %5639 = vmatpush1.bf16.msra.mxu0 %v1128
    %5640 = vmatprep.subr.bf16.mxu0 0
    %5641 = vmatpush1.bf16.msra.mxu0 %v1127
    %5642 = vmatprep.subr.bf16.mxu0 0
    %5643 = vmatpush1.bf16.msra.mxu0 %v1126
    %5644 = vmatprep.subr.bf16.mxu0 0
    %5645 = vmatpush1.bf16.msra.mxu0 %v1125
    %5646 = vmatprep.subr.bf16.mxu0 0
    %5647 = vmatpush1.bf16.msra.mxu0 %v1124
    %5648 = vmatprep.subr.bf16.mxu0 0
    %5649 = vmatpush2.bf16.msra.mxu0 0
    %5650 = vmatprep.subr.bf16.mxu0 0
    %5651 = vmatpush2.bf16.msra.mxu0 0
    %5652 = vmatprep.subr.bf16.mxu0 0
    %5653 = vmatpush2.bf16.msra.mxu0 0
    %5654 = vmatprep.subr.bf16.mxu0 0
    %5655 = vmatpush2.bf16.msra.mxu0 0
    %5656 = vmatprep.subr.bf16.mxu0 0
    %5657 = vmatpush2.bf16.msra.mxu0 0
    %5658 = vmatprep.subr.bf16.mxu0 0
    %5659 = vmatpush2.bf16.msra.mxu0 0
    %5660 = vmatprep.subr.bf16.mxu0 0
    %5661 = vmatpush2.bf16.msra.mxu0 %v1133
    %5662 = vmatprep.subr.bf16.mxu0 0
    %5663 = vmatpush2.bf16.msra.mxu0 %v1132
    %5664 = vmatprep.mubr.bf16.mxu0 %v5630
    %5665 = vmatmul.mubr.bf16.gmra.mxu0 %v5578
    %v5666 = vpop.f32.mrf.mxu0
    %v5667 = vadd.f32 %v5624, %v5666
    %v5668 = vpop.f32.mrf.mxu0
    %v5669 = vpop.f32.mrf.mxu0
    %v5670 = vpop.f32.mrf.mxu0
    %5671 = vdwg.mxu0
    %5672 = vmatprep.subr.bf16.mxu0 0
    %5673 = vmatpush1.bf16.msra.mxu0 %v1081
    %5674 = vmatprep.subr.bf16.mxu0 0
    %5675 = vmatpush1.bf16.msra.mxu0 %v1080
    %5676 = vmatprep.subr.bf16.mxu0 0
    %5677 = vmatpush1.bf16.msra.mxu0 %v1079
    %5678 = vmatprep.subr.bf16.mxu0 0
    %5679 = vmatpush1.bf16.msra.mxu0 %v1078
    %5680 = vmatprep.subr.bf16.mxu0 0
    %5681 = vmatpush1.bf16.msra.mxu0 %v1077
    %5682 = vmatprep.subr.bf16.mxu0 0
    %5683 = vmatpush1.bf16.msra.mxu0 %v1076
    %5684 = vmatprep.subr.bf16.mxu0 0
    %5685 = vmatpush1.bf16.msra.mxu0 %v1075
    %5686 = vmatprep.subr.bf16.mxu0 0
    %5687 = vmatpush1.bf16.msra.mxu0 %v1074
    %5688 = vmatprep.subr.bf16.mxu0 0
    %5689 = vmatpush2.bf16.msra.mxu0 0
    %5690 = vmatprep.subr.bf16.mxu0 0
    %5691 = vmatpush2.bf16.msra.mxu0 0
    %5692 = vmatprep.subr.bf16.mxu0 0
    %5693 = vmatpush2.bf16.msra.mxu0 0
    %5694 = vmatprep.subr.bf16.mxu0 0
    %5695 = vmatpush2.bf16.msra.mxu0 0
    %5696 = vmatprep.subr.bf16.mxu0 0
    %5697 = vmatpush2.bf16.msra.mxu0 0
    %5698 = vmatprep.subr.bf16.mxu0 0
    %5699 = vmatpush2.bf16.msra.mxu0 0
    %5700 = vmatprep.subr.bf16.mxu0 0
    %5701 = vmatpush2.bf16.msra.mxu0 %v1083
    %5702 = vmatprep.subr.bf16.mxu0 0
    %5703 = vmatpush2.bf16.msra.mxu0 %v1082
    %5704 = vmatprep.mubr.bf16.mxu0 %v5630
    %5705 = vmatmul.mubr.bf16.gmra.mxu0 %v5578
    %v5706 = vpop.f32.mrf.mxu0
    %v5707 = vadd.f32 %v5667, %v5706
    %v5708 = vpop.f32.mrf.mxu0
    %v5709 = vpop.f32.mrf.mxu0
    %v5710 = vpop.f32.mrf.mxu0
    %5711 = vdwg.mxu0
    %v5712 = vpack.c.bf16 %v5570, %v5570
    %v5713 = vpack.c.bf16 %v5571, %v5571
    %v5714 = vunpack.c.l.bf16 %v5712
    %v5715 = vunpack.c.l.bf16 %v5713
    %v5716 = vsub.f32 %v5570, %v5714
    %v5717 = vsub.f32 %v5571, %v5715
    %v5718 = vpack.c.bf16 %v5716, %v5716
    %v5719 = vpack.c.bf16 %v5717, %v5717
    %v5721 = vsel %vm1624, %v5719, 0
    %5723 = vmatprep.subr.bf16.mxu0 0
    %5724 = vmatpush1.bf16.msra.mxu0 %v1162
    %5725 = vmatprep.subr.bf16.mxu0 0
    %5726 = vmatpush1.bf16.msra.mxu0 %v1161
    %5727 = vmatprep.subr.bf16.mxu0 0
    %5728 = vmatpush1.bf16.msra.mxu0 %v1160
    %5729 = vmatprep.subr.bf16.mxu0 0
    %5730 = vmatpush1.bf16.msra.mxu0 %v1159
    %5731 = vmatprep.subr.bf16.mxu0 0
    %5732 = vmatpush1.bf16.msra.mxu0 %v1158
    %5733 = vmatprep.subr.bf16.mxu0 0
    %5734 = vmatpush1.bf16.msra.mxu0 %v1157
    %5735 = vmatprep.subr.bf16.mxu0 0
    %5736 = vmatpush1.bf16.msra.mxu0 %v1156
    %5737 = vmatprep.subr.bf16.mxu0 0
    %5738 = vmatpush1.bf16.msra.mxu0 %v1155
    %5739 = vmatprep.subr.bf16.mxu0 0
    %5740 = vmatpush2.bf16.msra.mxu0 0
    %5741 = vmatprep.subr.bf16.mxu0 0
    %5742 = vmatpush2.bf16.msra.mxu0 0
    %5743 = vmatprep.subr.bf16.mxu0 0
    %5744 = vmatpush2.bf16.msra.mxu0 0
    %5745 = vmatprep.subr.bf16.mxu0 0
    %5746 = vmatpush2.bf16.msra.mxu0 0
    %5747 = vmatprep.subr.bf16.mxu0 0
    %5748 = vmatpush2.bf16.msra.mxu0 0
    %5749 = vmatprep.subr.bf16.mxu0 0
    %5750 = vmatpush2.bf16.msra.mxu0 0
    %5751 = vmatprep.subr.bf16.mxu0 0
    %5752 = vmatpush2.bf16.msra.mxu0 %v1164
    %5753 = vmatprep.subr.bf16.mxu0 0
    %5754 = vmatpush2.bf16.msra.mxu0 %v1163
    %5755 = vmatprep.mubr.bf16.mxu0 %v5721
    %5756 = vmatmul.mubr.bf16.gmra.mxu0 %v5718
    %v5757 = vpop.f32.mrf.mxu0
    %v5758 = vadd.f32 0.0, %v5757
    %v5759 = vpop.f32.mrf.mxu0
    %v5760 = vpop.f32.mrf.mxu0
    %v5761 = vpop.f32.mrf.mxu0
    %5762 = vdwg.mxu0
    %v5764 = vsel %vm1624, %v5713, 0
    %5766 = vmatprep.subr.bf16.mxu0 0
    %5767 = vmatpush1.bf16.msra.mxu0 %v1212
    %5768 = vmatprep.subr.bf16.mxu0 0
    %5769 = vmatpush1.bf16.msra.mxu0 %v1211
    %5770 = vmatprep.subr.bf16.mxu0 0
    %5771 = vmatpush1.bf16.msra.mxu0 %v1210
    %5772 = vmatprep.subr.bf16.mxu0 0
    %5773 = vmatpush1.bf16.msra.mxu0 %v1209
    %5774 = vmatprep.subr.bf16.mxu0 0
    %5775 = vmatpush1.bf16.msra.mxu0 %v1208
    %5776 = vmatprep.subr.bf16.mxu0 0
    %5777 = vmatpush1.bf16.msra.mxu0 %v1207
    %5778 = vmatprep.subr.bf16.mxu0 0
    %5779 = vmatpush1.bf16.msra.mxu0 %v1206
    %5780 = vmatprep.subr.bf16.mxu0 0
    %5781 = vmatpush1.bf16.msra.mxu0 %v1205
    %5782 = vmatprep.subr.bf16.mxu0 0
    %5783 = vmatpush2.bf16.msra.mxu0 0
    %5784 = vmatprep.subr.bf16.mxu0 0
    %5785 = vmatpush2.bf16.msra.mxu0 0
    %5786 = vmatprep.subr.bf16.mxu0 0
    %5787 = vmatpush2.bf16.msra.mxu0 0
    %5788 = vmatprep.subr.bf16.mxu0 0
    %5789 = vmatpush2.bf16.msra.mxu0 0
    %5790 = vmatprep.subr.bf16.mxu0 0
    %5791 = vmatpush2.bf16.msra.mxu0 0
    %5792 = vmatprep.subr.bf16.mxu0 0
    %5793 = vmatpush2.bf16.msra.mxu0 0
    %5794 = vmatprep.subr.bf16.mxu0 0
    %5795 = vmatpush2.bf16.msra.mxu0 %v1214
    %5796 = vmatprep.subr.bf16.mxu0 0
    %5797 = vmatpush2.bf16.msra.mxu0 %v1213
    %5798 = vmatprep.mubr.bf16.mxu0 %v5764
    %5799 = vmatmul.mubr.bf16.gmra.mxu0 %v5712
    %v5800 = vpop.f32.mrf.mxu0
    %v5801 = vadd.f32 %v5758, %v5800
    %v5802 = vpop.f32.mrf.mxu0
    %v5803 = vpop.f32.mrf.mxu0
    %v5804 = vpop.f32.mrf.mxu0
    %5805 = vdwg.mxu0
    %5806 = vmatprep.subr.bf16.mxu0 0
    %5807 = vmatpush1.bf16.msra.mxu0 %v1162
    %5808 = vmatprep.subr.bf16.mxu0 0
    %5809 = vmatpush1.bf16.msra.mxu0 %v1161
    %5810 = vmatprep.subr.bf16.mxu0 0
    %5811 = vmatpush1.bf16.msra.mxu0 %v1160
    %5812 = vmatprep.subr.bf16.mxu0 0
    %5813 = vmatpush1.bf16.msra.mxu0 %v1159
    %5814 = vmatprep.subr.bf16.mxu0 0
    %5815 = vmatpush1.bf16.msra.mxu0 %v1158
    %5816 = vmatprep.subr.bf16.mxu0 0
    %5817 = vmatpush1.bf16.msra.mxu0 %v1157
    %5818 = vmatprep.subr.bf16.mxu0 0
    %5819 = vmatpush1.bf16.msra.mxu0 %v1156
    %5820 = vmatprep.subr.bf16.mxu0 0
    %5821 = vmatpush1.bf16.msra.mxu0 %v1155
    %5822 = vmatprep.subr.bf16.mxu0 0
    %5823 = vmatpush2.bf16.msra.mxu0 0
    %5824 = vmatprep.subr.bf16.mxu0 0
    %5825 = vmatpush2.bf16.msra.mxu0 0
    %5826 = vmatprep.subr.bf16.mxu0 0
    %5827 = vmatpush2.bf16.msra.mxu0 0
    %5828 = vmatprep.subr.bf16.mxu0 0
    %5829 = vmatpush2.bf16.msra.mxu0 0
    %5830 = vmatprep.subr.bf16.mxu0 0
    %5831 = vmatpush2.bf16.msra.mxu0 0
    %5832 = vmatprep.subr.bf16.mxu0 0
    %5833 = vmatpush2.bf16.msra.mxu0 0
    %5834 = vmatprep.subr.bf16.mxu0 0
    %5835 = vmatpush2.bf16.msra.mxu0 %v1164
    %5836 = vmatprep.subr.bf16.mxu0 0
    %5837 = vmatpush2.bf16.msra.mxu0 %v1163
    %5838 = vmatprep.mubr.bf16.mxu0 %v5764
    %5839 = vmatmul.mubr.bf16.gmra.mxu0 %v5712
    %v5840 = vpop.f32.mrf.mxu0
    %v5841 = vadd.f32 %v5801, %v5840
    %v5842 = vpop.f32.mrf.mxu0
    %v5843 = vpop.f32.mrf.mxu0
    %v5844 = vpop.f32.mrf.mxu0
    %5845 = vdwg.mxu0
    %v5846 = vadd.f32 %v5707, %v5841
    %v5847 = vpack.c.bf16 %v5572, %v5572
    %v5848 = vpack.c.bf16 %v5573, %v5573
    %v5849 = vunpack.c.l.bf16 %v5847
    %v5850 = vunpack.c.l.bf16 %v5848
    %v5851 = vsub.f32 %v5572, %v5849
    %v5852 = vsub.f32 %v5573, %v5850
    %v5853 = vpack.c.bf16 %v5851, %v5851
    %v5854 = vpack.c.bf16 %v5852, %v5852
    %v5856 = vsel %vm1624, %v5854, 0
    %5858 = vmatprep.subr.bf16.mxu0 0
    %5859 = vmatpush1.bf16.msra.mxu0 %v1243
    %5860 = vmatprep.subr.bf16.mxu0 0
    %5861 = vmatpush1.bf16.msra.mxu0 %v1242
    %5862 = vmatprep.subr.bf16.mxu0 0
    %5863 = vmatpush1.bf16.msra.mxu0 %v1241
    %5864 = vmatprep.subr.bf16.mxu0 0
    %5865 = vmatpush1.bf16.msra.mxu0 %v1240
    %5866 = vmatprep.subr.bf16.mxu0 0
    %5867 = vmatpush1.bf16.msra.mxu0 %v1239
    %5868 = vmatprep.subr.bf16.mxu0 0
    %5869 = vmatpush1.bf16.msra.mxu0 %v1238
    %5870 = vmatprep.subr.bf16.mxu0 0
    %5871 = vmatpush1.bf16.msra.mxu0 %v1237
    %5872 = vmatprep.subr.bf16.mxu0 0
    %5873 = vmatpush1.bf16.msra.mxu0 %v1236
    %5874 = vmatprep.subr.bf16.mxu0 0
    %5875 = vmatpush2.bf16.msra.mxu0 0
    %5876 = vmatprep.subr.bf16.mxu0 0
    %5877 = vmatpush2.bf16.msra.mxu0 0
    %5878 = vmatprep.subr.bf16.mxu0 0
    %5879 = vmatpush2.bf16.msra.mxu0 0
    %5880 = vmatprep.subr.bf16.mxu0 0
    %5881 = vmatpush2.bf16.msra.mxu0 0
    %5882 = vmatprep.subr.bf16.mxu0 0
    %5883 = vmatpush2.bf16.msra.mxu0 0
    %5884 = vmatprep.subr.bf16.mxu0 0
    %5885 = vmatpush2.bf16.msra.mxu0 0
    %5886 = vmatprep.subr.bf16.mxu0 0
    %5887 = vmatpush2.bf16.msra.mxu0 %v1245
    %5888 = vmatprep.subr.bf16.mxu0 0
    %5889 = vmatpush2.bf16.msra.mxu0 %v1244
    %5890 = vmatprep.mubr.bf16.mxu0 %v5856
    %5891 = vmatmul.mubr.bf16.gmra.mxu0 %v5853
    %v5892 = vpop.f32.mrf.mxu0
    %v5893 = vadd.f32 0.0, %v5892
    %v5894 = vpop.f32.mrf.mxu0
    %v5895 = vpop.f32.mrf.mxu0
    %v5896 = vpop.f32.mrf.mxu0
    %5897 = vdwg.mxu0
    %v5899 = vsel %vm1624, %v5848, 0
    %5901 = vmatprep.subr.bf16.mxu0 0
    %5902 = vmatpush1.bf16.msra.mxu0 %v1293
    %5903 = vmatprep.subr.bf16.mxu0 0
    %5904 = vmatpush1.bf16.msra.mxu0 %v1292
    %5905 = vmatprep.subr.bf16.mxu0 0
    %5906 = vmatpush1.bf16.msra.mxu0 %v1291
    %5907 = vmatprep.subr.bf16.mxu0 0
    %5908 = vmatpush1.bf16.msra.mxu0 %v1290
    %5909 = vmatprep.subr.bf16.mxu0 0
    %5910 = vmatpush1.bf16.msra.mxu0 %v1289
    %5911 = vmatprep.subr.bf16.mxu0 0
    %5912 = vmatpush1.bf16.msra.mxu0 %v1288
    %5913 = vmatprep.subr.bf16.mxu0 0
    %5914 = vmatpush1.bf16.msra.mxu0 %v1287
    %5915 = vmatprep.subr.bf16.mxu0 0
    %5916 = vmatpush1.bf16.msra.mxu0 %v1286
    %5917 = vmatprep.subr.bf16.mxu0 0
    %5918 = vmatpush2.bf16.msra.mxu0 0
    %5919 = vmatprep.subr.bf16.mxu0 0
    %5920 = vmatpush2.bf16.msra.mxu0 0
    %5921 = vmatprep.subr.bf16.mxu0 0
    %5922 = vmatpush2.bf16.msra.mxu0 0
    %5923 = vmatprep.subr.bf16.mxu0 0
    %5924 = vmatpush2.bf16.msra.mxu0 0
    %5925 = vmatprep.subr.bf16.mxu0 0
    %5926 = vmatpush2.bf16.msra.mxu0 0
    %5927 = vmatprep.subr.bf16.mxu0 0
    %5928 = vmatpush2.bf16.msra.mxu0 0
    %5929 = vmatprep.subr.bf16.mxu0 0
    %5930 = vmatpush2.bf16.msra.mxu0 %v1295
    %5931 = vmatprep.subr.bf16.mxu0 0
    %5932 = vmatpush2.bf16.msra.mxu0 %v1294
    %5933 = vmatprep.mubr.bf16.mxu0 %v5899
    %5934 = vmatmul.mubr.bf16.gmra.mxu0 %v5847
    %v5935 = vpop.f32.mrf.mxu0
    %v5936 = vadd.f32 %v5893, %v5935
    %v5937 = vpop.f32.mrf.mxu0
    %v5938 = vpop.f32.mrf.mxu0
    %v5939 = vpop.f32.mrf.mxu0
    %5940 = vdwg.mxu0
    %5941 = vmatprep.subr.bf16.mxu0 0
    %5942 = vmatpush1.bf16.msra.mxu0 %v1243
    %5943 = vmatprep.subr.bf16.mxu0 0
    %5944 = vmatpush1.bf16.msra.mxu0 %v1242
    %5945 = vmatprep.subr.bf16.mxu0 0
    %5946 = vmatpush1.bf16.msra.mxu0 %v1241
    %5947 = vmatprep.subr.bf16.mxu0 0
    %5948 = vmatpush1.bf16.msra.mxu0 %v1240
    %5949 = vmatprep.subr.bf16.mxu0 0
    %5950 = vmatpush1.bf16.msra.mxu0 %v1239
    %5951 = vmatprep.subr.bf16.mxu0 0
    %5952 = vmatpush1.bf16.msra.mxu0 %v1238
    %5953 = vmatprep.subr.bf16.mxu0 0
    %5954 = vmatpush1.bf16.msra.mxu0 %v1237
    %5955 = vmatprep.subr.bf16.mxu0 0
    %5956 = vmatpush1.bf16.msra.mxu0 %v1236
    %5957 = vmatprep.subr.bf16.mxu0 0
    %5958 = vmatpush2.bf16.msra.mxu0 0
    %5959 = vmatprep.subr.bf16.mxu0 0
    %5960 = vmatpush2.bf16.msra.mxu0 0
    %5961 = vmatprep.subr.bf16.mxu0 0
    %5962 = vmatpush2.bf16.msra.mxu0 0
    %5963 = vmatprep.subr.bf16.mxu0 0
    %5964 = vmatpush2.bf16.msra.mxu0 0
    %5965 = vmatprep.subr.bf16.mxu0 0
    %5966 = vmatpush2.bf16.msra.mxu0 0
    %5967 = vmatprep.subr.bf16.mxu0 0
    %5968 = vmatpush2.bf16.msra.mxu0 0
    %5969 = vmatprep.subr.bf16.mxu0 0
    %5970 = vmatpush2.bf16.msra.mxu0 %v1245
    %5971 = vmatprep.subr.bf16.mxu0 0
    %5972 = vmatpush2.bf16.msra.mxu0 %v1244
    %5973 = vmatprep.mubr.bf16.mxu0 %v5899
    %5974 = vmatmul.mubr.bf16.gmra.mxu0 %v5847
    %v5975 = vpop.f32.mrf.mxu0
    %v5976 = vadd.f32 %v5936, %v5975
    %v5977 = vpop.f32.mrf.mxu0
    %v5978 = vpop.f32.mrf.mxu0
    %v5979 = vpop.f32.mrf.mxu0
    %5980 = vdwg.mxu0
    %v5981 = vadd.f32 %v5846, %v5976
    %v5982 = vpack.c.bf16 %v5574, %v5574
    %v5983 = vpack.c.bf16 %v5575, %v5575
    %v5984 = vunpack.c.l.bf16 %v5982
    %v5985 = vunpack.c.l.bf16 %v5983
    %v5986 = vsub.f32 %v5574, %v5984
    %v5987 = vsub.f32 %v5575, %v5985
    %v5988 = vpack.c.bf16 %v5986, %v5986
    %v5989 = vpack.c.bf16 %v5987, %v5987
    %v5991 = vsel %vm1624, %v5989, 0
    %5993 = vmatprep.subr.bf16.mxu0 0
    %5994 = vmatpush1.bf16.msra.mxu0 %v1324
    %5995 = vmatprep.subr.bf16.mxu0 0
    %5996 = vmatpush1.bf16.msra.mxu0 %v1323
    %5997 = vmatprep.subr.bf16.mxu0 0
    %5998 = vmatpush1.bf16.msra.mxu0 %v1322
    %5999 = vmatprep.subr.bf16.mxu0 0
    %6000 = vmatpush1.bf16.msra.mxu0 %v1321
    %6001 = vmatprep.subr.bf16.mxu0 0
    %6002 = vmatpush1.bf16.msra.mxu0 %v1320
    %6003 = vmatprep.subr.bf16.mxu0 0
    %6004 = vmatpush1.bf16.msra.mxu0 %v1319
    %6005 = vmatprep.subr.bf16.mxu0 0
    %6006 = vmatpush1.bf16.msra.mxu0 %v1318
    %6007 = vmatprep.subr.bf16.mxu0 0
    %6008 = vmatpush1.bf16.msra.mxu0 %v1317
    %6009 = vmatprep.subr.bf16.mxu0 0
    %6010 = vmatpush2.bf16.msra.mxu0 0
    %6011 = vmatprep.subr.bf16.mxu0 0
    %6012 = vmatpush2.bf16.msra.mxu0 0
    %6013 = vmatprep.subr.bf16.mxu0 0
    %6014 = vmatpush2.bf16.msra.mxu0 0
    %6015 = vmatprep.subr.bf16.mxu0 0
    %6016 = vmatpush2.bf16.msra.mxu0 0
    %6017 = vmatprep.subr.bf16.mxu0 0
    %6018 = vmatpush2.bf16.msra.mxu0 0
    %6019 = vmatprep.subr.bf16.mxu0 0
    %6020 = vmatpush2.bf16.msra.mxu0 0
    %6021 = vmatprep.subr.bf16.mxu0 0
    %6022 = vmatpush2.bf16.msra.mxu0 %v1326
    %6023 = vmatprep.subr.bf16.mxu0 0
    %6024 = vmatpush2.bf16.msra.mxu0 %v1325
    %6025 = vmatprep.mubr.bf16.mxu0 %v5991
    %6026 = vmatmul.mubr.bf16.gmra.mxu0 %v5988
    %v6027 = vpop.f32.mrf.mxu0
    %v6028 = vadd.f32 0.0, %v6027
    %v6029 = vpop.f32.mrf.mxu0
    %v6030 = vpop.f32.mrf.mxu0
    %v6031 = vpop.f32.mrf.mxu0
    %6032 = vdwg.mxu0
    %v6034 = vsel %vm1624, %v5983, 0
    %6036 = vmatprep.subr.bf16.mxu0 0
    %6037 = vmatpush1.bf16.msra.mxu0 %v1374
    %6038 = vmatprep.subr.bf16.mxu0 0
    %6039 = vmatpush1.bf16.msra.mxu0 %v1373
    %6040 = vmatprep.subr.bf16.mxu0 0
    %6041 = vmatpush1.bf16.msra.mxu0 %v1372
    %6042 = vmatprep.subr.bf16.mxu0 0
    %6043 = vmatpush1.bf16.msra.mxu0 %v1371
    %6044 = vmatprep.subr.bf16.mxu0 0
    %6045 = vmatpush1.bf16.msra.mxu0 %v1370
    %6046 = vmatprep.subr.bf16.mxu0 0
    %6047 = vmatpush1.bf16.msra.mxu0 %v1369
    %6048 = vmatprep.subr.bf16.mxu0 0
    %6049 = vmatpush1.bf16.msra.mxu0 %v1368
    %6050 = vmatprep.subr.bf16.mxu0 0
    %6051 = vmatpush1.bf16.msra.mxu0 %v1367
    %6052 = vmatprep.subr.bf16.mxu0 0
    %6053 = vmatpush2.bf16.msra.mxu0 0
    %6054 = vmatprep.subr.bf16.mxu0 0
    %6055 = vmatpush2.bf16.msra.mxu0 0
    %6056 = vmatprep.subr.bf16.mxu0 0
    %6057 = vmatpush2.bf16.msra.mxu0 0
    %6058 = vmatprep.subr.bf16.mxu0 0
    %6059 = vmatpush2.bf16.msra.mxu0 0
    %6060 = vmatprep.subr.bf16.mxu0 0
    %6061 = vmatpush2.bf16.msra.mxu0 0
    %6062 = vmatprep.subr.bf16.mxu0 0
    %6063 = vmatpush2.bf16.msra.mxu0 0
    %6064 = vmatprep.subr.bf16.mxu0 0
    %6065 = vmatpush2.bf16.msra.mxu0 %v1376
    %6066 = vmatprep.subr.bf16.mxu0 0
    %6067 = vmatpush2.bf16.msra.mxu0 %v1375
    %6068 = vmatprep.mubr.bf16.mxu0 %v6034
    %6069 = vmatmul.mubr.bf16.gmra.mxu0 %v5982
    %v6070 = vpop.f32.mrf.mxu0
    %v6071 = vadd.f32 %v6028, %v6070
    %v6072 = vpop.f32.mrf.mxu0
    %v6073 = vpop.f32.mrf.mxu0
    %v6074 = vpop.f32.mrf.mxu0
    %6075 = vdwg.mxu0
    %6076 = vmatprep.subr.bf16.mxu0 0
    %6077 = vmatpush1.bf16.msra.mxu0 %v1324
    %6078 = vmatprep.subr.bf16.mxu0 0
    %6079 = vmatpush1.bf16.msra.mxu0 %v1323
    %6080 = vmatprep.subr.bf16.mxu0 0
    %6081 = vmatpush1.bf16.msra.mxu0 %v1322
    %6082 = vmatprep.subr.bf16.mxu0 0
    %6083 = vmatpush1.bf16.msra.mxu0 %v1321
    %6084 = vmatprep.subr.bf16.mxu0 0
    %6085 = vmatpush1.bf16.msra.mxu0 %v1320
    %6086 = vmatprep.subr.bf16.mxu0 0
    %6087 = vmatpush1.bf16.msra.mxu0 %v1319
    %6088 = vmatprep.subr.bf16.mxu0 0
    %6089 = vmatpush1.bf16.msra.mxu0 %v1318
    %6090 = vmatprep.subr.bf16.mxu0 0
    %6091 = vmatpush1.bf16.msra.mxu0 %v1317
    %6092 = vmatprep.subr.bf16.mxu0 0
    %6093 = vmatpush2.bf16.msra.mxu0 0
    %6094 = vmatprep.subr.bf16.mxu0 0
    %6095 = vmatpush2.bf16.msra.mxu0 0
    %6096 = vmatprep.subr.bf16.mxu0 0
    %6097 = vmatpush2.bf16.msra.mxu0 0
    %6098 = vmatprep.subr.bf16.mxu0 0
    %6099 = vmatpush2.bf16.msra.mxu0 0
    %6100 = vmatprep.subr.bf16.mxu0 0
    %6101 = vmatpush2.bf16.msra.mxu0 0
    %6102 = vmatprep.subr.bf16.mxu0 0
    %6103 = vmatpush2.bf16.msra.mxu0 0
    %6104 = vmatprep.subr.bf16.mxu0 0
    %6105 = vmatpush2.bf16.msra.mxu0 %v1326
    %6106 = vmatprep.subr.bf16.mxu0 0
    %6107 = vmatpush2.bf16.msra.mxu0 %v1325
    %6108 = vmatprep.mubr.bf16.mxu0 %v6034
    %6109 = vmatmul.mubr.bf16.gmra.mxu0 %v5982
    %v6110 = vpop.f32.mrf.mxu0
    %v6111 = vadd.f32 %v6071, %v6110
    %v6112 = vpop.f32.mrf.mxu0
    %v6113 = vpop.f32.mrf.mxu0
    %v6114 = vpop.f32.mrf.mxu0
    %6115 = vdwg.mxu0
    %v6116 = vadd.f32 %v5981, %v6111
    %v6117 = vpack.c.bf16 %v5576, %v5576
    %v6118 = vpack.c.bf16 %v5577, %v5577
    %v6119 = vunpack.c.l.bf16 %v6117
    %v6120 = vunpack.c.l.bf16 %v6118
    %v6121 = vsub.f32 %v5576, %v6119
    %v6122 = vsub.f32 %v5577, %v6120
    %v6123 = vpack.c.bf16 %v6121, %v6121
    %v6124 = vpack.c.bf16 %v6122, %v6122
    %v6126 = vsel %vm1624, %v6124, 0
    %6128 = vmatprep.subr.bf16.mxu0 0
    %6129 = vmatpush1.bf16.msra.mxu0 %v1405
    %6130 = vmatprep.subr.bf16.mxu0 0
    %6131 = vmatpush1.bf16.msra.mxu0 %v1404
    %6132 = vmatprep.subr.bf16.mxu0 0
    %6133 = vmatpush1.bf16.msra.mxu0 %v1403
    %6134 = vmatprep.subr.bf16.mxu0 0
    %6135 = vmatpush1.bf16.msra.mxu0 %v1402
    %6136 = vmatprep.subr.bf16.mxu0 0
    %6137 = vmatpush1.bf16.msra.mxu0 %v1401
    %6138 = vmatprep.subr.bf16.mxu0 0
    %6139 = vmatpush1.bf16.msra.mxu0 %v1400
    %6140 = vmatprep.subr.bf16.mxu0 0
    %6141 = vmatpush1.bf16.msra.mxu0 %v1399
    %6142 = vmatprep.subr.bf16.mxu0 0
    %6143 = vmatpush1.bf16.msra.mxu0 %v1398
    %6144 = vmatprep.subr.bf16.mxu0 0
    %6145 = vmatpush2.bf16.msra.mxu0 0
    %6146 = vmatprep.subr.bf16.mxu0 0
    %6147 = vmatpush2.bf16.msra.mxu0 0
    %6148 = vmatprep.subr.bf16.mxu0 0
    %6149 = vmatpush2.bf16.msra.mxu0 0
    %6150 = vmatprep.subr.bf16.mxu0 0
    %6151 = vmatpush2.bf16.msra.mxu0 0
    %6152 = vmatprep.subr.bf16.mxu0 0
    %6153 = vmatpush2.bf16.msra.mxu0 0
    %6154 = vmatprep.subr.bf16.mxu0 0
    %6155 = vmatpush2.bf16.msra.mxu0 0
    %6156 = vmatprep.subr.bf16.mxu0 0
    %6157 = vmatpush2.bf16.msra.mxu0 %v1407
    %6158 = vmatprep.subr.bf16.mxu0 0
    %6159 = vmatpush2.bf16.msra.mxu0 %v1406
    %6160 = vmatprep.mubr.bf16.mxu0 %v6126
    %6161 = vmatmul.mubr.bf16.gmra.mxu0 %v6123
    %v6162 = vpop.f32.mrf.mxu0
    %v6163 = vadd.f32 0.0, %v6162
    %v6164 = vpop.f32.mrf.mxu0
    %v6165 = vpop.f32.mrf.mxu0
    %v6166 = vpop.f32.mrf.mxu0
    %6167 = vdwg.mxu0
    %v6169 = vsel %vm1624, %v6118, 0
    %6171 = vmatprep.subr.bf16.mxu0 0
    %6172 = vmatpush1.bf16.msra.mxu0 %v1455
    %6173 = vmatprep.subr.bf16.mxu0 0
    %6174 = vmatpush1.bf16.msra.mxu0 %v1454
    %6175 = vmatprep.subr.bf16.mxu0 0
    %6176 = vmatpush1.bf16.msra.mxu0 %v1453
    %6177 = vmatprep.subr.bf16.mxu0 0
    %6178 = vmatpush1.bf16.msra.mxu0 %v1452
    %6179 = vmatprep.subr.bf16.mxu0 0
    %6180 = vmatpush1.bf16.msra.mxu0 %v1451
    %6181 = vmatprep.subr.bf16.mxu0 0
    %6182 = vmatpush1.bf16.msra.mxu0 %v1450
    %6183 = vmatprep.subr.bf16.mxu0 0
    %6184 = vmatpush1.bf16.msra.mxu0 %v1449
    %6185 = vmatprep.subr.bf16.mxu0 0
    %6186 = vmatpush1.bf16.msra.mxu0 %v1448
    %6187 = vmatprep.subr.bf16.mxu0 0
    %6188 = vmatpush2.bf16.msra.mxu0 0
    %6189 = vmatprep.subr.bf16.mxu0 0
    %6190 = vmatpush2.bf16.msra.mxu0 0
    %6191 = vmatprep.subr.bf16.mxu0 0
    %6192 = vmatpush2.bf16.msra.mxu0 0
    %6193 = vmatprep.subr.bf16.mxu0 0
    %6194 = vmatpush2.bf16.msra.mxu0 0
    %6195 = vmatprep.subr.bf16.mxu0 0
    %6196 = vmatpush2.bf16.msra.mxu0 0
    %6197 = vmatprep.subr.bf16.mxu0 0
    %6198 = vmatpush2.bf16.msra.mxu0 0
    %6199 = vmatprep.subr.bf16.mxu0 0
    %6200 = vmatpush2.bf16.msra.mxu0 %v1457
    %6201 = vmatprep.subr.bf16.mxu0 0
    %6202 = vmatpush2.bf16.msra.mxu0 %v1456
    %6203 = vmatprep.mubr.bf16.mxu0 %v6169
    %6204 = vmatmul.mubr.bf16.gmra.mxu0 %v6117
    %v6205 = vpop.f32.mrf.mxu0
    %v6206 = vadd.f32 %v6163, %v6205
    %v6207 = vpop.f32.mrf.mxu0
    %v6208 = vpop.f32.mrf.mxu0
    %v6209 = vpop.f32.mrf.mxu0
    %6210 = vdwg.mxu0
    %6211 = vmatprep.subr.bf16.mxu0 0
    %6212 = vmatpush1.bf16.msra.mxu0 %v1405
    %6213 = vmatprep.subr.bf16.mxu0 0
    %6214 = vmatpush1.bf16.msra.mxu0 %v1404
    %6215 = vmatprep.subr.bf16.mxu0 0
    %6216 = vmatpush1.bf16.msra.mxu0 %v1403
    %6217 = vmatprep.subr.bf16.mxu0 0
    %6218 = vmatpush1.bf16.msra.mxu0 %v1402
    %6219 = vmatprep.subr.bf16.mxu0 0
    %6220 = vmatpush1.bf16.msra.mxu0 %v1401
    %6221 = vmatprep.subr.bf16.mxu0 0
    %6222 = vmatpush1.bf16.msra.mxu0 %v1400
    %6223 = vmatprep.subr.bf16.mxu0 0
    %6224 = vmatpush1.bf16.msra.mxu0 %v1399
    %6225 = vmatprep.subr.bf16.mxu0 0
    %6226 = vmatpush1.bf16.msra.mxu0 %v1398
    %6227 = vmatprep.subr.bf16.mxu0 0
    %6228 = vmatpush2.bf16.msra.mxu0 0
    %6229 = vmatprep.subr.bf16.mxu0 0
    %6230 = vmatpush2.bf16.msra.mxu0 0
    %6231 = vmatprep.subr.bf16.mxu0 0
    %6232 = vmatpush2.bf16.msra.mxu0 0
    %6233 = vmatprep.subr.bf16.mxu0 0
    %6234 = vmatpush2.bf16.msra.mxu0 0
    %6235 = vmatprep.subr.bf16.mxu0 0
    %6236 = vmatpush2.bf16.msra.mxu0 0
    %6237 = vmatprep.subr.bf16.mxu0 0
    %6238 = vmatpush2.bf16.msra.mxu0 0
    %6239 = vmatprep.subr.bf16.mxu0 0
    %6240 = vmatpush2.bf16.msra.mxu0 %v1407
    %6241 = vmatprep.subr.bf16.mxu0 0
    %6242 = vmatpush2.bf16.msra.mxu0 %v1406
    %6243 = vmatprep.mubr.bf16.mxu0 %v6169
    %6244 = vmatmul.mubr.bf16.gmra.mxu0 %v6117
    %v6245 = vpop.f32.mrf.mxu0
    %v6246 = vadd.f32 %v6206, %v6245
    %v6247 = vpop.f32.mrf.mxu0
    %v6248 = vpop.f32.mrf.mxu0
    %v6249 = vpop.f32.mrf.mxu0
    %6250 = vdwg.mxu0
    %v6251 = vadd.f32 %v6116, %v6246
    %v6252 = vld [vmem:[%s6] sm:$0x1]
    %v6254 = vlaneseq
    %v6255 = vshrl.u32 %v6254, 7
    %v6256 = vsub.s32 0, %v6255
    %v6257 = vrot.slane %v6252, %v6256
    %v6259 = vadd.f32 %v6251, %v6257
    %v6260 = vsub.f32 0.0, %v6259
    %v6261 = vmul.f32 %v6260, 1.442695
    %v6262 = vpow.pop %v6261
    %v6263 = vadd.f32 %v6262, 1.0
    %v6264 = vrcp.pop %v6263
    %v6265 = vmul.f32 1.0, %v6264
    %v6266 = vpack.c.bf16 %v6265, %v6265
    %v6267 = vunpack.c.l.bf16 %v6266
    %v6268 = vsub.f32 %v6265, %v6267
    %v6269 = vpack.c.bf16 %v6268, %v6268
    %vm6270 = vcmask 982016
    %v6272 = vsel %vm6270, %v6269, 0
    %v6275 = vsel %vm3223, %v1480, 0
    %6277 = vmatprep.subr.bf16.mxu0 0
    %6278 = vmatpush1.bf16.msra.mxu0 %v6275
    %6279 = vmatprep.subr.bf16.mxu0 0
    %6280 = vmatpush1.bf16.msra.mxu0 %v1479
    %6281 = vmatprep.subr.bf16.mxu0 0
    %6282 = vmatpush1.bf16.msra.mxu0 %v1478
    %6283 = vmatprep.subr.bf16.mxu0 0
    %6284 = vmatpush1.bf16.msra.mxu0 %v1477
    %6285 = vmatprep.subr.bf16.mxu0 0
    %6286 = vmatpush1.bf16.msra.mxu0 %v1476
    %6287 = vmatprep.subr.bf16.mxu0 0
    %6288 = vmatpush1.bf16.msra.mxu0 %v1475
    %6289 = vmatprep.subr.bf16.mxu0 0
    %6290 = vmatpush1.bf16.msra.mxu0 %v1474
    %6291 = vmatprep.subr.bf16.mxu0 0
    %6292 = vmatpush1.bf16.msra.mxu0 %v1473
    %6293 = vmatprep.subr.bf16.mxu0 0
    %6294 = vmatpush2.bf16.msra.mxu0 0
    %6295 = vmatprep.subr.bf16.mxu0 0
    %6296 = vmatpush2.bf16.msra.mxu0 0
    %6297 = vmatprep.subr.bf16.mxu0 0
    %6298 = vmatpush2.bf16.msra.mxu0 0
    %6299 = vmatprep.subr.bf16.mxu0 0
    %6300 = vmatpush2.bf16.msra.mxu0 0
    %6301 = vmatprep.subr.bf16.mxu0 0
    %6302 = vmatpush2.bf16.msra.mxu0 0
    %6303 = vmatprep.subr.bf16.mxu0 0
    %6304 = vmatpush2.bf16.msra.mxu0 0
    %6305 = vmatprep.subr.bf16.mxu0 0
    %6306 = vmatpush2.bf16.msra.mxu0 0
    %6307 = vmatprep.subr.bf16.mxu0 0
    %6308 = vmatpush2.bf16.msra.mxu0 0
    %6309 = vmatprep.mubr.bf16.mxu0 0
    %6310 = vmatmul.mubr.bf16.gmra.mxu0 %v6272
    %v6311 = vpop.f32.mrf.mxu0
    %v6312 = vadd.f32 0.0, %v6311
    %v6313 = vpop.f32.mrf.mxu0
    %v6314 = vpop.f32.mrf.mxu0
    %v6315 = vpop.f32.mrf.mxu0
    %6316 = vdwg.mxu0
    %v6318 = vsel %vm6270, %v6266, 0
    %v6321 = vsel %vm3223, %v1518, 0
    %6323 = vmatprep.subr.bf16.mxu0 0
    %6324 = vmatpush1.bf16.msra.mxu0 %v6321
    %6325 = vmatprep.subr.bf16.mxu0 0
    %6326 = vmatpush1.bf16.msra.mxu0 %v1517
    %6327 = vmatprep.subr.bf16.mxu0 0
    %6328 = vmatpush1.bf16.msra.mxu0 %v1516
    %6329 = vmatprep.subr.bf16.mxu0 0
    %6330 = vmatpush1.bf16.msra.mxu0 %v1515
    %6331 = vmatprep.subr.bf16.mxu0 0
    %6332 = vmatpush1.bf16.msra.mxu0 %v1514
    %6333 = vmatprep.subr.bf16.mxu0 0
    %6334 = vmatpush1.bf16.msra.mxu0 %v1513
    %6335 = vmatprep.subr.bf16.mxu0 0
    %6336 = vmatpush1.bf16.msra.mxu0 %v1512
    %6337 = vmatprep.subr.bf16.mxu0 0
    %6338 = vmatpush1.bf16.msra.mxu0 %v1511
    %6339 = vmatprep.subr.bf16.mxu0 0
    %6340 = vmatpush2.bf16.msra.mxu0 0
    %6341 = vmatprep.subr.bf16.mxu0 0
    %6342 = vmatpush2.bf16.msra.mxu0 0
    %6343 = vmatprep.subr.bf16.mxu0 0
    %6344 = vmatpush2.bf16.msra.mxu0 0
    %6345 = vmatprep.subr.bf16.mxu0 0
    %6346 = vmatpush2.bf16.msra.mxu0 0
    %6347 = vmatprep.subr.bf16.mxu0 0
    %6348 = vmatpush2.bf16.msra.mxu0 0
    %6349 = vmatprep.subr.bf16.mxu0 0
    %6350 = vmatpush2.bf16.msra.mxu0 0
    %6351 = vmatprep.subr.bf16.mxu0 0
    %6352 = vmatpush2.bf16.msra.mxu0 0
    %6353 = vmatprep.subr.bf16.mxu0 0
    %6354 = vmatpush2.bf16.msra.mxu0 0
    %6355 = vmatprep.mubr.bf16.mxu0 0
    %6356 = vmatmul.mubr.bf16.gmra.mxu0 %v6318
    %v6357 = vpop.f32.mrf.mxu0
    %v6358 = vadd.f32 %v6312, %v6357
    %v6359 = vpop.f32.mrf.mxu0
    %v6360 = vpop.f32.mrf.mxu0
    %v6361 = vpop.f32.mrf.mxu0
    %6362 = vdwg.mxu0
    %6363 = vmatprep.subr.bf16.mxu0 0
    %6364 = vmatpush1.bf16.msra.mxu0 %v6275
    %6365 = vmatprep.subr.bf16.mxu0 0
    %6366 = vmatpush1.bf16.msra.mxu0 %v1479
    %6367 = vmatprep.subr.bf16.mxu0 0
    %6368 = vmatpush1.bf16.msra.mxu0 %v1478
    %6369 = vmatprep.subr.bf16.mxu0 0
    %6370 = vmatpush1.bf16.msra.mxu0 %v1477
    %6371 = vmatprep.subr.bf16.mxu0 0
    %6372 = vmatpush1.bf16.msra.mxu0 %v1476
    %6373 = vmatprep.subr.bf16.mxu0 0
    %6374 = vmatpush1.bf16.msra.mxu0 %v1475
    %6375 = vmatprep.subr.bf16.mxu0 0
    %6376 = vmatpush1.bf16.msra.mxu0 %v1474
    %6377 = vmatprep.subr.bf16.mxu0 0
    %6378 = vmatpush1.bf16.msra.mxu0 %v1473
    %6379 = vmatprep.subr.bf16.mxu0 0
    %6380 = vmatpush2.bf16.msra.mxu0 0
    %6381 = vmatprep.subr.bf16.mxu0 0
    %6382 = vmatpush2.bf16.msra.mxu0 0
    %6383 = vmatprep.subr.bf16.mxu0 0
    %6384 = vmatpush2.bf16.msra.mxu0 0
    %6385 = vmatprep.subr.bf16.mxu0 0
    %6386 = vmatpush2.bf16.msra.mxu0 0
    %6387 = vmatprep.subr.bf16.mxu0 0
    %6388 = vmatpush2.bf16.msra.mxu0 0
    %6389 = vmatprep.subr.bf16.mxu0 0
    %6390 = vmatpush2.bf16.msra.mxu0 0
    %6391 = vmatprep.subr.bf16.mxu0 0
    %6392 = vmatpush2.bf16.msra.mxu0 0
    %6393 = vmatprep.subr.bf16.mxu0 0
    %6394 = vmatpush2.bf16.msra.mxu0 0
    %6395 = vmatprep.mubr.bf16.mxu0 0
    %6396 = vmatmul.mubr.bf16.gmra.mxu0 %v6318
    %v6397 = vpop.f32.mrf.mxu0
    %v6398 = vadd.f32 %v6358, %v6397
    %v6399 = vpop.f32.mrf.mxu0
    %v6400 = vpop.f32.mrf.mxu0
    %v6401 = vpop.f32.mrf.mxu0
    %6402 = vdwg.mxu0
    %v6403 = vld [vmem:[%s8] sm:$0x1]
    %v6405 = vlaneseq
    %v6406 = vshrl.u32 %v6405, 7
    %v6407 = vsub.s32 0, %v6406
    %v6408 = vrot.slane %v6403, %v6407
    %v6410 = vadd.f32 %v6398, %v6408
    %v6411 = vsub.f32 0.0, %v6410
    %v6412 = vmul.f32 %v6411, 1.442695
    %v6413 = vpow.pop %v6412
    %v6414 = vadd.f32 %v6413, 1.0
    %v6415 = vrcp.pop %v6414
    %v6416 = vmul.f32 1.0, %v6415
    %v6417 = vpack.c.bf16 %v6416, %v6416
    %v6418 = vunpack.c.l.bf16 %v6417
    %v6419 = vsub.f32 %v6416, %v6418
    %v6420 = vpack.c.bf16 %v6419, %v6419
    %vm6421 = vcmask 687104
    %v6423 = vsel %vm6421, %v6420, 0
    %vm6425 = vcmask 1041408
    %v6427 = vsel %vm6425, %v1535, 0
    %6429 = vmatprep.subr.bf16.mxu0 0
    %6430 = vmatpush1.bf16.msra.mxu0 0
    %6431 = vmatprep.subr.bf16.mxu0 0
    %6432 = vmatpush1.bf16.msra.mxu0 0
    %6433 = vmatprep.subr.bf16.mxu0 0
    %6434 = vmatpush1.bf16.msra.mxu0 %v6427
    %6435 = vmatprep.subr.bf16.mxu0 0
    %6436 = vmatpush1.bf16.msra.mxu0 %v1534
    %6437 = vmatprep.subr.bf16.mxu0 0
    %6438 = vmatpush1.bf16.msra.mxu0 %v1533
    %6439 = vmatprep.subr.bf16.mxu0 0
    %6440 = vmatpush1.bf16.msra.mxu0 %v1532
    %6441 = vmatprep.subr.bf16.mxu0 0
    %6442 = vmatpush1.bf16.msra.mxu0 %v1531
    %6443 = vmatprep.subr.bf16.mxu0 0
    %6444 = vmatpush1.bf16.msra.mxu0 %v1530
    %6445 = vmatprep.subr.bf16.mxu0 0
    %6446 = vmatpush2.bf16.msra.mxu0 0
    %6447 = vmatprep.subr.bf16.mxu0 0
    %6448 = vmatpush2.bf16.msra.mxu0 0
    %6449 = vmatprep.subr.bf16.mxu0 0
    %6450 = vmatpush2.bf16.msra.mxu0 0
    %6451 = vmatprep.subr.bf16.mxu0 0
    %6452 = vmatpush2.bf16.msra.mxu0 0
    %6453 = vmatprep.subr.bf16.mxu0 0
    %6454 = vmatpush2.bf16.msra.mxu0 0
    %6455 = vmatprep.subr.bf16.mxu0 0
    %6456 = vmatpush2.bf16.msra.mxu0 0
    %6457 = vmatprep.subr.bf16.mxu0 0
    %6458 = vmatpush2.bf16.msra.mxu0 0
    %6459 = vmatprep.subr.bf16.mxu0 0
    %6460 = vmatpush2.bf16.msra.mxu0 0
    %6461 = vmatprep.mubr.bf16.mxu0 0
    %6462 = vmatmul.mubr.bf16.gmra.mxu0 %v6423
    %v6463 = vpop.f32.mrf.mxu0
    %v6464 = vadd.f32 0.0, %v6463
    %v6465 = vpop.f32.mrf.mxu0
    %v6466 = vpop.f32.mrf.mxu0
    %v6467 = vpop.f32.mrf.mxu0
    %6468 = vdwg.mxu0
    %v6470 = vsel %vm6421, %v6417, 0
    %v6473 = vsel %vm6425, %v1563, 0
    %6475 = vmatprep.subr.bf16.mxu0 0
    %6476 = vmatpush1.bf16.msra.mxu0 0
    %6477 = vmatprep.subr.bf16.mxu0 0
    %6478 = vmatpush1.bf16.msra.mxu0 0
    %6479 = vmatprep.subr.bf16.mxu0 0
    %6480 = vmatpush1.bf16.msra.mxu0 %v6473
    %6481 = vmatprep.subr.bf16.mxu0 0
    %6482 = vmatpush1.bf16.msra.mxu0 %v1562
    %6483 = vmatprep.subr.bf16.mxu0 0
    %6484 = vmatpush1.bf16.msra.mxu0 %v1561
    %6485 = vmatprep.subr.bf16.mxu0 0
    %6486 = vmatpush1.bf16.msra.mxu0 %v1560
    %6487 = vmatprep.subr.bf16.mxu0 0
    %6488 = vmatpush1.bf16.msra.mxu0 %v1559
    %6489 = vmatprep.subr.bf16.mxu0 0
    %6490 = vmatpush1.bf16.msra.mxu0 %v1558
    %6491 = vmatprep.subr.bf16.mxu0 0
    %6492 = vmatpush2.bf16.msra.mxu0 0
    %6493 = vmatprep.subr.bf16.mxu0 0
    %6494 = vmatpush2.bf16.msra.mxu0 0
    %6495 = vmatprep.subr.bf16.mxu0 0
    %6496 = vmatpush2.bf16.msra.mxu0 0
    %6497 = vmatprep.subr.bf16.mxu0 0
    %6498 = vmatpush2.bf16.msra.mxu0 0
    %6499 = vmatprep.subr.bf16.mxu0 0
    %6500 = vmatpush2.bf16.msra.mxu0 0
    %6501 = vmatprep.subr.bf16.mxu0 0
    %6502 = vmatpush2.bf16.msra.mxu0 0
    %6503 = vmatprep.subr.bf16.mxu0 0
    %6504 = vmatpush2.bf16.msra.mxu0 0
    %6505 = vmatprep.subr.bf16.mxu0 0
    %6506 = vmatpush2.bf16.msra.mxu0 0
    %6507 = vmatprep.mubr.bf16.mxu0 0
    %6508 = vmatmul.mubr.bf16.gmra.mxu0 %v6470
    %v6509 = vpop.f32.mrf.mxu0
    %v6510 = vadd.f32 %v6464, %v6509
    %v6511 = vpop.f32.mrf.mxu0
    %v6512 = vpop.f32.mrf.mxu0
    %v6513 = vpop.f32.mrf.mxu0
    %6514 = vdwg.mxu0
    %6515 = vmatprep.subr.bf16.mxu0 0
    %6516 = vmatpush1.bf16.msra.mxu0 0
    %6517 = vmatprep.subr.bf16.mxu0 0
    %6518 = vmatpush1.bf16.msra.mxu0 0
    %6519 = vmatprep.subr.bf16.mxu0 0
    %6520 = vmatpush1.bf16.msra.mxu0 %v6427
    %6521 = vmatprep.subr.bf16.mxu0 0
    %6522 = vmatpush1.bf16.msra.mxu0 %v1534
    %6523 = vmatprep.subr.bf16.mxu0 0
    %6524 = vmatpush1.bf16.msra.mxu0 %v1533
    %6525 = vmatprep.subr.bf16.mxu0 0
    %6526 = vmatpush1.bf16.msra.mxu0 %v1532
    %6527 = vmatprep.subr.bf16.mxu0 0
    %6528 = vmatpush1.bf16.msra.mxu0 %v1531
    %6529 = vmatprep.subr.bf16.mxu0 0
    %6530 = vmatpush1.bf16.msra.mxu0 %v1530
    %6531 = vmatprep.subr.bf16.mxu0 0
    %6532 = vmatpush2.bf16.msra.mxu0 0
    %6533 = vmatprep.subr.bf16.mxu0 0
    %6534 = vmatpush2.bf16.msra.mxu0 0
    %6535 = vmatprep.subr.bf16.mxu0 0
    %6536 = vmatpush2.bf16.msra.mxu0 0
    %6537 = vmatprep.subr.bf16.mxu0 0
    %6538 = vmatpush2.bf16.msra.mxu0 0
    %6539 = vmatprep.subr.bf16.mxu0 0
    %6540 = vmatpush2.bf16.msra.mxu0 0
    %6541 = vmatprep.subr.bf16.mxu0 0
    %6542 = vmatpush2.bf16.msra.mxu0 0
    %6543 = vmatprep.subr.bf16.mxu0 0
    %6544 = vmatpush2.bf16.msra.mxu0 0
    %6545 = vmatprep.subr.bf16.mxu0 0
    %6546 = vmatpush2.bf16.msra.mxu0 0
    %6547 = vmatprep.mubr.bf16.mxu0 0
    %6548 = vmatmul.mubr.bf16.gmra.mxu0 %v6470
    %v6549 = vpop.f32.mrf.mxu0
    %v6550 = vadd.f32 %v6510, %v6549
    %v6551 = vpop.f32.mrf.mxu0
    %v6552 = vpop.f32.mrf.mxu0
    %v6553 = vpop.f32.mrf.mxu0
    %6554 = vdwg.mxu0
    %v6555 = vld [vmem:[%s10] sm:$0x1]
    %v6557 = vlaneseq
    %v6558 = vshrl.u32 %v6557, 7
    %v6559 = vsub.s32 0, %v6558
    %v6560 = vrot.slane %v6555, %v6559
    %v6562 = vadd.f32 %v6550, %v6560
    %6563 = vst [vmem:[#allocation2] sm:$0xff] %v6562
    // Predicated region
    $region46: #{tpu_custom_call.1} parent=1 // pred_check
      _
    $region47: #{tpu_custom_call.1} parent=1 // pred_check_branch
      %6565 = sbr.rel (0) target = $region49
    $region48: #{tpu_custom_call.1} parent=1 // pred_region
      %s6567 = ssub.s32 128, 128
      %6568 = vsyncadd [#allocation3], %s6567
      %s6570 = sshll.u32 [#allocation2], 4
      %s6571 = int_to_ptr.vmem [resolvable:$true] %s6570
      %6573 = dma.vmem_to_hbm [thread:$0]  %s6571, 128, %s11, [#allocation3]
    $region49: #{tpu_custom_call.1} parent=1 // pred_fallthru
      _
    // Predicated region
    $region50: #{tpu_custom_call.1} parent=1 // pred_check
      _
    $region51: #{tpu_custom_call.1} parent=1 // pred_check_branch
      %6575 = sbr.rel (0) target = $region53
    $region52: #{tpu_custom_call.1} parent=1 // pred_region
      %6576 = dma.done [#allocation3], 128
    $region53: #{tpu_custom_call.1} parent=1 // pred_fallthru
      _
    %6577 = vsyncpa [#allocation3], 1

</llo_original>
